<compile_context>
chip_gen: v7x
topology: tpu7x:2x2x1
jax: 0.10.0
libtpu: 0.0.40
codegen_flags: <defaults>
</compile_context>

<pallas_src>
import functools
from math import log2

import jax
import jax.numpy as jnp
from jax.experimental import pallas as pl
from jax.experimental.pallas import tpu as pltpu

LEAKY_SLOPE = 0.2
BN_EPS = 1e-5


# ----------------------------------------------------------------------------
# Pallas kernel: tiled matmul (bf16 x bf16 -> f32 acc) + per-channel affine + act
# ----------------------------------------------------------------------------
def _fused_matmul_kernel(x_ref, w_ref, scale_ref, shift_ref, o_ref, acc_ref, *, activation):
    @pl.when(pl.program_id(2) == 0)
    def _init():
        acc_ref[...] = jnp.zeros_like(acc_ref)

    acc_ref[...] += jnp.dot(x_ref[...], w_ref[...], preferred_element_type=jnp.float32)

    @pl.when(pl.program_id(2) == pl.num_programs(2) - 1)
    def _epilogue():
        y = acc_ref[...] * scale_ref[...] + shift_ref[...]
        if activation == "leaky_relu":
            y = jnp.where(y > 0, y, LEAKY_SLOPE * y)
        elif activation == "sigmoid":
            y = 1.0 / (1.0 + jnp.exp(-y))
        o_ref[...] = y.astype(o_ref.dtype)


def _round_up(x, m):
    return ((x + m - 1) // m) * m


def _choose_tile(dim, target):
    """Return (tile, padded_dim).

    tile is a 128-multiple <= target; padded_dim % tile == 0.  Prefers a tile that
    divides the 128-aligned dim exactly so no extra padding copy is needed.
    """
    aligned = _round_up(dim, 128)
    if aligned <= target:
        return aligned, aligned
    for t in range(target, 127, -128):
        if aligned % t == 0:
            return t, aligned
    return target, _round_up(aligned, target)


def fused_matmul(patches, weight, scale, shift, activation):
    """patches: (M, K) bf16, weight: (K, N) bf16, scale/shift: (N,) f32.

    Returns the (Mp, Np) bf16 result with M/N zero-padding retained (padded output
    columns are exactly zero; caller slices rows only if M was padded).
    """
    M, K = patches.shape
    K2, N = weight.shape
    assert K == K2

    tm, Mp = _choose_tile(M, 1024)
    # v7x megacore: make sure the leading "parallel" M axis has >= 2 blocks when possible.
    if Mp // tm < 2 and tm % 256 == 0:
        tm //= 2
    tn, Np = _choose_tile(N, 512)
    tk, Kp = _choose_tile(K, 512)

    if (Mp, Kp) != (M, K):
        patches = jnp.pad(patches, ((0, Mp - M), (0, Kp - K)))
    if (Kp, Np) != (K, N):
        weight = jnp.pad(weight, ((0, Kp - K), (0, Np - N)))

    scale = scale.reshape(1, N).astype(jnp.float32)
    shift = shift.reshape(1, N).astype(jnp.float32)
    if Np != N:
        scale = jnp.pad(scale, ((0, 0), (0, Np - N)), constant_values=1.0)
        shift = jnp.pad(shift, ((0, 0), (0, Np - N)))

    grid = (Mp // tm, Np // tn, Kp // tk)
    kernel = functools.partial(_fused_matmul_kernel, activation=activation)

    out = pl.pallas_call(
        kernel,
        out_shape=jax.ShapeDtypeStruct((Mp, Np), jnp.bfloat16),
        grid_spec=pltpu.PrefetchScalarGridSpec(
            num_scalar_prefetch=0,
            grid=grid,
            in_specs=[
                pl.BlockSpec((tm, tk), lambda i, j, kk: (i, kk)),
                pl.BlockSpec((tk, tn), lambda i, j, kk: (kk, j)),
                pl.BlockSpec((1, tn), lambda i, j, kk: (0, j)),
                pl.BlockSpec((1, tn), lambda i, j, kk: (0, j)),
            ],
            out_specs=pl.BlockSpec((tm, tn), lambda i, j, kk: (i, j)),
            scratch_shapes=[pltpu.VMEM((tm, tn), jnp.float32)],
        ),
        compiler_params=pltpu.CompilerParams(
            dimension_semantics=("parallel", "parallel", "arbitrary"),
            vmem_limit_bytes=48 * 1024 * 1024,
        ),
    )(patches, weight, scale, shift)

    return out


# ----------------------------------------------------------------------------
# Plain-JAX glue: channels-last (NDHWC) im2col for 3D convolution, in bf16
# ----------------------------------------------------------------------------
def im2col_3d_ndhwc(x, k, stride, pad):
    """x: (B, D, H, W, C) bf16 -> (B*Do*Ho*Wo, k^3*C) with K-order (kd, kh, kw, c)."""
    B, D, H, W, C = x.shape
    if pad:
        x = jnp.pad(x, ((0, 0), (pad, pad), (pad, pad), (pad, pad), (0, 0)))
    Do = (D + 2 * pad - k) // stride + 1
    Ho = (H + 2 * pad - k) // stride + 1
    Wo = (W + 2 * pad - k) // stride + 1
    taps = []
    for kd in range(k):
        for kh in range(k):
            for kw in range(k):
                taps.append(
                    x[:,
                      kd:kd + (Do - 1) * stride + 1:stride,
                      kh:kh + (Ho - 1) * stride + 1:stride,
                      kw:kw + (Wo - 1) * stride + 1:stride, :]
                )
    p = jnp.stack(taps, axis=4)                       # (B, Do, Ho, Wo, k^3, C)
    patches = p.reshape(B * Do * Ho * Wo, k * k * k * C)   # trailing dims merge: no relayout
    return patches, (B, Do, Ho, Wo)


def conv3d_block(x, weight, k, stride, pad, scale, shift, activation):
    """x: (B, D, H, W, Cp) bf16 (Cp may carry zero-padded channels);
    weight: (O, C_real, k, k, k) PyTorch Conv3d layout.
    Returns (B, Do, Ho, Wo, Np) bf16 with Np >= O zero-padded channels."""
    B, D, H, W, Cp = x.shape
    C_real = weight.shape[1]
    O = weight.shape[0]

    patches, (B, Do, Ho, Wo) = im2col_3d_ndhwc(x, k, stride, pad)

    # Weight to K-order (kd, kh, kw, c) with input channels zero-padded to Cp.
    w = jnp.transpose(weight, (2, 3, 4, 1, 0))        # (kd, kh, kw, C_real, O)
    if Cp != C_real:
        w = jnp.pad(w, ((0, 0), (0, 0), (0, 0), (0, Cp - C_real), (0, 0)))
    w2d = w.reshape(k * k * k * Cp, O).astype(jnp.bfloat16)

    out = fused_matmul(patches, w2d, scale, shift, activation)   # (Mp, Np) bf16
    M = B * Do * Ho * Wo
    out = out[:M]                                     # drop M padding rows (no-op when Mp == M)
    return out.reshape(B, Do, Ho, Wo, out.shape[-1])  # padded channels carried forward


# ----------------------------------------------------------------------------
# Discriminator: parameter construction + forward
# ----------------------------------------------------------------------------
def init_discriminator_params(key, img_size, num_channels, num_filters, num_extra_layers=0):
    if img_size % 16 != 0:
        raise ValueError(f"Image size has to be a multiple of 16, got {img_size}")
    layers = []  # list of dicts: weight, k, stride, pad, scale, shift, activation

    def conv_w(key, o, c, k):
        return 0.02 * jax.random.normal(key, (o, c, k, k, k), dtype=jnp.float32)

    def bn_scale_shift(key, c):
        gamma = 1.0 + 0.02 * jax.random.normal(key, (c,), dtype=jnp.float32)
        beta = jnp.zeros((c,), dtype=jnp.float32)
        # eval-mode BN with running_mean=0, running_var=1
        return gamma / jnp.sqrt(1.0 + BN_EPS), beta

    keys = iter(jax.random.split(key, 64))
    f = num_filters

    # first conv + LeakyReLU (no BN)
    layers.append(dict(weight=conv_w(next(keys), f, num_channels, 4), k=4, stride=2, pad=1,
                       scale=jnp.ones((f,), jnp.float32), shift=jnp.zeros((f,), jnp.float32),
                       activation="leaky_relu"))
    # extra layers: conv(k3,s1,p1) + BN + LeakyReLU
    for _ in range(num_extra_layers):
        s, b = bn_scale_shift(next(keys), f)
        layers.append(dict(weight=conv_w(next(keys), f, f, 3), k=3, stride=1, pad=1,
                           scale=s, shift=b, activation="leaky_relu"))
    # downsampling blocks: conv(k4,s2,p1) + BN + LeakyReLU
    n = int(1 + log2(img_size / 16))
    for _ in range(n):
        s, b = bn_scale_shift(next(keys), 2 * f)
        layers.append(dict(weight=conv_w(next(keys), 2 * f, f, 4), k=4, stride=2, pad=1,
                           scale=s, shift=b, activation="leaky_relu"))
        f *= 2
    # final conv(k4,s1,p0) + Sigmoid
    layers.append(dict(weight=conv_w(next(keys), 1, f, 4), k=4, stride=1, pad=0,
                       scale=jnp.ones((1,), jnp.float32), shift=jnp.zeros((1,), jnp.float32),
                       activation="sigmoid"))
    return layers


def discriminator_forward(layers, x):
    """x: (B, C, D, H, W) with D=H=W=img_size. Returns shape (B,) like the PyTorch module."""
    # One layout conversion + bf16 cast at the model boundary; NDHWC bf16 thereafter.
    h = jnp.transpose(x, (0, 2, 3, 4, 1)).astype(jnp.bfloat16)
    for layer in layers[:-1]:
        h = conv3d_block(h, layer["weight"], layer["k"], layer["stride"], layer["pad"],
                         layer["scale"], layer["shift"], layer["activation"])
    # Final conv: kernel size equals the remaining spatial extent (4), stride 1, pad 0,
    # single output channel -> full contraction with a lane-width-1 output; a Pallas call
    # here would be pure launch + masked-store overhead, so it is plain JAX.
    final = layers[-1]
    k = final["k"]
    assert h.shape[1] == k and h.shape[2] == k and h.shape[3] == k
    C_real = final["weight"].shape[1]
    hf = h[..., :C_real].astype(jnp.float32)          # drop zero-padded channels (tiny tensor)
    logits = jnp.einsum("bdhwc,ocdhw->bo", hf, final["weight"].astype(jnp.float32),
                        precision=jax.lax.Precision.HIGHEST)
    y = logits * final["scale"][None, :] + final["shift"][None, :]
    if final["activation"] == "sigmoid":
        y = jax.nn.sigmoid(y)
    # output is (B, 1) -> .view(-1, 1).squeeze(1) -> (B,)
    return y.reshape(-1)


# ----------------------------------------------------------------------------
# References for numerical verification
# ----------------------------------------------------------------------------
def _final_layer_ref(layers, x):
    """x: (B, C, 4, 4, 4) NCDHW."""
    final = layers[-1]
    logits = jnp.einsum("bcdhw,ocdhw->bo", x.astype(jnp.float32),
                        final["weight"].astype(jnp.float32),
                        precision=jax.lax.Precision.HIGHEST)
    y = logits * final["scale"][None, :] + final["shift"][None, :]
    return jax.nn.sigmoid(y).reshape(-1)


def discriminator_reference_bf16(layers, x):
    """Precision-matched reference: bf16 conv operands / bf16 inter-layer activations,
    f32 accumulate — same rounding points as the kernel path."""
    x = x.astype(jnp.bfloat16)
    for layer in layers[:-1]:
        y = jax.lax.conv_general_dilated(
            x.astype(jnp.bfloat16), layer["weight"].astype(jnp.bfloat16),
            window_strides=(layer["stride"],) * 3,
            padding=[(layer["pad"], layer["pad"])] * 3,
            dimension_numbers=("NCDHW", "OIDHW", "NCDHW"),
            preferred_element_type=jnp.float32,
        )
        y = y * layer["scale"][None, :, None, None, None] + layer["shift"][None, :, None, None, None]
        y = jnp.where(y > 0, y, LEAKY_SLOPE * y)
        x = y.astype(jnp.bfloat16)
    return _final_layer_ref(layers, x)


def discriminator_reference_f32(layers, x):
    """Full-f32 reference (loose sanity check only)."""
    for layer in layers[:-1]:
        y = jax.lax.conv_general_dilated(
            x, layer["weight"],
            window_strides=(layer["stride"],) * 3,
            padding=[(layer["pad"], layer["pad"])] * 3,
            dimension_numbers=("NCDHW", "OIDHW", "NCDHW"),
            precision=jax.lax.Precision.HIGHEST,
        )
        y = y * layer["scale"][None, :, None, None, None] + layer["shift"][None, :, None, None, None]
        y = jnp.where(y > 0, y, LEAKY_SLOPE * y)
        x = y
    return _final_layer_ref(layers, x)


if __name__ == "__main__":
    # Small deterministic example: img_size=16, num_channels=3, num_filters=8, 1 extra layer
    img_size, num_channels, num_filters, num_extra = 16, 3, 8, 1
    batch = 2

    key = jax.random.PRNGKey(0)
    k_params, k_x = jax.random.split(key)
    layers = init_discriminator_params(k_params, img_size, num_channels, num_filters, num_extra)
    x = jax.random.normal(k_x, (batch, num_channels, img_size, img_size, img_size), dtype=jnp.float32)

    out = jax.jit(lambda inp: discriminator_forward(layers, inp))(x)
    out = jax.block_until_ready(out)

    ref_bf16 = jax.block_until_ready(discriminator_reference_bf16(layers, x))
    ref_f32 = jax.block_until_ready(discriminator_reference_f32(layers, x))

    assert out.shape == (batch,), out.shape
    assert bool(jnp.all(jnp.isfinite(out)))
    # Tight check against the precision-matched (bf16 operand / f32 accumulate) reference.
    assert bool(jnp.allclose(out, ref_bf16, atol=5e-3, rtol=5e-3)), (out, ref_bf16)
    # Loose sanity check against the full-f32 reference.
    assert bool(jnp.allclose(out, ref_f32, atol=5e-2, rtol=5e-2)), (out, ref_f32)
    print("KERNEL_OK")
</pallas_src>

<mosaic_0001>
module attributes {stable_mosaic.version = 11 : i64} {
  func.func @_fused_matmul_kernel(%arg0: i32, %arg1: i32, %arg2: i32, %arg3: memref<512x256xbf16, #tpu.memory_space<vmem>>, %arg4: memref<256x128xbf16, #tpu.memory_space<vmem>>, %arg5: memref<1x128xf32, #tpu.memory_space<vmem>>, %arg6: memref<1x128xf32, #tpu.memory_space<vmem>>, %arg7: memref<512x128xbf16, #tpu.memory_space<vmem>>, %arg8: memref<512x128xf32, #tpu.memory_space<vmem>>) attributes {dimension_semantics = [#tpu.dimension_semantics<parallel>, #tpu.dimension_semantics<parallel>, #tpu.dimension_semantics<arbitrary>], iteration_bounds = array<i64: 2, 1, 1>, scalar_prefetch = 0 : i64, scratch_operands = 1 : i64, tpu.core_type = #tpu.core_type<tc>, window_params = [{transform_indices = @transform_0, window_bounds = array<i64: 512, 256>}, {transform_indices = @transform_1, window_bounds = array<i64: 256, 128>}, {transform_indices = @transform_2, window_bounds = array<i64: 1, 128>}, {transform_indices = @transform_3, window_bounds = array<i64: 1, 128>}, {transform_indices = @transform_4, window_bounds = array<i64: 512, 128>}]} {
    %c0_i32 = arith.constant 0 : i32
    %0 = arith.cmpi eq, %arg2, %c0_i32 : i32
    %1 = arith.extui %0 : i1 to i32
    %c0_i32_0 = arith.constant 0 : i32
    %2 = arith.cmpi ne, %1, %c0_i32_0 : i32
    scf.if %2 {
      %cst_10 = arith.constant 0.000000e+00 : f32
      %12 = vector.broadcast %cst_10 : f32 to vector<512x128xf32>
      %c0_11 = arith.constant 0 : index
      %c0_12 = arith.constant 0 : index
      %13 = vector.load %arg8[%c0_11, %c0_12] : memref<512x128xf32, #tpu.memory_space<vmem>>, vector<512x128xf32>
      tpu.vector_store %arg8[%c0_11, %c0_12], %12 {strides = array<i32>} : memref<512x128xf32, #tpu.memory_space<vmem>>, vector<512x128xf32>,
    } else {
    }
    %c0 = arith.constant 0 : index
    %c0_1 = arith.constant 0 : index
    %3 = vector.load %arg8[%c0, %c0_1] : memref<512x128xf32, #tpu.memory_space<vmem>>, vector<512x128xf32>
    %c0_2 = arith.constant 0 : index
    %c0_3 = arith.constant 0 : index
    %4 = vector.load %arg3[%c0_2, %c0_3] : memref<512x256xbf16, #tpu.memory_space<vmem>>, vector<512x256xbf16>
    %c0_4 = arith.constant 0 : index
    %c0_5 = arith.constant 0 : index
    %5 = vector.load %arg4[%c0_4, %c0_5] : memref<256x128xbf16, #tpu.memory_space<vmem>>, vector<256x128xbf16>
    %cst = arith.constant dense<0.000000e+00> : vector<512x128xf32>
    %6 = tpu.matmul %4, %5, %cst {dimension_numbers = #tpu.dot_dimension_numbers<[1], [0], [0], [1], [0, 0, 1, 1], [], []>} : vector<512x256xbf16>, vector<256x128xbf16>, vector<512x128xf32> -> vector<512x128xf32>
    %7 = arith.addf %3, %6 : vector<512x128xf32>
    %c0_6 = arith.constant 0 : index
    %c0_7 = arith.constant 0 : index
    %8 = vector.load %arg8[%c0_6, %c0_7] : memref<512x128xf32, #tpu.memory_space<vmem>>, vector<512x128xf32>
    tpu.vector_store %arg8[%c0_6, %c0_7], %7 {strides = array<i32>} : memref<512x128xf32, #tpu.memory_space<vmem>>, vector<512x128xf32>,
    %c0_i32_8 = arith.constant 0 : i32
    %9 = arith.cmpi eq, %arg2, %c0_i32_8 : i32
    %10 = arith.extui %9 : i1 to i32
    %c0_i32_9 = arith.constant 0 : i32
    %11 = arith.cmpi ne, %10, %c0_i32_9 : i32
    scf.if %11 {
      %c0_10 = arith.constant 0 : index
      %c0_11 = arith.constant 0 : index
      %12 = vector.load %arg8[%c0_10, %c0_11] : memref<512x128xf32, #tpu.memory_space<vmem>>, vector<512x128xf32>
      %c0_12 = arith.constant 0 : index
      %c0_13 = arith.constant 0 : index
      %13 = vector.load %arg5[%c0_12, %c0_13] : memref<1x128xf32, #tpu.memory_space<vmem>>, vector<1x128xf32>
      %14 = vector.broadcast %13 : vector<1x128xf32> to vector<512x128xf32>
      %15 = arith.mulf %12, %14 : vector<512x128xf32>
      %c0_14 = arith.constant 0 : index
      %c0_15 = arith.constant 0 : index
      %16 = vector.load %arg6[%c0_14, %c0_15] : memref<1x128xf32, #tpu.memory_space<vmem>>, vector<1x128xf32>
      %17 = vector.broadcast %16 : vector<1x128xf32> to vector<512x128xf32>
      %18 = arith.addf %15, %17 : vector<512x128xf32>
      %cst_16 = arith.constant 0.000000e+00 : f32
      %19 = vector.broadcast %cst_16 : f32 to vector<512x128xf32>
      %20 = arith.cmpf ogt, %18, %19 : vector<512x128xf32>
      %cst_17 = arith.constant 2.000000e-01 : f32
      %21 = vector.broadcast %cst_17 : f32 to vector<512x128xf32>
      %22 = arith.mulf %21, %18 : vector<512x128xf32>
      %23 = arith.select %20, %18, %22 : vector<512x128xi1>, vector<512x128xf32>
      %24 = arith.truncf %23 : vector<512x128xf32> to vector<512x128xbf16>
      %c0_18 = arith.constant 0 : index
      %c0_19 = arith.constant 0 : index
      %25 = vector.load %arg7[%c0_18, %c0_19] : memref<512x128xbf16, #tpu.memory_space<vmem>>, vector<512x128xbf16>
      tpu.vector_store %arg7[%c0_18, %c0_19], %24 {strides = array<i32>} : memref<512x128xbf16, #tpu.memory_space<vmem>>, vector<512x128xbf16>,
    } else {
    }
    return
  }
  func.func @transform_0(%arg0: i32, %arg1: i32, %arg2: i32) -> (i32, i32) {
    %c0_i32 = arith.constant 0 : i32
    return %arg0, %arg2 : i32, i32
  }
  func.func @transform_1(%arg0: i32, %arg1: i32, %arg2: i32) -> (i32, i32) {
    %c0_i32 = arith.constant 0 : i32
    return %arg2, %arg1 : i32, i32
  }
  func.func @transform_2(%arg0: i32, %arg1: i32, %arg2: i32) -> (i32, i32) {
    %c0_i32 = arith.constant 0 : i32
    %c0_i32_0 = arith.constant 0 : i32
    return %c0_i32, %arg1 : i32, i32
  }
  func.func @transform_3(%arg0: i32, %arg1: i32, %arg2: i32) -> (i32, i32) {
    %c0_i32 = arith.constant 0 : i32
    %c0_i32_0 = arith.constant 0 : i32
    return %c0_i32, %arg1 : i32, i32
  }
  func.func @transform_4(%arg0: i32, %arg1: i32, %arg2: i32) -> (i32, i32) {
    %c0_i32 = arith.constant 0 : i32
    return %arg0, %arg1 : i32, i32
  }
}

module attributes {stable_mosaic.version = 11 : i64} {
  func.func @_fused_matmul_kernel(%arg0: i32, %arg1: i32, %arg2: i32, %arg3: memref<512x384xbf16, #tpu.memory_space<vmem>>, %arg4: memref<384x128xbf16, #tpu.memory_space<vmem>>, %arg5: memref<1x128xf32, #tpu.memory_space<vmem>>, %arg6: memref<1x128xf32, #tpu.memory_space<vmem>>, %arg7: memref<512x128xbf16, #tpu.memory_space<vmem>>, %arg8: memref<512x128xf32, #tpu.memory_space<vmem>>) attributes {dimension_semantics = [#tpu.dimension_semantics<parallel>, #tpu.dimension_semantics<parallel>, #tpu.dimension_semantics<arbitrary>], iteration_bounds = array<i64: 2, 1, 9>, scalar_prefetch = 0 : i64, scratch_operands = 1 : i64, tpu.core_type = #tpu.core_type<tc>, window_params = [{transform_indices = @transform_0, window_bounds = array<i64: 512, 384>}, {transform_indices = @transform_1, window_bounds = array<i64: 384, 128>}, {transform_indices = @transform_2, window_bounds = array<i64: 1, 128>}, {transform_indices = @transform_3, window_bounds = array<i64: 1, 128>}, {transform_indices = @transform_4, window_bounds = array<i64: 512, 128>}]} {
    %c0_i32 = arith.constant 0 : i32
    %0 = arith.cmpi eq, %arg2, %c0_i32 : i32
    %1 = arith.extui %0 : i1 to i32
    %c0_i32_0 = arith.constant 0 : i32
    %2 = arith.cmpi ne, %1, %c0_i32_0 : i32
    scf.if %2 {
      %cst_9 = arith.constant 0.000000e+00 : f32
      %12 = vector.broadcast %cst_9 : f32 to vector<512x128xf32>
      %c0_10 = arith.constant 0 : index
      %c0_11 = arith.constant 0 : index
      %13 = vector.load %arg8[%c0_10, %c0_11] : memref<512x128xf32, #tpu.memory_space<vmem>>, vector<512x128xf32>
      tpu.vector_store %arg8[%c0_10, %c0_11], %12 {strides = array<i32>} : memref<512x128xf32, #tpu.memory_space<vmem>>, vector<512x128xf32>,
    } else {
    }
    %c0 = arith.constant 0 : index
    %c0_1 = arith.constant 0 : index
    %3 = vector.load %arg8[%c0, %c0_1] : memref<512x128xf32, #tpu.memory_space<vmem>>, vector<512x128xf32>
    %c0_2 = arith.constant 0 : index
    %c0_3 = arith.constant 0 : index
    %4 = vector.load %arg3[%c0_2, %c0_3] : memref<512x384xbf16, #tpu.memory_space<vmem>>, vector<512x384xbf16>
    %c0_4 = arith.constant 0 : index
    %c0_5 = arith.constant 0 : index
    %5 = vector.load %arg4[%c0_4, %c0_5] : memref<384x128xbf16, #tpu.memory_space<vmem>>, vector<384x128xbf16>
    %cst = arith.constant dense<0.000000e+00> : vector<512x128xf32>
    %6 = tpu.matmul %4, %5, %cst {dimension_numbers = #tpu.dot_dimension_numbers<[1], [0], [0], [1], [0, 0, 1, 1], [], []>} : vector<512x384xbf16>, vector<384x128xbf16>, vector<512x128xf32> -> vector<512x128xf32>
    %7 = arith.addf %3, %6 : vector<512x128xf32>
    %c0_6 = arith.constant 0 : index
    %c0_7 = arith.constant 0 : index
    %8 = vector.load %arg8[%c0_6, %c0_7] : memref<512x128xf32, #tpu.memory_space<vmem>>, vector<512x128xf32>
    tpu.vector_store %arg8[%c0_6, %c0_7], %7 {strides = array<i32>} : memref<512x128xf32, #tpu.memory_space<vmem>>, vector<512x128xf32>,
    %c8_i32 = arith.constant 8 : i32
    %9 = arith.cmpi eq, %arg2, %c8_i32 : i32
    %10 = arith.extui %9 : i1 to i32
    %c0_i32_8 = arith.constant 0 : i32
    %11 = arith.cmpi ne, %10, %c0_i32_8 : i32
    scf.if %11 {
      %c0_9 = arith.constant 0 : index
      %c0_10 = arith.constant 0 : index
      %12 = vector.load %arg8[%c0_9, %c0_10] : memref<512x128xf32, #tpu.memory_space<vmem>>, vector<512x128xf32>
      %c0_11 = arith.constant 0 : index
      %c0_12 = arith.constant 0 : index
      %13 = vector.load %arg5[%c0_11, %c0_12] : memref<1x128xf32, #tpu.memory_space<vmem>>, vector<1x128xf32>
      %14 = vector.broadcast %13 : vector<1x128xf32> to vector<512x128xf32>
      %15 = arith.mulf %12, %14 : vector<512x128xf32>
      %c0_13 = arith.constant 0 : index
      %c0_14 = arith.constant 0 : index
      %16 = vector.load %arg6[%c0_13, %c0_14] : memref<1x128xf32, #tpu.memory_space<vmem>>, vector<1x128xf32>
      %17 = vector.broadcast %16 : vector<1x128xf32> to vector<512x128xf32>
      %18 = arith.addf %15, %17 : vector<512x128xf32>
      %cst_15 = arith.constant 0.000000e+00 : f32
      %19 = vector.broadcast %cst_15 : f32 to vector<512x128xf32>
      %20 = arith.cmpf ogt, %18, %19 : vector<512x128xf32>
      %cst_16 = arith.constant 2.000000e-01 : f32
      %21 = vector.broadcast %cst_16 : f32 to vector<512x128xf32>
      %22 = arith.mulf %21, %18 : vector<512x128xf32>
      %23 = arith.select %20, %18, %22 : vector<512x128xi1>, vector<512x128xf32>
      %24 = arith.truncf %23 : vector<512x128xf32> to vector<512x128xbf16>
      %c0_17 = arith.constant 0 : index
      %c0_18 = arith.constant 0 : index
      %25 = vector.load %arg7[%c0_17, %c0_18] : memref<512x128xbf16, #tpu.memory_space<vmem>>, vector<512x128xbf16>
      tpu.vector_store %arg7[%c0_17, %c0_18], %24 {strides = array<i32>} : memref<512x128xbf16, #tpu.memory_space<vmem>>, vector<512x128xbf16>,
    } else {
    }
    return
  }
  func.func @transform_0(%arg0: i32, %arg1: i32, %arg2: i32) -> (i32, i32) {
    %c0_i32 = arith.constant 0 : i32
    return %arg0, %arg2 : i32, i32
  }
  func.func @transform_1(%arg0: i32, %arg1: i32, %arg2: i32) -> (i32, i32) {
    %c0_i32 = arith.constant 0 : i32
    return %arg2, %arg1 : i32, i32
  }
  func.func @transform_2(%arg0: i32, %arg1: i32, %arg2: i32) -> (i32, i32) {
    %c0_i32 = arith.constant 0 : i32
    %c0_i32_0 = arith.constant 0 : i32
    return %c0_i32, %arg1 : i32, i32
  }
  func.func @transform_3(%arg0: i32, %arg1: i32, %arg2: i32) -> (i32, i32) {
    %c0_i32 = arith.constant 0 : i32
    %c0_i32_0 = arith.constant 0 : i32
    return %c0_i32, %arg1 : i32, i32
  }
  func.func @transform_4(%arg0: i32, %arg1: i32, %arg2: i32) -> (i32, i32) {
    %c0_i32 = arith.constant 0 : i32
    return %arg0, %arg1 : i32, i32
  }
}

module attributes {stable_mosaic.version = 11 : i64} {
  func.func @_fused_matmul_kernel(%arg0: i32, %arg1: i32, %arg2: i32, %arg3: memref<128x512xbf16, #tpu.memory_space<vmem>>, %arg4: memref<512x128xbf16, #tpu.memory_space<vmem>>, %arg5: memref<1x128xf32, #tpu.memory_space<vmem>>, %arg6: memref<1x128xf32, #tpu.memory_space<vmem>>, %arg7: memref<128x128xbf16, #tpu.memory_space<vmem>>, %arg8: memref<128x128xf32, #tpu.memory_space<vmem>>) attributes {dimension_semantics = [#tpu.dimension_semantics<parallel>, #tpu.dimension_semantics<parallel>, #tpu.dimension_semantics<arbitrary>], iteration_bounds = array<i64: 1, 1, 16>, scalar_prefetch = 0 : i64, scratch_operands = 1 : i64, tpu.core_type = #tpu.core_type<tc>, window_params = [{transform_indices = @transform_0, window_bounds = array<i64: 128, 512>}, {transform_indices = @transform_1, window_bounds = array<i64: 512, 128>}, {transform_indices = @transform_2, window_bounds = array<i64: 1, 128>}, {transform_indices = @transform_3, window_bounds = array<i64: 1, 128>}, {transform_indices = @transform_4, window_bounds = array<i64: 128, 128>}]} {
    %c0_i32 = arith.constant 0 : i32
    %0 = arith.cmpi eq, %arg2, %c0_i32 : i32
    %1 = arith.extui %0 : i1 to i32
    %c0_i32_0 = arith.constant 0 : i32
    %2 = arith.cmpi ne, %1, %c0_i32_0 : i32
    scf.if %2 {
      %cst_9 = arith.constant 0.000000e+00 : f32
      %12 = vector.broadcast %cst_9 : f32 to vector<128x128xf32>
      %c0_10 = arith.constant 0 : index
      %c0_11 = arith.constant 0 : index
      %13 = vector.load %arg8[%c0_10, %c0_11] : memref<128x128xf32, #tpu.memory_space<vmem>>, vector<128x128xf32>
      tpu.vector_store %arg8[%c0_10, %c0_11], %12 {strides = array<i32>} : memref<128x128xf32, #tpu.memory_space<vmem>>, vector<128x128xf32>,
    } else {
    }
    %c0 = arith.constant 0 : index
    %c0_1 = arith.constant 0 : index
    %3 = vector.load %arg8[%c0, %c0_1] : memref<128x128xf32, #tpu.memory_space<vmem>>, vector<128x128xf32>
    %c0_2 = arith.constant 0 : index
    %c0_3 = arith.constant 0 : index
    %4 = vector.load %arg3[%c0_2, %c0_3] : memref<128x512xbf16, #tpu.memory_space<vmem>>, vector<128x512xbf16>
    %c0_4 = arith.constant 0 : index
    %c0_5 = arith.constant 0 : index
    %5 = vector.load %arg4[%c0_4, %c0_5] : memref<512x128xbf16, #tpu.memory_space<vmem>>, vector<512x128xbf16>
    %cst = arith.constant dense<0.000000e+00> : vector<128x128xf32>
    %6 = tpu.matmul %4, %5, %cst {dimension_numbers = #tpu.dot_dimension_numbers<[1], [0], [0], [1], [0, 0, 1, 1], [], []>} : vector<128x512xbf16>, vector<512x128xbf16>, vector<128x128xf32> -> vector<128x128xf32>
    %7 = arith.addf %3, %6 : vector<128x128xf32>
    %c0_6 = arith.constant 0 : index
    %c0_7 = arith.constant 0 : index
    %8 = vector.load %arg8[%c0_6, %c0_7] : memref<128x128xf32, #tpu.memory_space<vmem>>, vector<128x128xf32>
    tpu.vector_store %arg8[%c0_6, %c0_7], %7 {strides = array<i32>} : memref<128x128xf32, #tpu.memory_space<vmem>>, vector<128x128xf32>,
    %c15_i32 = arith.constant 15 : i32
    %9 = arith.cmpi eq, %arg2, %c15_i32 : i32
    %10 = arith.extui %9 : i1 to i32
    %c0_i32_8 = arith.constant 0 : i32
    %11 = arith.cmpi ne, %10, %c0_i32_8 : i32
    scf.if %11 {
      %c0_9 = arith.constant 0 : index
      %c0_10 = arith.constant 0 : index
      %12 = vector.load %arg8[%c0_9, %c0_10] : memref<128x128xf32, #tpu.memory_space<vmem>>, vector<128x128xf32>
      %c0_11 = arith.constant 0 : index
      %c0_12 = arith.constant 0 : index
      %13 = vector.load %arg5[%c0_11, %c0_12] : memref<1x128xf32, #tpu.memory_space<vmem>>, vector<1x128xf32>
      %14 = vector.broadcast %13 : vector<1x128xf32> to vector<128x128xf32>
      %15 = arith.mulf %12, %14 : vector<128x128xf32>
      %c0_13 = arith.constant 0 : index
      %c0_14 = arith.constant 0 : index
      %16 = vector.load %arg6[%c0_13, %c0_14] : memref<1x128xf32, #tpu.memory_space<vmem>>, vector<1x128xf32>
      %17 = vector.broadcast %16 : vector<1x128xf32> to vector<128x128xf32>
      %18 = arith.addf %15, %17 : vector<128x128xf32>
      %cst_15 = arith.constant 0.000000e+00 : f32
      %19 = vector.broadcast %cst_15 : f32 to vector<128x128xf32>
      %20 = arith.cmpf ogt, %18, %19 : vector<128x128xf32>
      %cst_16 = arith.constant 2.000000e-01 : f32
      %21 = vector.broadcast %cst_16 : f32 to vector<128x128xf32>
      %22 = arith.mulf %21, %18 : vector<128x128xf32>
      %23 = arith.select %20, %18, %22 : vector<128x128xi1>, vector<128x128xf32>
      %24 = arith.truncf %23 : vector<128x128xf32> to vector<128x128xbf16>
      %c0_17 = arith.constant 0 : index
      %c0_18 = arith.constant 0 : index
      %25 = vector.load %arg7[%c0_17, %c0_18] : memref<128x128xbf16, #tpu.memory_space<vmem>>, vector<128x128xbf16>
      tpu.vector_store %arg7[%c0_17, %c0_18], %24 {strides = array<i32>} : memref<128x128xbf16, #tpu.memory_space<vmem>>, vector<128x128xbf16>,
    } else {
    }
    return
  }
  func.func @transform_0(%arg0: i32, %arg1: i32, %arg2: i32) -> (i32, i32) {
    %c0_i32 = arith.constant 0 : i32
    return %arg0, %arg2 : i32, i32
  }
  func.func @transform_1(%arg0: i32, %arg1: i32, %arg2: i32) -> (i32, i32) {
    %c0_i32 = arith.constant 0 : i32
    return %arg2, %arg1 : i32, i32
  }
  func.func @transform_2(%arg0: i32, %arg1: i32, %arg2: i32) -> (i32, i32) {
    %c0_i32 = arith.constant 0 : i32
    %c0_i32_0 = arith.constant 0 : i32
    return %c0_i32, %arg1 : i32, i32
  }
  func.func @transform_3(%arg0: i32, %arg1: i32, %arg2: i32) -> (i32, i32) {
    %c0_i32 = arith.constant 0 : i32
    %c0_i32_0 = arith.constant 0 : i32
    return %c0_i32, %arg1 : i32, i32
  }
  func.func @transform_4(%arg0: i32, %arg1: i32, %arg2: i32) -> (i32, i32) {
    %c0_i32 = arith.constant 0 : i32
    return %arg0, %arg1 : i32, i32
  }
}

</mosaic_0001>

<llo_original>
// kernel: _lambda_.3
$region0: #{_lambda_.3}
  #allocation0 [shape = 'u32[]', space=smem, size = 0x4, offset = 0x4, fixed_abs, tag = 'smem constant byte address 0x4 - core index']
  #allocation1 [shape = 'u32[144,128]{1,0:T(1,128)}', space=vmem, size = 0x12000, scoped, tag = 'internal scratch']
  #allocation2 [shape = 'f32[512,128]{1,0:T(8,128)}', space=vmem, size = 0x40000, scoped, tag = 'scratch operand']
  %s0 = inlined_call_operand.vmem [shape: bf16[1024,256], index: 0, kind: input, shape index: {}]
  %s1 = inlined_call_operand.vmem [shape: bf16[256,128], index: 1, kind: input, shape index: {}]
  %s2 = inlined_call_operand.vmem [shape: f32[1,128], index: 2, kind: input, shape index: {}]
  %s3 = inlined_call_operand.vmem [shape: f32[1,128], index: 3, kind: input, shape index: {}]
  %s4 = inlined_call_operand.vmem [shape: bf16[1024,128], index: 4, kind: output, shape index: {}]
  %s5 = sld [smem:[#allocation0]]
  $region57: #{_lambda_.3} parent=0
    _
  %s7 = ssub.s32 1, %s5
  %s8 = scalar_select 0, %s7, %s5
  loop: start=0, step=1, limit=4
  $region2: #{_lambda_.3} parent=0 // loop_pre_header
    _
  $region3: #{_lambda_.3} parent=0 // loop_header
    %s10 = sphi 0, %s14
    %p11 = scmp.ge.s32.totalorder %s10, 4
    %s17 = sphi 0, %s36
    %s18 = sphi 0, %s32
    %s19 = sphi 0, %s28
    %s20 = sphi 0, %s17
    %s21 = sphi 0, %s18
    %s22 = sphi 0, %s19
    %s23 = sphi 0, %s20
    %s24 = sphi 0, %s21
    %s25 = sphi 0, %s22
    %s41 = sphi 0, %s43
    %s44 = sphi 0, %s41
    %s45 = sphi 0, %s44
    %s61 = sphi 0, %s45
    %s69 = sphi 0, %s71
    %s72 = sphi 0, %s69
    %s73 = sphi 0, %s72
    %s89 = sphi 0, %s73
    %s95 = sphi 0, %s97
    %s98 = sphi 0, %s95
    %s99 = sphi 0, %s98
    %s115 = sphi 0, %s99
    %s121 = sphi 0, %s123
    %s124 = sphi 0, %s121
    %s125 = sphi 0, %s124
    %s141 = sphi 0, %s125
    %s149 = sphi 0, %s151
    %s152 = sphi 0, %s149
    %s153 = sphi 0, %s152
    %s169 = sphi 0, %s153
  $region4: #{_lambda_.3} parent=0 // loop_header_branch
    %13 = sbr.rel (%p11) target = $region8
  $region5: #{_lambda_.3} parent=0 // loop_body
    %s15 = ssub.s32 %s10, 1
    %s16 = ssub.s32 %s10, 2
    %s26 = sadd.s32 1, %s19
    %p27 = scmp.ge.s32.totalorder %s26, 1
    %s28 = scalar_select %p27, 0, %s26
    %s29 = sadd.s32 1, %s18
    %s30 = scalar_select %p27, %s29, %s18
    %p31 = scmp.ge.s32.totalorder %s30, 1
    %s32 = scalar_select %p31, 0, %s30
    %s33 = sadd.s32 1, %s17
    %s34 = scalar_select %p31, %s33, %s17
    %p35 = scmp.ge.s32.totalorder %s34, 2
    %s36 = scalar_select %p35, 0, %s34
    %s37 = ssub.s32 %s17, %s36
    %s38 = ssub.s32 %s19, %s28
    %s39 = sor.u32 %s37, %s38
    %p40 = scmp.eq.s32.totalorder %s39, 0
    %s42 = sadd.s32 %s41, 1
    %s43 = scalar_select %p40, %s41, %s42
    %p46 = pneg %p40
    %p47 = scmp.eq.s32.totalorder %s10, 1
    %p48 = por %p46, %p47
    %p49 = scmp.ne.s32.totalorder %s41, %s44
    %p50 = scmp.eq.s32.totalorder %s10, 0
    %p51 = por %p49, %p50
    %p52 = scmp.ne.s32.totalorder %s41, %s44
    %p53 = scmp.eq.s32.totalorder %s15, 1
    %p54 = por %p52, %p53
    %p55 = scmp.ne.s32.totalorder %s44, %s45
    %p56 = scmp.eq.s32.totalorder %s15, 0
    %p57 = por %p55, %p56
    %p58 = scmp.ne.s32.totalorder %s44, %s45
    %p59 = scmp.eq.s32.totalorder %s16, 1
    %p60 = por %p58, %p59
    %p62 = scmp.ne.s32.totalorder %s45, %s61
    %p63 = scmp.eq.s32.totalorder %s16, 0
    %p64 = por %p62, %p63
    %s65 = ssub.s32 %s19, %s28
    %s66 = ssub.s32 %s18, %s32
    %s67 = sor.u32 %s65, %s66
    %p68 = scmp.eq.s32.totalorder %s67, 0
    %s70 = sadd.s32 %s69, 1
    %s71 = scalar_select %p68, %s69, %s70
    %p74 = pneg %p68
    %p75 = scmp.eq.s32.totalorder %s10, 1
    %p76 = por %p74, %p75
    %p77 = scmp.ne.s32.totalorder %s69, %s72
    %p78 = scmp.eq.s32.totalorder %s10, 0
    %p79 = por %p77, %p78
    %p80 = scmp.ne.s32.totalorder %s69, %s72
    %p81 = scmp.eq.s32.totalorder %s15, 1
    %p82 = por %p80, %p81
    %p83 = scmp.ne.s32.totalorder %s72, %s73
    %p84 = scmp.eq.s32.totalorder %s15, 0
    %p85 = por %p83, %p84
    %p86 = scmp.ne.s32.totalorder %s72, %s73
    %p87 = scmp.eq.s32.totalorder %s16, 1
    %p88 = por %p86, %p87
    %p90 = scmp.ne.s32.totalorder %s73, %s89
    %p91 = scmp.eq.s32.totalorder %s16, 0
    %p92 = por %p90, %p91
    %s93 = ssub.s32 %s18, %s32
    %p94 = scmp.eq.s32.totalorder %s93, 0
    %s96 = sadd.s32 %s95, 1
    %s97 = scalar_select %p94, %s95, %s96
    %p100 = pneg %p94
    %p101 = scmp.eq.s32.totalorder %s10, 1
    %p102 = por %p100, %p101
    %p103 = scmp.ne.s32.totalorder %s95, %s98
    %p104 = scmp.eq.s32.totalorder %s10, 0
    %p105 = por %p103, %p104
    %p106 = scmp.ne.s32.totalorder %s95, %s98
    %p107 = scmp.eq.s32.totalorder %s15, 1
    %p108 = por %p106, %p107
    %p109 = scmp.ne.s32.totalorder %s98, %s99
    %p110 = scmp.eq.s32.totalorder %s15, 0
    %p111 = por %p109, %p110
    %p112 = scmp.ne.s32.totalorder %s98, %s99
    %p113 = scmp.eq.s32.totalorder %s16, 1
    %p114 = por %p112, %p113
    %p116 = scmp.ne.s32.totalorder %s99, %s115
    %p117 = scmp.eq.s32.totalorder %s16, 0
    %p118 = por %p116, %p117
    %s119 = ssub.s32 %s18, %s32
    %p120 = scmp.eq.s32.totalorder %s119, 0
    %s122 = sadd.s32 %s121, 1
    %s123 = scalar_select %p120, %s121, %s122
    %p126 = pneg %p120
    %p127 = scmp.eq.s32.totalorder %s10, 1
    %p128 = por %p126, %p127
    %p129 = scmp.ne.s32.totalorder %s121, %s124
    %p130 = scmp.eq.s32.totalorder %s10, 0
    %p131 = por %p129, %p130
    %p132 = scmp.ne.s32.totalorder %s121, %s124
    %p133 = scmp.eq.s32.totalorder %s15, 1
    %p134 = por %p132, %p133
    %p135 = scmp.ne.s32.totalorder %s124, %s125
    %p136 = scmp.eq.s32.totalorder %s15, 0
    %p137 = por %p135, %p136
    %p138 = scmp.ne.s32.totalorder %s124, %s125
    %p139 = scmp.eq.s32.totalorder %s16, 1
    %p140 = por %p138, %p139
    %p142 = scmp.ne.s32.totalorder %s125, %s141
    %p143 = scmp.eq.s32.totalorder %s16, 0
    %p144 = por %p142, %p143
    %s145 = ssub.s32 %s17, %s36
    %s146 = ssub.s32 %s18, %s32
    %s147 = sor.u32 %s145, %s146
    %p148 = scmp.eq.s32.totalorder %s147, 0
    %s150 = sadd.s32 %s149, 1
    %s151 = scalar_select %p148, %s149, %s150
    %p154 = pneg %p148
    %p155 = scmp.eq.s32.totalorder %s10, 1
    %p156 = por %p154, %p155
    %p157 = scmp.ne.s32.totalorder %s149, %s152
    %p158 = scmp.eq.s32.totalorder %s10, 0
    %p159 = por %p157, %p158
    %p160 = scmp.ne.s32.totalorder %s149, %s152
    %p161 = scmp.eq.s32.totalorder %s15, 1
    %p162 = por %p160, %p161
    %p163 = scmp.ne.s32.totalorder %s152, %s153
    %p164 = scmp.eq.s32.totalorder %s15, 0
    %p165 = por %p163, %p164
    %p166 = scmp.ne.s32.totalorder %s152, %s153
    %p167 = scmp.eq.s32.totalorder %s16, 1
    %p168 = por %p166, %p167
    %p170 = scmp.ne.s32.totalorder %s153, %s169
    %p171 = scmp.eq.s32.totalorder %s16, 0
    %p172 = por %p170, %p171
    %p173 = scmp.le.s32.totalorder 1, %s10
    %p174 = scmp.lt.s32.totalorder %s10, 3
    %p175 = pnand %p173, %p174
    %p176 = pneg %p175
    // Predicated region
    $region9: #{_lambda_.3} parent=5 // pred_check
      _
    $region10: #{_lambda_.3} parent=5 // pred_check_branch
      %178 = sbr.rel (%p175) target = $region12
    $region11: #{_lambda_.3} parent=5 // pred_region
      %s179 = ssub.s32 %s10, 1
      // Predicated region
      $region13: #{_lambda_.3} parent=11 // pred_check
        %p180 = pneg %p85
      $region14: #{_lambda_.3} parent=11 // pred_check_branch
        %182 = sbr.rel (%p180) target = $region16
      $region15: #{_lambda_.3} parent=11 // pred_region
        %s183 = smul.u32 32, %s22
        %p184 = scmp.lt.s32.totalorder %s183, 31
        %s185 = scalar_select %p184, %s183, 31
        %p186 = scmp.lt.s32.totalorder %s21, 0
        %s187 = scalar_select %p186, %s21, 0
        %s188 = sadd.s32 %s187, %s185
        %s189 = smul.addr %s188, 4
        %s190 = scalar_lea.vmem %s1, %s189
        %s191 = smul.u32 32, %s22
      $region16: #{_lambda_.3} parent=11 // pred_fallthru
        _
      // Predicated region
      $region17: #{_lambda_.3} parent=11 // pred_check
        %p192 = pneg %p111
      $region18: #{_lambda_.3} parent=11 // pred_check_branch
        %194 = sbr.rel (%p192) target = $region20
      $region19: #{_lambda_.3} parent=11 // pred_region
        %p195 = scmp.lt.s32.totalorder %s21, 0
        %s196 = scalar_select %p195, %s21, 0
        %s197 = scalar_lea.vmem %s2, %s196
      $region20: #{_lambda_.3} parent=11 // pred_fallthru
        _
      // Predicated region
      $region21: #{_lambda_.3} parent=11 // pred_check
        %p198 = pneg %p137
      $region22: #{_lambda_.3} parent=11 // pred_check_branch
        %200 = sbr.rel (%p198) target = $region24
      $region23: #{_lambda_.3} parent=11 // pred_region
        %p201 = scmp.lt.s32.totalorder %s21, 0
        %s202 = scalar_select %p201, %s21, 0
        %s203 = scalar_lea.vmem %s3, %s202
      $region24: #{_lambda_.3} parent=11 // pred_fallthru
        _
    $region12: #{_lambda_.3} parent=5 // pred_fallthru
      _
    %p204 = scmp.lt.s32.totalorder %s10, 2
    // Predicated region
    $region25: #{_lambda_.3} parent=5 // pred_check
      %p205 = pneg %p204
    $region26: #{_lambda_.3} parent=5 // pred_check_branch
      %207 = sbr.rel (%p205) target = $region28
    $region27: #{_lambda_.3} parent=5 // pred_region
      // Predicated region
      $region29: #{_lambda_.3} parent=27 // pred_check
        %p208 = pneg %p51
      $region30: #{_lambda_.3} parent=27 // pred_check_branch
        %210 = sbr.rel (%p208) target = $region32
      $region31: #{_lambda_.3} parent=27 // pred_region
        %s211 = smul.u32 64, %s17
        %s212 = smul.u32 2, %s19
        %p213 = scmp.lt.s32.totalorder %s211, 127
        %s214 = scalar_select %p213, %s211, 127
        %p215 = scmp.lt.s32.totalorder %s212, 1
        %s216 = scalar_select %p215, %s212, 1
        %s217 = smul.addr %s214, 2
        %s218 = sadd.s32 %s216, %s217
        %s219 = smul.addr %s218, 4
        %s220 = scalar_lea.vmem %s0, %s219
        %s221 = smul.u32 64, %s17
        %s222 = smul.u32 2, %s19
      $region32: #{_lambda_.3} parent=27 // pred_fallthru
        _
    $region28: #{_lambda_.3} parent=5 // pred_fallthru
      _
    %p223 = scmp.le.s32.totalorder 1, %s10
    %p224 = scmp.lt.s32.totalorder %s10, 3
    %p225 = pnand %p223, %p224
    %p226 = pneg %p225
    // Predicated region
    $region33: #{_lambda_.3} parent=5 // pred_check
      _
    $region34: #{_lambda_.3} parent=5 // pred_check_branch
      %228 = sbr.rel (%p225) target = $region36
    $region35: #{_lambda_.3} parent=5 // pred_region
      %s229 = ssub.s32 %s10, 1
      %s230 = smul.u32 64, %s20
      %s231 = smul.u32 2, %s22
      %p232 = scmp.lt.s32.totalorder %s230, 127
      %s233 = scalar_select %p232, %s230, 127
      %p234 = scmp.lt.s32.totalorder %s231, 1
      %s235 = scalar_select %p234, %s231, 1
      %s236 = smul.addr %s233, 2
      %s237 = sadd.s32 %s235, %s236
      %s238 = smul.addr %s237, 4
      %s239 = scalar_lea.vmem %s0, %s238
      %p240 = pneg %p57
      %p241 = pneg %p54
      %s242 = smul.u32 32, %s22
      %p243 = scmp.lt.s32.totalorder %s242, 31
      %s244 = scalar_select %p243, %s242, 31
      %p245 = scmp.lt.s32.totalorder %s21, 0
      %s246 = scalar_select %p245, %s21, 0
      %s247 = sadd.s32 %s246, %s244
      %s248 = smul.addr %s247, 4
      %s249 = scalar_lea.vmem %s1, %s248
      %p250 = pneg %p85
      %p251 = pneg %p82
      %p252 = scmp.lt.s32.totalorder %s21, 0
      %s253 = scalar_select %p252, %s21, 0
      %s254 = scalar_lea.vmem %s2, %s253
      %p255 = pneg %p111
      %p256 = pneg %p108
      %p257 = scmp.lt.s32.totalorder %s21, 0
      %s258 = scalar_select %p257, %s21, 0
      %s259 = scalar_lea.vmem %s3, %s258
      %p260 = pneg %p137
      %p261 = pneg %p134
      %p262 = pneg %p165
      %p263 = pneg %p162
      %s264 = smul.u32 64, %s20
      %p265 = scmp.lt.s32.totalorder %s264, 127
      %s266 = scalar_select %p265, %s264, 127
      %p267 = scmp.lt.s32.totalorder %s21, 0
      %s268 = scalar_select %p267, %s21, 0
      %s269 = sadd.s32 %s268, %s266
      %s270 = smul.addr %s269, 4
      %s271 = scalar_lea.vmem %s4, %s270
      %s272 = smul.u32 64, %s20
      %s273 = smul.u32 2, %s22
      %p274 = scmp.lt.s32.totalorder %s272, 127
      %s275 = scalar_select %p274, %s272, 127
      %p276 = scmp.lt.s32.totalorder %s273, 1
      %s277 = scalar_select %p276, %s273, 1
      %s278 = smul.addr %s275, 2
      %s279 = sadd.s32 %s277, %s278
      %s280 = smul.addr %s279, 4
      %s281 = scalar_lea.vmem %s0, %s280
      %s282 = smul.u32 64, %s20
      %s283 = smul.u32 2, %s22
      %s284 = smul.u32 32, %s22
      %p285 = scmp.lt.s32.totalorder %s284, 31
      %s286 = scalar_select %p285, %s284, 31
      %p287 = scmp.lt.s32.totalorder %s21, 0
      %s288 = scalar_select %p287, %s21, 0
      %s289 = sadd.s32 %s288, %s286
      %s290 = smul.addr %s289, 4
      %s291 = scalar_lea.vmem %s1, %s290
      %s292 = smul.u32 32, %s22
      %p293 = scmp.lt.s32.totalorder %s21, 0
      %s294 = scalar_select %p293, %s21, 0
      %s295 = scalar_lea.vmem %s2, %s294
      %p296 = scmp.lt.s32.totalorder %s21, 0
      %s297 = scalar_select %p296, %s21, 0
      %s298 = scalar_lea.vmem %s3, %s297
      %s299 = smul.u32 64, %s20
      %p300 = scmp.lt.s32.totalorder %s299, 127
      %s301 = scalar_select %p300, %s299, 127
      %p302 = scmp.lt.s32.totalorder %s21, 0
      %s303 = scalar_select %p302, %s21, 0
      %s304 = sadd.s32 %s303, %s301
      %s305 = smul.addr %s304, 4
      %s306 = scalar_lea.vmem %s4, %s305
      %s307 = smul.u32 64, %s20
      %p309 = scmp.eq.s32.totalorder %s22, 0
      // Predicated region
      $region37: #{_lambda_.3} parent=35 // pred_check
        %p310 = pneg %p309
      $region38: #{_lambda_.3} parent=35 // pred_check_branch
        %312 = sbr.rel (%p310) target = $region40
      $region39: #{_lambda_.3} parent=35 // pred_region
        %313 = vst [vmem:[#allocation2] sm:$0xff] 0.0
        %314 = vst [vmem:[#allocation2 + $0x8] sm:$0xff] 0.0
        %315 = vst [vmem:[#allocation2 + $0x10] sm:$0xff] 0.0
        %316 = vst [vmem:[#allocation2 + $0x18] sm:$0xff] 0.0
        %317 = vst [vmem:[#allocation2 + $0x20] sm:$0xff] 0.0
        %318 = vst [vmem:[#allocation2 + $0x28] sm:$0xff] 0.0
        %319 = vst [vmem:[#allocation2 + $0x30] sm:$0xff] 0.0
        %320 = vst [vmem:[#allocation2 + $0x38] sm:$0xff] 0.0
        %321 = vst [vmem:[#allocation2 + $0x40] sm:$0xff] 0.0
        %322 = vst [vmem:[#allocation2 + $0x48] sm:$0xff] 0.0
        %323 = vst [vmem:[#allocation2 + $0x50] sm:$0xff] 0.0
        %324 = vst [vmem:[#allocation2 + $0x58] sm:$0xff] 0.0
        %325 = vst [vmem:[#allocation2 + $0x60] sm:$0xff] 0.0
        %326 = vst [vmem:[#allocation2 + $0x68] sm:$0xff] 0.0
        %327 = vst [vmem:[#allocation2 + $0x70] sm:$0xff] 0.0
        %328 = vst [vmem:[#allocation2 + $0x78] sm:$0xff] 0.0
        %329 = vst [vmem:[#allocation2 + $0x80] sm:$0xff] 0.0
        %330 = vst [vmem:[#allocation2 + $0x88] sm:$0xff] 0.0
        %331 = vst [vmem:[#allocation2 + $0x90] sm:$0xff] 0.0
        %332 = vst [vmem:[#allocation2 + $0x98] sm:$0xff] 0.0
        %333 = vst [vmem:[#allocation2 + $0xa0] sm:$0xff] 0.0
        %334 = vst [vmem:[#allocation2 + $0xa8] sm:$0xff] 0.0
        %335 = vst [vmem:[#allocation2 + $0xb0] sm:$0xff] 0.0
        %336 = vst [vmem:[#allocation2 + $0xb8] sm:$0xff] 0.0
        %337 = vst [vmem:[#allocation2 + $0xc0] sm:$0xff] 0.0
        %338 = vst [vmem:[#allocation2 + $0xc8] sm:$0xff] 0.0
        %339 = vst [vmem:[#allocation2 + $0xd0] sm:$0xff] 0.0
        %340 = vst [vmem:[#allocation2 + $0xd8] sm:$0xff] 0.0
        %341 = vst [vmem:[#allocation2 + $0xe0] sm:$0xff] 0.0
        %342 = vst [vmem:[#allocation2 + $0xe8] sm:$0xff] 0.0
        %343 = vst [vmem:[#allocation2 + $0xf0] sm:$0xff] 0.0
        %344 = vst [vmem:[#allocation2 + $0xf8] sm:$0xff] 0.0
        %345 = vst [vmem:[#allocation2 + $0x100] sm:$0xff] 0.0
        %346 = vst [vmem:[#allocation2 + $0x108] sm:$0xff] 0.0
        %347 = vst [vmem:[#allocation2 + $0x110] sm:$0xff] 0.0
        %348 = vst [vmem:[#allocation2 + $0x118] sm:$0xff] 0.0
        %349 = vst [vmem:[#allocation2 + $0x120] sm:$0xff] 0.0
        %350 = vst [vmem:[#allocation2 + $0x128] sm:$0xff] 0.0
        %351 = vst [vmem:[#allocation2 + $0x130] sm:$0xff] 0.0
        %352 = vst [vmem:[#allocation2 + $0x138] sm:$0xff] 0.0
        %353 = vst [vmem:[#allocation2 + $0x140] sm:$0xff] 0.0
        %354 = vst [vmem:[#allocation2 + $0x148] sm:$0xff] 0.0
        %355 = vst [vmem:[#allocation2 + $0x150] sm:$0xff] 0.0
        %356 = vst [vmem:[#allocation2 + $0x158] sm:$0xff] 0.0
        %357 = vst [vmem:[#allocation2 + $0x160] sm:$0xff] 0.0
        %358 = vst [vmem:[#allocation2 + $0x168] sm:$0xff] 0.0
        %359 = vst [vmem:[#allocation2 + $0x170] sm:$0xff] 0.0
        %360 = vst [vmem:[#allocation2 + $0x178] sm:$0xff] 0.0
        %361 = vst [vmem:[#allocation2 + $0x180] sm:$0xff] 0.0
        %362 = vst [vmem:[#allocation2 + $0x188] sm:$0xff] 0.0
        %363 = vst [vmem:[#allocation2 + $0x190] sm:$0xff] 0.0
        %364 = vst [vmem:[#allocation2 + $0x198] sm:$0xff] 0.0
        %365 = vst [vmem:[#allocation2 + $0x1a0] sm:$0xff] 0.0
        %366 = vst [vmem:[#allocation2 + $0x1a8] sm:$0xff] 0.0
        %367 = vst [vmem:[#allocation2 + $0x1b0] sm:$0xff] 0.0
        %368 = vst [vmem:[#allocation2 + $0x1b8] sm:$0xff] 0.0
        %369 = vst [vmem:[#allocation2 + $0x1c0] sm:$0xff] 0.0
        %370 = vst [vmem:[#allocation2 + $0x1c8] sm:$0xff] 0.0
        %371 = vst [vmem:[#allocation2 + $0x1d0] sm:$0xff] 0.0
        %372 = vst [vmem:[#allocation2 + $0x1d8] sm:$0xff] 0.0
        %373 = vst [vmem:[#allocation2 + $0x1e0] sm:$0xff] 0.0
        %374 = vst [vmem:[#allocation2 + $0x1e8] sm:$0xff] 0.0
        %375 = vst [vmem:[#allocation2 + $0x1f0] sm:$0xff] 0.0
        %376 = vst [vmem:[#allocation2 + $0x1f8] sm:$0xff] 0.0
      $region40: #{_lambda_.3} parent=35 // pred_fallthru
        _
      %v377 = vld [vmem:[#allocation2] sm:$0xff]
      %v378 = vld [vmem:[#allocation2 + $0x8] sm:$0xff]
      %v379 = vld [vmem:[#allocation2 + $0x10] sm:$0xff]
      %v380 = vld [vmem:[#allocation2 + $0x18] sm:$0xff]
      %v381 = vld [vmem:[#allocation2 + $0x20] sm:$0xff]
      %v382 = vld [vmem:[#allocation2 + $0x28] sm:$0xff]
      %v383 = vld [vmem:[#allocation2 + $0x30] sm:$0xff]
      %v384 = vld [vmem:[#allocation2 + $0x38] sm:$0xff]
      %v385 = vld [vmem:[#allocation2 + $0x40] sm:$0xff]
      %v386 = vld [vmem:[#allocation2 + $0x48] sm:$0xff]
      %v387 = vld [vmem:[#allocation2 + $0x50] sm:$0xff]
      %v388 = vld [vmem:[#allocation2 + $0x58] sm:$0xff]
      %v389 = vld [vmem:[#allocation2 + $0x60] sm:$0xff]
      %v390 = vld [vmem:[#allocation2 + $0x68] sm:$0xff]
      %v391 = vld [vmem:[#allocation2 + $0x70] sm:$0xff]
      %v392 = vld [vmem:[#allocation2 + $0x78] sm:$0xff]
      %v393 = vld [vmem:[#allocation2 + $0x80] sm:$0xff]
      %v394 = vld [vmem:[#allocation2 + $0x88] sm:$0xff]
      %v395 = vld [vmem:[#allocation2 + $0x90] sm:$0xff]
      %v396 = vld [vmem:[#allocation2 + $0x98] sm:$0xff]
      %v397 = vld [vmem:[#allocation2 + $0xa0] sm:$0xff]
      %v398 = vld [vmem:[#allocation2 + $0xa8] sm:$0xff]
      %v399 = vld [vmem:[#allocation2 + $0xb0] sm:$0xff]
      %v400 = vld [vmem:[#allocation2 + $0xb8] sm:$0xff]
      %v401 = vld [vmem:[#allocation2 + $0xc0] sm:$0xff]
      %v402 = vld [vmem:[#allocation2 + $0xc8] sm:$0xff]
      %v403 = vld [vmem:[#allocation2 + $0xd0] sm:$0xff]
      %v404 = vld [vmem:[#allocation2 + $0xd8] sm:$0xff]
      %v405 = vld [vmem:[#allocation2 + $0xe0] sm:$0xff]
      %v406 = vld [vmem:[#allocation2 + $0xe8] sm:$0xff]
      %v407 = vld [vmem:[#allocation2 + $0xf0] sm:$0xff]
      %v408 = vld [vmem:[#allocation2 + $0xf8] sm:$0xff]
      %v409 = vld [vmem:[#allocation2 + $0x100] sm:$0xff]
      %v410 = vld [vmem:[#allocation2 + $0x108] sm:$0xff]
      %v411 = vld [vmem:[#allocation2 + $0x110] sm:$0xff]
      %v412 = vld [vmem:[#allocation2 + $0x118] sm:$0xff]
      %v413 = vld [vmem:[#allocation2 + $0x120] sm:$0xff]
      %v414 = vld [vmem:[#allocation2 + $0x128] sm:$0xff]
      %v415 = vld [vmem:[#allocation2 + $0x130] sm:$0xff]
      %v416 = vld [vmem:[#allocation2 + $0x138] sm:$0xff]
      %v417 = vld [vmem:[#allocation2 + $0x140] sm:$0xff]
      %v418 = vld [vmem:[#allocation2 + $0x148] sm:$0xff]
      %v419 = vld [vmem:[#allocation2 + $0x150] sm:$0xff]
      %v420 = vld [vmem:[#allocation2 + $0x158] sm:$0xff]
      %v421 = vld [vmem:[#allocation2 + $0x160] sm:$0xff]
      %v422 = vld [vmem:[#allocation2 + $0x168] sm:$0xff]
      %v423 = vld [vmem:[#allocation2 + $0x170] sm:$0xff]
      %v424 = vld [vmem:[#allocation2 + $0x178] sm:$0xff]
      %v425 = vld [vmem:[#allocation2 + $0x180] sm:$0xff]
      %v426 = vld [vmem:[#allocation2 + $0x188] sm:$0xff]
      %v427 = vld [vmem:[#allocation2 + $0x190] sm:$0xff]
      %v428 = vld [vmem:[#allocation2 + $0x198] sm:$0xff]
      %v429 = vld [vmem:[#allocation2 + $0x1a0] sm:$0xff]
      %v430 = vld [vmem:[#allocation2 + $0x1a8] sm:$0xff]
      %v431 = vld [vmem:[#allocation2 + $0x1b0] sm:$0xff]
      %v432 = vld [vmem:[#allocation2 + $0x1b8] sm:$0xff]
      %v433 = vld [vmem:[#allocation2 + $0x1c0] sm:$0xff]
      %v434 = vld [vmem:[#allocation2 + $0x1c8] sm:$0xff]
      %v435 = vld [vmem:[#allocation2 + $0x1d0] sm:$0xff]
      %v436 = vld [vmem:[#allocation2 + $0x1d8] sm:$0xff]
      %v437 = vld [vmem:[#allocation2 + $0x1e0] sm:$0xff]
      %v438 = vld [vmem:[#allocation2 + $0x1e8] sm:$0xff]
      %v439 = vld [vmem:[#allocation2 + $0x1f0] sm:$0xff]
      %v440 = vld [vmem:[#allocation2 + $0x1f8] sm:$0xff]
      %v441 = vld [vmem:[%s281] sm:$0xff]
      %v442 = vld [vmem:[%s281 + $0x8] sm:$0xff]
      %v443 = vld [vmem:[%s281 + $0x10] sm:$0xff]
      %v444 = vld [vmem:[%s281 + $0x18] sm:$0xff]
      %v445 = vld [vmem:[%s281 + $0x20] sm:$0xff]
      %v446 = vld [vmem:[%s281 + $0x28] sm:$0xff]
      %v447 = vld [vmem:[%s281 + $0x30] sm:$0xff]
      %v448 = vld [vmem:[%s281 + $0x38] sm:$0xff]
      %v449 = vld [vmem:[%s281 + $0x40] sm:$0xff]
      %v450 = vld [vmem:[%s281 + $0x48] sm:$0xff]
      %v451 = vld [vmem:[%s281 + $0x50] sm:$0xff]
      %v452 = vld [vmem:[%s281 + $0x58] sm:$0xff]
      %v453 = vld [vmem:[%s281 + $0x60] sm:$0xff]
      %v454 = vld [vmem:[%s281 + $0x68] sm:$0xff]
      %v455 = vld [vmem:[%s281 + $0x70] sm:$0xff]
      %v456 = vld [vmem:[%s281 + $0x78] sm:$0xff]
      %v457 = vld [vmem:[%s281 + $0x80] sm:$0xff]
      %v458 = vld [vmem:[%s281 + $0x88] sm:$0xff]
      %v459 = vld [vmem:[%s281 + $0x90] sm:$0xff]
      %v460 = vld [vmem:[%s281 + $0x98] sm:$0xff]
      %v461 = vld [vmem:[%s281 + $0xa0] sm:$0xff]
      %v462 = vld [vmem:[%s281 + $0xa8] sm:$0xff]
      %v463 = vld [vmem:[%s281 + $0xb0] sm:$0xff]
      %v464 = vld [vmem:[%s281 + $0xb8] sm:$0xff]
      %v465 = vld [vmem:[%s281 + $0xc0] sm:$0xff]
      %v466 = vld [vmem:[%s281 + $0xc8] sm:$0xff]
      %v467 = vld [vmem:[%s281 + $0xd0] sm:$0xff]
      %v468 = vld [vmem:[%s281 + $0xd8] sm:$0xff]
      %v469 = vld [vmem:[%s281 + $0xe0] sm:$0xff]
      %v470 = vld [vmem:[%s281 + $0xe8] sm:$0xff]
      %v471 = vld [vmem:[%s281 + $0xf0] sm:$0xff]
      %v472 = vld [vmem:[%s281 + $0xf8] sm:$0xff]
      %v473 = vld [vmem:[%s281 + $0x100] sm:$0xff]
      %v474 = vld [vmem:[%s281 + $0x108] sm:$0xff]
      %v475 = vld [vmem:[%s281 + $0x110] sm:$0xff]
      %v476 = vld [vmem:[%s281 + $0x118] sm:$0xff]
      %v477 = vld [vmem:[%s281 + $0x120] sm:$0xff]
      %v478 = vld [vmem:[%s281 + $0x128] sm:$0xff]
      %v479 = vld [vmem:[%s281 + $0x130] sm:$0xff]
      %v480 = vld [vmem:[%s281 + $0x138] sm:$0xff]
      %v481 = vld [vmem:[%s281 + $0x140] sm:$0xff]
      %v482 = vld [vmem:[%s281 + $0x148] sm:$0xff]
      %v483 = vld [vmem:[%s281 + $0x150] sm:$0xff]
      %v484 = vld [vmem:[%s281 + $0x158] sm:$0xff]
      %v485 = vld [vmem:[%s281 + $0x160] sm:$0xff]
      %v486 = vld [vmem:[%s281 + $0x168] sm:$0xff]
      %v487 = vld [vmem:[%s281 + $0x170] sm:$0xff]
      %v488 = vld [vmem:[%s281 + $0x178] sm:$0xff]
      %v489 = vld [vmem:[%s281 + $0x180] sm:$0xff]
      %v490 = vld [vmem:[%s281 + $0x188] sm:$0xff]
      %v491 = vld [vmem:[%s281 + $0x190] sm:$0xff]
      %v492 = vld [vmem:[%s281 + $0x198] sm:$0xff]
      %v493 = vld [vmem:[%s281 + $0x1a0] sm:$0xff]
      %v494 = vld [vmem:[%s281 + $0x1a8] sm:$0xff]
      %v495 = vld [vmem:[%s281 + $0x1b0] sm:$0xff]
      %v496 = vld [vmem:[%s281 + $0x1b8] sm:$0xff]
      %v497 = vld [vmem:[%s281 + $0x1c0] sm:$0xff]
      %v498 = vld [vmem:[%s281 + $0x1c8] sm:$0xff]
      %v499 = vld [vmem:[%s281 + $0x1d0] sm:$0xff]
      %v500 = vld [vmem:[%s281 + $0x1d8] sm:$0xff]
      %v501 = vld [vmem:[%s281 + $0x1e0] sm:$0xff]
      %v502 = vld [vmem:[%s281 + $0x1e8] sm:$0xff]
      %v503 = vld [vmem:[%s281 + $0x1f0] sm:$0xff]
      %v504 = vld [vmem:[%s281 + $0x1f8] sm:$0xff]
      %v505 = vld [vmem:[%s291] sm:$0xf]
      %v506 = vld [vmem:[%s291 + $0x4] sm:$0xf]
      %v507 = vld [vmem:[%s291 + $0x8] sm:$0xf]
      %v508 = vld [vmem:[%s291 + $0xc] sm:$0xf]
      %v509 = vld [vmem:[%s291 + $0x10] sm:$0xf]
      %v510 = vld [vmem:[%s291 + $0x14] sm:$0xf]
      %v511 = vld [vmem:[%s291 + $0x18] sm:$0xf]
      %v512 = vld [vmem:[%s291 + $0x1c] sm:$0xf]
      %v513 = vld [vmem:[%s291 + $0x20] sm:$0xf]
      %v514 = vld [vmem:[%s291 + $0x24] sm:$0xf]
      %v515 = vld [vmem:[%s291 + $0x28] sm:$0xf]
      %v516 = vld [vmem:[%s291 + $0x2c] sm:$0xf]
      %v517 = vld [vmem:[%s291 + $0x30] sm:$0xf]
      %v518 = vld [vmem:[%s291 + $0x34] sm:$0xf]
      %v519 = vld [vmem:[%s291 + $0x38] sm:$0xf]
      %v520 = vld [vmem:[%s291 + $0x3c] sm:$0xf]
      %v521 = vld [vmem:[%s291 + $0x40] sm:$0xf]
      %v522 = vld [vmem:[%s291 + $0x44] sm:$0xf]
      %v523 = vld [vmem:[%s291 + $0x48] sm:$0xf]
      %v524 = vld [vmem:[%s291 + $0x4c] sm:$0xf]
      %v525 = vld [vmem:[%s291 + $0x50] sm:$0xf]
      %v526 = vld [vmem:[%s291 + $0x54] sm:$0xf]
      %v527 = vld [vmem:[%s291 + $0x58] sm:$0xf]
      %v528 = vld [vmem:[%s291 + $0x5c] sm:$0xf]
      %v529 = vld [vmem:[%s291 + $0x60] sm:$0xf]
      %v530 = vld [vmem:[%s291 + $0x64] sm:$0xf]
      %v531 = vld [vmem:[%s291 + $0x68] sm:$0xf]
      %v532 = vld [vmem:[%s291 + $0x6c] sm:$0xf]
      %v533 = vld [vmem:[%s291 + $0x70] sm:$0xf]
      %v534 = vld [vmem:[%s291 + $0x74] sm:$0xf]
      %v535 = vld [vmem:[%s291 + $0x78] sm:$0xf]
      %v536 = vld [vmem:[%s291 + $0x7c] sm:$0xf]
      %v601 = vunpack.c.l.b16 %v441
      %v602 = vunpack.c.h.b16 %v441
      %v603 = vunpack.c.l.b16 %v442
      %v604 = vunpack.c.h.b16 %v442
      %v605 = vunpack.c.l.b16 %v443
      %v606 = vunpack.c.h.b16 %v443
      %v607 = vunpack.c.l.b16 %v444
      %v608 = vunpack.c.h.b16 %v444
      %v609 = vunpack.c.l.b16 %v445
      %v610 = vunpack.c.h.b16 %v445
      %v611 = vunpack.c.l.b16 %v446
      %v612 = vunpack.c.h.b16 %v446
      %v613 = vunpack.c.l.b16 %v447
      %v614 = vunpack.c.h.b16 %v447
      %v615 = vunpack.c.l.b16 %v448
      %v616 = vunpack.c.h.b16 %v448
      %v617 = vunpack.c.l.b16 %v449
      %v618 = vunpack.c.h.b16 %v449
      %v619 = vunpack.c.l.b16 %v450
      %v620 = vunpack.c.h.b16 %v450
      %v621 = vunpack.c.l.b16 %v451
      %v622 = vunpack.c.h.b16 %v451
      %v623 = vunpack.c.l.b16 %v452
      %v624 = vunpack.c.h.b16 %v452
      %v625 = vunpack.c.l.b16 %v453
      %v626 = vunpack.c.h.b16 %v453
      %v627 = vunpack.c.l.b16 %v454
      %v628 = vunpack.c.h.b16 %v454
      %v629 = vunpack.c.l.b16 %v455
      %v630 = vunpack.c.h.b16 %v455
      %v631 = vunpack.c.l.b16 %v456
      %v632 = vunpack.c.h.b16 %v456
      %v633 = vunpack.c.l.b16 %v457
      %v634 = vunpack.c.h.b16 %v457
      %v635 = vunpack.c.l.b16 %v458
      %v636 = vunpack.c.h.b16 %v458
      %v637 = vunpack.c.l.b16 %v459
      %v638 = vunpack.c.h.b16 %v459
      %v639 = vunpack.c.l.b16 %v460
      %v640 = vunpack.c.h.b16 %v460
      %v641 = vunpack.c.l.b16 %v461
      %v642 = vunpack.c.h.b16 %v461
      %v643 = vunpack.c.l.b16 %v462
      %v644 = vunpack.c.h.b16 %v462
      %v645 = vunpack.c.l.b16 %v463
      %v646 = vunpack.c.h.b16 %v463
      %v647 = vunpack.c.l.b16 %v464
      %v648 = vunpack.c.h.b16 %v464
      %v649 = vunpack.c.l.b16 %v465
      %v650 = vunpack.c.h.b16 %v465
      %v651 = vunpack.c.l.b16 %v466
      %v652 = vunpack.c.h.b16 %v466
      %v653 = vunpack.c.l.b16 %v467
      %v654 = vunpack.c.h.b16 %v467
      %v655 = vunpack.c.l.b16 %v468
      %v656 = vunpack.c.h.b16 %v468
      %v657 = vunpack.c.l.b16 %v469
      %v658 = vunpack.c.h.b16 %v469
      %v659 = vunpack.c.l.b16 %v470
      %v660 = vunpack.c.h.b16 %v470
      %v661 = vunpack.c.l.b16 %v471
      %v662 = vunpack.c.h.b16 %v471
      %v663 = vunpack.c.l.b16 %v472
      %v664 = vunpack.c.h.b16 %v472
      %v665 = vunpack.c.l.b16 %v473
      %v666 = vunpack.c.h.b16 %v473
      %v667 = vunpack.c.l.b16 %v474
      %v668 = vunpack.c.h.b16 %v474
      %v669 = vunpack.c.l.b16 %v475
      %v670 = vunpack.c.h.b16 %v475
      %v671 = vunpack.c.l.b16 %v476
      %v672 = vunpack.c.h.b16 %v476
      %v673 = vunpack.c.l.b16 %v477
      %v674 = vunpack.c.h.b16 %v477
      %v675 = vunpack.c.l.b16 %v478
      %v676 = vunpack.c.h.b16 %v478
      %v677 = vunpack.c.l.b16 %v479
      %v678 = vunpack.c.h.b16 %v479
      %v679 = vunpack.c.l.b16 %v480
      %v680 = vunpack.c.h.b16 %v480
      %v681 = vunpack.c.l.b16 %v481
      %v682 = vunpack.c.h.b16 %v481
      %v683 = vunpack.c.l.b16 %v482
      %v684 = vunpack.c.h.b16 %v482
      %v685 = vunpack.c.l.b16 %v483
      %v686 = vunpack.c.h.b16 %v483
      %v687 = vunpack.c.l.b16 %v484
      %v688 = vunpack.c.h.b16 %v484
      %v689 = vunpack.c.l.b16 %v485
      %v690 = vunpack.c.h.b16 %v485
      %v691 = vunpack.c.l.b16 %v486
      %v692 = vunpack.c.h.b16 %v486
      %v693 = vunpack.c.l.b16 %v487
      %v694 = vunpack.c.h.b16 %v487
      %v695 = vunpack.c.l.b16 %v488
      %v696 = vunpack.c.h.b16 %v488
      %v697 = vunpack.c.l.b16 %v489
      %v698 = vunpack.c.h.b16 %v489
      %v699 = vunpack.c.l.b16 %v490
      %v700 = vunpack.c.h.b16 %v490
      %v701 = vunpack.c.l.b16 %v491
      %v702 = vunpack.c.h.b16 %v491
      %v703 = vunpack.c.l.b16 %v492
      %v704 = vunpack.c.h.b16 %v492
      %v705 = vunpack.c.l.b16 %v493
      %v706 = vunpack.c.h.b16 %v493
      %v707 = vunpack.c.l.b16 %v494
      %v708 = vunpack.c.h.b16 %v494
      %v709 = vunpack.c.l.b16 %v495
      %v710 = vunpack.c.h.b16 %v495
      %v711 = vunpack.c.l.b16 %v496
      %v712 = vunpack.c.h.b16 %v496
      %v713 = vunpack.c.l.b16 %v497
      %v714 = vunpack.c.h.b16 %v497
      %v715 = vunpack.c.l.b16 %v498
      %v716 = vunpack.c.h.b16 %v498
      %v717 = vunpack.c.l.b16 %v499
      %v718 = vunpack.c.h.b16 %v499
      %v719 = vunpack.c.l.b16 %v500
      %v720 = vunpack.c.h.b16 %v500
      %v721 = vunpack.c.l.b16 %v501
      %v722 = vunpack.c.h.b16 %v501
      %v723 = vunpack.c.l.b16 %v502
      %v724 = vunpack.c.h.b16 %v502
      %v725 = vunpack.c.l.b16 %v503
      %v726 = vunpack.c.h.b16 %v503
      %v727 = vunpack.c.l.b16 %v504
      %v728 = vunpack.c.h.b16 %v504
      %v729 = vpack.c.b16 %v603, %v601
      %v730 = vpack.c.b16 %v604, %v602
      %v731 = vpack.c.b16 %v607, %v605
      %v732 = vpack.c.b16 %v608, %v606
      %v733 = vpack.c.b16 %v611, %v609
      %v734 = vpack.c.b16 %v612, %v610
      %v735 = vpack.c.b16 %v615, %v613
      %v736 = vpack.c.b16 %v616, %v614
      %v737 = vpack.c.b16 %v619, %v617
      %v738 = vpack.c.b16 %v620, %v618
      %v739 = vpack.c.b16 %v623, %v621
      %v740 = vpack.c.b16 %v624, %v622
      %v741 = vpack.c.b16 %v627, %v625
      %v742 = vpack.c.b16 %v628, %v626
      %v743 = vpack.c.b16 %v631, %v629
      %v744 = vpack.c.b16 %v632, %v630
      %v745 = vpack.c.b16 %v635, %v633
      %v746 = vpack.c.b16 %v636, %v634
      %v747 = vpack.c.b16 %v639, %v637
      %v748 = vpack.c.b16 %v640, %v638
      %v749 = vpack.c.b16 %v643, %v641
      %v750 = vpack.c.b16 %v644, %v642
      %v751 = vpack.c.b16 %v647, %v645
      %v752 = vpack.c.b16 %v648, %v646
      %v753 = vpack.c.b16 %v651, %v649
      %v754 = vpack.c.b16 %v652, %v650
      %v755 = vpack.c.b16 %v655, %v653
      %v756 = vpack.c.b16 %v656, %v654
      %v757 = vpack.c.b16 %v659, %v657
      %v758 = vpack.c.b16 %v660, %v658
      %v759 = vpack.c.b16 %v663, %v661
      %v760 = vpack.c.b16 %v664, %v662
      %v761 = vpack.c.b16 %v667, %v665
      %v762 = vpack.c.b16 %v668, %v666
      %v763 = vpack.c.b16 %v671, %v669
      %v764 = vpack.c.b16 %v672, %v670
      %v765 = vpack.c.b16 %v675, %v673
      %v766 = vpack.c.b16 %v676, %v674
      %v767 = vpack.c.b16 %v679, %v677
      %v768 = vpack.c.b16 %v680, %v678
      %v769 = vpack.c.b16 %v683, %v681
      %v770 = vpack.c.b16 %v684, %v682
      %v771 = vpack.c.b16 %v687, %v685
      %v772 = vpack.c.b16 %v688, %v686
      %v773 = vpack.c.b16 %v691, %v689
      %v774 = vpack.c.b16 %v692, %v690
      %v775 = vpack.c.b16 %v695, %v693
      %v776 = vpack.c.b16 %v696, %v694
      %v777 = vpack.c.b16 %v699, %v697
      %v778 = vpack.c.b16 %v700, %v698
      %v779 = vpack.c.b16 %v703, %v701
      %v780 = vpack.c.b16 %v704, %v702
      %v781 = vpack.c.b16 %v707, %v705
      %v782 = vpack.c.b16 %v708, %v706
      %v783 = vpack.c.b16 %v711, %v709
      %v784 = vpack.c.b16 %v712, %v710
      %v785 = vpack.c.b16 %v715, %v713
      %v786 = vpack.c.b16 %v716, %v714
      %v787 = vpack.c.b16 %v719, %v717
      %v788 = vpack.c.b16 %v720, %v718
      %v789 = vpack.c.b16 %v723, %v721
      %v790 = vpack.c.b16 %v724, %v722
      %v791 = vpack.c.b16 %v727, %v725
      %v792 = vpack.c.b16 %v728, %v726
      %v889 = vunpack.c.l.b16 %v505
      %v890 = vunpack.c.l.b16 %v506
      %v891 = vunpack.c.l.b16 %v507
      %v892 = vunpack.c.l.b16 %v508
      %v893 = vunpack.c.l.b16 %v509
      %v894 = vunpack.c.l.b16 %v510
      %v895 = vunpack.c.l.b16 %v511
      %v896 = vunpack.c.l.b16 %v512
      %v897 = vunpack.c.l.b16 %v513
      %v898 = vunpack.c.l.b16 %v514
      %v899 = vunpack.c.l.b16 %v515
      %v900 = vunpack.c.l.b16 %v516
      %v901 = vunpack.c.l.b16 %v517
      %v902 = vunpack.c.l.b16 %v518
      %v903 = vunpack.c.l.b16 %v519
      %v904 = vunpack.c.l.b16 %v520
      %v905 = vunpack.c.l.b16 %v521
      %v906 = vunpack.c.l.b16 %v522
      %v907 = vunpack.c.l.b16 %v523
      %v908 = vunpack.c.l.b16 %v524
      %v909 = vunpack.c.l.b16 %v525
      %v910 = vunpack.c.l.b16 %v526
      %v911 = vunpack.c.l.b16 %v527
      %v912 = vunpack.c.l.b16 %v528
      %v913 = vunpack.c.l.b16 %v529
      %v914 = vunpack.c.l.b16 %v530
      %v915 = vunpack.c.l.b16 %v531
      %v916 = vunpack.c.l.b16 %v532
      %v917 = vunpack.c.l.b16 %v533
      %v918 = vunpack.c.l.b16 %v534
      %v919 = vunpack.c.l.b16 %v535
      %v920 = vunpack.c.l.b16 %v536
      %v921 = vpack.c.b16 %v890, %v889
      %v922 = vpack.c.b16 %v892, %v891
      %v923 = vpack.c.b16 %v894, %v893
      %v924 = vpack.c.b16 %v896, %v895
      %v925 = vpack.c.b16 %v898, %v897
      %v926 = vpack.c.b16 %v900, %v899
      %v927 = vpack.c.b16 %v902, %v901
      %v928 = vpack.c.b16 %v904, %v903
      %v929 = vpack.c.b16 %v906, %v905
      %v930 = vpack.c.b16 %v908, %v907
      %v931 = vpack.c.b16 %v910, %v909
      %v932 = vpack.c.b16 %v912, %v911
      %v933 = vpack.c.b16 %v914, %v913
      %v934 = vpack.c.b16 %v916, %v915
      %v935 = vpack.c.b16 %v918, %v917
      %v936 = vpack.c.b16 %v920, %v919
      %953 = vmatprep.subr.bf16.mxu0 0
      %954 = vmatpush1.bf16.msra.mxu0 %v921
      %955 = vmatprep.subr.bf16.mxu0 0
      %956 = vmatpush1.bf16.msra.mxu0 %v922
      %957 = vmatprep.subr.bf16.mxu0 0
      %958 = vmatpush1.bf16.msra.mxu0 %v923
      %959 = vmatprep.subr.bf16.mxu0 0
      %960 = vmatpush1.bf16.msra.mxu0 %v924
      %961 = vmatprep.subr.bf16.mxu0 0
      %962 = vmatpush1.bf16.msra.mxu0 %v925
      %963 = vmatprep.subr.bf16.mxu0 0
      %964 = vmatpush1.bf16.msra.mxu0 %v926
      %965 = vmatprep.subr.bf16.mxu0 0
      %966 = vmatpush1.bf16.msra.mxu0 %v927
      %967 = vmatprep.subr.bf16.mxu0 0
      %968 = vmatpush1.bf16.msra.mxu0 %v928
      %969 = vmatprep.subr.bf16.mxu0 0
      %970 = vmatpush1.bf16.msra.mxu0 %v929
      %971 = vmatprep.subr.bf16.mxu0 0
      %972 = vmatpush1.bf16.msra.mxu0 %v930
      %973 = vmatprep.subr.bf16.mxu0 0
      %974 = vmatpush1.bf16.msra.mxu0 %v931
      %975 = vmatprep.subr.bf16.mxu0 0
      %976 = vmatpush1.bf16.msra.mxu0 %v932
      %977 = vmatprep.subr.bf16.mxu0 0
      %978 = vmatpush1.bf16.msra.mxu0 %v933
      %979 = vmatprep.subr.bf16.mxu0 0
      %980 = vmatpush1.bf16.msra.mxu0 %v934
      %981 = vmatprep.subr.bf16.mxu0 0
      %982 = vmatpush1.bf16.msra.mxu0 %v935
      %983 = vmatprep.subr.bf16.mxu0 0
      %984 = vmatpush1.bf16.msra.mxu0 %v936
      %985 = vmatprep.mubr.bf16.mxu0 %v730
      %986 = vmatmul.mubr.bf16.gmra.mrb[0].mxu0 %v729
      %v987 = vpop.f32.mrb[0].mxu0
      %v988 = vadd.f32 0.0, %v987
      %v989 = vpop.f32.mrb[0].mxu0
      %v990 = vpop.f32.mrb[0].mxu0
      %v991 = vadd.f32 0.0, %v990
      %v992 = vpop.f32.mrb[0].mxu0
      %993 = vmatprep.mubr.bf16.mxu0 %v732
      %994 = vmatmul.mubr.bf16.gmra.mrb[0].mxu0 %v731
      %v995 = vpop.f32.mrb[0].mxu0
      %v996 = vadd.f32 0.0, %v995
      %v997 = vpop.f32.mrb[0].mxu0
      %v998 = vpop.f32.mrb[0].mxu0
      %v999 = vadd.f32 0.0, %v998
      %v1000 = vpop.f32.mrb[0].mxu0
      %1001 = vmatprep.mubr.bf16.mxu0 %v734
      %1002 = vmatmul.mubr.bf16.gmra.mrb[0].mxu0 %v733
      %v1003 = vpop.f32.mrb[0].mxu0
      %v1004 = vadd.f32 0.0, %v1003
      %v1005 = vpop.f32.mrb[0].mxu0
      %v1006 = vpop.f32.mrb[0].mxu0
      %v1007 = vadd.f32 0.0, %v1006
      %v1008 = vpop.f32.mrb[0].mxu0
      %1009 = vmatprep.mubr.bf16.mxu0 %v736
      %1010 = vmatmul.mubr.bf16.gmra.mrb[0].mxu0 %v735
      %v1011 = vpop.f32.mrb[0].mxu0
      %v1012 = vadd.f32 0.0, %v1011
      %v1013 = vpop.f32.mrb[0].mxu0
      %v1014 = vpop.f32.mrb[0].mxu0
      %v1015 = vadd.f32 0.0, %v1014
      %v1016 = vpop.f32.mrb[0].mxu0
      %1017 = vmatprep.mubr.bf16.mxu0 %v738
      %1018 = vmatmul.mubr.bf16.gmra.mrb[0].mxu0 %v737
      %v1019 = vpop.f32.mrb[0].mxu0
      %v1020 = vadd.f32 0.0, %v1019
      %v1021 = vpop.f32.mrb[0].mxu0
      %v1022 = vpop.f32.mrb[0].mxu0
      %v1023 = vadd.f32 0.0, %v1022
      %v1024 = vpop.f32.mrb[0].mxu0
      %1025 = vmatprep.mubr.bf16.mxu0 %v740
      %1026 = vmatmul.mubr.bf16.gmra.mrb[0].mxu0 %v739
      %v1027 = vpop.f32.mrb[0].mxu0
      %v1028 = vadd.f32 0.0, %v1027
      %v1029 = vpop.f32.mrb[0].mxu0
      %v1030 = vpop.f32.mrb[0].mxu0
      %v1031 = vadd.f32 0.0, %v1030
      %v1032 = vpop.f32.mrb[0].mxu0
      %1033 = vmatprep.mubr.bf16.mxu0 %v742
      %1034 = vmatmul.mubr.bf16.gmra.mrb[0].mxu0 %v741
      %v1035 = vpop.f32.mrb[0].mxu0
      %v1036 = vadd.f32 0.0, %v1035
      %v1037 = vpop.f32.mrb[0].mxu0
      %v1038 = vpop.f32.mrb[0].mxu0
      %v1039 = vadd.f32 0.0, %v1038
      %v1040 = vpop.f32.mrb[0].mxu0
      %1041 = vmatprep.mubr.bf16.mxu0 %v744
      %1042 = vmatmul.mubr.bf16.gmra.mrb[0].mxu0 %v743
      %v1043 = vpop.f32.mrb[0].mxu0
      %v1044 = vadd.f32 0.0, %v1043
      %v1045 = vpop.f32.mrb[0].mxu0
      %v1046 = vpop.f32.mrb[0].mxu0
      %v1047 = vadd.f32 0.0, %v1046
      %v1048 = vpop.f32.mrb[0].mxu0
      %1049 = vmatprep.mubr.bf16.mxu0 %v746
      %1050 = vmatmul.mubr.bf16.gmra.mrb[0].mxu0 %v745
      %v1051 = vpop.f32.mrb[0].mxu0
      %v1052 = vadd.f32 0.0, %v1051
      %v1053 = vpop.f32.mrb[0].mxu0
      %v1054 = vpop.f32.mrb[0].mxu0
      %v1055 = vadd.f32 0.0, %v1054
      %v1056 = vpop.f32.mrb[0].mxu0
      %1057 = vmatprep.mubr.bf16.mxu0 %v748
      %1058 = vmatmul.mubr.bf16.gmra.mrb[0].mxu0 %v747
      %v1059 = vpop.f32.mrb[0].mxu0
      %v1060 = vadd.f32 0.0, %v1059
      %v1061 = vpop.f32.mrb[0].mxu0
      %v1062 = vpop.f32.mrb[0].mxu0
      %v1063 = vadd.f32 0.0, %v1062
      %v1064 = vpop.f32.mrb[0].mxu0
      %1065 = vmatprep.mubr.bf16.mxu0 %v750
      %1066 = vmatmul.mubr.bf16.gmra.mrb[0].mxu0 %v749
      %v1067 = vpop.f32.mrb[0].mxu0
      %v1068 = vadd.f32 0.0, %v1067
      %v1069 = vpop.f32.mrb[0].mxu0
      %v1070 = vpop.f32.mrb[0].mxu0
      %v1071 = vadd.f32 0.0, %v1070
      %v1072 = vpop.f32.mrb[0].mxu0
      %1073 = vmatprep.mubr.bf16.mxu0 %v752
      %1074 = vmatmul.mubr.bf16.gmra.mrb[0].mxu0 %v751
      %v1075 = vpop.f32.mrb[0].mxu0
      %v1076 = vadd.f32 0.0, %v1075
      %v1077 = vpop.f32.mrb[0].mxu0
      %v1078 = vpop.f32.mrb[0].mxu0
      %v1079 = vadd.f32 0.0, %v1078
      %v1080 = vpop.f32.mrb[0].mxu0
      %1081 = vmatprep.mubr.bf16.mxu0 %v754
      %1082 = vmatmul.mubr.bf16.gmra.mrb[0].mxu0 %v753
      %v1083 = vpop.f32.mrb[0].mxu0
      %v1084 = vadd.f32 0.0, %v1083
      %v1085 = vpop.f32.mrb[0].mxu0
      %v1086 = vpop.f32.mrb[0].mxu0
      %v1087 = vadd.f32 0.0, %v1086
      %v1088 = vpop.f32.mrb[0].mxu0
      %1089 = vmatprep.mubr.bf16.mxu0 %v756
      %1090 = vmatmul.mubr.bf16.gmra.mrb[0].mxu0 %v755
      %v1091 = vpop.f32.mrb[0].mxu0
      %v1092 = vadd.f32 0.0, %v1091
      %v1093 = vpop.f32.mrb[0].mxu0
      %v1094 = vpop.f32.mrb[0].mxu0
      %v1095 = vadd.f32 0.0, %v1094
      %v1096 = vpop.f32.mrb[0].mxu0
      %1097 = vmatprep.mubr.bf16.mxu0 %v758
      %1098 = vmatmul.mubr.bf16.gmra.mrb[0].mxu0 %v757
      %v1099 = vpop.f32.mrb[0].mxu0
      %v1100 = vadd.f32 0.0, %v1099
      %v1101 = vpop.f32.mrb[0].mxu0
      %v1102 = vpop.f32.mrb[0].mxu0
      %v1103 = vadd.f32 0.0, %v1102
      %v1104 = vpop.f32.mrb[0].mxu0
      %1105 = vmatprep.mubr.bf16.mxu0 %v760
      %1106 = vmatmul.mubr.bf16.gmra.mrb[0].mxu0 %v759
      %v1107 = vpop.f32.mrb[0].mxu0
      %v1108 = vadd.f32 0.0, %v1107
      %v1109 = vpop.f32.mrb[0].mxu0
      %v1110 = vpop.f32.mrb[0].mxu0
      %v1111 = vadd.f32 0.0, %v1110
      %v1112 = vpop.f32.mrb[0].mxu0
      %1113 = vmatprep.mubr.bf16.mxu0 %v762
      %1114 = vmatmul.mubr.bf16.gmra.mrb[0].mxu0 %v761
      %v1115 = vpop.f32.mrb[0].mxu0
      %v1116 = vadd.f32 0.0, %v1115
      %v1117 = vpop.f32.mrb[0].mxu0
      %v1118 = vpop.f32.mrb[0].mxu0
      %v1119 = vadd.f32 0.0, %v1118
      %v1120 = vpop.f32.mrb[0].mxu0
      %1121 = vmatprep.mubr.bf16.mxu0 %v764
      %1122 = vmatmul.mubr.bf16.gmra.mrb[0].mxu0 %v763
      %v1123 = vpop.f32.mrb[0].mxu0
      %v1124 = vadd.f32 0.0, %v1123
      %v1125 = vpop.f32.mrb[0].mxu0
      %v1126 = vpop.f32.mrb[0].mxu0
      %v1127 = vadd.f32 0.0, %v1126
      %v1128 = vpop.f32.mrb[0].mxu0
      %1129 = vmatprep.mubr.bf16.mxu0 %v766
      %1130 = vmatmul.mubr.bf16.gmra.mrb[0].mxu0 %v765
      %v1131 = vpop.f32.mrb[0].mxu0
      %v1132 = vadd.f32 0.0, %v1131
      %v1133 = vpop.f32.mrb[0].mxu0
      %v1134 = vpop.f32.mrb[0].mxu0
      %v1135 = vadd.f32 0.0, %v1134
      %v1136 = vpop.f32.mrb[0].mxu0
      %1137 = vmatprep.mubr.bf16.mxu0 %v768
      %1138 = vmatmul.mubr.bf16.gmra.mrb[0].mxu0 %v767
      %v1139 = vpop.f32.mrb[0].mxu0
      %v1140 = vadd.f32 0.0, %v1139
      %v1141 = vpop.f32.mrb[0].mxu0
      %v1142 = vpop.f32.mrb[0].mxu0
      %v1143 = vadd.f32 0.0, %v1142
      %v1144 = vpop.f32.mrb[0].mxu0
      %1145 = vmatprep.mubr.bf16.mxu0 %v770
      %1146 = vmatmul.mubr.bf16.gmra.mrb[0].mxu0 %v769
      %v1147 = vpop.f32.mrb[0].mxu0
      %v1148 = vadd.f32 0.0, %v1147
      %v1149 = vpop.f32.mrb[0].mxu0
      %v1150 = vpop.f32.mrb[0].mxu0
      %v1151 = vadd.f32 0.0, %v1150
      %v1152 = vpop.f32.mrb[0].mxu0
      %1153 = vmatprep.mubr.bf16.mxu0 %v772
      %1154 = vmatmul.mubr.bf16.gmra.mrb[0].mxu0 %v771
      %v1155 = vpop.f32.mrb[0].mxu0
      %v1156 = vadd.f32 0.0, %v1155
      %v1157 = vpop.f32.mrb[0].mxu0
      %v1158 = vpop.f32.mrb[0].mxu0
      %v1159 = vadd.f32 0.0, %v1158
      %v1160 = vpop.f32.mrb[0].mxu0
      %1161 = vmatprep.mubr.bf16.mxu0 %v774
      %1162 = vmatmul.mubr.bf16.gmra.mrb[0].mxu0 %v773
      %v1163 = vpop.f32.mrb[0].mxu0
      %v1164 = vadd.f32 0.0, %v1163
      %v1165 = vpop.f32.mrb[0].mxu0
      %v1166 = vpop.f32.mrb[0].mxu0
      %v1167 = vadd.f32 0.0, %v1166
      %v1168 = vpop.f32.mrb[0].mxu0
      %1169 = vmatprep.mubr.bf16.mxu0 %v776
      %1170 = vmatmul.mubr.bf16.gmra.mrb[0].mxu0 %v775
      %v1171 = vpop.f32.mrb[0].mxu0
      %v1172 = vadd.f32 0.0, %v1171
      %v1173 = vpop.f32.mrb[0].mxu0
      %v1174 = vpop.f32.mrb[0].mxu0
      %v1175 = vadd.f32 0.0, %v1174
      %v1176 = vpop.f32.mrb[0].mxu0
      %1177 = vmatprep.mubr.bf16.mxu0 %v778
      %1178 = vmatmul.mubr.bf16.gmra.mrb[0].mxu0 %v777
      %v1179 = vpop.f32.mrb[0].mxu0
      %v1180 = vadd.f32 0.0, %v1179
      %v1181 = vpop.f32.mrb[0].mxu0
      %v1182 = vpop.f32.mrb[0].mxu0
      %v1183 = vadd.f32 0.0, %v1182
      %v1184 = vpop.f32.mrb[0].mxu0
      %1185 = vmatprep.mubr.bf16.mxu0 %v780
      %1186 = vmatmul.mubr.bf16.gmra.mrb[0].mxu0 %v779
      %v1187 = vpop.f32.mrb[0].mxu0
      %v1188 = vadd.f32 0.0, %v1187
      %v1189 = vpop.f32.mrb[0].mxu0
      %v1190 = vpop.f32.mrb[0].mxu0
      %v1191 = vadd.f32 0.0, %v1190
      %v1192 = vpop.f32.mrb[0].mxu0
      %1193 = vmatprep.mubr.bf16.mxu0 %v782
      %1194 = vmatmul.mubr.bf16.gmra.mrb[0].mxu0 %v781
      %v1195 = vpop.f32.mrb[0].mxu0
      %v1196 = vadd.f32 0.0, %v1195
      %v1197 = vpop.f32.mrb[0].mxu0
      %v1198 = vpop.f32.mrb[0].mxu0
      %v1199 = vadd.f32 0.0, %v1198
      %v1200 = vpop.f32.mrb[0].mxu0
      %1201 = vmatprep.mubr.bf16.mxu0 %v784
      %1202 = vmatmul.mubr.bf16.gmra.mrb[0].mxu0 %v783
      %v1203 = vpop.f32.mrb[0].mxu0
      %v1204 = vadd.f32 0.0, %v1203
      %v1205 = vpop.f32.mrb[0].mxu0
      %v1206 = vpop.f32.mrb[0].mxu0
      %v1207 = vadd.f32 0.0, %v1206
      %v1208 = vpop.f32.mrb[0].mxu0
      %1209 = vmatprep.mubr.bf16.mxu0 %v786
      %1210 = vmatmul.mubr.bf16.gmra.mrb[0].mxu0 %v785
      %v1211 = vpop.f32.mrb[0].mxu0
      %v1212 = vadd.f32 0.0, %v1211
      %v1213 = vpop.f32.mrb[0].mxu0
      %v1214 = vpop.f32.mrb[0].mxu0
      %v1215 = vadd.f32 0.0, %v1214
      %v1216 = vpop.f32.mrb[0].mxu0
      %1217 = vmatprep.mubr.bf16.mxu0 %v788
      %1218 = vmatmul.mubr.bf16.gmra.mrb[0].mxu0 %v787
      %v1219 = vpop.f32.mrb[0].mxu0
      %v1220 = vadd.f32 0.0, %v1219
      %v1221 = vpop.f32.mrb[0].mxu0
      %v1222 = vpop.f32.mrb[0].mxu0
      %v1223 = vadd.f32 0.0, %v1222
      %v1224 = vpop.f32.mrb[0].mxu0
      %1225 = vmatprep.mubr.bf16.mxu0 %v790
      %1226 = vmatmul.mubr.bf16.gmra.mrb[0].mxu0 %v789
      %v1227 = vpop.f32.mrb[0].mxu0
      %v1228 = vadd.f32 0.0, %v1227
      %v1229 = vpop.f32.mrb[0].mxu0
      %v1230 = vpop.f32.mrb[0].mxu0
      %v1231 = vadd.f32 0.0, %v1230
      %v1232 = vpop.f32.mrb[0].mxu0
      %1233 = vmatprep.mubr.bf16.mxu0 %v792
      %1234 = vmatmul.mubr.bf16.gmra.mrb[0].mxu0 %v791
      %v1235 = vpop.f32.mrb[0].mxu0
      %v1236 = vadd.f32 0.0, %v1235
      %v1237 = vpop.f32.mrb[0].mxu0
      %v1238 = vpop.f32.mrb[0].mxu0
      %v1239 = vadd.f32 0.0, %v1238
      %v1240 = vpop.f32.mrb[0].mxu0
      %1241 = vdwg.mxu0
      %v1242 = vadd.f32 %v377, %v988
      %v1243 = vadd.f32 %v378, %v991
      %v1244 = vadd.f32 %v379, %v996
      %v1245 = vadd.f32 %v380, %v999
      %v1246 = vadd.f32 %v381, %v1004
      %v1247 = vadd.f32 %v382, %v1007
      %v1248 = vadd.f32 %v383, %v1012
      %v1249 = vadd.f32 %v384, %v1015
      %v1250 = vadd.f32 %v385, %v1020
      %v1251 = vadd.f32 %v386, %v1023
      %v1252 = vadd.f32 %v387, %v1028
      %v1253 = vadd.f32 %v388, %v1031
      %v1254 = vadd.f32 %v389, %v1036
      %v1255 = vadd.f32 %v390, %v1039
      %v1256 = vadd.f32 %v391, %v1044
      %v1257 = vadd.f32 %v392, %v1047
      %v1258 = vadd.f32 %v393, %v1052
      %v1259 = vadd.f32 %v394, %v1055
      %v1260 = vadd.f32 %v395, %v1060
      %v1261 = vadd.f32 %v396, %v1063
      %v1262 = vadd.f32 %v397, %v1068
      %v1263 = vadd.f32 %v398, %v1071
      %v1264 = vadd.f32 %v399, %v1076
      %v1265 = vadd.f32 %v400, %v1079
      %v1266 = vadd.f32 %v401, %v1084
      %v1267 = vadd.f32 %v402, %v1087
      %v1268 = vadd.f32 %v403, %v1092
      %v1269 = vadd.f32 %v404, %v1095
      %v1270 = vadd.f32 %v405, %v1100
      %v1271 = vadd.f32 %v406, %v1103
      %v1272 = vadd.f32 %v407, %v1108
      %v1273 = vadd.f32 %v408, %v1111
      %v1274 = vadd.f32 %v409, %v1116
      %v1275 = vadd.f32 %v410, %v1119
      %v1276 = vadd.f32 %v411, %v1124
      %v1277 = vadd.f32 %v412, %v1127
      %v1278 = vadd.f32 %v413, %v1132
      %v1279 = vadd.f32 %v414, %v1135
      %v1280 = vadd.f32 %v415, %v1140
      %v1281 = vadd.f32 %v416, %v1143
      %v1282 = vadd.f32 %v417, %v1148
      %v1283 = vadd.f32 %v418, %v1151
      %v1284 = vadd.f32 %v419, %v1156
      %v1285 = vadd.f32 %v420, %v1159
      %v1286 = vadd.f32 %v421, %v1164
      %v1287 = vadd.f32 %v422, %v1167
      %v1288 = vadd.f32 %v423, %v1172
      %v1289 = vadd.f32 %v424, %v1175
      %v1290 = vadd.f32 %v425, %v1180
      %v1291 = vadd.f32 %v426, %v1183
      %v1292 = vadd.f32 %v427, %v1188
      %v1293 = vadd.f32 %v428, %v1191
      %v1294 = vadd.f32 %v429, %v1196
      %v1295 = vadd.f32 %v430, %v1199
      %v1296 = vadd.f32 %v431, %v1204
      %v1297 = vadd.f32 %v432, %v1207
      %v1298 = vadd.f32 %v433, %v1212
      %v1299 = vadd.f32 %v434, %v1215
      %v1300 = vadd.f32 %v435, %v1220
      %v1301 = vadd.f32 %v436, %v1223
      %v1302 = vadd.f32 %v437, %v1228
      %v1303 = vadd.f32 %v438, %v1231
      %v1304 = vadd.f32 %v439, %v1236
      %v1305 = vadd.f32 %v440, %v1239
      %1306 = vst [vmem:[#allocation2] sm:$0xff] %v1242
      %1307 = vst [vmem:[#allocation2 + $0x8] sm:$0xff] %v1243
      %1308 = vst [vmem:[#allocation2 + $0x10] sm:$0xff] %v1244
      %1309 = vst [vmem:[#allocation2 + $0x18] sm:$0xff] %v1245
      %1310 = vst [vmem:[#allocation2 + $0x20] sm:$0xff] %v1246
      %1311 = vst [vmem:[#allocation2 + $0x28] sm:$0xff] %v1247
      %1312 = vst [vmem:[#allocation2 + $0x30] sm:$0xff] %v1248
      %1313 = vst [vmem:[#allocation2 + $0x38] sm:$0xff] %v1249
      %1314 = vst [vmem:[#allocation2 + $0x40] sm:$0xff] %v1250
      %1315 = vst [vmem:[#allocation2 + $0x48] sm:$0xff] %v1251
      %1316 = vst [vmem:[#allocation2 + $0x50] sm:$0xff] %v1252
      %1317 = vst [vmem:[#allocation2 + $0x58] sm:$0xff] %v1253
      %1318 = vst [vmem:[#allocation2 + $0x60] sm:$0xff] %v1254
      %1319 = vst [vmem:[#allocation2 + $0x68] sm:$0xff] %v1255
      %1320 = vst [vmem:[#allocation2 + $0x70] sm:$0xff] %v1256
      %1321 = vst [vmem:[#allocation2 + $0x78] sm:$0xff] %v1257
      %1322 = vst [vmem:[#allocation2 + $0x80] sm:$0xff] %v1258
      %1323 = vst [vmem:[#allocation2 + $0x88] sm:$0xff] %v1259
      %1324 = vst [vmem:[#allocation2 + $0x90] sm:$0xff] %v1260
      %1325 = vst [vmem:[#allocation2 + $0x98] sm:$0xff] %v1261
      %1326 = vst [vmem:[#allocation2 + $0xa0] sm:$0xff] %v1262
      %1327 = vst [vmem:[#allocation2 + $0xa8] sm:$0xff] %v1263
      %1328 = vst [vmem:[#allocation2 + $0xb0] sm:$0xff] %v1264
      %1329 = vst [vmem:[#allocation2 + $0xb8] sm:$0xff] %v1265
      %1330 = vst [vmem:[#allocation2 + $0xc0] sm:$0xff] %v1266
      %1331 = vst [vmem:[#allocation2 + $0xc8] sm:$0xff] %v1267
      %1332 = vst [vmem:[#allocation2 + $0xd0] sm:$0xff] %v1268
      %1333 = vst [vmem:[#allocation2 + $0xd8] sm:$0xff] %v1269
      %1334 = vst [vmem:[#allocation2 + $0xe0] sm:$0xff] %v1270
      %1335 = vst [vmem:[#allocation2 + $0xe8] sm:$0xff] %v1271
      %1336 = vst [vmem:[#allocation2 + $0xf0] sm:$0xff] %v1272
      %1337 = vst [vmem:[#allocation2 + $0xf8] sm:$0xff] %v1273
      %1338 = vst [vmem:[#allocation2 + $0x100] sm:$0xff] %v1274
      %1339 = vst [vmem:[#allocation2 + $0x108] sm:$0xff] %v1275
      %1340 = vst [vmem:[#allocation2 + $0x110] sm:$0xff] %v1276
      %1341 = vst [vmem:[#allocation2 + $0x118] sm:$0xff] %v1277
      %1342 = vst [vmem:[#allocation2 + $0x120] sm:$0xff] %v1278
      %1343 = vst [vmem:[#allocation2 + $0x128] sm:$0xff] %v1279
      %1344 = vst [vmem:[#allocation2 + $0x130] sm:$0xff] %v1280
      %1345 = vst [vmem:[#allocation2 + $0x138] sm:$0xff] %v1281
      %1346 = vst [vmem:[#allocation2 + $0x140] sm:$0xff] %v1282
      %1347 = vst [vmem:[#allocation2 + $0x148] sm:$0xff] %v1283
      %1348 = vst [vmem:[#allocation2 + $0x150] sm:$0xff] %v1284
      %1349 = vst [vmem:[#allocation2 + $0x158] sm:$0xff] %v1285
      %1350 = vst [vmem:[#allocation2 + $0x160] sm:$0xff] %v1286
      %1351 = vst [vmem:[#allocation2 + $0x168] sm:$0xff] %v1287
      %1352 = vst [vmem:[#allocation2 + $0x170] sm:$0xff] %v1288
      %1353 = vst [vmem:[#allocation2 + $0x178] sm:$0xff] %v1289
      %1354 = vst [vmem:[#allocation2 + $0x180] sm:$0xff] %v1290
      %1355 = vst [vmem:[#allocation2 + $0x188] sm:$0xff] %v1291
      %1356 = vst [vmem:[#allocation2 + $0x190] sm:$0xff] %v1292
      %1357 = vst [vmem:[#allocation2 + $0x198] sm:$0xff] %v1293
      %1358 = vst [vmem:[#allocation2 + $0x1a0] sm:$0xff] %v1294
      %1359 = vst [vmem:[#allocation2 + $0x1a8] sm:$0xff] %v1295
      %1360 = vst [vmem:[#allocation2 + $0x1b0] sm:$0xff] %v1296
      %1361 = vst [vmem:[#allocation2 + $0x1b8] sm:$0xff] %v1297
      %1362 = vst [vmem:[#allocation2 + $0x1c0] sm:$0xff] %v1298
      %1363 = vst [vmem:[#allocation2 + $0x1c8] sm:$0xff] %v1299
      %1364 = vst [vmem:[#allocation2 + $0x1d0] sm:$0xff] %v1300
      %1365 = vst [vmem:[#allocation2 + $0x1d8] sm:$0xff] %v1301
      %1366 = vst [vmem:[#allocation2 + $0x1e0] sm:$0xff] %v1302
      %1367 = vst [vmem:[#allocation2 + $0x1e8] sm:$0xff] %v1303
      %1368 = vst [vmem:[#allocation2 + $0x1f0] sm:$0xff] %v1304
      %1369 = vst [vmem:[#allocation2 + $0x1f8] sm:$0xff] %v1305
      // Predicated region
      $region41: #{_lambda_.3} parent=35 // pred_check
        %p1370 = pneg %p309
      $region42: #{_lambda_.3} parent=35 // pred_check_branch
        %1372 = sbr.rel (%p1370) target = $region44
      $region43: #{_lambda_.3} parent=35 // pred_region
        %v1373 = vld [vmem:[#allocation2] sm:$0xff]
        %v1374 = vld [vmem:[#allocation2 + $0x8] sm:$0xff]
        %v1375 = vld [vmem:[#allocation2 + $0x10] sm:$0xff]
        %v1376 = vld [vmem:[#allocation2 + $0x18] sm:$0xff]
        %v1377 = vld [vmem:[#allocation2 + $0x20] sm:$0xff]
        %v1378 = vld [vmem:[#allocation2 + $0x28] sm:$0xff]
        %v1379 = vld [vmem:[#allocation2 + $0x30] sm:$0xff]
        %v1380 = vld [vmem:[#allocation2 + $0x38] sm:$0xff]
        %v1381 = vld [vmem:[#allocation2 + $0x40] sm:$0xff]
        %v1382 = vld [vmem:[#allocation2 + $0x48] sm:$0xff]
        %v1383 = vld [vmem:[#allocation2 + $0x50] sm:$0xff]
        %v1384 = vld [vmem:[#allocation2 + $0x58] sm:$0xff]
        %v1385 = vld [vmem:[#allocation2 + $0x60] sm:$0xff]
        %v1386 = vld [vmem:[#allocation2 + $0x68] sm:$0xff]
        %v1387 = vld [vmem:[#allocation2 + $0x70] sm:$0xff]
        %v1388 = vld [vmem:[#allocation2 + $0x78] sm:$0xff]
        %v1389 = vld [vmem:[#allocation2 + $0x80] sm:$0xff]
        %v1390 = vld [vmem:[#allocation2 + $0x88] sm:$0xff]
        %v1391 = vld [vmem:[#allocation2 + $0x90] sm:$0xff]
        %v1392 = vld [vmem:[#allocation2 + $0x98] sm:$0xff]
        %v1393 = vld [vmem:[#allocation2 + $0xa0] sm:$0xff]
        %v1394 = vld [vmem:[#allocation2 + $0xa8] sm:$0xff]
        %v1395 = vld [vmem:[#allocation2 + $0xb0] sm:$0xff]
        %v1396 = vld [vmem:[#allocation2 + $0xb8] sm:$0xff]
        %v1397 = vld [vmem:[#allocation2 + $0xc0] sm:$0xff]
        %v1398 = vld [vmem:[#allocation2 + $0xc8] sm:$0xff]
        %v1399 = vld [vmem:[#allocation2 + $0xd0] sm:$0xff]
        %v1400 = vld [vmem:[#allocation2 + $0xd8] sm:$0xff]
        %v1401 = vld [vmem:[#allocation2 + $0xe0] sm:$0xff]
        %v1402 = vld [vmem:[#allocation2 + $0xe8] sm:$0xff]
        %v1403 = vld [vmem:[#allocation2 + $0xf0] sm:$0xff]
        %v1404 = vld [vmem:[#allocation2 + $0xf8] sm:$0xff]
        %v1405 = vld [vmem:[#allocation2 + $0x100] sm:$0xff]
        %v1406 = vld [vmem:[#allocation2 + $0x108] sm:$0xff]
        %v1407 = vld [vmem:[#allocation2 + $0x110] sm:$0xff]
        %v1408 = vld [vmem:[#allocation2 + $0x118] sm:$0xff]
        %v1409 = vld [vmem:[#allocation2 + $0x120] sm:$0xff]
        %v1410 = vld [vmem:[#allocation2 + $0x128] sm:$0xff]
        %v1411 = vld [vmem:[#allocation2 + $0x130] sm:$0xff]
        %v1412 = vld [vmem:[#allocation2 + $0x138] sm:$0xff]
        %v1413 = vld [vmem:[#allocation2 + $0x140] sm:$0xff]
        %v1414 = vld [vmem:[#allocation2 + $0x148] sm:$0xff]
        %v1415 = vld [vmem:[#allocation2 + $0x150] sm:$0xff]
        %v1416 = vld [vmem:[#allocation2 + $0x158] sm:$0xff]
        %v1417 = vld [vmem:[#allocation2 + $0x160] sm:$0xff]
        %v1418 = vld [vmem:[#allocation2 + $0x168] sm:$0xff]
        %v1419 = vld [vmem:[#allocation2 + $0x170] sm:$0xff]
        %v1420 = vld [vmem:[#allocation2 + $0x178] sm:$0xff]
        %v1421 = vld [vmem:[#allocation2 + $0x180] sm:$0xff]
        %v1422 = vld [vmem:[#allocation2 + $0x188] sm:$0xff]
        %v1423 = vld [vmem:[#allocation2 + $0x190] sm:$0xff]
        %v1424 = vld [vmem:[#allocation2 + $0x198] sm:$0xff]
        %v1425 = vld [vmem:[#allocation2 + $0x1a0] sm:$0xff]
        %v1426 = vld [vmem:[#allocation2 + $0x1a8] sm:$0xff]
        %v1427 = vld [vmem:[#allocation2 + $0x1b0] sm:$0xff]
        %v1428 = vld [vmem:[#allocation2 + $0x1b8] sm:$0xff]
        %v1429 = vld [vmem:[#allocation2 + $0x1c0] sm:$0xff]
        %v1430 = vld [vmem:[#allocation2 + $0x1c8] sm:$0xff]
        %v1431 = vld [vmem:[#allocation2 + $0x1d0] sm:$0xff]
        %v1432 = vld [vmem:[#allocation2 + $0x1d8] sm:$0xff]
        %v1433 = vld [vmem:[#allocation2 + $0x1e0] sm:$0xff]
        %v1434 = vld [vmem:[#allocation2 + $0x1e8] sm:$0xff]
        %v1435 = vld [vmem:[#allocation2 + $0x1f0] sm:$0xff]
        %v1436 = vld [vmem:[#allocation2 + $0x1f8] sm:$0xff]
        %v1437 = vld [vmem:[%s295] sm:$0x1]
        %v1439 = vlaneseq
        %v1440 = vshrl.u32 %v1439, 7
        %v1441 = vsub.s32 0, %v1440
        %v1442 = vrot.slane %v1437, %v1441
        %v1444 = vmul.f32 %v1373, %v1442
        %v1445 = vmul.f32 %v1374, %v1442
        %v1446 = vmul.f32 %v1375, %v1442
        %v1447 = vmul.f32 %v1376, %v1442
        %v1448 = vmul.f32 %v1377, %v1442
        %v1449 = vmul.f32 %v1378, %v1442
        %v1450 = vmul.f32 %v1379, %v1442
        %v1451 = vmul.f32 %v1380, %v1442
        %v1452 = vmul.f32 %v1381, %v1442
        %v1453 = vmul.f32 %v1382, %v1442
        %v1454 = vmul.f32 %v1383, %v1442
        %v1455 = vmul.f32 %v1384, %v1442
        %v1456 = vmul.f32 %v1385, %v1442
        %v1457 = vmul.f32 %v1386, %v1442
        %v1458 = vmul.f32 %v1387, %v1442
        %v1459 = vmul.f32 %v1388, %v1442
        %v1460 = vmul.f32 %v1389, %v1442
        %v1461 = vmul.f32 %v1390, %v1442
        %v1462 = vmul.f32 %v1391, %v1442
        %v1463 = vmul.f32 %v1392, %v1442
        %v1464 = vmul.f32 %v1393, %v1442
        %v1465 = vmul.f32 %v1394, %v1442
        %v1466 = vmul.f32 %v1395, %v1442
        %v1467 = vmul.f32 %v1396, %v1442
        %v1468 = vmul.f32 %v1397, %v1442
        %v1469 = vmul.f32 %v1398, %v1442
        %v1470 = vmul.f32 %v1399, %v1442
        %v1471 = vmul.f32 %v1400, %v1442
        %v1472 = vmul.f32 %v1401, %v1442
        %v1473 = vmul.f32 %v1402, %v1442
        %v1474 = vmul.f32 %v1403, %v1442
        %v1475 = vmul.f32 %v1404, %v1442
        %v1476 = vmul.f32 %v1405, %v1442
        %v1477 = vmul.f32 %v1406, %v1442
        %v1478 = vmul.f32 %v1407, %v1442
        %v1479 = vmul.f32 %v1408, %v1442
        %v1480 = vmul.f32 %v1409, %v1442
        %v1481 = vmul.f32 %v1410, %v1442
        %v1482 = vmul.f32 %v1411, %v1442
        %v1483 = vmul.f32 %v1412, %v1442
        %v1484 = vmul.f32 %v1413, %v1442
        %v1485 = vmul.f32 %v1414, %v1442
        %v1486 = vmul.f32 %v1415, %v1442
        %v1487 = vmul.f32 %v1416, %v1442
        %v1488 = vmul.f32 %v1417, %v1442
        %v1489 = vmul.f32 %v1418, %v1442
        %v1490 = vmul.f32 %v1419, %v1442
        %v1491 = vmul.f32 %v1420, %v1442
        %v1492 = vmul.f32 %v1421, %v1442
        %v1493 = vmul.f32 %v1422, %v1442
        %v1494 = vmul.f32 %v1423, %v1442
        %v1495 = vmul.f32 %v1424, %v1442
        %v1496 = vmul.f32 %v1425, %v1442
        %v1497 = vmul.f32 %v1426, %v1442
        %v1498 = vmul.f32 %v1427, %v1442
        %v1499 = vmul.f32 %v1428, %v1442
        %v1500 = vmul.f32 %v1429, %v1442
        %v1501 = vmul.f32 %v1430, %v1442
        %v1502 = vmul.f32 %v1431, %v1442
        %v1503 = vmul.f32 %v1432, %v1442
        %v1504 = vmul.f32 %v1433, %v1442
        %v1505 = vmul.f32 %v1434, %v1442
        %v1506 = vmul.f32 %v1435, %v1442
        %v1507 = vmul.f32 %v1436, %v1442
        %v1508 = vld [vmem:[%s298] sm:$0x1]
        %v1510 = vlaneseq
        %v1511 = vshrl.u32 %v1510, 7
        %v1512 = vsub.s32 0, %v1511
        %v1513 = vrot.slane %v1508, %v1512
        %v1515 = vadd.f32 %v1444, %v1513
        %v1516 = vadd.f32 %v1445, %v1513
        %v1517 = vadd.f32 %v1446, %v1513
        %v1518 = vadd.f32 %v1447, %v1513
        %v1519 = vadd.f32 %v1448, %v1513
        %v1520 = vadd.f32 %v1449, %v1513
        %v1521 = vadd.f32 %v1450, %v1513
        %v1522 = vadd.f32 %v1451, %v1513
        %v1523 = vadd.f32 %v1452, %v1513
        %v1524 = vadd.f32 %v1453, %v1513
        %v1525 = vadd.f32 %v1454, %v1513
        %v1526 = vadd.f32 %v1455, %v1513
        %v1527 = vadd.f32 %v1456, %v1513
        %v1528 = vadd.f32 %v1457, %v1513
        %v1529 = vadd.f32 %v1458, %v1513
        %v1530 = vadd.f32 %v1459, %v1513
        %v1531 = vadd.f32 %v1460, %v1513
        %v1532 = vadd.f32 %v1461, %v1513
        %v1533 = vadd.f32 %v1462, %v1513
        %v1534 = vadd.f32 %v1463, %v1513
        %v1535 = vadd.f32 %v1464, %v1513
        %v1536 = vadd.f32 %v1465, %v1513
        %v1537 = vadd.f32 %v1466, %v1513
        %v1538 = vadd.f32 %v1467, %v1513
        %v1539 = vadd.f32 %v1468, %v1513
        %v1540 = vadd.f32 %v1469, %v1513
        %v1541 = vadd.f32 %v1470, %v1513
        %v1542 = vadd.f32 %v1471, %v1513
        %v1543 = vadd.f32 %v1472, %v1513
        %v1544 = vadd.f32 %v1473, %v1513
        %v1545 = vadd.f32 %v1474, %v1513
        %v1546 = vadd.f32 %v1475, %v1513
        %v1547 = vadd.f32 %v1476, %v1513
        %v1548 = vadd.f32 %v1477, %v1513
        %v1549 = vadd.f32 %v1478, %v1513
        %v1550 = vadd.f32 %v1479, %v1513
        %v1551 = vadd.f32 %v1480, %v1513
        %v1552 = vadd.f32 %v1481, %v1513
        %v1553 = vadd.f32 %v1482, %v1513
        %v1554 = vadd.f32 %v1483, %v1513
        %v1555 = vadd.f32 %v1484, %v1513
        %v1556 = vadd.f32 %v1485, %v1513
        %v1557 = vadd.f32 %v1486, %v1513
        %v1558 = vadd.f32 %v1487, %v1513
        %v1559 = vadd.f32 %v1488, %v1513
        %v1560 = vadd.f32 %v1489, %v1513
        %v1561 = vadd.f32 %v1490, %v1513
        %v1562 = vadd.f32 %v1491, %v1513
        %v1563 = vadd.f32 %v1492, %v1513
        %v1564 = vadd.f32 %v1493, %v1513
        %v1565 = vadd.f32 %v1494, %v1513
        %v1566 = vadd.f32 %v1495, %v1513
        %v1567 = vadd.f32 %v1496, %v1513
        %v1568 = vadd.f32 %v1497, %v1513
        %v1569 = vadd.f32 %v1498, %v1513
        %v1570 = vadd.f32 %v1499, %v1513
        %v1571 = vadd.f32 %v1500, %v1513
        %v1572 = vadd.f32 %v1501, %v1513
        %v1573 = vadd.f32 %v1502, %v1513
        %v1574 = vadd.f32 %v1503, %v1513
        %v1575 = vadd.f32 %v1504, %v1513
        %v1576 = vadd.f32 %v1505, %v1513
        %v1577 = vadd.f32 %v1506, %v1513
        %v1578 = vadd.f32 %v1507, %v1513
        %vm1579 = vcmp.gt.f32.partialorder %v1515, 0.0
        %vm1580 = vcmp.gt.f32.partialorder %v1516, 0.0
        %vm1581 = vcmp.gt.f32.partialorder %v1517, 0.0
        %vm1582 = vcmp.gt.f32.partialorder %v1518, 0.0
        %vm1583 = vcmp.gt.f32.partialorder %v1519, 0.0
        %vm1584 = vcmp.gt.f32.partialorder %v1520, 0.0
        %vm1585 = vcmp.gt.f32.partialorder %v1521, 0.0
        %vm1586 = vcmp.gt.f32.partialorder %v1522, 0.0
        %vm1587 = vcmp.gt.f32.partialorder %v1523, 0.0
        %vm1588 = vcmp.gt.f32.partialorder %v1524, 0.0
        %vm1589 = vcmp.gt.f32.partialorder %v1525, 0.0
        %vm1590 = vcmp.gt.f32.partialorder %v1526, 0.0
        %vm1591 = vcmp.gt.f32.partialorder %v1527, 0.0
        %vm1592 = vcmp.gt.f32.partialorder %v1528, 0.0
        %vm1593 = vcmp.gt.f32.partialorder %v1529, 0.0
        %vm1594 = vcmp.gt.f32.partialorder %v1530, 0.0
        %vm1595 = vcmp.gt.f32.partialorder %v1531, 0.0
        %vm1596 = vcmp.gt.f32.partialorder %v1532, 0.0
        %vm1597 = vcmp.gt.f32.partialorder %v1533, 0.0
        %vm1598 = vcmp.gt.f32.partialorder %v1534, 0.0
        %vm1599 = vcmp.gt.f32.partialorder %v1535, 0.0
        %vm1600 = vcmp.gt.f32.partialorder %v1536, 0.0
        %vm1601 = vcmp.gt.f32.partialorder %v1537, 0.0
        %vm1602 = vcmp.gt.f32.partialorder %v1538, 0.0
        %vm1603 = vcmp.gt.f32.partialorder %v1539, 0.0
        %vm1604 = vcmp.gt.f32.partialorder %v1540, 0.0
        %vm1605 = vcmp.gt.f32.partialorder %v1541, 0.0
        %vm1606 = vcmp.gt.f32.partialorder %v1542, 0.0
        %vm1607 = vcmp.gt.f32.partialorder %v1543, 0.0
        %vm1608 = vcmp.gt.f32.partialorder %v1544, 0.0
        %vm1609 = vcmp.gt.f32.partialorder %v1545, 0.0
        %vm1610 = vcmp.gt.f32.partialorder %v1546, 0.0
        %vm1611 = vcmp.gt.f32.partialorder %v1547, 0.0
        %vm1612 = vcmp.gt.f32.partialorder %v1548, 0.0
        %vm1613 = vcmp.gt.f32.partialorder %v1549, 0.0
        %vm1614 = vcmp.gt.f32.partialorder %v1550, 0.0
        %vm1615 = vcmp.gt.f32.partialorder %v1551, 0.0
        %vm1616 = vcmp.gt.f32.partialorder %v1552, 0.0
        %vm1617 = vcmp.gt.f32.partialorder %v1553, 0.0
        %vm1618 = vcmp.gt.f32.partialorder %v1554, 0.0
        %vm1619 = vcmp.gt.f32.partialorder %v1555, 0.0
        %vm1620 = vcmp.gt.f32.partialorder %v1556, 0.0
        %vm1621 = vcmp.gt.f32.partialorder %v1557, 0.0
        %vm1622 = vcmp.gt.f32.partialorder %v1558, 0.0
        %vm1623 = vcmp.gt.f32.partialorder %v1559, 0.0
        %vm1624 = vcmp.gt.f32.partialorder %v1560, 0.0
        %vm1625 = vcmp.gt.f32.partialorder %v1561, 0.0
        %vm1626 = vcmp.gt.f32.partialorder %v1562, 0.0
        %vm1627 = vcmp.gt.f32.partialorder %v1563, 0.0
        %vm1628 = vcmp.gt.f32.partialorder %v1564, 0.0
        %vm1629 = vcmp.gt.f32.partialorder %v1565, 0.0
        %vm1630 = vcmp.gt.f32.partialorder %v1566, 0.0
        %vm1631 = vcmp.gt.f32.partialorder %v1567, 0.0
        %vm1632 = vcmp.gt.f32.partialorder %v1568, 0.0
        %vm1633 = vcmp.gt.f32.partialorder %v1569, 0.0
        %vm1634 = vcmp.gt.f32.partialorder %v1570, 0.0
        %vm1635 = vcmp.gt.f32.partialorder %v1571, 0.0
        %vm1636 = vcmp.gt.f32.partialorder %v1572, 0.0
        %vm1637 = vcmp.gt.f32.partialorder %v1573, 0.0
        %vm1638 = vcmp.gt.f32.partialorder %v1574, 0.0
        %vm1639 = vcmp.gt.f32.partialorder %v1575, 0.0
        %vm1640 = vcmp.gt.f32.partialorder %v1576, 0.0
        %vm1641 = vcmp.gt.f32.partialorder %v1577, 0.0
        %vm1642 = vcmp.gt.f32.partialorder %v1578, 0.0
        %v1643 = vmul.f32 %v1515, 0.2
        %v1644 = vmul.f32 %v1516, 0.2
        %v1645 = vmul.f32 %v1517, 0.2
        %v1646 = vmul.f32 %v1518, 0.2
        %v1647 = vmul.f32 %v1519, 0.2
        %v1648 = vmul.f32 %v1520, 0.2
        %v1649 = vmul.f32 %v1521, 0.2
        %v1650 = vmul.f32 %v1522, 0.2
        %v1651 = vmul.f32 %v1523, 0.2
        %v1652 = vmul.f32 %v1524, 0.2
        %v1653 = vmul.f32 %v1525, 0.2
        %v1654 = vmul.f32 %v1526, 0.2
        %v1655 = vmul.f32 %v1527, 0.2
        %v1656 = vmul.f32 %v1528, 0.2
        %v1657 = vmul.f32 %v1529, 0.2
        %v1658 = vmul.f32 %v1530, 0.2
        %v1659 = vmul.f32 %v1531, 0.2
        %v1660 = vmul.f32 %v1532, 0.2
        %v1661 = vmul.f32 %v1533, 0.2
        %v1662 = vmul.f32 %v1534, 0.2
        %v1663 = vmul.f32 %v1535, 0.2
        %v1664 = vmul.f32 %v1536, 0.2
        %v1665 = vmul.f32 %v1537, 0.2
        %v1666 = vmul.f32 %v1538, 0.2
        %v1667 = vmul.f32 %v1539, 0.2
        %v1668 = vmul.f32 %v1540, 0.2
        %v1669 = vmul.f32 %v1541, 0.2
        %v1670 = vmul.f32 %v1542, 0.2
        %v1671 = vmul.f32 %v1543, 0.2
        %v1672 = vmul.f32 %v1544, 0.2
        %v1673 = vmul.f32 %v1545, 0.2
        %v1674 = vmul.f32 %v1546, 0.2
        %v1675 = vmul.f32 %v1547, 0.2
        %v1676 = vmul.f32 %v1548, 0.2
        %v1677 = vmul.f32 %v1549, 0.2
        %v1678 = vmul.f32 %v1550, 0.2
        %v1679 = vmul.f32 %v1551, 0.2
        %v1680 = vmul.f32 %v1552, 0.2
        %v1681 = vmul.f32 %v1553, 0.2
        %v1682 = vmul.f32 %v1554, 0.2
        %v1683 = vmul.f32 %v1555, 0.2
        %v1684 = vmul.f32 %v1556, 0.2
        %v1685 = vmul.f32 %v1557, 0.2
        %v1686 = vmul.f32 %v1558, 0.2
        %v1687 = vmul.f32 %v1559, 0.2
        %v1688 = vmul.f32 %v1560, 0.2
        %v1689 = vmul.f32 %v1561, 0.2
        %v1690 = vmul.f32 %v1562, 0.2
        %v1691 = vmul.f32 %v1563, 0.2
        %v1692 = vmul.f32 %v1564, 0.2
        %v1693 = vmul.f32 %v1565, 0.2
        %v1694 = vmul.f32 %v1566, 0.2
        %v1695 = vmul.f32 %v1567, 0.2
        %v1696 = vmul.f32 %v1568, 0.2
        %v1697 = vmul.f32 %v1569, 0.2
        %v1698 = vmul.f32 %v1570, 0.2
        %v1699 = vmul.f32 %v1571, 0.2
        %v1700 = vmul.f32 %v1572, 0.2
        %v1701 = vmul.f32 %v1573, 0.2
        %v1702 = vmul.f32 %v1574, 0.2
        %v1703 = vmul.f32 %v1575, 0.2
        %v1704 = vmul.f32 %v1576, 0.2
        %v1705 = vmul.f32 %v1577, 0.2
        %v1706 = vmul.f32 %v1578, 0.2
        %v1707 = vsel %vm1579, %v1515, %v1643
        %v1708 = vsel %vm1580, %v1516, %v1644
        %v1709 = vsel %vm1581, %v1517, %v1645
        %v1710 = vsel %vm1582, %v1518, %v1646
        %v1711 = vsel %vm1583, %v1519, %v1647
        %v1712 = vsel %vm1584, %v1520, %v1648
        %v1713 = vsel %vm1585, %v1521, %v1649
        %v1714 = vsel %vm1586, %v1522, %v1650
        %v1715 = vsel %vm1587, %v1523, %v1651
        %v1716 = vsel %vm1588, %v1524, %v1652
        %v1717 = vsel %vm1589, %v1525, %v1653
        %v1718 = vsel %vm1590, %v1526, %v1654
        %v1719 = vsel %vm1591, %v1527, %v1655
        %v1720 = vsel %vm1592, %v1528, %v1656
        %v1721 = vsel %vm1593, %v1529, %v1657
        %v1722 = vsel %vm1594, %v1530, %v1658
        %v1723 = vsel %vm1595, %v1531, %v1659
        %v1724 = vsel %vm1596, %v1532, %v1660
        %v1725 = vsel %vm1597, %v1533, %v1661
        %v1726 = vsel %vm1598, %v1534, %v1662
        %v1727 = vsel %vm1599, %v1535, %v1663
        %v1728 = vsel %vm1600, %v1536, %v1664
        %v1729 = vsel %vm1601, %v1537, %v1665
        %v1730 = vsel %vm1602, %v1538, %v1666
        %v1731 = vsel %vm1603, %v1539, %v1667
        %v1732 = vsel %vm1604, %v1540, %v1668
        %v1733 = vsel %vm1605, %v1541, %v1669
        %v1734 = vsel %vm1606, %v1542, %v1670
        %v1735 = vsel %vm1607, %v1543, %v1671
        %v1736 = vsel %vm1608, %v1544, %v1672
        %v1737 = vsel %vm1609, %v1545, %v1673
        %v1738 = vsel %vm1610, %v1546, %v1674
        %v1739 = vsel %vm1611, %v1547, %v1675
        %v1740 = vsel %vm1612, %v1548, %v1676
        %v1741 = vsel %vm1613, %v1549, %v1677
        %v1742 = vsel %vm1614, %v1550, %v1678
        %v1743 = vsel %vm1615, %v1551, %v1679
        %v1744 = vsel %vm1616, %v1552, %v1680
        %v1745 = vsel %vm1617, %v1553, %v1681
        %v1746 = vsel %vm1618, %v1554, %v1682
        %v1747 = vsel %vm1619, %v1555, %v1683
        %v1748 = vsel %vm1620, %v1556, %v1684
        %v1749 = vsel %vm1621, %v1557, %v1685
        %v1750 = vsel %vm1622, %v1558, %v1686
        %v1751 = vsel %vm1623, %v1559, %v1687
        %v1752 = vsel %vm1624, %v1560, %v1688
        %v1753 = vsel %vm1625, %v1561, %v1689
        %v1754 = vsel %vm1626, %v1562, %v1690
        %v1755 = vsel %vm1627, %v1563, %v1691
        %v1756 = vsel %vm1628, %v1564, %v1692
        %v1757 = vsel %vm1629, %v1565, %v1693
        %v1758 = vsel %vm1630, %v1566, %v1694
        %v1759 = vsel %vm1631, %v1567, %v1695
        %v1760 = vsel %vm1632, %v1568, %v1696
        %v1761 = vsel %vm1633, %v1569, %v1697
        %v1762 = vsel %vm1634, %v1570, %v1698
        %v1763 = vsel %vm1635, %v1571, %v1699
        %v1764 = vsel %vm1636, %v1572, %v1700
        %v1765 = vsel %vm1637, %v1573, %v1701
        %v1766 = vsel %vm1638, %v1574, %v1702
        %v1767 = vsel %vm1639, %v1575, %v1703
        %v1768 = vsel %vm1640, %v1576, %v1704
        %v1769 = vsel %vm1641, %v1577, %v1705
        %v1770 = vsel %vm1642, %v1578, %v1706
        %v1771 = vpack.c.bf16 %v1708, %v1707
        %v1772 = vpack.c.bf16 %v1710, %v1709
        %v1773 = vpack.c.bf16 %v1712, %v1711
        %v1774 = vpack.c.bf16 %v1714, %v1713
        %v1775 = vpack.c.bf16 %v1716, %v1715
        %v1776 = vpack.c.bf16 %v1718, %v1717
        %v1777 = vpack.c.bf16 %v1720, %v1719
        %v1778 = vpack.c.bf16 %v1722, %v1721
        %v1779 = vpack.c.bf16 %v1724, %v1723
        %v1780 = vpack.c.bf16 %v1726, %v1725
        %v1781 = vpack.c.bf16 %v1728, %v1727
        %v1782 = vpack.c.bf16 %v1730, %v1729
        %v1783 = vpack.c.bf16 %v1732, %v1731
        %v1784 = vpack.c.bf16 %v1734, %v1733
        %v1785 = vpack.c.bf16 %v1736, %v1735
        %v1786 = vpack.c.bf16 %v1738, %v1737
        %v1787 = vpack.c.bf16 %v1740, %v1739
        %v1788 = vpack.c.bf16 %v1742, %v1741
        %v1789 = vpack.c.bf16 %v1744, %v1743
        %v1790 = vpack.c.bf16 %v1746, %v1745
        %v1791 = vpack.c.bf16 %v1748, %v1747
        %v1792 = vpack.c.bf16 %v1750, %v1749
        %v1793 = vpack.c.bf16 %v1752, %v1751
        %v1794 = vpack.c.bf16 %v1754, %v1753
        %v1795 = vpack.c.bf16 %v1756, %v1755
        %v1796 = vpack.c.bf16 %v1758, %v1757
        %v1797 = vpack.c.bf16 %v1760, %v1759
        %v1798 = vpack.c.bf16 %v1762, %v1761
        %v1799 = vpack.c.bf16 %v1764, %v1763
        %v1800 = vpack.c.bf16 %v1766, %v1765
        %v1801 = vpack.c.bf16 %v1768, %v1767
        %v1802 = vpack.c.bf16 %v1770, %v1769
        %v1835 = vunpack.c.l.b16 %v1771
        %v1836 = vunpack.c.h.b16 %v1771
        %v1837 = vunpack.c.l.b16 %v1772
        %v1838 = vunpack.c.h.b16 %v1772
        %v1839 = vunpack.c.l.b16 %v1773
        %v1840 = vunpack.c.h.b16 %v1773
        %v1841 = vunpack.c.l.b16 %v1774
        %v1842 = vunpack.c.h.b16 %v1774
        %v1843 = vunpack.c.l.b16 %v1775
        %v1844 = vunpack.c.h.b16 %v1775
        %v1845 = vunpack.c.l.b16 %v1776
        %v1846 = vunpack.c.h.b16 %v1776
        %v1847 = vunpack.c.l.b16 %v1777
        %v1848 = vunpack.c.h.b16 %v1777
        %v1849 = vunpack.c.l.b16 %v1778
        %v1850 = vunpack.c.h.b16 %v1778
        %v1851 = vunpack.c.l.b16 %v1779
        %v1852 = vunpack.c.h.b16 %v1779
        %v1853 = vunpack.c.l.b16 %v1780
        %v1854 = vunpack.c.h.b16 %v1780
        %v1855 = vunpack.c.l.b16 %v1781
        %v1856 = vunpack.c.h.b16 %v1781
        %v1857 = vunpack.c.l.b16 %v1782
        %v1858 = vunpack.c.h.b16 %v1782
        %v1859 = vunpack.c.l.b16 %v1783
        %v1860 = vunpack.c.h.b16 %v1783
        %v1861 = vunpack.c.l.b16 %v1784
        %v1862 = vunpack.c.h.b16 %v1784
        %v1863 = vunpack.c.l.b16 %v1785
        %v1864 = vunpack.c.h.b16 %v1785
        %v1865 = vunpack.c.l.b16 %v1786
        %v1866 = vunpack.c.h.b16 %v1786
        %v1867 = vunpack.c.l.b16 %v1787
        %v1868 = vunpack.c.h.b16 %v1787
        %v1869 = vunpack.c.l.b16 %v1788
        %v1870 = vunpack.c.h.b16 %v1788
        %v1871 = vunpack.c.l.b16 %v1789
        %v1872 = vunpack.c.h.b16 %v1789
        %v1873 = vunpack.c.l.b16 %v1790
        %v1874 = vunpack.c.h.b16 %v1790
        %v1875 = vunpack.c.l.b16 %v1791
        %v1876 = vunpack.c.h.b16 %v1791
        %v1877 = vunpack.c.l.b16 %v1792
        %v1878 = vunpack.c.h.b16 %v1792
        %v1879 = vunpack.c.l.b16 %v1793
        %v1880 = vunpack.c.h.b16 %v1793
        %v1881 = vunpack.c.l.b16 %v1794
        %v1882 = vunpack.c.h.b16 %v1794
        %v1883 = vunpack.c.l.b16 %v1795
        %v1884 = vunpack.c.h.b16 %v1795
        %v1885 = vunpack.c.l.b16 %v1796
        %v1886 = vunpack.c.h.b16 %v1796
        %v1887 = vunpack.c.l.b16 %v1797
        %v1888 = vunpack.c.h.b16 %v1797
        %v1889 = vunpack.c.l.b16 %v1798
        %v1890 = vunpack.c.h.b16 %v1798
        %v1891 = vunpack.c.l.b16 %v1799
        %v1892 = vunpack.c.h.b16 %v1799
        %v1893 = vunpack.c.l.b16 %v1800
        %v1894 = vunpack.c.h.b16 %v1800
        %v1895 = vunpack.c.l.b16 %v1801
        %v1896 = vunpack.c.h.b16 %v1801
        %v1897 = vunpack.c.l.b16 %v1802
        %v1898 = vunpack.c.h.b16 %v1802
        %v1899 = vpack.c.b16 %v1835, %v1835
        %v1900 = vpack.c.b16 %v1836, %v1836
        %v1901 = vpack.c.b16 %v1837, %v1837
        %v1902 = vpack.c.b16 %v1838, %v1838
        %v1903 = vpack.c.b16 %v1839, %v1839
        %v1904 = vpack.c.b16 %v1840, %v1840
        %v1905 = vpack.c.b16 %v1841, %v1841
        %v1906 = vpack.c.b16 %v1842, %v1842
        %v1907 = vpack.c.b16 %v1843, %v1843
        %v1908 = vpack.c.b16 %v1844, %v1844
        %v1909 = vpack.c.b16 %v1845, %v1845
        %v1910 = vpack.c.b16 %v1846, %v1846
        %v1911 = vpack.c.b16 %v1847, %v1847
        %v1912 = vpack.c.b16 %v1848, %v1848
        %v1913 = vpack.c.b16 %v1849, %v1849
        %v1914 = vpack.c.b16 %v1850, %v1850
        %v1915 = vpack.c.b16 %v1851, %v1851
        %v1916 = vpack.c.b16 %v1852, %v1852
        %v1917 = vpack.c.b16 %v1853, %v1853
        %v1918 = vpack.c.b16 %v1854, %v1854
        %v1919 = vpack.c.b16 %v1855, %v1855
        %v1920 = vpack.c.b16 %v1856, %v1856
        %v1921 = vpack.c.b16 %v1857, %v1857
        %v1922 = vpack.c.b16 %v1858, %v1858
        %v1923 = vpack.c.b16 %v1859, %v1859
        %v1924 = vpack.c.b16 %v1860, %v1860
        %v1925 = vpack.c.b16 %v1861, %v1861
        %v1926 = vpack.c.b16 %v1862, %v1862
        %v1927 = vpack.c.b16 %v1863, %v1863
        %v1928 = vpack.c.b16 %v1864, %v1864
        %v1929 = vpack.c.b16 %v1865, %v1865
        %v1930 = vpack.c.b16 %v1866, %v1866
        %v1931 = vpack.c.b16 %v1867, %v1867
        %v1932 = vpack.c.b16 %v1868, %v1868
        %v1933 = vpack.c.b16 %v1869, %v1869
        %v1934 = vpack.c.b16 %v1870, %v1870
        %v1935 = vpack.c.b16 %v1871, %v1871
        %v1936 = vpack.c.b16 %v1872, %v1872
        %v1937 = vpack.c.b16 %v1873, %v1873
        %v1938 = vpack.c.b16 %v1874, %v1874
        %v1939 = vpack.c.b16 %v1875, %v1875
        %v1940 = vpack.c.b16 %v1876, %v1876
        %v1941 = vpack.c.b16 %v1877, %v1877
        %v1942 = vpack.c.b16 %v1878, %v1878
        %v1943 = vpack.c.b16 %v1879, %v1879
        %v1944 = vpack.c.b16 %v1880, %v1880
        %v1945 = vpack.c.b16 %v1881, %v1881
        %v1946 = vpack.c.b16 %v1882, %v1882
        %v1947 = vpack.c.b16 %v1883, %v1883
        %v1948 = vpack.c.b16 %v1884, %v1884
        %v1949 = vpack.c.b16 %v1885, %v1885
        %v1950 = vpack.c.b16 %v1886, %v1886
        %v1951 = vpack.c.b16 %v1887, %v1887
        %v1952 = vpack.c.b16 %v1888, %v1888
        %v1953 = vpack.c.b16 %v1889, %v1889
        %v1954 = vpack.c.b16 %v1890, %v1890
        %v1955 = vpack.c.b16 %v1891, %v1891
        %v1956 = vpack.c.b16 %v1892, %v1892
        %v1957 = vpack.c.b16 %v1893, %v1893
        %v1958 = vpack.c.b16 %v1894, %v1894
        %v1959 = vpack.c.b16 %v1895, %v1895
        %v1960 = vpack.c.b16 %v1896, %v1896
        %v1961 = vpack.c.b16 %v1897, %v1897
        %v1962 = vpack.c.b16 %v1898, %v1898
        %2027 = vst [vmem:[%s306] sm:$0xf] %v1899
        %2028 = vst [vmem:[%s306 + $0x4] sm:$0xf] %v1900
        %2029 = vst [vmem:[%s306 + $0x8] sm:$0xf] %v1901
        %2030 = vst [vmem:[%s306 + $0xc] sm:$0xf] %v1902
        %2031 = vst [vmem:[%s306 + $0x10] sm:$0xf] %v1903
        %2032 = vst [vmem:[%s306 + $0x14] sm:$0xf] %v1904
        %2033 = vst [vmem:[%s306 + $0x18] sm:$0xf] %v1905
        %2034 = vst [vmem:[%s306 + $0x1c] sm:$0xf] %v1906
        %2035 = vst [vmem:[%s306 + $0x20] sm:$0xf] %v1907
        %2036 = vst [vmem:[%s306 + $0x24] sm:$0xf] %v1908
        %2037 = vst [vmem:[%s306 + $0x28] sm:$0xf] %v1909
        %2038 = vst [vmem:[%s306 + $0x2c] sm:$0xf] %v1910
        %2039 = vst [vmem:[%s306 + $0x30] sm:$0xf] %v1911
        %2040 = vst [vmem:[%s306 + $0x34] sm:$0xf] %v1912
        %2041 = vst [vmem:[%s306 + $0x38] sm:$0xf] %v1913
        %2042 = vst [vmem:[%s306 + $0x3c] sm:$0xf] %v1914
        %2043 = vst [vmem:[%s306 + $0x40] sm:$0xf] %v1915
        %2044 = vst [vmem:[%s306 + $0x44] sm:$0xf] %v1916
        %2045 = vst [vmem:[%s306 + $0x48] sm:$0xf] %v1917
        %2046 = vst [vmem:[%s306 + $0x4c] sm:$0xf] %v1918
        %2047 = vst [vmem:[%s306 + $0x50] sm:$0xf] %v1919
        %2048 = vst [vmem:[%s306 + $0x54] sm:$0xf] %v1920
        %2049 = vst [vmem:[%s306 + $0x58] sm:$0xf] %v1921
        %2050 = vst [vmem:[%s306 + $0x5c] sm:$0xf] %v1922
        %2051 = vst [vmem:[%s306 + $0x60] sm:$0xf] %v1923
        %2052 = vst [vmem:[%s306 + $0x64] sm:$0xf] %v1924
        %2053 = vst [vmem:[%s306 + $0x68] sm:$0xf] %v1925
        %2054 = vst [vmem:[%s306 + $0x6c] sm:$0xf] %v1926
        %2055 = vst [vmem:[%s306 + $0x70] sm:$0xf] %v1927
        %2056 = vst [vmem:[%s306 + $0x74] sm:$0xf] %v1928
        %2057 = vst [vmem:[%s306 + $0x78] sm:$0xf] %v1929
        %2058 = vst [vmem:[%s306 + $0x7c] sm:$0xf] %v1930
        %2059 = vst [vmem:[%s306 + $0x80] sm:$0xf] %v1931
        %2060 = vst [vmem:[%s306 + $0x84] sm:$0xf] %v1932
        %2061 = vst [vmem:[%s306 + $0x88] sm:$0xf] %v1933
        %2062 = vst [vmem:[%s306 + $0x8c] sm:$0xf] %v1934
        %2063 = vst [vmem:[%s306 + $0x90] sm:$0xf] %v1935
        %2064 = vst [vmem:[%s306 + $0x94] sm:$0xf] %v1936
        %2065 = vst [vmem:[%s306 + $0x98] sm:$0xf] %v1937
        %2066 = vst [vmem:[%s306 + $0x9c] sm:$0xf] %v1938
        %2067 = vst [vmem:[%s306 + $0xa0] sm:$0xf] %v1939
        %2068 = vst [vmem:[%s306 + $0xa4] sm:$0xf] %v1940
        %2069 = vst [vmem:[%s306 + $0xa8] sm:$0xf] %v1941
        %2070 = vst [vmem:[%s306 + $0xac] sm:$0xf] %v1942
        %2071 = vst [vmem:[%s306 + $0xb0] sm:$0xf] %v1943
        %2072 = vst [vmem:[%s306 + $0xb4] sm:$0xf] %v1944
        %2073 = vst [vmem:[%s306 + $0xb8] sm:$0xf] %v1945
        %2074 = vst [vmem:[%s306 + $0xbc] sm:$0xf] %v1946
        %2075 = vst [vmem:[%s306 + $0xc0] sm:$0xf] %v1947
        %2076 = vst [vmem:[%s306 + $0xc4] sm:$0xf] %v1948
        %2077 = vst [vmem:[%s306 + $0xc8] sm:$0xf] %v1949
        %2078 = vst [vmem:[%s306 + $0xcc] sm:$0xf] %v1950
        %2079 = vst [vmem:[%s306 + $0xd0] sm:$0xf] %v1951
        %2080 = vst [vmem:[%s306 + $0xd4] sm:$0xf] %v1952
        %2081 = vst [vmem:[%s306 + $0xd8] sm:$0xf] %v1953
        %2082 = vst [vmem:[%s306 + $0xdc] sm:$0xf] %v1954
        %2083 = vst [vmem:[%s306 + $0xe0] sm:$0xf] %v1955
        %2084 = vst [vmem:[%s306 + $0xe4] sm:$0xf] %v1956
        %2085 = vst [vmem:[%s306 + $0xe8] sm:$0xf] %v1957
        %2086 = vst [vmem:[%s306 + $0xec] sm:$0xf] %v1958
        %2087 = vst [vmem:[%s306 + $0xf0] sm:$0xf] %v1959
        %2088 = vst [vmem:[%s306 + $0xf4] sm:$0xf] %v1960
        %2089 = vst [vmem:[%s306 + $0xf8] sm:$0xf] %v1961
        %2090 = vst [vmem:[%s306 + $0xfc] sm:$0xf] %v1962
      $region44: #{_lambda_.3} parent=35 // pred_fallthru
        _
      %s2091 = smul.u32 64, %s20
      %p2092 = scmp.lt.s32.totalorder %s2091, 127
      %s2093 = scalar_select %p2092, %s2091, 127
      %p2094 = scmp.lt.s32.totalorder %s21, 0
      %s2095 = scalar_select %p2094, %s21, 0
      %s2096 = sadd.s32 %s2095, %s2093
      %s2097 = smul.addr %s2096, 4
      %s2098 = scalar_lea.vmem %s4, %s2097
      // Predicated region
      $region45: #{_lambda_.3} parent=35 // pred_check
        %p2099 = pneg %p162
      $region46: #{_lambda_.3} parent=35 // pred_check_branch
        %2101 = sbr.rel (%p2099) target = $region48
      $region47: #{_lambda_.3} parent=35 // pred_region
        %s2102 = smul.u32 64, %s20
      $region48: #{_lambda_.3} parent=35 // pred_fallthru
        _
    $region36: #{_lambda_.3} parent=5 // pred_fallthru
      _
    %p2103 = scmp.le.s32.totalorder 2, %s10
    // Predicated region
    $region49: #{_lambda_.3} parent=5 // pred_check
      %p2104 = pneg %p2103
    $region50: #{_lambda_.3} parent=5 // pred_check_branch
      %2106 = sbr.rel (%p2104) target = $region52
    $region51: #{_lambda_.3} parent=5 // pred_region
      %s2107 = ssub.s32 %s10, 2
      // Predicated region
      $region53: #{_lambda_.3} parent=51 // pred_check
        %p2108 = pneg %p168
      $region54: #{_lambda_.3} parent=51 // pred_check_branch
        %2110 = sbr.rel (%p2108) target = $region56
      $region55: #{_lambda_.3} parent=51 // pred_region
        %s2111 = smul.u32 64, %s23
        %p2112 = scmp.lt.s32.totalorder %s2111, 127
        %s2113 = scalar_select %p2112, %s2111, 127
        %p2114 = scmp.lt.s32.totalorder %s24, 0
        %s2115 = scalar_select %p2114, %s24, 0
        %s2116 = sadd.s32 %s2115, %s2113
        %s2117 = smul.addr %s2116, 4
        %s2118 = scalar_lea.vmem %s4, %s2117
      $region56: #{_lambda_.3} parent=51 // pred_fallthru
        _
    $region52: #{_lambda_.3} parent=5 // pred_fallthru
      _
  $region6: #{_lambda_.3} parent=0 // loop_footer
    %s14 = sadd.s32 1, %s10
  $region7: #{_lambda_.3} parent=0 // loop_footer_branch
    %9 = sbr.rel target = $region3
  $region8: #{_lambda_.3} parent=0 // loop_exit
    _

// kernel: _lambda_.4
$region0: #{_lambda_.4}
  #allocation0 [shape = 'u32[]', space=smem, size = 0x4, offset = 0x4, fixed_abs, tag = 'smem constant byte address 0x4 - core index']
  #allocation1 [shape = 'u32[144,128]{1,0:T(1,128)}', space=vmem, size = 0x12000, scoped, tag = 'internal scratch']
  #allocation2 [shape = 'f32[512,128]{1,0:T(8,128)}', space=vmem, size = 0x40000, scoped, tag = 'scratch operand']
  %s0 = inlined_call_operand.vmem [shape: bf16[1024,3456], index: 0, kind: input, shape index: {}]
  %s1 = inlined_call_operand.vmem [shape: bf16[3456,128], index: 1, kind: input, shape index: {}]
  %s2 = inlined_call_operand.vmem [shape: f32[1,128], index: 2, kind: input, shape index: {}]
  %s3 = inlined_call_operand.vmem [shape: f32[1,128], index: 3, kind: input, shape index: {}]
  %s4 = inlined_call_operand.vmem [shape: bf16[1024,128], index: 4, kind: output, shape index: {}]
  %s5 = sld [smem:[#allocation0]]
  $region83: #{_lambda_.4} parent=0
    _
  %s7 = ssub.s32 1, %s5
  %s8 = scalar_select 0, %s7, %s5
  $region1: #{_lambda_.4} parent=0
    #allocation3 [shape = 'u8[786432]{0}', space=vmem, size = 0xc0000, scoped, tag = 'input window, operand 0']
    loop: start=0, step=1, limit=20
    $region2: #{_lambda_.4} parent=1 // loop_pre_header
      _
    $region3: #{_lambda_.4} parent=1 // loop_header
      %s10 = sphi 0, %s14
      %p11 = scmp.ge.s32.totalorder %s10, 20
      %s17 = sphi 0, %s36
      %s18 = sphi 0, %s32
      %s19 = sphi 0, %s28
      %s20 = sphi 0, %s17
      %s21 = sphi 0, %s18
      %s22 = sphi 0, %s19
      %s23 = sphi 0, %s20
      %s24 = sphi 0, %s21
      %s25 = sphi 0, %s22
      %s41 = sphi 0, %s43
      %s44 = sphi 0, %s41
      %s45 = sphi 0, %s44
      %s61 = sphi 0, %s45
      %s69 = sphi 0, %s71
      %s72 = sphi 0, %s69
      %s73 = sphi 0, %s72
      %s89 = sphi 0, %s73
      %s95 = sphi 0, %s97
      %s98 = sphi 0, %s95
      %s99 = sphi 0, %s98
      %s115 = sphi 0, %s99
      %s121 = sphi 0, %s123
      %s124 = sphi 0, %s121
      %s125 = sphi 0, %s124
      %s141 = sphi 0, %s125
      %s149 = sphi 0, %s151
      %s152 = sphi 0, %s149
      %s153 = sphi 0, %s152
      %s169 = sphi 0, %s153
    $region4: #{_lambda_.4} parent=1 // loop_header_branch
      %13 = sbr.rel (%p11) target = $region8
    $region5: #{_lambda_.4} parent=1 // loop_body
      %s15 = ssub.s32 %s10, 1
      %s16 = ssub.s32 %s10, 2
      %s26 = sadd.s32 1, %s19
      %p27 = scmp.ge.s32.totalorder %s26, 9
      %s28 = scalar_select %p27, 0, %s26
      %s29 = sadd.s32 1, %s18
      %s30 = scalar_select %p27, %s29, %s18
      %p31 = scmp.ge.s32.totalorder %s30, 1
      %s32 = scalar_select %p31, 0, %s30
      %s33 = sadd.s32 1, %s17
      %s34 = scalar_select %p31, %s33, %s17
      %p35 = scmp.ge.s32.totalorder %s34, 2
      %s36 = scalar_select %p35, 0, %s34
      %s37 = ssub.s32 %s17, %s36
      %s38 = ssub.s32 %s19, %s28
      %s39 = sor.u32 %s37, %s38
      %p40 = scmp.eq.s32.totalorder %s39, 0
      %s42 = sadd.s32 %s41, 1
      %s43 = scalar_select %p40, %s41, %s42
      %p46 = pneg %p40
      %p47 = scmp.eq.s32.totalorder %s10, 17
      %p48 = por %p46, %p47
      %p49 = scmp.ne.s32.totalorder %s41, %s44
      %p50 = scmp.eq.s32.totalorder %s10, 0
      %p51 = por %p49, %p50
      %p52 = scmp.ne.s32.totalorder %s41, %s44
      %p53 = scmp.eq.s32.totalorder %s15, 17
      %p54 = por %p52, %p53
      %p55 = scmp.ne.s32.totalorder %s44, %s45
      %p56 = scmp.eq.s32.totalorder %s15, 0
      %p57 = por %p55, %p56
      %p58 = scmp.ne.s32.totalorder %s44, %s45
      %p59 = scmp.eq.s32.totalorder %s16, 17
      %p60 = por %p58, %p59
      %p62 = scmp.ne.s32.totalorder %s45, %s61
      %p63 = scmp.eq.s32.totalorder %s16, 0
      %p64 = por %p62, %p63
      %s65 = ssub.s32 %s19, %s28
      %s66 = ssub.s32 %s18, %s32
      %s67 = sor.u32 %s65, %s66
      %p68 = scmp.eq.s32.totalorder %s67, 0
      %s70 = sadd.s32 %s69, 1
      %s71 = scalar_select %p68, %s69, %s70
      %p74 = pneg %p68
      %p75 = scmp.eq.s32.totalorder %s10, 17
      %p76 = por %p74, %p75
      %p77 = scmp.ne.s32.totalorder %s69, %s72
      %p78 = scmp.eq.s32.totalorder %s10, 0
      %p79 = por %p77, %p78
      %p80 = scmp.ne.s32.totalorder %s69, %s72
      %p81 = scmp.eq.s32.totalorder %s15, 17
      %p82 = por %p80, %p81
      %p83 = scmp.ne.s32.totalorder %s72, %s73
      %p84 = scmp.eq.s32.totalorder %s15, 0
      %p85 = por %p83, %p84
      %p86 = scmp.ne.s32.totalorder %s72, %s73
      %p87 = scmp.eq.s32.totalorder %s16, 17
      %p88 = por %p86, %p87
      %p90 = scmp.ne.s32.totalorder %s73, %s89
      %p91 = scmp.eq.s32.totalorder %s16, 0
      %p92 = por %p90, %p91
      %s93 = ssub.s32 %s18, %s32
      %p94 = scmp.eq.s32.totalorder %s93, 0
      %s96 = sadd.s32 %s95, 1
      %s97 = scalar_select %p94, %s95, %s96
      %p100 = pneg %p94
      %p101 = scmp.eq.s32.totalorder %s10, 17
      %p102 = por %p100, %p101
      %p103 = scmp.ne.s32.totalorder %s95, %s98
      %p104 = scmp.eq.s32.totalorder %s10, 0
      %p105 = por %p103, %p104
      %p106 = scmp.ne.s32.totalorder %s95, %s98
      %p107 = scmp.eq.s32.totalorder %s15, 17
      %p108 = por %p106, %p107
      %p109 = scmp.ne.s32.totalorder %s98, %s99
      %p110 = scmp.eq.s32.totalorder %s15, 0
      %p111 = por %p109, %p110
      %p112 = scmp.ne.s32.totalorder %s98, %s99
      %p113 = scmp.eq.s32.totalorder %s16, 17
      %p114 = por %p112, %p113
      %p116 = scmp.ne.s32.totalorder %s99, %s115
      %p117 = scmp.eq.s32.totalorder %s16, 0
      %p118 = por %p116, %p117
      %s119 = ssub.s32 %s18, %s32
      %p120 = scmp.eq.s32.totalorder %s119, 0
      %s122 = sadd.s32 %s121, 1
      %s123 = scalar_select %p120, %s121, %s122
      %p126 = pneg %p120
      %p127 = scmp.eq.s32.totalorder %s10, 17
      %p128 = por %p126, %p127
      %p129 = scmp.ne.s32.totalorder %s121, %s124
      %p130 = scmp.eq.s32.totalorder %s10, 0
      %p131 = por %p129, %p130
      %p132 = scmp.ne.s32.totalorder %s121, %s124
      %p133 = scmp.eq.s32.totalorder %s15, 17
      %p134 = por %p132, %p133
      %p135 = scmp.ne.s32.totalorder %s124, %s125
      %p136 = scmp.eq.s32.totalorder %s15, 0
      %p137 = por %p135, %p136
      %p138 = scmp.ne.s32.totalorder %s124, %s125
      %p139 = scmp.eq.s32.totalorder %s16, 17
      %p140 = por %p138, %p139
      %p142 = scmp.ne.s32.totalorder %s125, %s141
      %p143 = scmp.eq.s32.totalorder %s16, 0
      %p144 = por %p142, %p143
      %s145 = ssub.s32 %s17, %s36
      %s146 = ssub.s32 %s18, %s32
      %s147 = sor.u32 %s145, %s146
      %p148 = scmp.eq.s32.totalorder %s147, 0
      %s150 = sadd.s32 %s149, 1
      %s151 = scalar_select %p148, %s149, %s150
      %p154 = pneg %p148
      %p155 = scmp.eq.s32.totalorder %s10, 17
      %p156 = por %p154, %p155
      %p157 = scmp.ne.s32.totalorder %s149, %s152
      %p158 = scmp.eq.s32.totalorder %s10, 0
      %p159 = por %p157, %p158
      %p160 = scmp.ne.s32.totalorder %s149, %s152
      %p161 = scmp.eq.s32.totalorder %s15, 17
      %p162 = por %p160, %p161
      %p163 = scmp.ne.s32.totalorder %s152, %s153
      %p164 = scmp.eq.s32.totalorder %s15, 0
      %p165 = por %p163, %p164
      %p166 = scmp.ne.s32.totalorder %s152, %s153
      %p167 = scmp.eq.s32.totalorder %s16, 17
      %p168 = por %p166, %p167
      %p170 = scmp.ne.s32.totalorder %s153, %s169
      %p171 = scmp.eq.s32.totalorder %s16, 0
      %p172 = por %p170, %p171
      %p173 = scmp.le.s32.totalorder 1, %s10
      %p174 = scmp.lt.s32.totalorder %s10, 19
      %p175 = pnand %p173, %p174
      %p176 = pneg %p175
      // Predicated region
      $region9: #{_lambda_.4} parent=5 // pred_check
        _
      $region10: #{_lambda_.4} parent=5 // pred_check_branch
        %178 = sbr.rel (%p175) target = $region12
      $region11: #{_lambda_.4} parent=5 // pred_region
        %s179 = ssub.s32 %s10, 1
        // Predicated region
        $region13: #{_lambda_.4} parent=11 // pred_check
          %p180 = pneg %p111
        $region14: #{_lambda_.4} parent=11 // pred_check_branch
          %182 = sbr.rel (%p180) target = $region16
        $region15: #{_lambda_.4} parent=11 // pred_region
          %p183 = scmp.lt.s32.totalorder %s21, 0
          %s184 = scalar_select %p183, %s21, 0
          %s185 = scalar_lea.vmem %s2, %s184
        $region16: #{_lambda_.4} parent=11 // pred_fallthru
          _
        // Predicated region
        $region17: #{_lambda_.4} parent=11 // pred_check
          %p186 = pneg %p137
        $region18: #{_lambda_.4} parent=11 // pred_check_branch
          %188 = sbr.rel (%p186) target = $region20
        $region19: #{_lambda_.4} parent=11 // pred_region
          %p189 = scmp.lt.s32.totalorder %s21, 0
          %s190 = scalar_select %p189, %s21, 0
          %s191 = scalar_lea.vmem %s3, %s190
        $region20: #{_lambda_.4} parent=11 // pred_fallthru
          _
      $region12: #{_lambda_.4} parent=5 // pred_fallthru
        _
      %p192 = scmp.lt.s32.totalorder %s10, 18
      // Predicated region
      $region21: #{_lambda_.4} parent=5 // pred_check
        %p193 = pneg %p192
      $region22: #{_lambda_.4} parent=5 // pred_check_branch
        %195 = sbr.rel (%p193) target = $region24
      $region23: #{_lambda_.4} parent=5 // pred_region
        // Predicated region
        $region25: #{_lambda_.4} parent=23 // pred_check
          %p196 = pneg %p51
        $region26: #{_lambda_.4} parent=23 // pred_check_branch
          %198 = sbr.rel (%p196) target = $region28
        $region27: #{_lambda_.4} parent=23 // pred_region
          %s199 = sand.u32 %s41, 1
          %s200 = sand.u32 %s41, 1
          %s201 = smul.addr %s200, 768
          %s202 = scalar_lea.vmem [#allocation3], %s201
          %s203 = smul.u32 64, %s17
          %s204 = smul.u32 3, %s19
          %s205 = smul.addr %s203, 27
          %s206 = sadd.s32 %s204, %s205
          %s207 = smul.addr %s206, 4
          %s208 = scalar_lea.vmem %s0, %s207
          // Predicated region
          $region29: #{_lambda_.4} parent=27 // pred_check
            _
          $region30: #{_lambda_.4} parent=27 // pred_check_branch
            %210 = sbr.rel (0) target = $region32
          $region31: #{_lambda_.4} parent=27 // pred_region
            // Predicated region
            $region33: #{_lambda_.4} parent=31 // pred_check
              _
            $region34: #{_lambda_.4} parent=31 // pred_check_branch
              %212 = sbr.rel (0) target = $region36
            $region35: #{_lambda_.4} parent=31 // pred_region
              %s213 = scalar_lea.vmem %s208, 8
              %s214 = scalar_lea.vmem %s202, 8 [#allocation3]
              loop: start=0, step=1, limit=1
              $region37: #{_lambda_.4} parent=35 // loop_pre_header
                _
              $region38: #{_lambda_.4} parent=35 // loop_header
                %s216 = sphi 0, %s220
                %p217 = scmp.ge.s32.totalorder %s216, 1
                %s221 = sphi %s208, %s208
                %s222 = sphi %s202, %s202
              $region39: #{_lambda_.4} parent=35 // loop_header_branch
                %219 = sbr.rel (%p217) target = $region43
              $region40: #{_lambda_.4} parent=35 // loop_body
                %v223 = vld [vmem:[%s221] sm:$0xff]
                %224 = vst [vmem:[%s222] sm:$0xff] %v223
                %v225 = vld [vmem:[%s221 + $0x6c] sm:$0xff]
                %226 = vst [vmem:[%s222 + $0xc] sm:$0xff] %v225
                %v227 = vld [vmem:[%s221 + $0xd8] sm:$0xff]
                %228 = vst [vmem:[%s222 + $0x18] sm:$0xff] %v227
                %v229 = vld [vmem:[%s221 + $0x144] sm:$0xff]
                %230 = vst [vmem:[%s222 + $0x24] sm:$0xff] %v229
                %v231 = vld [vmem:[%s221 + $0x1b0] sm:$0xff]
                %232 = vst [vmem:[%s222 + $0x30] sm:$0xff] %v231
                %v233 = vld [vmem:[%s221 + $0x21c] sm:$0xff]
                %234 = vst [vmem:[%s222 + $0x3c] sm:$0xff] %v233
                %v235 = vld [vmem:[%s221 + $0x288] sm:$0xff]
                %236 = vst [vmem:[%s222 + $0x48] sm:$0xff] %v235
                %v237 = vld [vmem:[%s221 + $0x2f4] sm:$0xff]
                %238 = vst [vmem:[%s222 + $0x54] sm:$0xff] %v237
                %v239 = vld [vmem:[%s221 + $0x360] sm:$0xff]
                %240 = vst [vmem:[%s222 + $0x60] sm:$0xff] %v239
                %v241 = vld [vmem:[%s221 + $0x3cc] sm:$0xff]
                %242 = vst [vmem:[%s222 + $0x6c] sm:$0xff] %v241
                %v243 = vld [vmem:[%s221 + $0x438] sm:$0xff]
                %244 = vst [vmem:[%s222 + $0x78] sm:$0xff] %v243
                %v245 = vld [vmem:[%s221 + $0x4a4] sm:$0xff]
                %246 = vst [vmem:[%s222 + $0x84] sm:$0xff] %v245
                %v247 = vld [vmem:[%s221 + $0x510] sm:$0xff]
                %248 = vst [vmem:[%s222 + $0x90] sm:$0xff] %v247
                %v249 = vld [vmem:[%s221 + $0x57c] sm:$0xff]
                %250 = vst [vmem:[%s222 + $0x9c] sm:$0xff] %v249
                %v251 = vld [vmem:[%s221 + $0x5e8] sm:$0xff]
                %252 = vst [vmem:[%s222 + $0xa8] sm:$0xff] %v251
                %v253 = vld [vmem:[%s221 + $0x654] sm:$0xff]
                %254 = vst [vmem:[%s222 + $0xb4] sm:$0xff] %v253
                %v255 = vld [vmem:[%s221 + $0x6c0] sm:$0xff]
                %256 = vst [vmem:[%s222 + $0xc0] sm:$0xff] %v255
                %v257 = vld [vmem:[%s221 + $0x72c] sm:$0xff]
                %258 = vst [vmem:[%s222 + $0xcc] sm:$0xff] %v257
                %v259 = vld [vmem:[%s221 + $0x798] sm:$0xff]
                %260 = vst [vmem:[%s222 + $0xd8] sm:$0xff] %v259
                %v261 = vld [vmem:[%s221 + $0x804] sm:$0xff]
                %262 = vst [vmem:[%s222 + $0xe4] sm:$0xff] %v261
                %v263 = vld [vmem:[%s221 + $0x870] sm:$0xff]
                %264 = vst [vmem:[%s222 + $0xf0] sm:$0xff] %v263
                %v265 = vld [vmem:[%s221 + $0x8dc] sm:$0xff]
                %266 = vst [vmem:[%s222 + $0xfc] sm:$0xff] %v265
                %v267 = vld [vmem:[%s221 + $0x948] sm:$0xff]
                %268 = vst [vmem:[%s222 + $0x108] sm:$0xff] %v267
                %v269 = vld [vmem:[%s221 + $0x9b4] sm:$0xff]
                %270 = vst [vmem:[%s222 + $0x114] sm:$0xff] %v269
                %v271 = vld [vmem:[%s221 + $0xa20] sm:$0xff]
                %272 = vst [vmem:[%s222 + $0x120] sm:$0xff] %v271
                %v273 = vld [vmem:[%s221 + $0xa8c] sm:$0xff]
                %274 = vst [vmem:[%s222 + $0x12c] sm:$0xff] %v273
                %v275 = vld [vmem:[%s221 + $0xaf8] sm:$0xff]
                %276 = vst [vmem:[%s222 + $0x138] sm:$0xff] %v275
                %v277 = vld [vmem:[%s221 + $0xb64] sm:$0xff]
                %278 = vst [vmem:[%s222 + $0x144] sm:$0xff] %v277
                %v279 = vld [vmem:[%s221 + $0xbd0] sm:$0xff]
                %280 = vst [vmem:[%s222 + $0x150] sm:$0xff] %v279
                %v281 = vld [vmem:[%s221 + $0xc3c] sm:$0xff]
                %282 = vst [vmem:[%s222 + $0x15c] sm:$0xff] %v281
                %v283 = vld [vmem:[%s221 + $0xca8] sm:$0xff]
                %284 = vst [vmem:[%s222 + $0x168] sm:$0xff] %v283
                %v285 = vld [vmem:[%s221 + $0xd14] sm:$0xff]
                %286 = vst [vmem:[%s222 + $0x174] sm:$0xff] %v285
                %v287 = vld [vmem:[%s221 + $0xd80] sm:$0xff]
                %288 = vst [vmem:[%s222 + $0x180] sm:$0xff] %v287
                %v289 = vld [vmem:[%s221 + $0xdec] sm:$0xff]
                %290 = vst [vmem:[%s222 + $0x18c] sm:$0xff] %v289
                %v291 = vld [vmem:[%s221 + $0xe58] sm:$0xff]
                %292 = vst [vmem:[%s222 + $0x198] sm:$0xff] %v291
                %v293 = vld [vmem:[%s221 + $0xec4] sm:$0xff]
                %294 = vst [vmem:[%s222 + $0x1a4] sm:$0xff] %v293
                %v295 = vld [vmem:[%s221 + $0xf30] sm:$0xff]
                %296 = vst [vmem:[%s222 + $0x1b0] sm:$0xff] %v295
                %v297 = vld [vmem:[%s221 + $0xf9c] sm:$0xff]
                %298 = vst [vmem:[%s222 + $0x1bc] sm:$0xff] %v297
                %v299 = vld [vmem:[%s221 + $0x1008] sm:$0xff]
                %300 = vst [vmem:[%s222 + $0x1c8] sm:$0xff] %v299
                %v301 = vld [vmem:[%s221 + $0x1074] sm:$0xff]
                %302 = vst [vmem:[%s222 + $0x1d4] sm:$0xff] %v301
                %v303 = vld [vmem:[%s221 + $0x10e0] sm:$0xff]
                %304 = vst [vmem:[%s222 + $0x1e0] sm:$0xff] %v303
                %v305 = vld [vmem:[%s221 + $0x114c] sm:$0xff]
                %306 = vst [vmem:[%s222 + $0x1ec] sm:$0xff] %v305
                %v307 = vld [vmem:[%s221 + $0x11b8] sm:$0xff]
                %308 = vst [vmem:[%s222 + $0x1f8] sm:$0xff] %v307
                %v309 = vld [vmem:[%s221 + $0x1224] sm:$0xff]
                %310 = vst [vmem:[%s222 + $0x204] sm:$0xff] %v309
                %v311 = vld [vmem:[%s221 + $0x1290] sm:$0xff]
                %312 = vst [vmem:[%s222 + $0x210] sm:$0xff] %v311
                %v313 = vld [vmem:[%s221 + $0x12fc] sm:$0xff]
                %314 = vst [vmem:[%s222 + $0x21c] sm:$0xff] %v313
                %v315 = vld [vmem:[%s221 + $0x1368] sm:$0xff]
                %316 = vst [vmem:[%s222 + $0x228] sm:$0xff] %v315
                %v317 = vld [vmem:[%s221 + $0x13d4] sm:$0xff]
                %318 = vst [vmem:[%s222 + $0x234] sm:$0xff] %v317
                %v319 = vld [vmem:[%s221 + $0x1440] sm:$0xff]
                %320 = vst [vmem:[%s222 + $0x240] sm:$0xff] %v319
                %v321 = vld [vmem:[%s221 + $0x14ac] sm:$0xff]
                %322 = vst [vmem:[%s222 + $0x24c] sm:$0xff] %v321
                %v323 = vld [vmem:[%s221 + $0x1518] sm:$0xff]
                %324 = vst [vmem:[%s222 + $0x258] sm:$0xff] %v323
                %v325 = vld [vmem:[%s221 + $0x1584] sm:$0xff]
                %326 = vst [vmem:[%s222 + $0x264] sm:$0xff] %v325
                %v327 = vld [vmem:[%s221 + $0x15f0] sm:$0xff]
                %328 = vst [vmem:[%s222 + $0x270] sm:$0xff] %v327
                %v329 = vld [vmem:[%s221 + $0x165c] sm:$0xff]
                %330 = vst [vmem:[%s222 + $0x27c] sm:$0xff] %v329
                %v331 = vld [vmem:[%s221 + $0x16c8] sm:$0xff]
                %332 = vst [vmem:[%s222 + $0x288] sm:$0xff] %v331
                %v333 = vld [vmem:[%s221 + $0x1734] sm:$0xff]
                %334 = vst [vmem:[%s222 + $0x294] sm:$0xff] %v333
                %v335 = vld [vmem:[%s221 + $0x17a0] sm:$0xff]
                %336 = vst [vmem:[%s222 + $0x2a0] sm:$0xff] %v335
                %v337 = vld [vmem:[%s221 + $0x180c] sm:$0xff]
                %338 = vst [vmem:[%s222 + $0x2ac] sm:$0xff] %v337
                %v339 = vld [vmem:[%s221 + $0x1878] sm:$0xff]
                %340 = vst [vmem:[%s222 + $0x2b8] sm:$0xff] %v339
                %v341 = vld [vmem:[%s221 + $0x18e4] sm:$0xff]
                %342 = vst [vmem:[%s222 + $0x2c4] sm:$0xff] %v341
                %v343 = vld [vmem:[%s221 + $0x1950] sm:$0xff]
                %344 = vst [vmem:[%s222 + $0x2d0] sm:$0xff] %v343
                %v345 = vld [vmem:[%s221 + $0x19bc] sm:$0xff]
                %346 = vst [vmem:[%s222 + $0x2dc] sm:$0xff] %v345
                %v347 = vld [vmem:[%s221 + $0x1a28] sm:$0xff]
                %348 = vst [vmem:[%s222 + $0x2e8] sm:$0xff] %v347
                %v349 = vld [vmem:[%s221 + $0x1a94] sm:$0xff]
                %350 = vst [vmem:[%s222 + $0x2f4] sm:$0xff] %v349
              $region41: #{_lambda_.4} parent=35 // loop_footer
                %s220 = sadd.s32 1, %s216
              $region42: #{_lambda_.4} parent=35 // loop_footer_branch
                %215 = sbr.rel target = $region38
              $region43: #{_lambda_.4} parent=35 // loop_exit
                _
              loop: start=0, step=1, limit=1
              $region44: #{_lambda_.4} parent=35 // loop_pre_header
                _
              $region45: #{_lambda_.4} parent=35 // loop_header
                %s353 = sphi 0, %s357
                %p354 = scmp.ge.s32.totalorder %s353, 1
                %s358 = sphi %s213, %s213
                %s359 = sphi %s214, %s214
              $region46: #{_lambda_.4} parent=35 // loop_header_branch
                %356 = sbr.rel (%p354) target = $region50
              $region47: #{_lambda_.4} parent=35 // loop_body
                %v360 = vld [vmem:[%s358] sm:$0xf]
                %361 = vst [vmem:[%s359] sm:$0xf] %v360
                %v362 = vld [vmem:[%s358 + $0x6c] sm:$0xf]
                %363 = vst [vmem:[%s359 + $0xc] sm:$0xf] %v362
                %v364 = vld [vmem:[%s358 + $0xd8] sm:$0xf]
                %365 = vst [vmem:[%s359 + $0x18] sm:$0xf] %v364
                %v366 = vld [vmem:[%s358 + $0x144] sm:$0xf]
                %367 = vst [vmem:[%s359 + $0x24] sm:$0xf] %v366
                %v368 = vld [vmem:[%s358 + $0x1b0] sm:$0xf]
                %369 = vst [vmem:[%s359 + $0x30] sm:$0xf] %v368
                %v370 = vld [vmem:[%s358 + $0x21c] sm:$0xf]
                %371 = vst [vmem:[%s359 + $0x3c] sm:$0xf] %v370
                %v372 = vld [vmem:[%s358 + $0x288] sm:$0xf]
                %373 = vst [vmem:[%s359 + $0x48] sm:$0xf] %v372
                %v374 = vld [vmem:[%s358 + $0x2f4] sm:$0xf]
                %375 = vst [vmem:[%s359 + $0x54] sm:$0xf] %v374
                %v376 = vld [vmem:[%s358 + $0x360] sm:$0xf]
                %377 = vst [vmem:[%s359 + $0x60] sm:$0xf] %v376
                %v378 = vld [vmem:[%s358 + $0x3cc] sm:$0xf]
                %379 = vst [vmem:[%s359 + $0x6c] sm:$0xf] %v378
                %v380 = vld [vmem:[%s358 + $0x438] sm:$0xf]
                %381 = vst [vmem:[%s359 + $0x78] sm:$0xf] %v380
                %v382 = vld [vmem:[%s358 + $0x4a4] sm:$0xf]
                %383 = vst [vmem:[%s359 + $0x84] sm:$0xf] %v382
                %v384 = vld [vmem:[%s358 + $0x510] sm:$0xf]
                %385 = vst [vmem:[%s359 + $0x90] sm:$0xf] %v384
                %v386 = vld [vmem:[%s358 + $0x57c] sm:$0xf]
                %387 = vst [vmem:[%s359 + $0x9c] sm:$0xf] %v386
                %v388 = vld [vmem:[%s358 + $0x5e8] sm:$0xf]
                %389 = vst [vmem:[%s359 + $0xa8] sm:$0xf] %v388
                %v390 = vld [vmem:[%s358 + $0x654] sm:$0xf]
                %391 = vst [vmem:[%s359 + $0xb4] sm:$0xf] %v390
                %v392 = vld [vmem:[%s358 + $0x6c0] sm:$0xf]
                %393 = vst [vmem:[%s359 + $0xc0] sm:$0xf] %v392
                %v394 = vld [vmem:[%s358 + $0x72c] sm:$0xf]
                %395 = vst [vmem:[%s359 + $0xcc] sm:$0xf] %v394
                %v396 = vld [vmem:[%s358 + $0x798] sm:$0xf]
                %397 = vst [vmem:[%s359 + $0xd8] sm:$0xf] %v396
                %v398 = vld [vmem:[%s358 + $0x804] sm:$0xf]
                %399 = vst [vmem:[%s359 + $0xe4] sm:$0xf] %v398
                %v400 = vld [vmem:[%s358 + $0x870] sm:$0xf]
                %401 = vst [vmem:[%s359 + $0xf0] sm:$0xf] %v400
                %v402 = vld [vmem:[%s358 + $0x8dc] sm:$0xf]
                %403 = vst [vmem:[%s359 + $0xfc] sm:$0xf] %v402
                %v404 = vld [vmem:[%s358 + $0x948] sm:$0xf]
                %405 = vst [vmem:[%s359 + $0x108] sm:$0xf] %v404
                %v406 = vld [vmem:[%s358 + $0x9b4] sm:$0xf]
                %407 = vst [vmem:[%s359 + $0x114] sm:$0xf] %v406
                %v408 = vld [vmem:[%s358 + $0xa20] sm:$0xf]
                %409 = vst [vmem:[%s359 + $0x120] sm:$0xf] %v408
                %v410 = vld [vmem:[%s358 + $0xa8c] sm:$0xf]
                %411 = vst [vmem:[%s359 + $0x12c] sm:$0xf] %v410
                %v412 = vld [vmem:[%s358 + $0xaf8] sm:$0xf]
                %413 = vst [vmem:[%s359 + $0x138] sm:$0xf] %v412
                %v414 = vld [vmem:[%s358 + $0xb64] sm:$0xf]
                %415 = vst [vmem:[%s359 + $0x144] sm:$0xf] %v414
                %v416 = vld [vmem:[%s358 + $0xbd0] sm:$0xf]
                %417 = vst [vmem:[%s359 + $0x150] sm:$0xf] %v416
                %v418 = vld [vmem:[%s358 + $0xc3c] sm:$0xf]
                %419 = vst [vmem:[%s359 + $0x15c] sm:$0xf] %v418
                %v420 = vld [vmem:[%s358 + $0xca8] sm:$0xf]
                %421 = vst [vmem:[%s359 + $0x168] sm:$0xf] %v420
                %v422 = vld [vmem:[%s358 + $0xd14] sm:$0xf]
                %423 = vst [vmem:[%s359 + $0x174] sm:$0xf] %v422
                %v424 = vld [vmem:[%s358 + $0xd80] sm:$0xf]
                %425 = vst [vmem:[%s359 + $0x180] sm:$0xf] %v424
                %v426 = vld [vmem:[%s358 + $0xdec] sm:$0xf]
                %427 = vst [vmem:[%s359 + $0x18c] sm:$0xf] %v426
                %v428 = vld [vmem:[%s358 + $0xe58] sm:$0xf]
                %429 = vst [vmem:[%s359 + $0x198] sm:$0xf] %v428
                %v430 = vld [vmem:[%s358 + $0xec4] sm:$0xf]
                %431 = vst [vmem:[%s359 + $0x1a4] sm:$0xf] %v430
                %v432 = vld [vmem:[%s358 + $0xf30] sm:$0xf]
                %433 = vst [vmem:[%s359 + $0x1b0] sm:$0xf] %v432
                %v434 = vld [vmem:[%s358 + $0xf9c] sm:$0xf]
                %435 = vst [vmem:[%s359 + $0x1bc] sm:$0xf] %v434
                %v436 = vld [vmem:[%s358 + $0x1008] sm:$0xf]
                %437 = vst [vmem:[%s359 + $0x1c8] sm:$0xf] %v436
                %v438 = vld [vmem:[%s358 + $0x1074] sm:$0xf]
                %439 = vst [vmem:[%s359 + $0x1d4] sm:$0xf] %v438
                %v440 = vld [vmem:[%s358 + $0x10e0] sm:$0xf]
                %441 = vst [vmem:[%s359 + $0x1e0] sm:$0xf] %v440
                %v442 = vld [vmem:[%s358 + $0x114c] sm:$0xf]
                %443 = vst [vmem:[%s359 + $0x1ec] sm:$0xf] %v442
                %v444 = vld [vmem:[%s358 + $0x11b8] sm:$0xf]
                %445 = vst [vmem:[%s359 + $0x1f8] sm:$0xf] %v444
                %v446 = vld [vmem:[%s358 + $0x1224] sm:$0xf]
                %447 = vst [vmem:[%s359 + $0x204] sm:$0xf] %v446
                %v448 = vld [vmem:[%s358 + $0x1290] sm:$0xf]
                %449 = vst [vmem:[%s359 + $0x210] sm:$0xf] %v448
                %v450 = vld [vmem:[%s358 + $0x12fc] sm:$0xf]
                %451 = vst [vmem:[%s359 + $0x21c] sm:$0xf] %v450
                %v452 = vld [vmem:[%s358 + $0x1368] sm:$0xf]
                %453 = vst [vmem:[%s359 + $0x228] sm:$0xf] %v452
                %v454 = vld [vmem:[%s358 + $0x13d4] sm:$0xf]
                %455 = vst [vmem:[%s359 + $0x234] sm:$0xf] %v454
                %v456 = vld [vmem:[%s358 + $0x1440] sm:$0xf]
                %457 = vst [vmem:[%s359 + $0x240] sm:$0xf] %v456
                %v458 = vld [vmem:[%s358 + $0x14ac] sm:$0xf]
                %459 = vst [vmem:[%s359 + $0x24c] sm:$0xf] %v458
                %v460 = vld [vmem:[%s358 + $0x1518] sm:$0xf]
                %461 = vst [vmem:[%s359 + $0x258] sm:$0xf] %v460
                %v462 = vld [vmem:[%s358 + $0x1584] sm:$0xf]
                %463 = vst [vmem:[%s359 + $0x264] sm:$0xf] %v462
                %v464 = vld [vmem:[%s358 + $0x15f0] sm:$0xf]
                %465 = vst [vmem:[%s359 + $0x270] sm:$0xf] %v464
                %v466 = vld [vmem:[%s358 + $0x165c] sm:$0xf]
                %467 = vst [vmem:[%s359 + $0x27c] sm:$0xf] %v466
                %v468 = vld [vmem:[%s358 + $0x16c8] sm:$0xf]
                %469 = vst [vmem:[%s359 + $0x288] sm:$0xf] %v468
                %v470 = vld [vmem:[%s358 + $0x1734] sm:$0xf]
                %471 = vst [vmem:[%s359 + $0x294] sm:$0xf] %v470
                %v472 = vld [vmem:[%s358 + $0x17a0] sm:$0xf]
                %473 = vst [vmem:[%s359 + $0x2a0] sm:$0xf] %v472
                %v474 = vld [vmem:[%s358 + $0x180c] sm:$0xf]
                %475 = vst [vmem:[%s359 + $0x2ac] sm:$0xf] %v474
                %v476 = vld [vmem:[%s358 + $0x1878] sm:$0xf]
                %477 = vst [vmem:[%s359 + $0x2b8] sm:$0xf] %v476
                %v478 = vld [vmem:[%s358 + $0x18e4] sm:$0xf]
                %479 = vst [vmem:[%s359 + $0x2c4] sm:$0xf] %v478
                %v480 = vld [vmem:[%s358 + $0x1950] sm:$0xf]
                %481 = vst [vmem:[%s359 + $0x2d0] sm:$0xf] %v480
                %v482 = vld [vmem:[%s358 + $0x19bc] sm:$0xf]
                %483 = vst [vmem:[%s359 + $0x2dc] sm:$0xf] %v482
                %v484 = vld [vmem:[%s358 + $0x1a28] sm:$0xf]
                %485 = vst [vmem:[%s359 + $0x2e8] sm:$0xf] %v484
                %v486 = vld [vmem:[%s358 + $0x1a94] sm:$0xf]
                %487 = vst [vmem:[%s359 + $0x2f4] sm:$0xf] %v486
              $region48: #{_lambda_.4} parent=35 // loop_footer
                %s357 = sadd.s32 1, %s353
              $region49: #{_lambda_.4} parent=35 // loop_footer_branch
                %352 = sbr.rel target = $region45
              $region50: #{_lambda_.4} parent=35 // loop_exit
                _
            $region36: #{_lambda_.4} parent=31 // pred_fallthru
              _
          $region32: #{_lambda_.4} parent=27 // pred_fallthru
            _
          %488 = vnop
        $region28: #{_lambda_.4} parent=23 // pred_fallthru
          _
        // Predicated region
        $region51: #{_lambda_.4} parent=23 // pred_check
          %p489 = pneg %p79
        $region52: #{_lambda_.4} parent=23 // pred_check_branch
          %491 = sbr.rel (%p489) target = $region54
        $region53: #{_lambda_.4} parent=23 // pred_region
          %s492 = smul.u32 48, %s19
          %p493 = scmp.lt.s32.totalorder %s492, 431
          %s494 = scalar_select %p493, %s492, 431
          %p495 = scmp.lt.s32.totalorder %s18, 0
          %s496 = scalar_select %p495, %s18, 0
          %s497 = sadd.s32 %s496, %s494
          %s498 = smul.addr %s497, 4
          %s499 = scalar_lea.vmem %s1, %s498
          %s500 = smul.u32 48, %s19
        $region54: #{_lambda_.4} parent=23 // pred_fallthru
          _
      $region24: #{_lambda_.4} parent=5 // pred_fallthru
        _
      %p501 = scmp.le.s32.totalorder 1, %s10
      %p502 = scmp.lt.s32.totalorder %s10, 19
      %p503 = pnand %p501, %p502
      %p504 = pneg %p503
      // Predicated region
      $region55: #{_lambda_.4} parent=5 // pred_check
        _
      $region56: #{_lambda_.4} parent=5 // pred_check_branch
        %506 = sbr.rel (%p503) target = $region58
      $region57: #{_lambda_.4} parent=5 // pred_region
        %s507 = ssub.s32 %s10, 1
        %s508 = sand.u32 %s44, 1
        %s509 = sand.u32 %s44, 1
        %s510 = smul.addr %s509, 768
        %s511 = scalar_lea.vmem [#allocation3], %s510
        // Predicated region
        $region59: #{_lambda_.4} parent=57 // pred_check
          %p512 = pneg %p57
        $region60: #{_lambda_.4} parent=57 // pred_check_branch
          %514 = sbr.rel (%p512) target = $region62
        $region61: #{_lambda_.4} parent=57 // pred_region
          _
        $region62: #{_lambda_.4} parent=57 // pred_fallthru
          _
        %s515 = sand.u32 %s44, 1
        %s516 = sand.u32 %s44, 1
        %s517 = smul.addr %s516, 768
        %s518 = scalar_lea.vmem [#allocation3], %s517
        %p519 = pneg %p57
        %p520 = pneg %p54
        %s521 = smul.u32 48, %s22
        %p522 = scmp.lt.s32.totalorder %s521, 431
        %s523 = scalar_select %p522, %s521, 431
        %p524 = scmp.lt.s32.totalorder %s21, 0
        %s525 = scalar_select %p524, %s21, 0
        %s526 = sadd.s32 %s525, %s523
        %s527 = smul.addr %s526, 4
        %s528 = scalar_lea.vmem %s1, %s527
        %p529 = pneg %p85
        %p530 = pneg %p82
        %p531 = scmp.lt.s32.totalorder %s21, 0
        %s532 = scalar_select %p531, %s21, 0
        %s533 = scalar_lea.vmem %s2, %s532
        %p534 = pneg %p111
        %p535 = pneg %p108
        %p536 = scmp.lt.s32.totalorder %s21, 0
        %s537 = scalar_select %p536, %s21, 0
        %s538 = scalar_lea.vmem %s3, %s537
        %p539 = pneg %p137
        %p540 = pneg %p134
        %p541 = pneg %p165
        %p542 = pneg %p162
        %s543 = smul.u32 64, %s20
        %p544 = scmp.lt.s32.totalorder %s543, 127
        %s545 = scalar_select %p544, %s543, 127
        %p546 = scmp.lt.s32.totalorder %s21, 0
        %s547 = scalar_select %p546, %s21, 0
        %s548 = sadd.s32 %s547, %s545
        %s549 = smul.addr %s548, 4
        %s550 = scalar_lea.vmem %s4, %s549
        %s551 = smul.u32 64, %s20
        %s552 = smul.u32 3, %s22
        %s553 = smul.u32 48, %s22
        %p554 = scmp.lt.s32.totalorder %s553, 431
        %s555 = scalar_select %p554, %s553, 431
        %p556 = scmp.lt.s32.totalorder %s21, 0
        %s557 = scalar_select %p556, %s21, 0
        %s558 = sadd.s32 %s557, %s555
        %s559 = smul.addr %s558, 4
        %s560 = scalar_lea.vmem %s1, %s559
        %s561 = smul.u32 48, %s22
        %p562 = scmp.lt.s32.totalorder %s21, 0
        %s563 = scalar_select %p562, %s21, 0
        %s564 = scalar_lea.vmem %s2, %s563
        %p565 = scmp.lt.s32.totalorder %s21, 0
        %s566 = scalar_select %p565, %s21, 0
        %s567 = scalar_lea.vmem %s3, %s566
        %s568 = smul.u32 64, %s20
        %p569 = scmp.lt.s32.totalorder %s568, 127
        %s570 = scalar_select %p569, %s568, 127
        %p571 = scmp.lt.s32.totalorder %s21, 0
        %s572 = scalar_select %p571, %s21, 0
        %s573 = sadd.s32 %s572, %s570
        %s574 = smul.addr %s573, 4
        %s575 = scalar_lea.vmem %s4, %s574
        %s576 = smul.u32 64, %s20
        %p578 = scmp.eq.s32.totalorder %s22, 0
        // Predicated region
        $region63: #{_lambda_.4} parent=57 // pred_check
          %p579 = pneg %p578
        $region64: #{_lambda_.4} parent=57 // pred_check_branch
          %581 = sbr.rel (%p579) target = $region66
        $region65: #{_lambda_.4} parent=57 // pred_region
          %582 = vst [vmem:[#allocation2] sm:$0xff] 0.0
          %583 = vst [vmem:[#allocation2 + $0x8] sm:$0xff] 0.0
          %584 = vst [vmem:[#allocation2 + $0x10] sm:$0xff] 0.0
          %585 = vst [vmem:[#allocation2 + $0x18] sm:$0xff] 0.0
          %586 = vst [vmem:[#allocation2 + $0x20] sm:$0xff] 0.0
          %587 = vst [vmem:[#allocation2 + $0x28] sm:$0xff] 0.0
          %588 = vst [vmem:[#allocation2 + $0x30] sm:$0xff] 0.0
          %589 = vst [vmem:[#allocation2 + $0x38] sm:$0xff] 0.0
          %590 = vst [vmem:[#allocation2 + $0x40] sm:$0xff] 0.0
          %591 = vst [vmem:[#allocation2 + $0x48] sm:$0xff] 0.0
          %592 = vst [vmem:[#allocation2 + $0x50] sm:$0xff] 0.0
          %593 = vst [vmem:[#allocation2 + $0x58] sm:$0xff] 0.0
          %594 = vst [vmem:[#allocation2 + $0x60] sm:$0xff] 0.0
          %595 = vst [vmem:[#allocation2 + $0x68] sm:$0xff] 0.0
          %596 = vst [vmem:[#allocation2 + $0x70] sm:$0xff] 0.0
          %597 = vst [vmem:[#allocation2 + $0x78] sm:$0xff] 0.0
          %598 = vst [vmem:[#allocation2 + $0x80] sm:$0xff] 0.0
          %599 = vst [vmem:[#allocation2 + $0x88] sm:$0xff] 0.0
          %600 = vst [vmem:[#allocation2 + $0x90] sm:$0xff] 0.0
          %601 = vst [vmem:[#allocation2 + $0x98] sm:$0xff] 0.0
          %602 = vst [vmem:[#allocation2 + $0xa0] sm:$0xff] 0.0
          %603 = vst [vmem:[#allocation2 + $0xa8] sm:$0xff] 0.0
          %604 = vst [vmem:[#allocation2 + $0xb0] sm:$0xff] 0.0
          %605 = vst [vmem:[#allocation2 + $0xb8] sm:$0xff] 0.0
          %606 = vst [vmem:[#allocation2 + $0xc0] sm:$0xff] 0.0
          %607 = vst [vmem:[#allocation2 + $0xc8] sm:$0xff] 0.0
          %608 = vst [vmem:[#allocation2 + $0xd0] sm:$0xff] 0.0
          %609 = vst [vmem:[#allocation2 + $0xd8] sm:$0xff] 0.0
          %610 = vst [vmem:[#allocation2 + $0xe0] sm:$0xff] 0.0
          %611 = vst [vmem:[#allocation2 + $0xe8] sm:$0xff] 0.0
          %612 = vst [vmem:[#allocation2 + $0xf0] sm:$0xff] 0.0
          %613 = vst [vmem:[#allocation2 + $0xf8] sm:$0xff] 0.0
          %614 = vst [vmem:[#allocation2 + $0x100] sm:$0xff] 0.0
          %615 = vst [vmem:[#allocation2 + $0x108] sm:$0xff] 0.0
          %616 = vst [vmem:[#allocation2 + $0x110] sm:$0xff] 0.0
          %617 = vst [vmem:[#allocation2 + $0x118] sm:$0xff] 0.0
          %618 = vst [vmem:[#allocation2 + $0x120] sm:$0xff] 0.0
          %619 = vst [vmem:[#allocation2 + $0x128] sm:$0xff] 0.0
          %620 = vst [vmem:[#allocation2 + $0x130] sm:$0xff] 0.0
          %621 = vst [vmem:[#allocation2 + $0x138] sm:$0xff] 0.0
          %622 = vst [vmem:[#allocation2 + $0x140] sm:$0xff] 0.0
          %623 = vst [vmem:[#allocation2 + $0x148] sm:$0xff] 0.0
          %624 = vst [vmem:[#allocation2 + $0x150] sm:$0xff] 0.0
          %625 = vst [vmem:[#allocation2 + $0x158] sm:$0xff] 0.0
          %626 = vst [vmem:[#allocation2 + $0x160] sm:$0xff] 0.0
          %627 = vst [vmem:[#allocation2 + $0x168] sm:$0xff] 0.0
          %628 = vst [vmem:[#allocation2 + $0x170] sm:$0xff] 0.0
          %629 = vst [vmem:[#allocation2 + $0x178] sm:$0xff] 0.0
          %630 = vst [vmem:[#allocation2 + $0x180] sm:$0xff] 0.0
          %631 = vst [vmem:[#allocation2 + $0x188] sm:$0xff] 0.0
          %632 = vst [vmem:[#allocation2 + $0x190] sm:$0xff] 0.0
          %633 = vst [vmem:[#allocation2 + $0x198] sm:$0xff] 0.0
          %634 = vst [vmem:[#allocation2 + $0x1a0] sm:$0xff] 0.0
          %635 = vst [vmem:[#allocation2 + $0x1a8] sm:$0xff] 0.0
          %636 = vst [vmem:[#allocation2 + $0x1b0] sm:$0xff] 0.0
          %637 = vst [vmem:[#allocation2 + $0x1b8] sm:$0xff] 0.0
          %638 = vst [vmem:[#allocation2 + $0x1c0] sm:$0xff] 0.0
          %639 = vst [vmem:[#allocation2 + $0x1c8] sm:$0xff] 0.0
          %640 = vst [vmem:[#allocation2 + $0x1d0] sm:$0xff] 0.0
          %641 = vst [vmem:[#allocation2 + $0x1d8] sm:$0xff] 0.0
          %642 = vst [vmem:[#allocation2 + $0x1e0] sm:$0xff] 0.0
          %643 = vst [vmem:[#allocation2 + $0x1e8] sm:$0xff] 0.0
          %644 = vst [vmem:[#allocation2 + $0x1f0] sm:$0xff] 0.0
          %645 = vst [vmem:[#allocation2 + $0x1f8] sm:$0xff] 0.0
        $region66: #{_lambda_.4} parent=57 // pred_fallthru
          _
        %v646 = vld [vmem:[#allocation2] sm:$0xff]
        %v647 = vld [vmem:[#allocation2 + $0x8] sm:$0xff]
        %v648 = vld [vmem:[#allocation2 + $0x10] sm:$0xff]
        %v649 = vld [vmem:[#allocation2 + $0x18] sm:$0xff]
        %v650 = vld [vmem:[#allocation2 + $0x20] sm:$0xff]
        %v651 = vld [vmem:[#allocation2 + $0x28] sm:$0xff]
        %v652 = vld [vmem:[#allocation2 + $0x30] sm:$0xff]
        %v653 = vld [vmem:[#allocation2 + $0x38] sm:$0xff]
        %v654 = vld [vmem:[#allocation2 + $0x40] sm:$0xff]
        %v655 = vld [vmem:[#allocation2 + $0x48] sm:$0xff]
        %v656 = vld [vmem:[#allocation2 + $0x50] sm:$0xff]
        %v657 = vld [vmem:[#allocation2 + $0x58] sm:$0xff]
        %v658 = vld [vmem:[#allocation2 + $0x60] sm:$0xff]
        %v659 = vld [vmem:[#allocation2 + $0x68] sm:$0xff]
        %v660 = vld [vmem:[#allocation2 + $0x70] sm:$0xff]
        %v661 = vld [vmem:[#allocation2 + $0x78] sm:$0xff]
        %v662 = vld [vmem:[#allocation2 + $0x80] sm:$0xff]
        %v663 = vld [vmem:[#allocation2 + $0x88] sm:$0xff]
        %v664 = vld [vmem:[#allocation2 + $0x90] sm:$0xff]
        %v665 = vld [vmem:[#allocation2 + $0x98] sm:$0xff]
        %v666 = vld [vmem:[#allocation2 + $0xa0] sm:$0xff]
        %v667 = vld [vmem:[#allocation2 + $0xa8] sm:$0xff]
        %v668 = vld [vmem:[#allocation2 + $0xb0] sm:$0xff]
        %v669 = vld [vmem:[#allocation2 + $0xb8] sm:$0xff]
        %v670 = vld [vmem:[#allocation2 + $0xc0] sm:$0xff]
        %v671 = vld [vmem:[#allocation2 + $0xc8] sm:$0xff]
        %v672 = vld [vmem:[#allocation2 + $0xd0] sm:$0xff]
        %v673 = vld [vmem:[#allocation2 + $0xd8] sm:$0xff]
        %v674 = vld [vmem:[#allocation2 + $0xe0] sm:$0xff]
        %v675 = vld [vmem:[#allocation2 + $0xe8] sm:$0xff]
        %v676 = vld [vmem:[#allocation2 + $0xf0] sm:$0xff]
        %v677 = vld [vmem:[#allocation2 + $0xf8] sm:$0xff]
        %v678 = vld [vmem:[#allocation2 + $0x100] sm:$0xff]
        %v679 = vld [vmem:[#allocation2 + $0x108] sm:$0xff]
        %v680 = vld [vmem:[#allocation2 + $0x110] sm:$0xff]
        %v681 = vld [vmem:[#allocation2 + $0x118] sm:$0xff]
        %v682 = vld [vmem:[#allocation2 + $0x120] sm:$0xff]
        %v683 = vld [vmem:[#allocation2 + $0x128] sm:$0xff]
        %v684 = vld [vmem:[#allocation2 + $0x130] sm:$0xff]
        %v685 = vld [vmem:[#allocation2 + $0x138] sm:$0xff]
        %v686 = vld [vmem:[#allocation2 + $0x140] sm:$0xff]
        %v687 = vld [vmem:[#allocation2 + $0x148] sm:$0xff]
        %v688 = vld [vmem:[#allocation2 + $0x150] sm:$0xff]
        %v689 = vld [vmem:[#allocation2 + $0x158] sm:$0xff]
        %v690 = vld [vmem:[#allocation2 + $0x160] sm:$0xff]
        %v691 = vld [vmem:[#allocation2 + $0x168] sm:$0xff]
        %v692 = vld [vmem:[#allocation2 + $0x170] sm:$0xff]
        %v693 = vld [vmem:[#allocation2 + $0x178] sm:$0xff]
        %v694 = vld [vmem:[#allocation2 + $0x180] sm:$0xff]
        %v695 = vld [vmem:[#allocation2 + $0x188] sm:$0xff]
        %v696 = vld [vmem:[#allocation2 + $0x190] sm:$0xff]
        %v697 = vld [vmem:[#allocation2 + $0x198] sm:$0xff]
        %v698 = vld [vmem:[#allocation2 + $0x1a0] sm:$0xff]
        %v699 = vld [vmem:[#allocation2 + $0x1a8] sm:$0xff]
        %v700 = vld [vmem:[#allocation2 + $0x1b0] sm:$0xff]
        %v701 = vld [vmem:[#allocation2 + $0x1b8] sm:$0xff]
        %v702 = vld [vmem:[#allocation2 + $0x1c0] sm:$0xff]
        %v703 = vld [vmem:[#allocation2 + $0x1c8] sm:$0xff]
        %v704 = vld [vmem:[#allocation2 + $0x1d0] sm:$0xff]
        %v705 = vld [vmem:[#allocation2 + $0x1d8] sm:$0xff]
        %v706 = vld [vmem:[#allocation2 + $0x1e0] sm:$0xff]
        %v707 = vld [vmem:[#allocation2 + $0x1e8] sm:$0xff]
        %v708 = vld [vmem:[#allocation2 + $0x1f0] sm:$0xff]
        %v709 = vld [vmem:[#allocation2 + $0x1f8] sm:$0xff]
        %v710 = vld [vmem:[%s511] sm:$0xff]
        %v711 = vld [vmem:[%s511 + $0x8] sm:$0xf]
        %v712 = vld [vmem:[%s511 + $0xc] sm:$0xff]
        %v713 = vld [vmem:[%s511 + $0x14] sm:$0xf]
        %v714 = vld [vmem:[%s511 + $0x18] sm:$0xff]
        %v715 = vld [vmem:[%s511 + $0x20] sm:$0xf]
        %v716 = vld [vmem:[%s511 + $0x24] sm:$0xff]
        %v717 = vld [vmem:[%s511 + $0x2c] sm:$0xf]
        %v718 = vld [vmem:[%s511 + $0x30] sm:$0xff]
        %v719 = vld [vmem:[%s511 + $0x38] sm:$0xf]
        %v720 = vld [vmem:[%s511 + $0x3c] sm:$0xff]
        %v721 = vld [vmem:[%s511 + $0x44] sm:$0xf]
        %v722 = vld [vmem:[%s511 + $0x48] sm:$0xff]
        %v723 = vld [vmem:[%s511 + $0x50] sm:$0xf]
        %v724 = vld [vmem:[%s511 + $0x54] sm:$0xff]
        %v725 = vld [vmem:[%s511 + $0x5c] sm:$0xf]
        %v726 = vld [vmem:[%s511 + $0x60] sm:$0xff]
        %v727 = vld [vmem:[%s511 + $0x68] sm:$0xf]
        %v728 = vld [vmem:[%s511 + $0x6c] sm:$0xff]
        %v729 = vld [vmem:[%s511 + $0x74] sm:$0xf]
        %v730 = vld [vmem:[%s511 + $0x78] sm:$0xff]
        %v731 = vld [vmem:[%s511 + $0x80] sm:$0xf]
        %v732 = vld [vmem:[%s511 + $0x84] sm:$0xff]
        %v733 = vld [vmem:[%s511 + $0x8c] sm:$0xf]
        %v734 = vld [vmem:[%s511 + $0x90] sm:$0xff]
        %v735 = vld [vmem:[%s511 + $0x98] sm:$0xf]
        %v736 = vld [vmem:[%s511 + $0x9c] sm:$0xff]
        %v737 = vld [vmem:[%s511 + $0xa4] sm:$0xf]
        %v738 = vld [vmem:[%s511 + $0xa8] sm:$0xff]
        %v739 = vld [vmem:[%s511 + $0xb0] sm:$0xf]
        %v740 = vld [vmem:[%s511 + $0xb4] sm:$0xff]
        %v741 = vld [vmem:[%s511 + $0xbc] sm:$0xf]
        %v742 = vld [vmem:[%s511 + $0xc0] sm:$0xff]
        %v743 = vld [vmem:[%s511 + $0xc8] sm:$0xf]
        %v744 = vld [vmem:[%s511 + $0xcc] sm:$0xff]
        %v745 = vld [vmem:[%s511 + $0xd4] sm:$0xf]
        %v746 = vld [vmem:[%s511 + $0xd8] sm:$0xff]
        %v747 = vld [vmem:[%s511 + $0xe0] sm:$0xf]
        %v748 = vld [vmem:[%s511 + $0xe4] sm:$0xff]
        %v749 = vld [vmem:[%s511 + $0xec] sm:$0xf]
        %v750 = vld [vmem:[%s511 + $0xf0] sm:$0xff]
        %v751 = vld [vmem:[%s511 + $0xf8] sm:$0xf]
        %v752 = vld [vmem:[%s511 + $0xfc] sm:$0xff]
        %v753 = vld [vmem:[%s511 + $0x104] sm:$0xf]
        %v754 = vld [vmem:[%s511 + $0x108] sm:$0xff]
        %v755 = vld [vmem:[%s511 + $0x110] sm:$0xf]
        %v756 = vld [vmem:[%s511 + $0x114] sm:$0xff]
        %v757 = vld [vmem:[%s511 + $0x11c] sm:$0xf]
        %v758 = vld [vmem:[%s511 + $0x120] sm:$0xff]
        %v759 = vld [vmem:[%s511 + $0x128] sm:$0xf]
        %v760 = vld [vmem:[%s511 + $0x12c] sm:$0xff]
        %v761 = vld [vmem:[%s511 + $0x134] sm:$0xf]
        %v762 = vld [vmem:[%s511 + $0x138] sm:$0xff]
        %v763 = vld [vmem:[%s511 + $0x140] sm:$0xf]
        %v764 = vld [vmem:[%s511 + $0x144] sm:$0xff]
        %v765 = vld [vmem:[%s511 + $0x14c] sm:$0xf]
        %v766 = vld [vmem:[%s511 + $0x150] sm:$0xff]
        %v767 = vld [vmem:[%s511 + $0x158] sm:$0xf]
        %v768 = vld [vmem:[%s511 + $0x15c] sm:$0xff]
        %v769 = vld [vmem:[%s511 + $0x164] sm:$0xf]
        %v770 = vld [vmem:[%s511 + $0x168] sm:$0xff]
        %v771 = vld [vmem:[%s511 + $0x170] sm:$0xf]
        %v772 = vld [vmem:[%s511 + $0x174] sm:$0xff]
        %v773 = vld [vmem:[%s511 + $0x17c] sm:$0xf]
        %v774 = vld [vmem:[%s511 + $0x180] sm:$0xff]
        %v775 = vld [vmem:[%s511 + $0x188] sm:$0xf]
        %v776 = vld [vmem:[%s511 + $0x18c] sm:$0xff]
        %v777 = vld [vmem:[%s511 + $0x194] sm:$0xf]
        %v778 = vld [vmem:[%s511 + $0x198] sm:$0xff]
        %v779 = vld [vmem:[%s511 + $0x1a0] sm:$0xf]
        %v780 = vld [vmem:[%s511 + $0x1a4] sm:$0xff]
        %v781 = vld [vmem:[%s511 + $0x1ac] sm:$0xf]
        %v782 = vld [vmem:[%s511 + $0x1b0] sm:$0xff]
        %v783 = vld [vmem:[%s511 + $0x1b8] sm:$0xf]
        %v784 = vld [vmem:[%s511 + $0x1bc] sm:$0xff]
        %v785 = vld [vmem:[%s511 + $0x1c4] sm:$0xf]
        %v786 = vld [vmem:[%s511 + $0x1c8] sm:$0xff]
        %v787 = vld [vmem:[%s511 + $0x1d0] sm:$0xf]
        %v788 = vld [vmem:[%s511 + $0x1d4] sm:$0xff]
        %v789 = vld [vmem:[%s511 + $0x1dc] sm:$0xf]
        %v790 = vld [vmem:[%s511 + $0x1e0] sm:$0xff]
        %v791 = vld [vmem:[%s511 + $0x1e8] sm:$0xf]
        %v792 = vld [vmem:[%s511 + $0x1ec] sm:$0xff]
        %v793 = vld [vmem:[%s511 + $0x1f4] sm:$0xf]
        %v794 = vld [vmem:[%s511 + $0x1f8] sm:$0xff]
        %v795 = vld [vmem:[%s511 + $0x200] sm:$0xf]
        %v796 = vld [vmem:[%s511 + $0x204] sm:$0xff]
        %v797 = vld [vmem:[%s511 + $0x20c] sm:$0xf]
        %v798 = vld [vmem:[%s511 + $0x210] sm:$0xff]
        %v799 = vld [vmem:[%s511 + $0x218] sm:$0xf]
        %v800 = vld [vmem:[%s511 + $0x21c] sm:$0xff]
        %v801 = vld [vmem:[%s511 + $0x224] sm:$0xf]
        %v802 = vld [vmem:[%s511 + $0x228] sm:$0xff]
        %v803 = vld [vmem:[%s511 + $0x230] sm:$0xf]
        %v804 = vld [vmem:[%s511 + $0x234] sm:$0xff]
        %v805 = vld [vmem:[%s511 + $0x23c] sm:$0xf]
        %v806 = vld [vmem:[%s511 + $0x240] sm:$0xff]
        %v807 = vld [vmem:[%s511 + $0x248] sm:$0xf]
        %v808 = vld [vmem:[%s511 + $0x24c] sm:$0xff]
        %v809 = vld [vmem:[%s511 + $0x254] sm:$0xf]
        %v810 = vld [vmem:[%s511 + $0x258] sm:$0xff]
        %v811 = vld [vmem:[%s511 + $0x260] sm:$0xf]
        %v812 = vld [vmem:[%s511 + $0x264] sm:$0xff]
        %v813 = vld [vmem:[%s511 + $0x26c] sm:$0xf]
        %v814 = vld [vmem:[%s511 + $0x270] sm:$0xff]
        %v815 = vld [vmem:[%s511 + $0x278] sm:$0xf]
        %v816 = vld [vmem:[%s511 + $0x27c] sm:$0xff]
        %v817 = vld [vmem:[%s511 + $0x284] sm:$0xf]
        %v818 = vld [vmem:[%s511 + $0x288] sm:$0xff]
        %v819 = vld [vmem:[%s511 + $0x290] sm:$0xf]
        %v820 = vld [vmem:[%s511 + $0x294] sm:$0xff]
        %v821 = vld [vmem:[%s511 + $0x29c] sm:$0xf]
        %v822 = vld [vmem:[%s511 + $0x2a0] sm:$0xff]
        %v823 = vld [vmem:[%s511 + $0x2a8] sm:$0xf]
        %v824 = vld [vmem:[%s511 + $0x2ac] sm:$0xff]
        %v825 = vld [vmem:[%s511 + $0x2b4] sm:$0xf]
        %v826 = vld [vmem:[%s511 + $0x2b8] sm:$0xff]
        %v827 = vld [vmem:[%s511 + $0x2c0] sm:$0xf]
        %v828 = vld [vmem:[%s511 + $0x2c4] sm:$0xff]
        %v829 = vld [vmem:[%s511 + $0x2cc] sm:$0xf]
        %v830 = vld [vmem:[%s511 + $0x2d0] sm:$0xff]
        %v831 = vld [vmem:[%s511 + $0x2d8] sm:$0xf]
        %v832 = vld [vmem:[%s511 + $0x2dc] sm:$0xff]
        %v833 = vld [vmem:[%s511 + $0x2e4] sm:$0xf]
        %v834 = vld [vmem:[%s511 + $0x2e8] sm:$0xff]
        %v835 = vld [vmem:[%s511 + $0x2f0] sm:$0xf]
        %v836 = vld [vmem:[%s511 + $0x2f4] sm:$0xff]
        %v837 = vld [vmem:[%s511 + $0x2fc] sm:$0xf]
        %v838 = vld [vmem:[%s560] sm:$0xf]
        %v839 = vld [vmem:[%s560 + $0x4] sm:$0xf]
        %v840 = vld [vmem:[%s560 + $0x8] sm:$0xf]
        %v841 = vld [vmem:[%s560 + $0xc] sm:$0xf]
        %v842 = vld [vmem:[%s560 + $0x10] sm:$0xf]
        %v843 = vld [vmem:[%s560 + $0x14] sm:$0xf]
        %v844 = vld [vmem:[%s560 + $0x18] sm:$0xf]
        %v845 = vld [vmem:[%s560 + $0x1c] sm:$0xf]
        %v846 = vld [vmem:[%s560 + $0x20] sm:$0xf]
        %v847 = vld [vmem:[%s560 + $0x24] sm:$0xf]
        %v848 = vld [vmem:[%s560 + $0x28] sm:$0xf]
        %v849 = vld [vmem:[%s560 + $0x2c] sm:$0xf]
        %v850 = vld [vmem:[%s560 + $0x30] sm:$0xf]
        %v851 = vld [vmem:[%s560 + $0x34] sm:$0xf]
        %v852 = vld [vmem:[%s560 + $0x38] sm:$0xf]
        %v853 = vld [vmem:[%s560 + $0x3c] sm:$0xf]
        %v854 = vld [vmem:[%s560 + $0x40] sm:$0xf]
        %v855 = vld [vmem:[%s560 + $0x44] sm:$0xf]
        %v856 = vld [vmem:[%s560 + $0x48] sm:$0xf]
        %v857 = vld [vmem:[%s560 + $0x4c] sm:$0xf]
        %v858 = vld [vmem:[%s560 + $0x50] sm:$0xf]
        %v859 = vld [vmem:[%s560 + $0x54] sm:$0xf]
        %v860 = vld [vmem:[%s560 + $0x58] sm:$0xf]
        %v861 = vld [vmem:[%s560 + $0x5c] sm:$0xf]
        %v862 = vld [vmem:[%s560 + $0x60] sm:$0xf]
        %v863 = vld [vmem:[%s560 + $0x64] sm:$0xf]
        %v864 = vld [vmem:[%s560 + $0x68] sm:$0xf]
        %v865 = vld [vmem:[%s560 + $0x6c] sm:$0xf]
        %v866 = vld [vmem:[%s560 + $0x70] sm:$0xf]
        %v867 = vld [vmem:[%s560 + $0x74] sm:$0xf]
        %v868 = vld [vmem:[%s560 + $0x78] sm:$0xf]
        %v869 = vld [vmem:[%s560 + $0x7c] sm:$0xf]
        %v870 = vld [vmem:[%s560 + $0x80] sm:$0xf]
        %v871 = vld [vmem:[%s560 + $0x84] sm:$0xf]
        %v872 = vld [vmem:[%s560 + $0x88] sm:$0xf]
        %v873 = vld [vmem:[%s560 + $0x8c] sm:$0xf]
        %v874 = vld [vmem:[%s560 + $0x90] sm:$0xf]
        %v875 = vld [vmem:[%s560 + $0x94] sm:$0xf]
        %v876 = vld [vmem:[%s560 + $0x98] sm:$0xf]
        %v877 = vld [vmem:[%s560 + $0x9c] sm:$0xf]
        %v878 = vld [vmem:[%s560 + $0xa0] sm:$0xf]
        %v879 = vld [vmem:[%s560 + $0xa4] sm:$0xf]
        %v880 = vld [vmem:[%s560 + $0xa8] sm:$0xf]
        %v881 = vld [vmem:[%s560 + $0xac] sm:$0xf]
        %v882 = vld [vmem:[%s560 + $0xb0] sm:$0xf]
        %v883 = vld [vmem:[%s560 + $0xb4] sm:$0xf]
        %v884 = vld [vmem:[%s560 + $0xb8] sm:$0xf]
        %v885 = vld [vmem:[%s560 + $0xbc] sm:$0xf]
        %v1014 = vunpack.c.l.b16 %v710
        %v1015 = vunpack.c.h.b16 %v710
        %v1016 = vunpack.c.l.b16 %v711
        %v1017 = vunpack.c.l.b16 %v712
        %v1018 = vunpack.c.h.b16 %v712
        %v1019 = vunpack.c.l.b16 %v713
        %v1020 = vunpack.c.l.b16 %v714
        %v1021 = vunpack.c.h.b16 %v714
        %v1022 = vunpack.c.l.b16 %v715
        %v1023 = vunpack.c.l.b16 %v716
        %v1024 = vunpack.c.h.b16 %v716
        %v1025 = vunpack.c.l.b16 %v717
        %v1026 = vunpack.c.l.b16 %v718
        %v1027 = vunpack.c.h.b16 %v718
        %v1028 = vunpack.c.l.b16 %v719
        %v1029 = vunpack.c.l.b16 %v720
        %v1030 = vunpack.c.h.b16 %v720
        %v1031 = vunpack.c.l.b16 %v721
        %v1032 = vunpack.c.l.b16 %v722
        %v1033 = vunpack.c.h.b16 %v722
        %v1034 = vunpack.c.l.b16 %v723
        %v1035 = vunpack.c.l.b16 %v724
        %v1036 = vunpack.c.h.b16 %v724
        %v1037 = vunpack.c.l.b16 %v725
        %v1038 = vunpack.c.l.b16 %v726
        %v1039 = vunpack.c.h.b16 %v726
        %v1040 = vunpack.c.l.b16 %v727
        %v1041 = vunpack.c.l.b16 %v728
        %v1042 = vunpack.c.h.b16 %v728
        %v1043 = vunpack.c.l.b16 %v729
        %v1044 = vunpack.c.l.b16 %v730
        %v1045 = vunpack.c.h.b16 %v730
        %v1046 = vunpack.c.l.b16 %v731
        %v1047 = vunpack.c.l.b16 %v732
        %v1048 = vunpack.c.h.b16 %v732
        %v1049 = vunpack.c.l.b16 %v733
        %v1050 = vunpack.c.l.b16 %v734
        %v1051 = vunpack.c.h.b16 %v734
        %v1052 = vunpack.c.l.b16 %v735
        %v1053 = vunpack.c.l.b16 %v736
        %v1054 = vunpack.c.h.b16 %v736
        %v1055 = vunpack.c.l.b16 %v737
        %v1056 = vunpack.c.l.b16 %v738
        %v1057 = vunpack.c.h.b16 %v738
        %v1058 = vunpack.c.l.b16 %v739
        %v1059 = vunpack.c.l.b16 %v740
        %v1060 = vunpack.c.h.b16 %v740
        %v1061 = vunpack.c.l.b16 %v741
        %v1062 = vunpack.c.l.b16 %v742
        %v1063 = vunpack.c.h.b16 %v742
        %v1064 = vunpack.c.l.b16 %v743
        %v1065 = vunpack.c.l.b16 %v744
        %v1066 = vunpack.c.h.b16 %v744
        %v1067 = vunpack.c.l.b16 %v745
        %v1068 = vunpack.c.l.b16 %v746
        %v1069 = vunpack.c.h.b16 %v746
        %v1070 = vunpack.c.l.b16 %v747
        %v1071 = vunpack.c.l.b16 %v748
        %v1072 = vunpack.c.h.b16 %v748
        %v1073 = vunpack.c.l.b16 %v749
        %v1074 = vunpack.c.l.b16 %v750
        %v1075 = vunpack.c.h.b16 %v750
        %v1076 = vunpack.c.l.b16 %v751
        %v1077 = vunpack.c.l.b16 %v752
        %v1078 = vunpack.c.h.b16 %v752
        %v1079 = vunpack.c.l.b16 %v753
        %v1080 = vunpack.c.l.b16 %v754
        %v1081 = vunpack.c.h.b16 %v754
        %v1082 = vunpack.c.l.b16 %v755
        %v1083 = vunpack.c.l.b16 %v756
        %v1084 = vunpack.c.h.b16 %v756
        %v1085 = vunpack.c.l.b16 %v757
        %v1086 = vunpack.c.l.b16 %v758
        %v1087 = vunpack.c.h.b16 %v758
        %v1088 = vunpack.c.l.b16 %v759
        %v1089 = vunpack.c.l.b16 %v760
        %v1090 = vunpack.c.h.b16 %v760
        %v1091 = vunpack.c.l.b16 %v761
        %v1092 = vunpack.c.l.b16 %v762
        %v1093 = vunpack.c.h.b16 %v762
        %v1094 = vunpack.c.l.b16 %v763
        %v1095 = vunpack.c.l.b16 %v764
        %v1096 = vunpack.c.h.b16 %v764
        %v1097 = vunpack.c.l.b16 %v765
        %v1098 = vunpack.c.l.b16 %v766
        %v1099 = vunpack.c.h.b16 %v766
        %v1100 = vunpack.c.l.b16 %v767
        %v1101 = vunpack.c.l.b16 %v768
        %v1102 = vunpack.c.h.b16 %v768
        %v1103 = vunpack.c.l.b16 %v769
        %v1104 = vunpack.c.l.b16 %v770
        %v1105 = vunpack.c.h.b16 %v770
        %v1106 = vunpack.c.l.b16 %v771
        %v1107 = vunpack.c.l.b16 %v772
        %v1108 = vunpack.c.h.b16 %v772
        %v1109 = vunpack.c.l.b16 %v773
        %v1110 = vunpack.c.l.b16 %v774
        %v1111 = vunpack.c.h.b16 %v774
        %v1112 = vunpack.c.l.b16 %v775
        %v1113 = vunpack.c.l.b16 %v776
        %v1114 = vunpack.c.h.b16 %v776
        %v1115 = vunpack.c.l.b16 %v777
        %v1116 = vunpack.c.l.b16 %v778
        %v1117 = vunpack.c.h.b16 %v778
        %v1118 = vunpack.c.l.b16 %v779
        %v1119 = vunpack.c.l.b16 %v780
        %v1120 = vunpack.c.h.b16 %v780
        %v1121 = vunpack.c.l.b16 %v781
        %v1122 = vunpack.c.l.b16 %v782
        %v1123 = vunpack.c.h.b16 %v782
        %v1124 = vunpack.c.l.b16 %v783
        %v1125 = vunpack.c.l.b16 %v784
        %v1126 = vunpack.c.h.b16 %v784
        %v1127 = vunpack.c.l.b16 %v785
        %v1128 = vunpack.c.l.b16 %v786
        %v1129 = vunpack.c.h.b16 %v786
        %v1130 = vunpack.c.l.b16 %v787
        %v1131 = vunpack.c.l.b16 %v788
        %v1132 = vunpack.c.h.b16 %v788
        %v1133 = vunpack.c.l.b16 %v789
        %v1134 = vunpack.c.l.b16 %v790
        %v1135 = vunpack.c.h.b16 %v790
        %v1136 = vunpack.c.l.b16 %v791
        %v1137 = vunpack.c.l.b16 %v792
        %v1138 = vunpack.c.h.b16 %v792
        %v1139 = vunpack.c.l.b16 %v793
        %v1140 = vunpack.c.l.b16 %v794
        %v1141 = vunpack.c.h.b16 %v794
        %v1142 = vunpack.c.l.b16 %v795
        %v1143 = vunpack.c.l.b16 %v796
        %v1144 = vunpack.c.h.b16 %v796
        %v1145 = vunpack.c.l.b16 %v797
        %v1146 = vunpack.c.l.b16 %v798
        %v1147 = vunpack.c.h.b16 %v798
        %v1148 = vunpack.c.l.b16 %v799
        %v1149 = vunpack.c.l.b16 %v800
        %v1150 = vunpack.c.h.b16 %v800
        %v1151 = vunpack.c.l.b16 %v801
        %v1152 = vunpack.c.l.b16 %v802
        %v1153 = vunpack.c.h.b16 %v802
        %v1154 = vunpack.c.l.b16 %v803
        %v1155 = vunpack.c.l.b16 %v804
        %v1156 = vunpack.c.h.b16 %v804
        %v1157 = vunpack.c.l.b16 %v805
        %v1158 = vunpack.c.l.b16 %v806
        %v1159 = vunpack.c.h.b16 %v806
        %v1160 = vunpack.c.l.b16 %v807
        %v1161 = vunpack.c.l.b16 %v808
        %v1162 = vunpack.c.h.b16 %v808
        %v1163 = vunpack.c.l.b16 %v809
        %v1164 = vunpack.c.l.b16 %v810
        %v1165 = vunpack.c.h.b16 %v810
        %v1166 = vunpack.c.l.b16 %v811
        %v1167 = vunpack.c.l.b16 %v812
        %v1168 = vunpack.c.h.b16 %v812
        %v1169 = vunpack.c.l.b16 %v813
        %v1170 = vunpack.c.l.b16 %v814
        %v1171 = vunpack.c.h.b16 %v814
        %v1172 = vunpack.c.l.b16 %v815
        %v1173 = vunpack.c.l.b16 %v816
        %v1174 = vunpack.c.h.b16 %v816
        %v1175 = vunpack.c.l.b16 %v817
        %v1176 = vunpack.c.l.b16 %v818
        %v1177 = vunpack.c.h.b16 %v818
        %v1178 = vunpack.c.l.b16 %v819
        %v1179 = vunpack.c.l.b16 %v820
        %v1180 = vunpack.c.h.b16 %v820
        %v1181 = vunpack.c.l.b16 %v821
        %v1182 = vunpack.c.l.b16 %v822
        %v1183 = vunpack.c.h.b16 %v822
        %v1184 = vunpack.c.l.b16 %v823
        %v1185 = vunpack.c.l.b16 %v824
        %v1186 = vunpack.c.h.b16 %v824
        %v1187 = vunpack.c.l.b16 %v825
        %v1188 = vunpack.c.l.b16 %v826
        %v1189 = vunpack.c.h.b16 %v826
        %v1190 = vunpack.c.l.b16 %v827
        %v1191 = vunpack.c.l.b16 %v828
        %v1192 = vunpack.c.h.b16 %v828
        %v1193 = vunpack.c.l.b16 %v829
        %v1194 = vunpack.c.l.b16 %v830
        %v1195 = vunpack.c.h.b16 %v830
        %v1196 = vunpack.c.l.b16 %v831
        %v1197 = vunpack.c.l.b16 %v832
        %v1198 = vunpack.c.h.b16 %v832
        %v1199 = vunpack.c.l.b16 %v833
        %v1200 = vunpack.c.l.b16 %v834
        %v1201 = vunpack.c.h.b16 %v834
        %v1202 = vunpack.c.l.b16 %v835
        %v1203 = vunpack.c.l.b16 %v836
        %v1204 = vunpack.c.h.b16 %v836
        %v1205 = vunpack.c.l.b16 %v837
        %v1206 = vpack.c.b16 %v1017, %v1014
        %v1207 = vpack.c.b16 %v1018, %v1015
        %v1208 = vpack.c.b16 %v1019, %v1016
        %v1209 = vpack.c.b16 %v1023, %v1020
        %v1210 = vpack.c.b16 %v1024, %v1021
        %v1211 = vpack.c.b16 %v1025, %v1022
        %v1212 = vpack.c.b16 %v1029, %v1026
        %v1213 = vpack.c.b16 %v1030, %v1027
        %v1214 = vpack.c.b16 %v1031, %v1028
        %v1215 = vpack.c.b16 %v1035, %v1032
        %v1216 = vpack.c.b16 %v1036, %v1033
        %v1217 = vpack.c.b16 %v1037, %v1034
        %v1218 = vpack.c.b16 %v1041, %v1038
        %v1219 = vpack.c.b16 %v1042, %v1039
        %v1220 = vpack.c.b16 %v1043, %v1040
        %v1221 = vpack.c.b16 %v1047, %v1044
        %v1222 = vpack.c.b16 %v1048, %v1045
        %v1223 = vpack.c.b16 %v1049, %v1046
        %v1224 = vpack.c.b16 %v1053, %v1050
        %v1225 = vpack.c.b16 %v1054, %v1051
        %v1226 = vpack.c.b16 %v1055, %v1052
        %v1227 = vpack.c.b16 %v1059, %v1056
        %v1228 = vpack.c.b16 %v1060, %v1057
        %v1229 = vpack.c.b16 %v1061, %v1058
        %v1230 = vpack.c.b16 %v1065, %v1062
        %v1231 = vpack.c.b16 %v1066, %v1063
        %v1232 = vpack.c.b16 %v1067, %v1064
        %v1233 = vpack.c.b16 %v1071, %v1068
        %v1234 = vpack.c.b16 %v1072, %v1069
        %v1235 = vpack.c.b16 %v1073, %v1070
        %v1236 = vpack.c.b16 %v1077, %v1074
        %v1237 = vpack.c.b16 %v1078, %v1075
        %v1238 = vpack.c.b16 %v1079, %v1076
        %v1239 = vpack.c.b16 %v1083, %v1080
        %v1240 = vpack.c.b16 %v1084, %v1081
        %v1241 = vpack.c.b16 %v1085, %v1082
        %v1242 = vpack.c.b16 %v1089, %v1086
        %v1243 = vpack.c.b16 %v1090, %v1087
        %v1244 = vpack.c.b16 %v1091, %v1088
        %v1245 = vpack.c.b16 %v1095, %v1092
        %v1246 = vpack.c.b16 %v1096, %v1093
        %v1247 = vpack.c.b16 %v1097, %v1094
        %v1248 = vpack.c.b16 %v1101, %v1098
        %v1249 = vpack.c.b16 %v1102, %v1099
        %v1250 = vpack.c.b16 %v1103, %v1100
        %v1251 = vpack.c.b16 %v1107, %v1104
        %v1252 = vpack.c.b16 %v1108, %v1105
        %v1253 = vpack.c.b16 %v1109, %v1106
        %v1254 = vpack.c.b16 %v1113, %v1110
        %v1255 = vpack.c.b16 %v1114, %v1111
        %v1256 = vpack.c.b16 %v1115, %v1112
        %v1257 = vpack.c.b16 %v1119, %v1116
        %v1258 = vpack.c.b16 %v1120, %v1117
        %v1259 = vpack.c.b16 %v1121, %v1118
        %v1260 = vpack.c.b16 %v1125, %v1122
        %v1261 = vpack.c.b16 %v1126, %v1123
        %v1262 = vpack.c.b16 %v1127, %v1124
        %v1263 = vpack.c.b16 %v1131, %v1128
        %v1264 = vpack.c.b16 %v1132, %v1129
        %v1265 = vpack.c.b16 %v1133, %v1130
        %v1266 = vpack.c.b16 %v1137, %v1134
        %v1267 = vpack.c.b16 %v1138, %v1135
        %v1268 = vpack.c.b16 %v1139, %v1136
        %v1269 = vpack.c.b16 %v1143, %v1140
        %v1270 = vpack.c.b16 %v1144, %v1141
        %v1271 = vpack.c.b16 %v1145, %v1142
        %v1272 = vpack.c.b16 %v1149, %v1146
        %v1273 = vpack.c.b16 %v1150, %v1147
        %v1274 = vpack.c.b16 %v1151, %v1148
        %v1275 = vpack.c.b16 %v1155, %v1152
        %v1276 = vpack.c.b16 %v1156, %v1153
        %v1277 = vpack.c.b16 %v1157, %v1154
        %v1278 = vpack.c.b16 %v1161, %v1158
        %v1279 = vpack.c.b16 %v1162, %v1159
        %v1280 = vpack.c.b16 %v1163, %v1160
        %v1281 = vpack.c.b16 %v1167, %v1164
        %v1282 = vpack.c.b16 %v1168, %v1165
        %v1283 = vpack.c.b16 %v1169, %v1166
        %v1284 = vpack.c.b16 %v1173, %v1170
        %v1285 = vpack.c.b16 %v1174, %v1171
        %v1286 = vpack.c.b16 %v1175, %v1172
        %v1287 = vpack.c.b16 %v1179, %v1176
        %v1288 = vpack.c.b16 %v1180, %v1177
        %v1289 = vpack.c.b16 %v1181, %v1178
        %v1290 = vpack.c.b16 %v1185, %v1182
        %v1291 = vpack.c.b16 %v1186, %v1183
        %v1292 = vpack.c.b16 %v1187, %v1184
        %v1293 = vpack.c.b16 %v1191, %v1188
        %v1294 = vpack.c.b16 %v1192, %v1189
        %v1295 = vpack.c.b16 %v1193, %v1190
        %v1296 = vpack.c.b16 %v1197, %v1194
        %v1297 = vpack.c.b16 %v1198, %v1195
        %v1298 = vpack.c.b16 %v1199, %v1196
        %v1299 = vpack.c.b16 %v1203, %v1200
        %v1300 = vpack.c.b16 %v1204, %v1201
        %v1301 = vpack.c.b16 %v1205, %v1202
        %v1446 = vunpack.c.l.b16 %v838
        %v1447 = vunpack.c.l.b16 %v839
        %v1448 = vunpack.c.l.b16 %v840
        %v1449 = vunpack.c.l.b16 %v841
        %v1450 = vunpack.c.l.b16 %v842
        %v1451 = vunpack.c.l.b16 %v843
        %v1452 = vunpack.c.l.b16 %v844
        %v1453 = vunpack.c.l.b16 %v845
        %v1454 = vunpack.c.l.b16 %v846
        %v1455 = vunpack.c.l.b16 %v847
        %v1456 = vunpack.c.l.b16 %v848
        %v1457 = vunpack.c.l.b16 %v849
        %v1458 = vunpack.c.l.b16 %v850
        %v1459 = vunpack.c.l.b16 %v851
        %v1460 = vunpack.c.l.b16 %v852
        %v1461 = vunpack.c.l.b16 %v853
        %v1462 = vunpack.c.l.b16 %v854
        %v1463 = vunpack.c.l.b16 %v855
        %v1464 = vunpack.c.l.b16 %v856
        %v1465 = vunpack.c.l.b16 %v857
        %v1466 = vunpack.c.l.b16 %v858
        %v1467 = vunpack.c.l.b16 %v859
        %v1468 = vunpack.c.l.b16 %v860
        %v1469 = vunpack.c.l.b16 %v861
        %v1470 = vunpack.c.l.b16 %v862
        %v1471 = vunpack.c.l.b16 %v863
        %v1472 = vunpack.c.l.b16 %v864
        %v1473 = vunpack.c.l.b16 %v865
        %v1474 = vunpack.c.l.b16 %v866
        %v1475 = vunpack.c.l.b16 %v867
        %v1476 = vunpack.c.l.b16 %v868
        %v1477 = vunpack.c.l.b16 %v869
        %v1478 = vunpack.c.l.b16 %v870
        %v1479 = vunpack.c.l.b16 %v871
        %v1480 = vunpack.c.l.b16 %v872
        %v1481 = vunpack.c.l.b16 %v873
        %v1482 = vunpack.c.l.b16 %v874
        %v1483 = vunpack.c.l.b16 %v875
        %v1484 = vunpack.c.l.b16 %v876
        %v1485 = vunpack.c.l.b16 %v877
        %v1486 = vunpack.c.l.b16 %v878
        %v1487 = vunpack.c.l.b16 %v879
        %v1488 = vunpack.c.l.b16 %v880
        %v1489 = vunpack.c.l.b16 %v881
        %v1490 = vunpack.c.l.b16 %v882
        %v1491 = vunpack.c.l.b16 %v883
        %v1492 = vunpack.c.l.b16 %v884
        %v1493 = vunpack.c.l.b16 %v885
        %v1494 = vpack.c.b16 %v1447, %v1446
        %v1495 = vpack.c.b16 %v1449, %v1448
        %v1496 = vpack.c.b16 %v1451, %v1450
        %v1497 = vpack.c.b16 %v1453, %v1452
        %v1498 = vpack.c.b16 %v1455, %v1454
        %v1499 = vpack.c.b16 %v1457, %v1456
        %v1500 = vpack.c.b16 %v1459, %v1458
        %v1501 = vpack.c.b16 %v1461, %v1460
        %v1502 = vpack.c.b16 %v1463, %v1462
        %v1503 = vpack.c.b16 %v1465, %v1464
        %v1504 = vpack.c.b16 %v1467, %v1466
        %v1505 = vpack.c.b16 %v1469, %v1468
        %v1506 = vpack.c.b16 %v1471, %v1470
        %v1507 = vpack.c.b16 %v1473, %v1472
        %v1508 = vpack.c.b16 %v1475, %v1474
        %v1509 = vpack.c.b16 %v1477, %v1476
        %v1510 = vpack.c.b16 %v1479, %v1478
        %v1511 = vpack.c.b16 %v1481, %v1480
        %v1512 = vpack.c.b16 %v1483, %v1482
        %v1513 = vpack.c.b16 %v1485, %v1484
        %v1514 = vpack.c.b16 %v1487, %v1486
        %v1515 = vpack.c.b16 %v1489, %v1488
        %v1516 = vpack.c.b16 %v1491, %v1490
        %v1517 = vpack.c.b16 %v1493, %v1492
        %1542 = vmatprep.subr.bf16.mxu0 0
        %1543 = vmatpush1.bf16.msra.mxu0 %v1494
        %1544 = vmatprep.subr.bf16.mxu0 0
        %1545 = vmatpush1.bf16.msra.mxu0 %v1495
        %1546 = vmatprep.subr.bf16.mxu0 0
        %1547 = vmatpush1.bf16.msra.mxu0 %v1496
        %1548 = vmatprep.subr.bf16.mxu0 0
        %1549 = vmatpush1.bf16.msra.mxu0 %v1497
        %1550 = vmatprep.subr.bf16.mxu0 0
        %1551 = vmatpush1.bf16.msra.mxu0 %v1498
        %1552 = vmatprep.subr.bf16.mxu0 0
        %1553 = vmatpush1.bf16.msra.mxu0 %v1499
        %1554 = vmatprep.subr.bf16.mxu0 0
        %1555 = vmatpush1.bf16.msra.mxu0 %v1500
        %1556 = vmatprep.subr.bf16.mxu0 0
        %1557 = vmatpush1.bf16.msra.mxu0 %v1501
        %1558 = vmatprep.subr.bf16.mxu0 0
        %1559 = vmatpush1.bf16.msra.mxu0 %v1502
        %1560 = vmatprep.subr.bf16.mxu0 0
        %1561 = vmatpush1.bf16.msra.mxu0 %v1503
        %1562 = vmatprep.subr.bf16.mxu0 0
        %1563 = vmatpush1.bf16.msra.mxu0 %v1504
        %1564 = vmatprep.subr.bf16.mxu0 0
        %1565 = vmatpush1.bf16.msra.mxu0 %v1505
        %1566 = vmatprep.subr.bf16.mxu0 0
        %1567 = vmatpush1.bf16.msra.mxu0 %v1506
        %1568 = vmatprep.subr.bf16.mxu0 0
        %1569 = vmatpush1.bf16.msra.mxu0 %v1507
        %1570 = vmatprep.subr.bf16.mxu0 0
        %1571 = vmatpush1.bf16.msra.mxu0 %v1508
        %1572 = vmatprep.subr.bf16.mxu0 0
        %1573 = vmatpush1.bf16.msra.mxu0 %v1509
        %1574 = vmatprep.mubr.bf16.mxu0 %v1207
        %1575 = vmatmul.mubr.bf16.gmra.mrb[0].mxu0 %v1206
        %v1576 = vpop.f32.mrb[0].mxu0
        %v1577 = vadd.f32 0.0, %v1576
        %v1578 = vpop.f32.mrb[0].mxu0
        %v1579 = vpop.f32.mrb[0].mxu0
        %v1580 = vadd.f32 0.0, %v1579
        %v1581 = vpop.f32.mrb[0].mxu0
        %1582 = vmatprep.mubr.bf16.mxu0 %v1210
        %1583 = vmatmul.mubr.bf16.gmra.mrb[0].mxu0 %v1209
        %v1584 = vpop.f32.mrb[0].mxu0
        %v1585 = vadd.f32 0.0, %v1584
        %v1586 = vpop.f32.mrb[0].mxu0
        %v1587 = vpop.f32.mrb[0].mxu0
        %v1588 = vadd.f32 0.0, %v1587
        %v1589 = vpop.f32.mrb[0].mxu0
        %1590 = vmatprep.mubr.bf16.mxu0 %v1213
        %1591 = vmatmul.mubr.bf16.gmra.mrb[0].mxu0 %v1212
        %v1592 = vpop.f32.mrb[0].mxu0
        %v1593 = vadd.f32 0.0, %v1592
        %v1594 = vpop.f32.mrb[0].mxu0
        %v1595 = vpop.f32.mrb[0].mxu0
        %v1596 = vadd.f32 0.0, %v1595
        %v1597 = vpop.f32.mrb[0].mxu0
        %1598 = vmatprep.mubr.bf16.mxu0 %v1216
        %1599 = vmatmul.mubr.bf16.gmra.mrb[0].mxu0 %v1215
        %v1600 = vpop.f32.mrb[0].mxu0
        %v1601 = vadd.f32 0.0, %v1600
        %v1602 = vpop.f32.mrb[0].mxu0
        %v1603 = vpop.f32.mrb[0].mxu0
        %v1604 = vadd.f32 0.0, %v1603
        %v1605 = vpop.f32.mrb[0].mxu0
        %1606 = vmatprep.mubr.bf16.mxu0 %v1219
        %1607 = vmatmul.mubr.bf16.gmra.mrb[0].mxu0 %v1218
        %v1608 = vpop.f32.mrb[0].mxu0
        %v1609 = vadd.f32 0.0, %v1608
        %v1610 = vpop.f32.mrb[0].mxu0
        %v1611 = vpop.f32.mrb[0].mxu0
        %v1612 = vadd.f32 0.0, %v1611
        %v1613 = vpop.f32.mrb[0].mxu0
        %1614 = vmatprep.mubr.bf16.mxu0 %v1222
        %1615 = vmatmul.mubr.bf16.gmra.mrb[0].mxu0 %v1221
        %v1616 = vpop.f32.mrb[0].mxu0
        %v1617 = vadd.f32 0.0, %v1616
        %v1618 = vpop.f32.mrb[0].mxu0
        %v1619 = vpop.f32.mrb[0].mxu0
        %v1620 = vadd.f32 0.0, %v1619
        %v1621 = vpop.f32.mrb[0].mxu0
        %1622 = vmatprep.mubr.bf16.mxu0 %v1225
        %1623 = vmatmul.mubr.bf16.gmra.mrb[0].mxu0 %v1224
        %v1624 = vpop.f32.mrb[0].mxu0
        %v1625 = vadd.f32 0.0, %v1624
        %v1626 = vpop.f32.mrb[0].mxu0
        %v1627 = vpop.f32.mrb[0].mxu0
        %v1628 = vadd.f32 0.0, %v1627
        %v1629 = vpop.f32.mrb[0].mxu0
        %1630 = vmatprep.mubr.bf16.mxu0 %v1228
        %1631 = vmatmul.mubr.bf16.gmra.mrb[0].mxu0 %v1227
        %v1632 = vpop.f32.mrb[0].mxu0
        %v1633 = vadd.f32 0.0, %v1632
        %v1634 = vpop.f32.mrb[0].mxu0
        %v1635 = vpop.f32.mrb[0].mxu0
        %v1636 = vadd.f32 0.0, %v1635
        %v1637 = vpop.f32.mrb[0].mxu0
        %1638 = vmatprep.mubr.bf16.mxu0 %v1231
        %1639 = vmatmul.mubr.bf16.gmra.mrb[0].mxu0 %v1230
        %v1640 = vpop.f32.mrb[0].mxu0
        %v1641 = vadd.f32 0.0, %v1640
        %v1642 = vpop.f32.mrb[0].mxu0
        %v1643 = vpop.f32.mrb[0].mxu0
        %v1644 = vadd.f32 0.0, %v1643
        %v1645 = vpop.f32.mrb[0].mxu0
        %1646 = vmatprep.mubr.bf16.mxu0 %v1234
        %1647 = vmatmul.mubr.bf16.gmra.mrb[0].mxu0 %v1233
        %v1648 = vpop.f32.mrb[0].mxu0
        %v1649 = vadd.f32 0.0, %v1648
        %v1650 = vpop.f32.mrb[0].mxu0
        %v1651 = vpop.f32.mrb[0].mxu0
        %v1652 = vadd.f32 0.0, %v1651
        %v1653 = vpop.f32.mrb[0].mxu0
        %1654 = vmatprep.mubr.bf16.mxu0 %v1237
        %1655 = vmatmul.mubr.bf16.gmra.mrb[0].mxu0 %v1236
        %v1656 = vpop.f32.mrb[0].mxu0
        %v1657 = vadd.f32 0.0, %v1656
        %v1658 = vpop.f32.mrb[0].mxu0
        %v1659 = vpop.f32.mrb[0].mxu0
        %v1660 = vadd.f32 0.0, %v1659
        %v1661 = vpop.f32.mrb[0].mxu0
        %1662 = vmatprep.mubr.bf16.mxu0 %v1240
        %1663 = vmatmul.mubr.bf16.gmra.mrb[0].mxu0 %v1239
        %v1664 = vpop.f32.mrb[0].mxu0
        %v1665 = vadd.f32 0.0, %v1664
        %v1666 = vpop.f32.mrb[0].mxu0
        %v1667 = vpop.f32.mrb[0].mxu0
        %v1668 = vadd.f32 0.0, %v1667
        %v1669 = vpop.f32.mrb[0].mxu0
        %1670 = vmatprep.mubr.bf16.mxu0 %v1243
        %1671 = vmatmul.mubr.bf16.gmra.mrb[0].mxu0 %v1242
        %v1672 = vpop.f32.mrb[0].mxu0
        %v1673 = vadd.f32 0.0, %v1672
        %v1674 = vpop.f32.mrb[0].mxu0
        %v1675 = vpop.f32.mrb[0].mxu0
        %v1676 = vadd.f32 0.0, %v1675
        %v1677 = vpop.f32.mrb[0].mxu0
        %1678 = vmatprep.mubr.bf16.mxu0 %v1246
        %1679 = vmatmul.mubr.bf16.gmra.mrb[0].mxu0 %v1245
        %v1680 = vpop.f32.mrb[0].mxu0
        %v1681 = vadd.f32 0.0, %v1680
        %v1682 = vpop.f32.mrb[0].mxu0
        %v1683 = vpop.f32.mrb[0].mxu0
        %v1684 = vadd.f32 0.0, %v1683
        %v1685 = vpop.f32.mrb[0].mxu0
        %1686 = vmatprep.mubr.bf16.mxu0 %v1249
        %1687 = vmatmul.mubr.bf16.gmra.mrb[0].mxu0 %v1248
        %v1688 = vpop.f32.mrb[0].mxu0
        %v1689 = vadd.f32 0.0, %v1688
        %v1690 = vpop.f32.mrb[0].mxu0
        %v1691 = vpop.f32.mrb[0].mxu0
        %v1692 = vadd.f32 0.0, %v1691
        %v1693 = vpop.f32.mrb[0].mxu0
        %1694 = vmatprep.mubr.bf16.mxu0 %v1252
        %1695 = vmatmul.mubr.bf16.gmra.mrb[0].mxu0 %v1251
        %v1696 = vpop.f32.mrb[0].mxu0
        %v1697 = vadd.f32 0.0, %v1696
        %v1698 = vpop.f32.mrb[0].mxu0
        %v1699 = vpop.f32.mrb[0].mxu0
        %v1700 = vadd.f32 0.0, %v1699
        %v1701 = vpop.f32.mrb[0].mxu0
        %1702 = vmatprep.mubr.bf16.mxu0 %v1255
        %1703 = vmatmul.mubr.bf16.gmra.mrb[0].mxu0 %v1254
        %v1704 = vpop.f32.mrb[0].mxu0
        %v1705 = vadd.f32 0.0, %v1704
        %v1706 = vpop.f32.mrb[0].mxu0
        %v1707 = vpop.f32.mrb[0].mxu0
        %v1708 = vadd.f32 0.0, %v1707
        %v1709 = vpop.f32.mrb[0].mxu0
        %1710 = vmatprep.mubr.bf16.mxu0 %v1258
        %1711 = vmatmul.mubr.bf16.gmra.mrb[0].mxu0 %v1257
        %v1712 = vpop.f32.mrb[0].mxu0
        %v1713 = vadd.f32 0.0, %v1712
        %v1714 = vpop.f32.mrb[0].mxu0
        %v1715 = vpop.f32.mrb[0].mxu0
        %v1716 = vadd.f32 0.0, %v1715
        %v1717 = vpop.f32.mrb[0].mxu0
        %1718 = vmatprep.mubr.bf16.mxu0 %v1261
        %1719 = vmatmul.mubr.bf16.gmra.mrb[0].mxu0 %v1260
        %v1720 = vpop.f32.mrb[0].mxu0
        %v1721 = vadd.f32 0.0, %v1720
        %v1722 = vpop.f32.mrb[0].mxu0
        %v1723 = vpop.f32.mrb[0].mxu0
        %v1724 = vadd.f32 0.0, %v1723
        %v1725 = vpop.f32.mrb[0].mxu0
        %1726 = vmatprep.mubr.bf16.mxu0 %v1264
        %1727 = vmatmul.mubr.bf16.gmra.mrb[0].mxu0 %v1263
        %v1728 = vpop.f32.mrb[0].mxu0
        %v1729 = vadd.f32 0.0, %v1728
        %v1730 = vpop.f32.mrb[0].mxu0
        %v1731 = vpop.f32.mrb[0].mxu0
        %v1732 = vadd.f32 0.0, %v1731
        %v1733 = vpop.f32.mrb[0].mxu0
        %1734 = vmatprep.mubr.bf16.mxu0 %v1267
        %1735 = vmatmul.mubr.bf16.gmra.mrb[0].mxu0 %v1266
        %v1736 = vpop.f32.mrb[0].mxu0
        %v1737 = vadd.f32 0.0, %v1736
        %v1738 = vpop.f32.mrb[0].mxu0
        %v1739 = vpop.f32.mrb[0].mxu0
        %v1740 = vadd.f32 0.0, %v1739
        %v1741 = vpop.f32.mrb[0].mxu0
        %1742 = vmatprep.mubr.bf16.mxu0 %v1270
        %1743 = vmatmul.mubr.bf16.gmra.mrb[0].mxu0 %v1269
        %v1744 = vpop.f32.mrb[0].mxu0
        %v1745 = vadd.f32 0.0, %v1744
        %v1746 = vpop.f32.mrb[0].mxu0
        %v1747 = vpop.f32.mrb[0].mxu0
        %v1748 = vadd.f32 0.0, %v1747
        %v1749 = vpop.f32.mrb[0].mxu0
        %1750 = vmatprep.mubr.bf16.mxu0 %v1273
        %1751 = vmatmul.mubr.bf16.gmra.mrb[0].mxu0 %v1272
        %v1752 = vpop.f32.mrb[0].mxu0
        %v1753 = vadd.f32 0.0, %v1752
        %v1754 = vpop.f32.mrb[0].mxu0
        %v1755 = vpop.f32.mrb[0].mxu0
        %v1756 = vadd.f32 0.0, %v1755
        %v1757 = vpop.f32.mrb[0].mxu0
        %1758 = vmatprep.mubr.bf16.mxu0 %v1276
        %1759 = vmatmul.mubr.bf16.gmra.mrb[0].mxu0 %v1275
        %v1760 = vpop.f32.mrb[0].mxu0
        %v1761 = vadd.f32 0.0, %v1760
        %v1762 = vpop.f32.mrb[0].mxu0
        %v1763 = vpop.f32.mrb[0].mxu0
        %v1764 = vadd.f32 0.0, %v1763
        %v1765 = vpop.f32.mrb[0].mxu0
        %1766 = vmatprep.mubr.bf16.mxu0 %v1279
        %1767 = vmatmul.mubr.bf16.gmra.mrb[0].mxu0 %v1278
        %v1768 = vpop.f32.mrb[0].mxu0
        %v1769 = vadd.f32 0.0, %v1768
        %v1770 = vpop.f32.mrb[0].mxu0
        %v1771 = vpop.f32.mrb[0].mxu0
        %v1772 = vadd.f32 0.0, %v1771
        %v1773 = vpop.f32.mrb[0].mxu0
        %1774 = vmatprep.mubr.bf16.mxu0 %v1282
        %1775 = vmatmul.mubr.bf16.gmra.mrb[0].mxu0 %v1281
        %v1776 = vpop.f32.mrb[0].mxu0
        %v1777 = vadd.f32 0.0, %v1776
        %v1778 = vpop.f32.mrb[0].mxu0
        %v1779 = vpop.f32.mrb[0].mxu0
        %v1780 = vadd.f32 0.0, %v1779
        %v1781 = vpop.f32.mrb[0].mxu0
        %1782 = vmatprep.mubr.bf16.mxu0 %v1285
        %1783 = vmatmul.mubr.bf16.gmra.mrb[0].mxu0 %v1284
        %v1784 = vpop.f32.mrb[0].mxu0
        %v1785 = vadd.f32 0.0, %v1784
        %v1786 = vpop.f32.mrb[0].mxu0
        %v1787 = vpop.f32.mrb[0].mxu0
        %v1788 = vadd.f32 0.0, %v1787
        %v1789 = vpop.f32.mrb[0].mxu0
        %1790 = vmatprep.mubr.bf16.mxu0 %v1288
        %1791 = vmatmul.mubr.bf16.gmra.mrb[0].mxu0 %v1287
        %v1792 = vpop.f32.mrb[0].mxu0
        %v1793 = vadd.f32 0.0, %v1792
        %v1794 = vpop.f32.mrb[0].mxu0
        %v1795 = vpop.f32.mrb[0].mxu0
        %v1796 = vadd.f32 0.0, %v1795
        %v1797 = vpop.f32.mrb[0].mxu0
        %1798 = vmatprep.mubr.bf16.mxu0 %v1291
        %1799 = vmatmul.mubr.bf16.gmra.mrb[0].mxu0 %v1290
        %v1800 = vpop.f32.mrb[0].mxu0
        %v1801 = vadd.f32 0.0, %v1800
        %v1802 = vpop.f32.mrb[0].mxu0
        %v1803 = vpop.f32.mrb[0].mxu0
        %v1804 = vadd.f32 0.0, %v1803
        %v1805 = vpop.f32.mrb[0].mxu0
        %1806 = vmatprep.mubr.bf16.mxu0 %v1294
        %1807 = vmatmul.mubr.bf16.gmra.mrb[0].mxu0 %v1293
        %v1808 = vpop.f32.mrb[0].mxu0
        %v1809 = vadd.f32 0.0, %v1808
        %v1810 = vpop.f32.mrb[0].mxu0
        %v1811 = vpop.f32.mrb[0].mxu0
        %v1812 = vadd.f32 0.0, %v1811
        %v1813 = vpop.f32.mrb[0].mxu0
        %1814 = vmatprep.mubr.bf16.mxu0 %v1297
        %1815 = vmatmul.mubr.bf16.gmra.mrb[0].mxu0 %v1296
        %v1816 = vpop.f32.mrb[0].mxu0
        %v1817 = vadd.f32 0.0, %v1816
        %v1818 = vpop.f32.mrb[0].mxu0
        %v1819 = vpop.f32.mrb[0].mxu0
        %v1820 = vadd.f32 0.0, %v1819
        %v1821 = vpop.f32.mrb[0].mxu0
        %1822 = vmatprep.mubr.bf16.mxu0 %v1300
        %1823 = vmatmul.mubr.bf16.gmra.mrb[0].mxu0 %v1299
        %v1824 = vpop.f32.mrb[0].mxu0
        %v1825 = vadd.f32 0.0, %v1824
        %v1826 = vpop.f32.mrb[0].mxu0
        %v1827 = vpop.f32.mrb[0].mxu0
        %v1828 = vadd.f32 0.0, %v1827
        %v1829 = vpop.f32.mrb[0].mxu0
        %1830 = vdwg.mxu0
        %1831 = vmatprep.subr.bf16.mxu0 0
        %1832 = vmatpush1.bf16.msra.mxu0 %v1510
        %1833 = vmatprep.subr.bf16.mxu0 0
        %1834 = vmatpush1.bf16.msra.mxu0 %v1511
        %1835 = vmatprep.subr.bf16.mxu0 0
        %1836 = vmatpush1.bf16.msra.mxu0 %v1512
        %1837 = vmatprep.subr.bf16.mxu0 0
        %1838 = vmatpush1.bf16.msra.mxu0 %v1513
        %1839 = vmatprep.subr.bf16.mxu0 0
        %1840 = vmatpush1.bf16.msra.mxu0 %v1514
        %1841 = vmatprep.subr.bf16.mxu0 0
        %1842 = vmatpush1.bf16.msra.mxu0 %v1515
        %1843 = vmatprep.subr.bf16.mxu0 0
        %1844 = vmatpush1.bf16.msra.mxu0 %v1516
        %1845 = vmatprep.subr.bf16.mxu0 0
        %1846 = vmatpush1.bf16.msra.mxu0 %v1517
        %1847 = vmatprep.subr.bf16.mxu0 0
        %1848 = vmatpush1.bf16.msra.mxu0 0
        %1849 = vmatprep.subr.bf16.mxu0 0
        %1850 = vmatpush1.bf16.msra.mxu0 0
        %1851 = vmatprep.subr.bf16.mxu0 0
        %1852 = vmatpush1.bf16.msra.mxu0 0
        %1853 = vmatprep.subr.bf16.mxu0 0
        %1854 = vmatpush1.bf16.msra.mxu0 0
        %1855 = vmatprep.subr.bf16.mxu0 0
        %1856 = vmatpush1.bf16.msra.mxu0 0
        %1857 = vmatprep.subr.bf16.mxu0 0
        %1858 = vmatpush1.bf16.msra.mxu0 0
        %1859 = vmatprep.subr.bf16.mxu0 0
        %1860 = vmatpush1.bf16.msra.mxu0 0
        %1861 = vmatprep.subr.bf16.mxu0 0
        %1862 = vmatpush1.bf16.msra.mxu0 0
        %1863 = vmatprep.mubr.bf16.mxu0 0
        %1864 = vmatmul.mubr.bf16.gmra.mrb[0].mxu0 %v1208
        %v1865 = vpop.f32.mrb[0].mxu0
        %v1866 = vadd.f32 %v1577, %v1865
        %v1867 = vpop.f32.mrb[0].mxu0
        %v1868 = vpop.f32.mrb[0].mxu0
        %v1869 = vadd.f32 %v1580, %v1868
        %v1870 = vpop.f32.mrb[0].mxu0
        %1871 = vmatprep.mubr.bf16.mxu0 0
        %1872 = vmatmul.mubr.bf16.gmra.mrb[0].mxu0 %v1211
        %v1873 = vpop.f32.mrb[0].mxu0
        %v1874 = vadd.f32 %v1585, %v1873
        %v1875 = vpop.f32.mrb[0].mxu0
        %v1876 = vpop.f32.mrb[0].mxu0
        %v1877 = vadd.f32 %v1588, %v1876
        %v1878 = vpop.f32.mrb[0].mxu0
        %1879 = vmatprep.mubr.bf16.mxu0 0
        %1880 = vmatmul.mubr.bf16.gmra.mrb[0].mxu0 %v1214
        %v1881 = vpop.f32.mrb[0].mxu0
        %v1882 = vadd.f32 %v1593, %v1881
        %v1883 = vpop.f32.mrb[0].mxu0
        %v1884 = vpop.f32.mrb[0].mxu0
        %v1885 = vadd.f32 %v1596, %v1884
        %v1886 = vpop.f32.mrb[0].mxu0
        %1887 = vmatprep.mubr.bf16.mxu0 0
        %1888 = vmatmul.mubr.bf16.gmra.mrb[0].mxu0 %v1217
        %v1889 = vpop.f32.mrb[0].mxu0
        %v1890 = vadd.f32 %v1601, %v1889
        %v1891 = vpop.f32.mrb[0].mxu0
        %v1892 = vpop.f32.mrb[0].mxu0
        %v1893 = vadd.f32 %v1604, %v1892
        %v1894 = vpop.f32.mrb[0].mxu0
        %1895 = vmatprep.mubr.bf16.mxu0 0
        %1896 = vmatmul.mubr.bf16.gmra.mrb[0].mxu0 %v1220
        %v1897 = vpop.f32.mrb[0].mxu0
        %v1898 = vadd.f32 %v1609, %v1897
        %v1899 = vpop.f32.mrb[0].mxu0
        %v1900 = vpop.f32.mrb[0].mxu0
        %v1901 = vadd.f32 %v1612, %v1900
        %v1902 = vpop.f32.mrb[0].mxu0
        %1903 = vmatprep.mubr.bf16.mxu0 0
        %1904 = vmatmul.mubr.bf16.gmra.mrb[0].mxu0 %v1223
        %v1905 = vpop.f32.mrb[0].mxu0
        %v1906 = vadd.f32 %v1617, %v1905
        %v1907 = vpop.f32.mrb[0].mxu0
        %v1908 = vpop.f32.mrb[0].mxu0
        %v1909 = vadd.f32 %v1620, %v1908
        %v1910 = vpop.f32.mrb[0].mxu0
        %1911 = vmatprep.mubr.bf16.mxu0 0
        %1912 = vmatmul.mubr.bf16.gmra.mrb[0].mxu0 %v1226
        %v1913 = vpop.f32.mrb[0].mxu0
        %v1914 = vadd.f32 %v1625, %v1913
        %v1915 = vpop.f32.mrb[0].mxu0
        %v1916 = vpop.f32.mrb[0].mxu0
        %v1917 = vadd.f32 %v1628, %v1916
        %v1918 = vpop.f32.mrb[0].mxu0
        %1919 = vmatprep.mubr.bf16.mxu0 0
        %1920 = vmatmul.mubr.bf16.gmra.mrb[0].mxu0 %v1229
        %v1921 = vpop.f32.mrb[0].mxu0
        %v1922 = vadd.f32 %v1633, %v1921
        %v1923 = vpop.f32.mrb[0].mxu0
        %v1924 = vpop.f32.mrb[0].mxu0
        %v1925 = vadd.f32 %v1636, %v1924
        %v1926 = vpop.f32.mrb[0].mxu0
        %1927 = vmatprep.mubr.bf16.mxu0 0
        %1928 = vmatmul.mubr.bf16.gmra.mrb[0].mxu0 %v1232
        %v1929 = vpop.f32.mrb[0].mxu0
        %v1930 = vadd.f32 %v1641, %v1929
        %v1931 = vpop.f32.mrb[0].mxu0
        %v1932 = vpop.f32.mrb[0].mxu0
        %v1933 = vadd.f32 %v1644, %v1932
        %v1934 = vpop.f32.mrb[0].mxu0
        %1935 = vmatprep.mubr.bf16.mxu0 0
        %1936 = vmatmul.mubr.bf16.gmra.mrb[0].mxu0 %v1235
        %v1937 = vpop.f32.mrb[0].mxu0
        %v1938 = vadd.f32 %v1649, %v1937
        %v1939 = vpop.f32.mrb[0].mxu0
        %v1940 = vpop.f32.mrb[0].mxu0
        %v1941 = vadd.f32 %v1652, %v1940
        %v1942 = vpop.f32.mrb[0].mxu0
        %1943 = vmatprep.mubr.bf16.mxu0 0
        %1944 = vmatmul.mubr.bf16.gmra.mrb[0].mxu0 %v1238
        %v1945 = vpop.f32.mrb[0].mxu0
        %v1946 = vadd.f32 %v1657, %v1945
        %v1947 = vpop.f32.mrb[0].mxu0
        %v1948 = vpop.f32.mrb[0].mxu0
        %v1949 = vadd.f32 %v1660, %v1948
        %v1950 = vpop.f32.mrb[0].mxu0
        %1951 = vmatprep.mubr.bf16.mxu0 0
        %1952 = vmatmul.mubr.bf16.gmra.mrb[0].mxu0 %v1241
        %v1953 = vpop.f32.mrb[0].mxu0
        %v1954 = vadd.f32 %v1665, %v1953
        %v1955 = vpop.f32.mrb[0].mxu0
        %v1956 = vpop.f32.mrb[0].mxu0
        %v1957 = vadd.f32 %v1668, %v1956
        %v1958 = vpop.f32.mrb[0].mxu0
        %1959 = vmatprep.mubr.bf16.mxu0 0
        %1960 = vmatmul.mubr.bf16.gmra.mrb[0].mxu0 %v1244
        %v1961 = vpop.f32.mrb[0].mxu0
        %v1962 = vadd.f32 %v1673, %v1961
        %v1963 = vpop.f32.mrb[0].mxu0
        %v1964 = vpop.f32.mrb[0].mxu0
        %v1965 = vadd.f32 %v1676, %v1964
        %v1966 = vpop.f32.mrb[0].mxu0
        %1967 = vmatprep.mubr.bf16.mxu0 0
        %1968 = vmatmul.mubr.bf16.gmra.mrb[0].mxu0 %v1247
        %v1969 = vpop.f32.mrb[0].mxu0
        %v1970 = vadd.f32 %v1681, %v1969
        %v1971 = vpop.f32.mrb[0].mxu0
        %v1972 = vpop.f32.mrb[0].mxu0
        %v1973 = vadd.f32 %v1684, %v1972
        %v1974 = vpop.f32.mrb[0].mxu0
        %1975 = vmatprep.mubr.bf16.mxu0 0
        %1976 = vmatmul.mubr.bf16.gmra.mrb[0].mxu0 %v1250
        %v1977 = vpop.f32.mrb[0].mxu0
        %v1978 = vadd.f32 %v1689, %v1977
        %v1979 = vpop.f32.mrb[0].mxu0
        %v1980 = vpop.f32.mrb[0].mxu0
        %v1981 = vadd.f32 %v1692, %v1980
        %v1982 = vpop.f32.mrb[0].mxu0
        %1983 = vmatprep.mubr.bf16.mxu0 0
        %1984 = vmatmul.mubr.bf16.gmra.mrb[0].mxu0 %v1253
        %v1985 = vpop.f32.mrb[0].mxu0
        %v1986 = vadd.f32 %v1697, %v1985
        %v1987 = vpop.f32.mrb[0].mxu0
        %v1988 = vpop.f32.mrb[0].mxu0
        %v1989 = vadd.f32 %v1700, %v1988
        %v1990 = vpop.f32.mrb[0].mxu0
        %1991 = vmatprep.mubr.bf16.mxu0 0
        %1992 = vmatmul.mubr.bf16.gmra.mrb[0].mxu0 %v1256
        %v1993 = vpop.f32.mrb[0].mxu0
        %v1994 = vadd.f32 %v1705, %v1993
        %v1995 = vpop.f32.mrb[0].mxu0
        %v1996 = vpop.f32.mrb[0].mxu0
        %v1997 = vadd.f32 %v1708, %v1996
        %v1998 = vpop.f32.mrb[0].mxu0
        %1999 = vmatprep.mubr.bf16.mxu0 0
        %2000 = vmatmul.mubr.bf16.gmra.mrb[0].mxu0 %v1259
        %v2001 = vpop.f32.mrb[0].mxu0
        %v2002 = vadd.f32 %v1713, %v2001
        %v2003 = vpop.f32.mrb[0].mxu0
        %v2004 = vpop.f32.mrb[0].mxu0
        %v2005 = vadd.f32 %v1716, %v2004
        %v2006 = vpop.f32.mrb[0].mxu0
        %2007 = vmatprep.mubr.bf16.mxu0 0
        %2008 = vmatmul.mubr.bf16.gmra.mrb[0].mxu0 %v1262
        %v2009 = vpop.f32.mrb[0].mxu0
        %v2010 = vadd.f32 %v1721, %v2009
        %v2011 = vpop.f32.mrb[0].mxu0
        %v2012 = vpop.f32.mrb[0].mxu0
        %v2013 = vadd.f32 %v1724, %v2012
        %v2014 = vpop.f32.mrb[0].mxu0
        %2015 = vmatprep.mubr.bf16.mxu0 0
        %2016 = vmatmul.mubr.bf16.gmra.mrb[0].mxu0 %v1265
        %v2017 = vpop.f32.mrb[0].mxu0
        %v2018 = vadd.f32 %v1729, %v2017
        %v2019 = vpop.f32.mrb[0].mxu0
        %v2020 = vpop.f32.mrb[0].mxu0
        %v2021 = vadd.f32 %v1732, %v2020
        %v2022 = vpop.f32.mrb[0].mxu0
        %2023 = vmatprep.mubr.bf16.mxu0 0
        %2024 = vmatmul.mubr.bf16.gmra.mrb[0].mxu0 %v1268
        %v2025 = vpop.f32.mrb[0].mxu0
        %v2026 = vadd.f32 %v1737, %v2025
        %v2027 = vpop.f32.mrb[0].mxu0
        %v2028 = vpop.f32.mrb[0].mxu0
        %v2029 = vadd.f32 %v1740, %v2028
        %v2030 = vpop.f32.mrb[0].mxu0
        %2031 = vmatprep.mubr.bf16.mxu0 0
        %2032 = vmatmul.mubr.bf16.gmra.mrb[0].mxu0 %v1271
        %v2033 = vpop.f32.mrb[0].mxu0
        %v2034 = vadd.f32 %v1745, %v2033
        %v2035 = vpop.f32.mrb[0].mxu0
        %v2036 = vpop.f32.mrb[0].mxu0
        %v2037 = vadd.f32 %v1748, %v2036
        %v2038 = vpop.f32.mrb[0].mxu0
        %2039 = vmatprep.mubr.bf16.mxu0 0
        %2040 = vmatmul.mubr.bf16.gmra.mrb[0].mxu0 %v1274
        %v2041 = vpop.f32.mrb[0].mxu0
        %v2042 = vadd.f32 %v1753, %v2041
        %v2043 = vpop.f32.mrb[0].mxu0
        %v2044 = vpop.f32.mrb[0].mxu0
        %v2045 = vadd.f32 %v1756, %v2044
        %v2046 = vpop.f32.mrb[0].mxu0
        %2047 = vmatprep.mubr.bf16.mxu0 0
        %2048 = vmatmul.mubr.bf16.gmra.mrb[0].mxu0 %v1277
        %v2049 = vpop.f32.mrb[0].mxu0
        %v2050 = vadd.f32 %v1761, %v2049
        %v2051 = vpop.f32.mrb[0].mxu0
        %v2052 = vpop.f32.mrb[0].mxu0
        %v2053 = vadd.f32 %v1764, %v2052
        %v2054 = vpop.f32.mrb[0].mxu0
        %2055 = vmatprep.mubr.bf16.mxu0 0
        %2056 = vmatmul.mubr.bf16.gmra.mrb[0].mxu0 %v1280
        %v2057 = vpop.f32.mrb[0].mxu0
        %v2058 = vadd.f32 %v1769, %v2057
        %v2059 = vpop.f32.mrb[0].mxu0
        %v2060 = vpop.f32.mrb[0].mxu0
        %v2061 = vadd.f32 %v1772, %v2060
        %v2062 = vpop.f32.mrb[0].mxu0
        %2063 = vmatprep.mubr.bf16.mxu0 0
        %2064 = vmatmul.mubr.bf16.gmra.mrb[0].mxu0 %v1283
        %v2065 = vpop.f32.mrb[0].mxu0
        %v2066 = vadd.f32 %v1777, %v2065
        %v2067 = vpop.f32.mrb[0].mxu0
        %v2068 = vpop.f32.mrb[0].mxu0
        %v2069 = vadd.f32 %v1780, %v2068
        %v2070 = vpop.f32.mrb[0].mxu0
        %2071 = vmatprep.mubr.bf16.mxu0 0
        %2072 = vmatmul.mubr.bf16.gmra.mrb[0].mxu0 %v1286
        %v2073 = vpop.f32.mrb[0].mxu0
        %v2074 = vadd.f32 %v1785, %v2073
        %v2075 = vpop.f32.mrb[0].mxu0
        %v2076 = vpop.f32.mrb[0].mxu0
        %v2077 = vadd.f32 %v1788, %v2076
        %v2078 = vpop.f32.mrb[0].mxu0
        %2079 = vmatprep.mubr.bf16.mxu0 0
        %2080 = vmatmul.mubr.bf16.gmra.mrb[0].mxu0 %v1289
        %v2081 = vpop.f32.mrb[0].mxu0
        %v2082 = vadd.f32 %v1793, %v2081
        %v2083 = vpop.f32.mrb[0].mxu0
        %v2084 = vpop.f32.mrb[0].mxu0
        %v2085 = vadd.f32 %v1796, %v2084
        %v2086 = vpop.f32.mrb[0].mxu0
        %2087 = vmatprep.mubr.bf16.mxu0 0
        %2088 = vmatmul.mubr.bf16.gmra.mrb[0].mxu0 %v1292
        %v2089 = vpop.f32.mrb[0].mxu0
        %v2090 = vadd.f32 %v1801, %v2089
        %v2091 = vpop.f32.mrb[0].mxu0
        %v2092 = vpop.f32.mrb[0].mxu0
        %v2093 = vadd.f32 %v1804, %v2092
        %v2094 = vpop.f32.mrb[0].mxu0
        %2095 = vmatprep.mubr.bf16.mxu0 0
        %2096 = vmatmul.mubr.bf16.gmra.mrb[0].mxu0 %v1295
        %v2097 = vpop.f32.mrb[0].mxu0
        %v2098 = vadd.f32 %v1809, %v2097
        %v2099 = vpop.f32.mrb[0].mxu0
        %v2100 = vpop.f32.mrb[0].mxu0
        %v2101 = vadd.f32 %v1812, %v2100
        %v2102 = vpop.f32.mrb[0].mxu0
        %2103 = vmatprep.mubr.bf16.mxu0 0
        %2104 = vmatmul.mubr.bf16.gmra.mrb[0].mxu0 %v1298
        %v2105 = vpop.f32.mrb[0].mxu0
        %v2106 = vadd.f32 %v1817, %v2105
        %v2107 = vpop.f32.mrb[0].mxu0
        %v2108 = vpop.f32.mrb[0].mxu0
        %v2109 = vadd.f32 %v1820, %v2108
        %v2110 = vpop.f32.mrb[0].mxu0
        %2111 = vmatprep.mubr.bf16.mxu0 0
        %2112 = vmatmul.mubr.bf16.gmra.mrb[0].mxu0 %v1301
        %v2113 = vpop.f32.mrb[0].mxu0
        %v2114 = vadd.f32 %v1825, %v2113
        %v2115 = vpop.f32.mrb[0].mxu0
        %v2116 = vpop.f32.mrb[0].mxu0
        %v2117 = vadd.f32 %v1828, %v2116
        %v2118 = vpop.f32.mrb[0].mxu0
        %2119 = vdwg.mxu0
        %v2120 = vadd.f32 %v646, %v1866
        %v2121 = vadd.f32 %v647, %v1869
        %v2122 = vadd.f32 %v648, %v1874
        %v2123 = vadd.f32 %v649, %v1877
        %v2124 = vadd.f32 %v650, %v1882
        %v2125 = vadd.f32 %v651, %v1885
        %v2126 = vadd.f32 %v652, %v1890
        %v2127 = vadd.f32 %v653, %v1893
        %v2128 = vadd.f32 %v654, %v1898
        %v2129 = vadd.f32 %v655, %v1901
        %v2130 = vadd.f32 %v656, %v1906
        %v2131 = vadd.f32 %v657, %v1909
        %v2132 = vadd.f32 %v658, %v1914
        %v2133 = vadd.f32 %v659, %v1917
        %v2134 = vadd.f32 %v660, %v1922
        %v2135 = vadd.f32 %v661, %v1925
        %v2136 = vadd.f32 %v662, %v1930
        %v2137 = vadd.f32 %v663, %v1933
        %v2138 = vadd.f32 %v664, %v1938
        %v2139 = vadd.f32 %v665, %v1941
        %v2140 = vadd.f32 %v666, %v1946
        %v2141 = vadd.f32 %v667, %v1949
        %v2142 = vadd.f32 %v668, %v1954
        %v2143 = vadd.f32 %v669, %v1957
        %v2144 = vadd.f32 %v670, %v1962
        %v2145 = vadd.f32 %v671, %v1965
        %v2146 = vadd.f32 %v672, %v1970
        %v2147 = vadd.f32 %v673, %v1973
        %v2148 = vadd.f32 %v674, %v1978
        %v2149 = vadd.f32 %v675, %v1981
        %v2150 = vadd.f32 %v676, %v1986
        %v2151 = vadd.f32 %v677, %v1989
        %v2152 = vadd.f32 %v678, %v1994
        %v2153 = vadd.f32 %v679, %v1997
        %v2154 = vadd.f32 %v680, %v2002
        %v2155 = vadd.f32 %v681, %v2005
        %v2156 = vadd.f32 %v682, %v2010
        %v2157 = vadd.f32 %v683, %v2013
        %v2158 = vadd.f32 %v684, %v2018
        %v2159 = vadd.f32 %v685, %v2021
        %v2160 = vadd.f32 %v686, %v2026
        %v2161 = vadd.f32 %v687, %v2029
        %v2162 = vadd.f32 %v688, %v2034
        %v2163 = vadd.f32 %v689, %v2037
        %v2164 = vadd.f32 %v690, %v2042
        %v2165 = vadd.f32 %v691, %v2045
        %v2166 = vadd.f32 %v692, %v2050
        %v2167 = vadd.f32 %v693, %v2053
        %v2168 = vadd.f32 %v694, %v2058
        %v2169 = vadd.f32 %v695, %v2061
        %v2170 = vadd.f32 %v696, %v2066
        %v2171 = vadd.f32 %v697, %v2069
        %v2172 = vadd.f32 %v698, %v2074
        %v2173 = vadd.f32 %v699, %v2077
        %v2174 = vadd.f32 %v700, %v2082
        %v2175 = vadd.f32 %v701, %v2085
        %v2176 = vadd.f32 %v702, %v2090
        %v2177 = vadd.f32 %v703, %v2093
        %v2178 = vadd.f32 %v704, %v2098
        %v2179 = vadd.f32 %v705, %v2101
        %v2180 = vadd.f32 %v706, %v2106
        %v2181 = vadd.f32 %v707, %v2109
        %v2182 = vadd.f32 %v708, %v2114
        %v2183 = vadd.f32 %v709, %v2117
        %2184 = vst [vmem:[#allocation2] sm:$0xff] %v2120
        %2185 = vst [vmem:[#allocation2 + $0x8] sm:$0xff] %v2121
        %2186 = vst [vmem:[#allocation2 + $0x10] sm:$0xff] %v2122
        %2187 = vst [vmem:[#allocation2 + $0x18] sm:$0xff] %v2123
        %2188 = vst [vmem:[#allocation2 + $0x20] sm:$0xff] %v2124
        %2189 = vst [vmem:[#allocation2 + $0x28] sm:$0xff] %v2125
        %2190 = vst [vmem:[#allocation2 + $0x30] sm:$0xff] %v2126
        %2191 = vst [vmem:[#allocation2 + $0x38] sm:$0xff] %v2127
        %2192 = vst [vmem:[#allocation2 + $0x40] sm:$0xff] %v2128
        %2193 = vst [vmem:[#allocation2 + $0x48] sm:$0xff] %v2129
        %2194 = vst [vmem:[#allocation2 + $0x50] sm:$0xff] %v2130
        %2195 = vst [vmem:[#allocation2 + $0x58] sm:$0xff] %v2131
        %2196 = vst [vmem:[#allocation2 + $0x60] sm:$0xff] %v2132
        %2197 = vst [vmem:[#allocation2 + $0x68] sm:$0xff] %v2133
        %2198 = vst [vmem:[#allocation2 + $0x70] sm:$0xff] %v2134
        %2199 = vst [vmem:[#allocation2 + $0x78] sm:$0xff] %v2135
        %2200 = vst [vmem:[#allocation2 + $0x80] sm:$0xff] %v2136
        %2201 = vst [vmem:[#allocation2 + $0x88] sm:$0xff] %v2137
        %2202 = vst [vmem:[#allocation2 + $0x90] sm:$0xff] %v2138
        %2203 = vst [vmem:[#allocation2 + $0x98] sm:$0xff] %v2139
        %2204 = vst [vmem:[#allocation2 + $0xa0] sm:$0xff] %v2140
        %2205 = vst [vmem:[#allocation2 + $0xa8] sm:$0xff] %v2141
        %2206 = vst [vmem:[#allocation2 + $0xb0] sm:$0xff] %v2142
        %2207 = vst [vmem:[#allocation2 + $0xb8] sm:$0xff] %v2143
        %2208 = vst [vmem:[#allocation2 + $0xc0] sm:$0xff] %v2144
        %2209 = vst [vmem:[#allocation2 + $0xc8] sm:$0xff] %v2145
        %2210 = vst [vmem:[#allocation2 + $0xd0] sm:$0xff] %v2146
        %2211 = vst [vmem:[#allocation2 + $0xd8] sm:$0xff] %v2147
        %2212 = vst [vmem:[#allocation2 + $0xe0] sm:$0xff] %v2148
        %2213 = vst [vmem:[#allocation2 + $0xe8] sm:$0xff] %v2149
        %2214 = vst [vmem:[#allocation2 + $0xf0] sm:$0xff] %v2150
        %2215 = vst [vmem:[#allocation2 + $0xf8] sm:$0xff] %v2151
        %2216 = vst [vmem:[#allocation2 + $0x100] sm:$0xff] %v2152
        %2217 = vst [vmem:[#allocation2 + $0x108] sm:$0xff] %v2153
        %2218 = vst [vmem:[#allocation2 + $0x110] sm:$0xff] %v2154
        %2219 = vst [vmem:[#allocation2 + $0x118] sm:$0xff] %v2155
        %2220 = vst [vmem:[#allocation2 + $0x120] sm:$0xff] %v2156
        %2221 = vst [vmem:[#allocation2 + $0x128] sm:$0xff] %v2157
        %2222 = vst [vmem:[#allocation2 + $0x130] sm:$0xff] %v2158
        %2223 = vst [vmem:[#allocation2 + $0x138] sm:$0xff] %v2159
        %2224 = vst [vmem:[#allocation2 + $0x140] sm:$0xff] %v2160
        %2225 = vst [vmem:[#allocation2 + $0x148] sm:$0xff] %v2161
        %2226 = vst [vmem:[#allocation2 + $0x150] sm:$0xff] %v2162
        %2227 = vst [vmem:[#allocation2 + $0x158] sm:$0xff] %v2163
        %2228 = vst [vmem:[#allocation2 + $0x160] sm:$0xff] %v2164
        %2229 = vst [vmem:[#allocation2 + $0x168] sm:$0xff] %v2165
        %2230 = vst [vmem:[#allocation2 + $0x170] sm:$0xff] %v2166
        %2231 = vst [vmem:[#allocation2 + $0x178] sm:$0xff] %v2167
        %2232 = vst [vmem:[#allocation2 + $0x180] sm:$0xff] %v2168
        %2233 = vst [vmem:[#allocation2 + $0x188] sm:$0xff] %v2169
        %2234 = vst [vmem:[#allocation2 + $0x190] sm:$0xff] %v2170
        %2235 = vst [vmem:[#allocation2 + $0x198] sm:$0xff] %v2171
        %2236 = vst [vmem:[#allocation2 + $0x1a0] sm:$0xff] %v2172
        %2237 = vst [vmem:[#allocation2 + $0x1a8] sm:$0xff] %v2173
        %2238 = vst [vmem:[#allocation2 + $0x1b0] sm:$0xff] %v2174
        %2239 = vst [vmem:[#allocation2 + $0x1b8] sm:$0xff] %v2175
        %2240 = vst [vmem:[#allocation2 + $0x1c0] sm:$0xff] %v2176
        %2241 = vst [vmem:[#allocation2 + $0x1c8] sm:$0xff] %v2177
        %2242 = vst [vmem:[#allocation2 + $0x1d0] sm:$0xff] %v2178
        %2243 = vst [vmem:[#allocation2 + $0x1d8] sm:$0xff] %v2179
        %2244 = vst [vmem:[#allocation2 + $0x1e0] sm:$0xff] %v2180
        %2245 = vst [vmem:[#allocation2 + $0x1e8] sm:$0xff] %v2181
        %2246 = vst [vmem:[#allocation2 + $0x1f0] sm:$0xff] %v2182
        %2247 = vst [vmem:[#allocation2 + $0x1f8] sm:$0xff] %v2183
        %p2248 = scmp.eq.s32.totalorder %s22, 8
        // Predicated region
        $region67: #{_lambda_.4} parent=57 // pred_check
          %p2249 = pneg %p2248
        $region68: #{_lambda_.4} parent=57 // pred_check_branch
          %2251 = sbr.rel (%p2249) target = $region70
        $region69: #{_lambda_.4} parent=57 // pred_region
          %v2252 = vld [vmem:[#allocation2] sm:$0xff]
          %v2253 = vld [vmem:[#allocation2 + $0x8] sm:$0xff]
          %v2254 = vld [vmem:[#allocation2 + $0x10] sm:$0xff]
          %v2255 = vld [vmem:[#allocation2 + $0x18] sm:$0xff]
          %v2256 = vld [vmem:[#allocation2 + $0x20] sm:$0xff]
          %v2257 = vld [vmem:[#allocation2 + $0x28] sm:$0xff]
          %v2258 = vld [vmem:[#allocation2 + $0x30] sm:$0xff]
          %v2259 = vld [vmem:[#allocation2 + $0x38] sm:$0xff]
          %v2260 = vld [vmem:[#allocation2 + $0x40] sm:$0xff]
          %v2261 = vld [vmem:[#allocation2 + $0x48] sm:$0xff]
          %v2262 = vld [vmem:[#allocation2 + $0x50] sm:$0xff]
          %v2263 = vld [vmem:[#allocation2 + $0x58] sm:$0xff]
          %v2264 = vld [vmem:[#allocation2 + $0x60] sm:$0xff]
          %v2265 = vld [vmem:[#allocation2 + $0x68] sm:$0xff]
          %v2266 = vld [vmem:[#allocation2 + $0x70] sm:$0xff]
          %v2267 = vld [vmem:[#allocation2 + $0x78] sm:$0xff]
          %v2268 = vld [vmem:[#allocation2 + $0x80] sm:$0xff]
          %v2269 = vld [vmem:[#allocation2 + $0x88] sm:$0xff]
          %v2270 = vld [vmem:[#allocation2 + $0x90] sm:$0xff]
          %v2271 = vld [vmem:[#allocation2 + $0x98] sm:$0xff]
          %v2272 = vld [vmem:[#allocation2 + $0xa0] sm:$0xff]
          %v2273 = vld [vmem:[#allocation2 + $0xa8] sm:$0xff]
          %v2274 = vld [vmem:[#allocation2 + $0xb0] sm:$0xff]
          %v2275 = vld [vmem:[#allocation2 + $0xb8] sm:$0xff]
          %v2276 = vld [vmem:[#allocation2 + $0xc0] sm:$0xff]
          %v2277 = vld [vmem:[#allocation2 + $0xc8] sm:$0xff]
          %v2278 = vld [vmem:[#allocation2 + $0xd0] sm:$0xff]
          %v2279 = vld [vmem:[#allocation2 + $0xd8] sm:$0xff]
          %v2280 = vld [vmem:[#allocation2 + $0xe0] sm:$0xff]
          %v2281 = vld [vmem:[#allocation2 + $0xe8] sm:$0xff]
          %v2282 = vld [vmem:[#allocation2 + $0xf0] sm:$0xff]
          %v2283 = vld [vmem:[#allocation2 + $0xf8] sm:$0xff]
          %v2284 = vld [vmem:[#allocation2 + $0x100] sm:$0xff]
          %v2285 = vld [vmem:[#allocation2 + $0x108] sm:$0xff]
          %v2286 = vld [vmem:[#allocation2 + $0x110] sm:$0xff]
          %v2287 = vld [vmem:[#allocation2 + $0x118] sm:$0xff]
          %v2288 = vld [vmem:[#allocation2 + $0x120] sm:$0xff]
          %v2289 = vld [vmem:[#allocation2 + $0x128] sm:$0xff]
          %v2290 = vld [vmem:[#allocation2 + $0x130] sm:$0xff]
          %v2291 = vld [vmem:[#allocation2 + $0x138] sm:$0xff]
          %v2292 = vld [vmem:[#allocation2 + $0x140] sm:$0xff]
          %v2293 = vld [vmem:[#allocation2 + $0x148] sm:$0xff]
          %v2294 = vld [vmem:[#allocation2 + $0x150] sm:$0xff]
          %v2295 = vld [vmem:[#allocation2 + $0x158] sm:$0xff]
          %v2296 = vld [vmem:[#allocation2 + $0x160] sm:$0xff]
          %v2297 = vld [vmem:[#allocation2 + $0x168] sm:$0xff]
          %v2298 = vld [vmem:[#allocation2 + $0x170] sm:$0xff]
          %v2299 = vld [vmem:[#allocation2 + $0x178] sm:$0xff]
          %v2300 = vld [vmem:[#allocation2 + $0x180] sm:$0xff]
          %v2301 = vld [vmem:[#allocation2 + $0x188] sm:$0xff]
          %v2302 = vld [vmem:[#allocation2 + $0x190] sm:$0xff]
          %v2303 = vld [vmem:[#allocation2 + $0x198] sm:$0xff]
          %v2304 = vld [vmem:[#allocation2 + $0x1a0] sm:$0xff]
          %v2305 = vld [vmem:[#allocation2 + $0x1a8] sm:$0xff]
          %v2306 = vld [vmem:[#allocation2 + $0x1b0] sm:$0xff]
          %v2307 = vld [vmem:[#allocation2 + $0x1b8] sm:$0xff]
          %v2308 = vld [vmem:[#allocation2 + $0x1c0] sm:$0xff]
          %v2309 = vld [vmem:[#allocation2 + $0x1c8] sm:$0xff]
          %v2310 = vld [vmem:[#allocation2 + $0x1d0] sm:$0xff]
          %v2311 = vld [vmem:[#allocation2 + $0x1d8] sm:$0xff]
          %v2312 = vld [vmem:[#allocation2 + $0x1e0] sm:$0xff]
          %v2313 = vld [vmem:[#allocation2 + $0x1e8] sm:$0xff]
          %v2314 = vld [vmem:[#allocation2 + $0x1f0] sm:$0xff]
          %v2315 = vld [vmem:[#allocation2 + $0x1f8] sm:$0xff]
          %v2316 = vld [vmem:[%s564] sm:$0x1]
          %v2318 = vlaneseq
          %v2319 = vshrl.u32 %v2318, 7
          %v2320 = vsub.s32 0, %v2319
          %v2321 = vrot.slane %v2316, %v2320
          %v2323 = vmul.f32 %v2252, %v2321
          %v2324 = vmul.f32 %v2253, %v2321
          %v2325 = vmul.f32 %v2254, %v2321
          %v2326 = vmul.f32 %v2255, %v2321
          %v2327 = vmul.f32 %v2256, %v2321
          %v2328 = vmul.f32 %v2257, %v2321
          %v2329 = vmul.f32 %v2258, %v2321
          %v2330 = vmul.f32 %v2259, %v2321
          %v2331 = vmul.f32 %v2260, %v2321
          %v2332 = vmul.f32 %v2261, %v2321
          %v2333 = vmul.f32 %v2262, %v2321
          %v2334 = vmul.f32 %v2263, %v2321
          %v2335 = vmul.f32 %v2264, %v2321
          %v2336 = vmul.f32 %v2265, %v2321
          %v2337 = vmul.f32 %v2266, %v2321
          %v2338 = vmul.f32 %v2267, %v2321
          %v2339 = vmul.f32 %v2268, %v2321
          %v2340 = vmul.f32 %v2269, %v2321
          %v2341 = vmul.f32 %v2270, %v2321
          %v2342 = vmul.f32 %v2271, %v2321
          %v2343 = vmul.f32 %v2272, %v2321
          %v2344 = vmul.f32 %v2273, %v2321
          %v2345 = vmul.f32 %v2274, %v2321
          %v2346 = vmul.f32 %v2275, %v2321
          %v2347 = vmul.f32 %v2276, %v2321
          %v2348 = vmul.f32 %v2277, %v2321
          %v2349 = vmul.f32 %v2278, %v2321
          %v2350 = vmul.f32 %v2279, %v2321
          %v2351 = vmul.f32 %v2280, %v2321
          %v2352 = vmul.f32 %v2281, %v2321
          %v2353 = vmul.f32 %v2282, %v2321
          %v2354 = vmul.f32 %v2283, %v2321
          %v2355 = vmul.f32 %v2284, %v2321
          %v2356 = vmul.f32 %v2285, %v2321
          %v2357 = vmul.f32 %v2286, %v2321
          %v2358 = vmul.f32 %v2287, %v2321
          %v2359 = vmul.f32 %v2288, %v2321
          %v2360 = vmul.f32 %v2289, %v2321
          %v2361 = vmul.f32 %v2290, %v2321
          %v2362 = vmul.f32 %v2291, %v2321
          %v2363 = vmul.f32 %v2292, %v2321
          %v2364 = vmul.f32 %v2293, %v2321
          %v2365 = vmul.f32 %v2294, %v2321
          %v2366 = vmul.f32 %v2295, %v2321
          %v2367 = vmul.f32 %v2296, %v2321
          %v2368 = vmul.f32 %v2297, %v2321
          %v2369 = vmul.f32 %v2298, %v2321
          %v2370 = vmul.f32 %v2299, %v2321
          %v2371 = vmul.f32 %v2300, %v2321
          %v2372 = vmul.f32 %v2301, %v2321
          %v2373 = vmul.f32 %v2302, %v2321
          %v2374 = vmul.f32 %v2303, %v2321
          %v2375 = vmul.f32 %v2304, %v2321
          %v2376 = vmul.f32 %v2305, %v2321
          %v2377 = vmul.f32 %v2306, %v2321
          %v2378 = vmul.f32 %v2307, %v2321
          %v2379 = vmul.f32 %v2308, %v2321
          %v2380 = vmul.f32 %v2309, %v2321
          %v2381 = vmul.f32 %v2310, %v2321
          %v2382 = vmul.f32 %v2311, %v2321
          %v2383 = vmul.f32 %v2312, %v2321
          %v2384 = vmul.f32 %v2313, %v2321
          %v2385 = vmul.f32 %v2314, %v2321
          %v2386 = vmul.f32 %v2315, %v2321
          %v2387 = vld [vmem:[%s567] sm:$0x1]
          %v2389 = vlaneseq
          %v2390 = vshrl.u32 %v2389, 7
          %v2391 = vsub.s32 0, %v2390
          %v2392 = vrot.slane %v2387, %v2391
          %v2394 = vadd.f32 %v2323, %v2392
          %v2395 = vadd.f32 %v2324, %v2392
          %v2396 = vadd.f32 %v2325, %v2392
          %v2397 = vadd.f32 %v2326, %v2392
          %v2398 = vadd.f32 %v2327, %v2392
          %v2399 = vadd.f32 %v2328, %v2392
          %v2400 = vadd.f32 %v2329, %v2392
          %v2401 = vadd.f32 %v2330, %v2392
          %v2402 = vadd.f32 %v2331, %v2392
          %v2403 = vadd.f32 %v2332, %v2392
          %v2404 = vadd.f32 %v2333, %v2392
          %v2405 = vadd.f32 %v2334, %v2392
          %v2406 = vadd.f32 %v2335, %v2392
          %v2407 = vadd.f32 %v2336, %v2392
          %v2408 = vadd.f32 %v2337, %v2392
          %v2409 = vadd.f32 %v2338, %v2392
          %v2410 = vadd.f32 %v2339, %v2392
          %v2411 = vadd.f32 %v2340, %v2392
          %v2412 = vadd.f32 %v2341, %v2392
          %v2413 = vadd.f32 %v2342, %v2392
          %v2414 = vadd.f32 %v2343, %v2392
          %v2415 = vadd.f32 %v2344, %v2392
          %v2416 = vadd.f32 %v2345, %v2392
          %v2417 = vadd.f32 %v2346, %v2392
          %v2418 = vadd.f32 %v2347, %v2392
          %v2419 = vadd.f32 %v2348, %v2392
          %v2420 = vadd.f32 %v2349, %v2392
          %v2421 = vadd.f32 %v2350, %v2392
          %v2422 = vadd.f32 %v2351, %v2392
          %v2423 = vadd.f32 %v2352, %v2392
          %v2424 = vadd.f32 %v2353, %v2392
          %v2425 = vadd.f32 %v2354, %v2392
          %v2426 = vadd.f32 %v2355, %v2392
          %v2427 = vadd.f32 %v2356, %v2392
          %v2428 = vadd.f32 %v2357, %v2392
          %v2429 = vadd.f32 %v2358, %v2392
          %v2430 = vadd.f32 %v2359, %v2392
          %v2431 = vadd.f32 %v2360, %v2392
          %v2432 = vadd.f32 %v2361, %v2392
          %v2433 = vadd.f32 %v2362, %v2392
          %v2434 = vadd.f32 %v2363, %v2392
          %v2435 = vadd.f32 %v2364, %v2392
          %v2436 = vadd.f32 %v2365, %v2392
          %v2437 = vadd.f32 %v2366, %v2392
          %v2438 = vadd.f32 %v2367, %v2392
          %v2439 = vadd.f32 %v2368, %v2392
          %v2440 = vadd.f32 %v2369, %v2392
          %v2441 = vadd.f32 %v2370, %v2392
          %v2442 = vadd.f32 %v2371, %v2392
          %v2443 = vadd.f32 %v2372, %v2392
          %v2444 = vadd.f32 %v2373, %v2392
          %v2445 = vadd.f32 %v2374, %v2392
          %v2446 = vadd.f32 %v2375, %v2392
          %v2447 = vadd.f32 %v2376, %v2392
          %v2448 = vadd.f32 %v2377, %v2392
          %v2449 = vadd.f32 %v2378, %v2392
          %v2450 = vadd.f32 %v2379, %v2392
          %v2451 = vadd.f32 %v2380, %v2392
          %v2452 = vadd.f32 %v2381, %v2392
          %v2453 = vadd.f32 %v2382, %v2392
          %v2454 = vadd.f32 %v2383, %v2392
          %v2455 = vadd.f32 %v2384, %v2392
          %v2456 = vadd.f32 %v2385, %v2392
          %v2457 = vadd.f32 %v2386, %v2392
          %vm2458 = vcmp.gt.f32.partialorder %v2394, 0.0
          %vm2459 = vcmp.gt.f32.partialorder %v2395, 0.0
          %vm2460 = vcmp.gt.f32.partialorder %v2396, 0.0
          %vm2461 = vcmp.gt.f32.partialorder %v2397, 0.0
          %vm2462 = vcmp.gt.f32.partialorder %v2398, 0.0
          %vm2463 = vcmp.gt.f32.partialorder %v2399, 0.0
          %vm2464 = vcmp.gt.f32.partialorder %v2400, 0.0
          %vm2465 = vcmp.gt.f32.partialorder %v2401, 0.0
          %vm2466 = vcmp.gt.f32.partialorder %v2402, 0.0
          %vm2467 = vcmp.gt.f32.partialorder %v2403, 0.0
          %vm2468 = vcmp.gt.f32.partialorder %v2404, 0.0
          %vm2469 = vcmp.gt.f32.partialorder %v2405, 0.0
          %vm2470 = vcmp.gt.f32.partialorder %v2406, 0.0
          %vm2471 = vcmp.gt.f32.partialorder %v2407, 0.0
          %vm2472 = vcmp.gt.f32.partialorder %v2408, 0.0
          %vm2473 = vcmp.gt.f32.partialorder %v2409, 0.0
          %vm2474 = vcmp.gt.f32.partialorder %v2410, 0.0
          %vm2475 = vcmp.gt.f32.partialorder %v2411, 0.0
          %vm2476 = vcmp.gt.f32.partialorder %v2412, 0.0
          %vm2477 = vcmp.gt.f32.partialorder %v2413, 0.0
          %vm2478 = vcmp.gt.f32.partialorder %v2414, 0.0
          %vm2479 = vcmp.gt.f32.partialorder %v2415, 0.0
          %vm2480 = vcmp.gt.f32.partialorder %v2416, 0.0
          %vm2481 = vcmp.gt.f32.partialorder %v2417, 0.0
          %vm2482 = vcmp.gt.f32.partialorder %v2418, 0.0
          %vm2483 = vcmp.gt.f32.partialorder %v2419, 0.0
          %vm2484 = vcmp.gt.f32.partialorder %v2420, 0.0
          %vm2485 = vcmp.gt.f32.partialorder %v2421, 0.0
          %vm2486 = vcmp.gt.f32.partialorder %v2422, 0.0
          %vm2487 = vcmp.gt.f32.partialorder %v2423, 0.0
          %vm2488 = vcmp.gt.f32.partialorder %v2424, 0.0
          %vm2489 = vcmp.gt.f32.partialorder %v2425, 0.0
          %vm2490 = vcmp.gt.f32.partialorder %v2426, 0.0
          %vm2491 = vcmp.gt.f32.partialorder %v2427, 0.0
          %vm2492 = vcmp.gt.f32.partialorder %v2428, 0.0
          %vm2493 = vcmp.gt.f32.partialorder %v2429, 0.0
          %vm2494 = vcmp.gt.f32.partialorder %v2430, 0.0
          %vm2495 = vcmp.gt.f32.partialorder %v2431, 0.0
          %vm2496 = vcmp.gt.f32.partialorder %v2432, 0.0
          %vm2497 = vcmp.gt.f32.partialorder %v2433, 0.0
          %vm2498 = vcmp.gt.f32.partialorder %v2434, 0.0
          %vm2499 = vcmp.gt.f32.partialorder %v2435, 0.0
          %vm2500 = vcmp.gt.f32.partialorder %v2436, 0.0
          %vm2501 = vcmp.gt.f32.partialorder %v2437, 0.0
          %vm2502 = vcmp.gt.f32.partialorder %v2438, 0.0
          %vm2503 = vcmp.gt.f32.partialorder %v2439, 0.0
          %vm2504 = vcmp.gt.f32.partialorder %v2440, 0.0
          %vm2505 = vcmp.gt.f32.partialorder %v2441, 0.0
          %vm2506 = vcmp.gt.f32.partialorder %v2442, 0.0
          %vm2507 = vcmp.gt.f32.partialorder %v2443, 0.0
          %vm2508 = vcmp.gt.f32.partialorder %v2444, 0.0
          %vm2509 = vcmp.gt.f32.partialorder %v2445, 0.0
          %vm2510 = vcmp.gt.f32.partialorder %v2446, 0.0
          %vm2511 = vcmp.gt.f32.partialorder %v2447, 0.0
          %vm2512 = vcmp.gt.f32.partialorder %v2448, 0.0
          %vm2513 = vcmp.gt.f32.partialorder %v2449, 0.0
          %vm2514 = vcmp.gt.f32.partialorder %v2450, 0.0
          %vm2515 = vcmp.gt.f32.partialorder %v2451, 0.0
          %vm2516 = vcmp.gt.f32.partialorder %v2452, 0.0
          %vm2517 = vcmp.gt.f32.partialorder %v2453, 0.0
          %vm2518 = vcmp.gt.f32.partialorder %v2454, 0.0
          %vm2519 = vcmp.gt.f32.partialorder %v2455, 0.0
          %vm2520 = vcmp.gt.f32.partialorder %v2456, 0.0
          %vm2521 = vcmp.gt.f32.partialorder %v2457, 0.0
          %v2522 = vmul.f32 %v2394, 0.2
          %v2523 = vmul.f32 %v2395, 0.2
          %v2524 = vmul.f32 %v2396, 0.2
          %v2525 = vmul.f32 %v2397, 0.2
          %v2526 = vmul.f32 %v2398, 0.2
          %v2527 = vmul.f32 %v2399, 0.2
          %v2528 = vmul.f32 %v2400, 0.2
          %v2529 = vmul.f32 %v2401, 0.2
          %v2530 = vmul.f32 %v2402, 0.2
          %v2531 = vmul.f32 %v2403, 0.2
          %v2532 = vmul.f32 %v2404, 0.2
          %v2533 = vmul.f32 %v2405, 0.2
          %v2534 = vmul.f32 %v2406, 0.2
          %v2535 = vmul.f32 %v2407, 0.2
          %v2536 = vmul.f32 %v2408, 0.2
          %v2537 = vmul.f32 %v2409, 0.2
          %v2538 = vmul.f32 %v2410, 0.2
          %v2539 = vmul.f32 %v2411, 0.2
          %v2540 = vmul.f32 %v2412, 0.2
          %v2541 = vmul.f32 %v2413, 0.2
          %v2542 = vmul.f32 %v2414, 0.2
          %v2543 = vmul.f32 %v2415, 0.2
          %v2544 = vmul.f32 %v2416, 0.2
          %v2545 = vmul.f32 %v2417, 0.2
          %v2546 = vmul.f32 %v2418, 0.2
          %v2547 = vmul.f32 %v2419, 0.2
          %v2548 = vmul.f32 %v2420, 0.2
          %v2549 = vmul.f32 %v2421, 0.2
          %v2550 = vmul.f32 %v2422, 0.2
          %v2551 = vmul.f32 %v2423, 0.2
          %v2552 = vmul.f32 %v2424, 0.2
          %v2553 = vmul.f32 %v2425, 0.2
          %v2554 = vmul.f32 %v2426, 0.2
          %v2555 = vmul.f32 %v2427, 0.2
          %v2556 = vmul.f32 %v2428, 0.2
          %v2557 = vmul.f32 %v2429, 0.2
          %v2558 = vmul.f32 %v2430, 0.2
          %v2559 = vmul.f32 %v2431, 0.2
          %v2560 = vmul.f32 %v2432, 0.2
          %v2561 = vmul.f32 %v2433, 0.2
          %v2562 = vmul.f32 %v2434, 0.2
          %v2563 = vmul.f32 %v2435, 0.2
          %v2564 = vmul.f32 %v2436, 0.2
          %v2565 = vmul.f32 %v2437, 0.2
          %v2566 = vmul.f32 %v2438, 0.2
          %v2567 = vmul.f32 %v2439, 0.2
          %v2568 = vmul.f32 %v2440, 0.2
          %v2569 = vmul.f32 %v2441, 0.2
          %v2570 = vmul.f32 %v2442, 0.2
          %v2571 = vmul.f32 %v2443, 0.2
          %v2572 = vmul.f32 %v2444, 0.2
          %v2573 = vmul.f32 %v2445, 0.2
          %v2574 = vmul.f32 %v2446, 0.2
          %v2575 = vmul.f32 %v2447, 0.2
          %v2576 = vmul.f32 %v2448, 0.2
          %v2577 = vmul.f32 %v2449, 0.2
          %v2578 = vmul.f32 %v2450, 0.2
          %v2579 = vmul.f32 %v2451, 0.2
          %v2580 = vmul.f32 %v2452, 0.2
          %v2581 = vmul.f32 %v2453, 0.2
          %v2582 = vmul.f32 %v2454, 0.2
          %v2583 = vmul.f32 %v2455, 0.2
          %v2584 = vmul.f32 %v2456, 0.2
          %v2585 = vmul.f32 %v2457, 0.2
          %v2586 = vsel %vm2458, %v2394, %v2522
          %v2587 = vsel %vm2459, %v2395, %v2523
          %v2588 = vsel %vm2460, %v2396, %v2524
          %v2589 = vsel %vm2461, %v2397, %v2525
          %v2590 = vsel %vm2462, %v2398, %v2526
          %v2591 = vsel %vm2463, %v2399, %v2527
          %v2592 = vsel %vm2464, %v2400, %v2528
          %v2593 = vsel %vm2465, %v2401, %v2529
          %v2594 = vsel %vm2466, %v2402, %v2530
          %v2595 = vsel %vm2467, %v2403, %v2531
          %v2596 = vsel %vm2468, %v2404, %v2532
          %v2597 = vsel %vm2469, %v2405, %v2533
          %v2598 = vsel %vm2470, %v2406, %v2534
          %v2599 = vsel %vm2471, %v2407, %v2535
          %v2600 = vsel %vm2472, %v2408, %v2536
          %v2601 = vsel %vm2473, %v2409, %v2537
          %v2602 = vsel %vm2474, %v2410, %v2538
          %v2603 = vsel %vm2475, %v2411, %v2539
          %v2604 = vsel %vm2476, %v2412, %v2540
          %v2605 = vsel %vm2477, %v2413, %v2541
          %v2606 = vsel %vm2478, %v2414, %v2542
          %v2607 = vsel %vm2479, %v2415, %v2543
          %v2608 = vsel %vm2480, %v2416, %v2544
          %v2609 = vsel %vm2481, %v2417, %v2545
          %v2610 = vsel %vm2482, %v2418, %v2546
          %v2611 = vsel %vm2483, %v2419, %v2547
          %v2612 = vsel %vm2484, %v2420, %v2548
          %v2613 = vsel %vm2485, %v2421, %v2549
          %v2614 = vsel %vm2486, %v2422, %v2550
          %v2615 = vsel %vm2487, %v2423, %v2551
          %v2616 = vsel %vm2488, %v2424, %v2552
          %v2617 = vsel %vm2489, %v2425, %v2553
          %v2618 = vsel %vm2490, %v2426, %v2554
          %v2619 = vsel %vm2491, %v2427, %v2555
          %v2620 = vsel %vm2492, %v2428, %v2556
          %v2621 = vsel %vm2493, %v2429, %v2557
          %v2622 = vsel %vm2494, %v2430, %v2558
          %v2623 = vsel %vm2495, %v2431, %v2559
          %v2624 = vsel %vm2496, %v2432, %v2560
          %v2625 = vsel %vm2497, %v2433, %v2561
          %v2626 = vsel %vm2498, %v2434, %v2562
          %v2627 = vsel %vm2499, %v2435, %v2563
          %v2628 = vsel %vm2500, %v2436, %v2564
          %v2629 = vsel %vm2501, %v2437, %v2565
          %v2630 = vsel %vm2502, %v2438, %v2566
          %v2631 = vsel %vm2503, %v2439, %v2567
          %v2632 = vsel %vm2504, %v2440, %v2568
          %v2633 = vsel %vm2505, %v2441, %v2569
          %v2634 = vsel %vm2506, %v2442, %v2570
          %v2635 = vsel %vm2507, %v2443, %v2571
          %v2636 = vsel %vm2508, %v2444, %v2572
          %v2637 = vsel %vm2509, %v2445, %v2573
          %v2638 = vsel %vm2510, %v2446, %v2574
          %v2639 = vsel %vm2511, %v2447, %v2575
          %v2640 = vsel %vm2512, %v2448, %v2576
          %v2641 = vsel %vm2513, %v2449, %v2577
          %v2642 = vsel %vm2514, %v2450, %v2578
          %v2643 = vsel %vm2515, %v2451, %v2579
          %v2644 = vsel %vm2516, %v2452, %v2580
          %v2645 = vsel %vm2517, %v2453, %v2581
          %v2646 = vsel %vm2518, %v2454, %v2582
          %v2647 = vsel %vm2519, %v2455, %v2583
          %v2648 = vsel %vm2520, %v2456, %v2584
          %v2649 = vsel %vm2521, %v2457, %v2585
          %v2650 = vpack.c.bf16 %v2587, %v2586
          %v2651 = vpack.c.bf16 %v2589, %v2588
          %v2652 = vpack.c.bf16 %v2591, %v2590
          %v2653 = vpack.c.bf16 %v2593, %v2592
          %v2654 = vpack.c.bf16 %v2595, %v2594
          %v2655 = vpack.c.bf16 %v2597, %v2596
          %v2656 = vpack.c.bf16 %v2599, %v2598
          %v2657 = vpack.c.bf16 %v2601, %v2600
          %v2658 = vpack.c.bf16 %v2603, %v2602
          %v2659 = vpack.c.bf16 %v2605, %v2604
          %v2660 = vpack.c.bf16 %v2607, %v2606
          %v2661 = vpack.c.bf16 %v2609, %v2608
          %v2662 = vpack.c.bf16 %v2611, %v2610
          %v2663 = vpack.c.bf16 %v2613, %v2612
          %v2664 = vpack.c.bf16 %v2615, %v2614
          %v2665 = vpack.c.bf16 %v2617, %v2616
          %v2666 = vpack.c.bf16 %v2619, %v2618
          %v2667 = vpack.c.bf16 %v2621, %v2620
          %v2668 = vpack.c.bf16 %v2623, %v2622
          %v2669 = vpack.c.bf16 %v2625, %v2624
          %v2670 = vpack.c.bf16 %v2627, %v2626
          %v2671 = vpack.c.bf16 %v2629, %v2628
          %v2672 = vpack.c.bf16 %v2631, %v2630
          %v2673 = vpack.c.bf16 %v2633, %v2632
          %v2674 = vpack.c.bf16 %v2635, %v2634
          %v2675 = vpack.c.bf16 %v2637, %v2636
          %v2676 = vpack.c.bf16 %v2639, %v2638
          %v2677 = vpack.c.bf16 %v2641, %v2640
          %v2678 = vpack.c.bf16 %v2643, %v2642
          %v2679 = vpack.c.bf16 %v2645, %v2644
          %v2680 = vpack.c.bf16 %v2647, %v2646
          %v2681 = vpack.c.bf16 %v2649, %v2648
          %v2714 = vunpack.c.l.b16 %v2650
          %v2715 = vunpack.c.h.b16 %v2650
          %v2716 = vunpack.c.l.b16 %v2651
          %v2717 = vunpack.c.h.b16 %v2651
          %v2718 = vunpack.c.l.b16 %v2652
          %v2719 = vunpack.c.h.b16 %v2652
          %v2720 = vunpack.c.l.b16 %v2653
          %v2721 = vunpack.c.h.b16 %v2653
          %v2722 = vunpack.c.l.b16 %v2654
          %v2723 = vunpack.c.h.b16 %v2654
          %v2724 = vunpack.c.l.b16 %v2655
          %v2725 = vunpack.c.h.b16 %v2655
          %v2726 = vunpack.c.l.b16 %v2656
          %v2727 = vunpack.c.h.b16 %v2656
          %v2728 = vunpack.c.l.b16 %v2657
          %v2729 = vunpack.c.h.b16 %v2657
          %v2730 = vunpack.c.l.b16 %v2658
          %v2731 = vunpack.c.h.b16 %v2658
          %v2732 = vunpack.c.l.b16 %v2659
          %v2733 = vunpack.c.h.b16 %v2659
          %v2734 = vunpack.c.l.b16 %v2660
          %v2735 = vunpack.c.h.b16 %v2660
          %v2736 = vunpack.c.l.b16 %v2661
          %v2737 = vunpack.c.h.b16 %v2661
          %v2738 = vunpack.c.l.b16 %v2662
          %v2739 = vunpack.c.h.b16 %v2662
          %v2740 = vunpack.c.l.b16 %v2663
          %v2741 = vunpack.c.h.b16 %v2663
          %v2742 = vunpack.c.l.b16 %v2664
          %v2743 = vunpack.c.h.b16 %v2664
          %v2744 = vunpack.c.l.b16 %v2665
          %v2745 = vunpack.c.h.b16 %v2665
          %v2746 = vunpack.c.l.b16 %v2666
          %v2747 = vunpack.c.h.b16 %v2666
          %v2748 = vunpack.c.l.b16 %v2667
          %v2749 = vunpack.c.h.b16 %v2667
          %v2750 = vunpack.c.l.b16 %v2668
          %v2751 = vunpack.c.h.b16 %v2668
          %v2752 = vunpack.c.l.b16 %v2669
          %v2753 = vunpack.c.h.b16 %v2669
          %v2754 = vunpack.c.l.b16 %v2670
          %v2755 = vunpack.c.h.b16 %v2670
          %v2756 = vunpack.c.l.b16 %v2671
          %v2757 = vunpack.c.h.b16 %v2671
          %v2758 = vunpack.c.l.b16 %v2672
          %v2759 = vunpack.c.h.b16 %v2672
          %v2760 = vunpack.c.l.b16 %v2673
          %v2761 = vunpack.c.h.b16 %v2673
          %v2762 = vunpack.c.l.b16 %v2674
          %v2763 = vunpack.c.h.b16 %v2674
          %v2764 = vunpack.c.l.b16 %v2675
          %v2765 = vunpack.c.h.b16 %v2675
          %v2766 = vunpack.c.l.b16 %v2676
          %v2767 = vunpack.c.h.b16 %v2676
          %v2768 = vunpack.c.l.b16 %v2677
          %v2769 = vunpack.c.h.b16 %v2677
          %v2770 = vunpack.c.l.b16 %v2678
          %v2771 = vunpack.c.h.b16 %v2678
          %v2772 = vunpack.c.l.b16 %v2679
          %v2773 = vunpack.c.h.b16 %v2679
          %v2774 = vunpack.c.l.b16 %v2680
          %v2775 = vunpack.c.h.b16 %v2680
          %v2776 = vunpack.c.l.b16 %v2681
          %v2777 = vunpack.c.h.b16 %v2681
          %v2778 = vpack.c.b16 %v2714, %v2714
          %v2779 = vpack.c.b16 %v2715, %v2715
          %v2780 = vpack.c.b16 %v2716, %v2716
          %v2781 = vpack.c.b16 %v2717, %v2717
          %v2782 = vpack.c.b16 %v2718, %v2718
          %v2783 = vpack.c.b16 %v2719, %v2719
          %v2784 = vpack.c.b16 %v2720, %v2720
          %v2785 = vpack.c.b16 %v2721, %v2721
          %v2786 = vpack.c.b16 %v2722, %v2722
          %v2787 = vpack.c.b16 %v2723, %v2723
          %v2788 = vpack.c.b16 %v2724, %v2724
          %v2789 = vpack.c.b16 %v2725, %v2725
          %v2790 = vpack.c.b16 %v2726, %v2726
          %v2791 = vpack.c.b16 %v2727, %v2727
          %v2792 = vpack.c.b16 %v2728, %v2728
          %v2793 = vpack.c.b16 %v2729, %v2729
          %v2794 = vpack.c.b16 %v2730, %v2730
          %v2795 = vpack.c.b16 %v2731, %v2731
          %v2796 = vpack.c.b16 %v2732, %v2732
          %v2797 = vpack.c.b16 %v2733, %v2733
          %v2798 = vpack.c.b16 %v2734, %v2734
          %v2799 = vpack.c.b16 %v2735, %v2735
          %v2800 = vpack.c.b16 %v2736, %v2736
          %v2801 = vpack.c.b16 %v2737, %v2737
          %v2802 = vpack.c.b16 %v2738, %v2738
          %v2803 = vpack.c.b16 %v2739, %v2739
          %v2804 = vpack.c.b16 %v2740, %v2740
          %v2805 = vpack.c.b16 %v2741, %v2741
          %v2806 = vpack.c.b16 %v2742, %v2742
          %v2807 = vpack.c.b16 %v2743, %v2743
          %v2808 = vpack.c.b16 %v2744, %v2744
          %v2809 = vpack.c.b16 %v2745, %v2745
          %v2810 = vpack.c.b16 %v2746, %v2746
          %v2811 = vpack.c.b16 %v2747, %v2747
          %v2812 = vpack.c.b16 %v2748, %v2748
          %v2813 = vpack.c.b16 %v2749, %v2749
          %v2814 = vpack.c.b16 %v2750, %v2750
          %v2815 = vpack.c.b16 %v2751, %v2751
          %v2816 = vpack.c.b16 %v2752, %v2752
          %v2817 = vpack.c.b16 %v2753, %v2753
          %v2818 = vpack.c.b16 %v2754, %v2754
          %v2819 = vpack.c.b16 %v2755, %v2755
          %v2820 = vpack.c.b16 %v2756, %v2756
          %v2821 = vpack.c.b16 %v2757, %v2757
          %v2822 = vpack.c.b16 %v2758, %v2758
          %v2823 = vpack.c.b16 %v2759, %v2759
          %v2824 = vpack.c.b16 %v2760, %v2760
          %v2825 = vpack.c.b16 %v2761, %v2761
          %v2826 = vpack.c.b16 %v2762, %v2762
          %v2827 = vpack.c.b16 %v2763, %v2763
          %v2828 = vpack.c.b16 %v2764, %v2764
          %v2829 = vpack.c.b16 %v2765, %v2765
          %v2830 = vpack.c.b16 %v2766, %v2766
          %v2831 = vpack.c.b16 %v2767, %v2767
          %v2832 = vpack.c.b16 %v2768, %v2768
          %v2833 = vpack.c.b16 %v2769, %v2769
          %v2834 = vpack.c.b16 %v2770, %v2770
          %v2835 = vpack.c.b16 %v2771, %v2771
          %v2836 = vpack.c.b16 %v2772, %v2772
          %v2837 = vpack.c.b16 %v2773, %v2773
          %v2838 = vpack.c.b16 %v2774, %v2774
          %v2839 = vpack.c.b16 %v2775, %v2775
          %v2840 = vpack.c.b16 %v2776, %v2776
          %v2841 = vpack.c.b16 %v2777, %v2777
          %2906 = vst [vmem:[%s575] sm:$0xf] %v2778
          %2907 = vst [vmem:[%s575 + $0x4] sm:$0xf] %v2779
          %2908 = vst [vmem:[%s575 + $0x8] sm:$0xf] %v2780
          %2909 = vst [vmem:[%s575 + $0xc] sm:$0xf] %v2781
          %2910 = vst [vmem:[%s575 + $0x10] sm:$0xf] %v2782
          %2911 = vst [vmem:[%s575 + $0x14] sm:$0xf] %v2783
          %2912 = vst [vmem:[%s575 + $0x18] sm:$0xf] %v2784
          %2913 = vst [vmem:[%s575 + $0x1c] sm:$0xf] %v2785
          %2914 = vst [vmem:[%s575 + $0x20] sm:$0xf] %v2786
          %2915 = vst [vmem:[%s575 + $0x24] sm:$0xf] %v2787
          %2916 = vst [vmem:[%s575 + $0x28] sm:$0xf] %v2788
          %2917 = vst [vmem:[%s575 + $0x2c] sm:$0xf] %v2789
          %2918 = vst [vmem:[%s575 + $0x30] sm:$0xf] %v2790
          %2919 = vst [vmem:[%s575 + $0x34] sm:$0xf] %v2791
          %2920 = vst [vmem:[%s575 + $0x38] sm:$0xf] %v2792
          %2921 = vst [vmem:[%s575 + $0x3c] sm:$0xf] %v2793
          %2922 = vst [vmem:[%s575 + $0x40] sm:$0xf] %v2794
          %2923 = vst [vmem:[%s575 + $0x44] sm:$0xf] %v2795
          %2924 = vst [vmem:[%s575 + $0x48] sm:$0xf] %v2796
          %2925 = vst [vmem:[%s575 + $0x4c] sm:$0xf] %v2797
          %2926 = vst [vmem:[%s575 + $0x50] sm:$0xf] %v2798
          %2927 = vst [vmem:[%s575 + $0x54] sm:$0xf] %v2799
          %2928 = vst [vmem:[%s575 + $0x58] sm:$0xf] %v2800
          %2929 = vst [vmem:[%s575 + $0x5c] sm:$0xf] %v2801
          %2930 = vst [vmem:[%s575 + $0x60] sm:$0xf] %v2802
          %2931 = vst [vmem:[%s575 + $0x64] sm:$0xf] %v2803
          %2932 = vst [vmem:[%s575 + $0x68] sm:$0xf] %v2804
          %2933 = vst [vmem:[%s575 + $0x6c] sm:$0xf] %v2805
          %2934 = vst [vmem:[%s575 + $0x70] sm:$0xf] %v2806
          %2935 = vst [vmem:[%s575 + $0x74] sm:$0xf] %v2807
          %2936 = vst [vmem:[%s575 + $0x78] sm:$0xf] %v2808
          %2937 = vst [vmem:[%s575 + $0x7c] sm:$0xf] %v2809
          %2938 = vst [vmem:[%s575 + $0x80] sm:$0xf] %v2810
          %2939 = vst [vmem:[%s575 + $0x84] sm:$0xf] %v2811
          %2940 = vst [vmem:[%s575 + $0x88] sm:$0xf] %v2812
          %2941 = vst [vmem:[%s575 + $0x8c] sm:$0xf] %v2813
          %2942 = vst [vmem:[%s575 + $0x90] sm:$0xf] %v2814
          %2943 = vst [vmem:[%s575 + $0x94] sm:$0xf] %v2815
          %2944 = vst [vmem:[%s575 + $0x98] sm:$0xf] %v2816
          %2945 = vst [vmem:[%s575 + $0x9c] sm:$0xf] %v2817
          %2946 = vst [vmem:[%s575 + $0xa0] sm:$0xf] %v2818
          %2947 = vst [vmem:[%s575 + $0xa4] sm:$0xf] %v2819
          %2948 = vst [vmem:[%s575 + $0xa8] sm:$0xf] %v2820
          %2949 = vst [vmem:[%s575 + $0xac] sm:$0xf] %v2821
          %2950 = vst [vmem:[%s575 + $0xb0] sm:$0xf] %v2822
          %2951 = vst [vmem:[%s575 + $0xb4] sm:$0xf] %v2823
          %2952 = vst [vmem:[%s575 + $0xb8] sm:$0xf] %v2824
          %2953 = vst [vmem:[%s575 + $0xbc] sm:$0xf] %v2825
          %2954 = vst [vmem:[%s575 + $0xc0] sm:$0xf] %v2826
          %2955 = vst [vmem:[%s575 + $0xc4] sm:$0xf] %v2827
          %2956 = vst [vmem:[%s575 + $0xc8] sm:$0xf] %v2828
          %2957 = vst [vmem:[%s575 + $0xcc] sm:$0xf] %v2829
          %2958 = vst [vmem:[%s575 + $0xd0] sm:$0xf] %v2830
          %2959 = vst [vmem:[%s575 + $0xd4] sm:$0xf] %v2831
          %2960 = vst [vmem:[%s575 + $0xd8] sm:$0xf] %v2832
          %2961 = vst [vmem:[%s575 + $0xdc] sm:$0xf] %v2833
          %2962 = vst [vmem:[%s575 + $0xe0] sm:$0xf] %v2834
          %2963 = vst [vmem:[%s575 + $0xe4] sm:$0xf] %v2835
          %2964 = vst [vmem:[%s575 + $0xe8] sm:$0xf] %v2836
          %2965 = vst [vmem:[%s575 + $0xec] sm:$0xf] %v2837
          %2966 = vst [vmem:[%s575 + $0xf0] sm:$0xf] %v2838
          %2967 = vst [vmem:[%s575 + $0xf4] sm:$0xf] %v2839
          %2968 = vst [vmem:[%s575 + $0xf8] sm:$0xf] %v2840
          %2969 = vst [vmem:[%s575 + $0xfc] sm:$0xf] %v2841
        $region70: #{_lambda_.4} parent=57 // pred_fallthru
          _
        %s2970 = smul.u32 64, %s20
        %p2971 = scmp.lt.s32.totalorder %s2970, 127
        %s2972 = scalar_select %p2971, %s2970, 127
        %p2973 = scmp.lt.s32.totalorder %s21, 0
        %s2974 = scalar_select %p2973, %s21, 0
        %s2975 = sadd.s32 %s2974, %s2972
        %s2976 = smul.addr %s2975, 4
        %s2977 = scalar_lea.vmem %s4, %s2976
        // Predicated region
        $region71: #{_lambda_.4} parent=57 // pred_check
          %p2978 = pneg %p162
        $region72: #{_lambda_.4} parent=57 // pred_check_branch
          %2980 = sbr.rel (%p2978) target = $region74
        $region73: #{_lambda_.4} parent=57 // pred_region
          %s2981 = smul.u32 64, %s20
        $region74: #{_lambda_.4} parent=57 // pred_fallthru
          _
      $region58: #{_lambda_.4} parent=5 // pred_fallthru
        _
      %p2982 = scmp.le.s32.totalorder 2, %s10
      // Predicated region
      $region75: #{_lambda_.4} parent=5 // pred_check
        %p2983 = pneg %p2982
      $region76: #{_lambda_.4} parent=5 // pred_check_branch
        %2985 = sbr.rel (%p2983) target = $region78
      $region77: #{_lambda_.4} parent=5 // pred_region
        %s2986 = ssub.s32 %s10, 2
        // Predicated region
        $region79: #{_lambda_.4} parent=77 // pred_check
          %p2987 = pneg %p168
        $region80: #{_lambda_.4} parent=77 // pred_check_branch
          %2989 = sbr.rel (%p2987) target = $region82
        $region81: #{_lambda_.4} parent=77 // pred_region
          %s2990 = smul.u32 64, %s23
          %p2991 = scmp.lt.s32.totalorder %s2990, 127
          %s2992 = scalar_select %p2991, %s2990, 127
          %p2993 = scmp.lt.s32.totalorder %s24, 0
          %s2994 = scalar_select %p2993, %s24, 0
          %s2995 = sadd.s32 %s2994, %s2992
          %s2996 = smul.addr %s2995, 4
          %s2997 = scalar_lea.vmem %s4, %s2996
        $region82: #{_lambda_.4} parent=77 // pred_fallthru
          _
      $region78: #{_lambda_.4} parent=5 // pred_fallthru
        _
    $region6: #{_lambda_.4} parent=1 // loop_footer
      %s14 = sadd.s32 1, %s10
    $region7: #{_lambda_.4} parent=1 // loop_footer_branch
      %9 = sbr.rel target = $region3
    $region8: #{_lambda_.4} parent=1 // loop_exit
      _

// kernel: _lambda_.5
$region0: #{_lambda_.5}
  #allocation0 [shape = 'u32[]', space=smem, size = 0x4, offset = 0x4, fixed_abs, tag = 'smem constant byte address 0x4 - core index']
  #allocation1 [shape = 'u32[144,128]{1,0:T(1,128)}', space=vmem, size = 0x12000, scoped, tag = 'internal scratch']
  #allocation2 [shape = 'f32[128,128]{1,0:T(8,128)}', space=vmem, size = 0x10000, scoped, tag = 'scratch operand']
  %s0 = inlined_call_operand.vmem [shape: bf16[128,8192], index: 0, kind: input, shape index: {}]
  %s1 = inlined_call_operand.vmem [shape: bf16[8192,128], index: 1, kind: input, shape index: {}]
  %s2 = inlined_call_operand.vmem [shape: f32[1,128], index: 2, kind: input, shape index: {}]
  %s3 = inlined_call_operand.vmem [shape: f32[1,128], index: 3, kind: input, shape index: {}]
  %s4 = inlined_call_operand.vmem [shape: bf16[128,128], index: 4, kind: output, shape index: {}]
  %s5 = sld [smem:[#allocation0]]
  $region80: #{_lambda_.5} parent=0
    _
  %s7 = ssub.s32 1, %s5
  %s8 = scalar_select 0, %s7, %s5
  $region1: #{_lambda_.5} parent=0
    #allocation3 [shape = 'u8[262144]{0}', space=vmem, size = 0x40000, scoped, tag = 'input window, operand 0']
    loop: start=0, step=1, limit=18
    $region2: #{_lambda_.5} parent=1 // loop_pre_header
      _
    $region3: #{_lambda_.5} parent=1 // loop_header
      %s10 = sphi 0, %s14
      %p11 = scmp.ge.s32.totalorder %s10, 18
      %s17 = sphi 0, %s36
      %s18 = sphi 0, %s32
      %s19 = sphi 0, %s28
      %s20 = sphi 0, %s17
      %s21 = sphi 0, %s18
      %s22 = sphi 0, %s19
      %s23 = sphi 0, %s20
      %s24 = sphi 0, %s21
      %s25 = sphi 0, %s22
      %s41 = sphi 0, %s43
      %s44 = sphi 0, %s41
      %s45 = sphi 0, %s44
      %s61 = sphi 0, %s45
      %s69 = sphi 0, %s71
      %s72 = sphi 0, %s69
      %s73 = sphi 0, %s72
      %s89 = sphi 0, %s73
      %s95 = sphi 0, %s97
      %s98 = sphi 0, %s95
      %s99 = sphi 0, %s98
      %s115 = sphi 0, %s99
      %s121 = sphi 0, %s123
      %s124 = sphi 0, %s121
      %s125 = sphi 0, %s124
      %s141 = sphi 0, %s125
      %s149 = sphi 0, %s151
      %s152 = sphi 0, %s149
      %s153 = sphi 0, %s152
      %s169 = sphi 0, %s153
    $region4: #{_lambda_.5} parent=1 // loop_header_branch
      %13 = sbr.rel (%p11) target = $region8
    $region5: #{_lambda_.5} parent=1 // loop_body
      %s15 = ssub.s32 %s10, 1
      %s16 = ssub.s32 %s10, 2
      %s26 = sadd.s32 1, %s19
      %p27 = scmp.ge.s32.totalorder %s26, 16
      %s28 = scalar_select %p27, 0, %s26
      %s29 = sadd.s32 1, %s18
      %s30 = scalar_select %p27, %s29, %s18
      %p31 = scmp.ge.s32.totalorder %s30, 1
      %s32 = scalar_select %p31, 0, %s30
      %s33 = sadd.s32 1, %s17
      %s34 = scalar_select %p31, %s33, %s17
      %p35 = scmp.ge.s32.totalorder %s34, 1
      %s36 = scalar_select %p35, 0, %s34
      %s37 = ssub.s32 %s17, %s36
      %s38 = ssub.s32 %s19, %s28
      %s39 = sor.u32 %s37, %s38
      %p40 = scmp.eq.s32.totalorder %s39, 0
      %s42 = sadd.s32 %s41, 1
      %s43 = scalar_select %p40, %s41, %s42
      %p46 = pneg %p40
      %p47 = scmp.eq.s32.totalorder %s10, 15
      %p48 = por %p46, %p47
      %p49 = scmp.ne.s32.totalorder %s41, %s44
      %p50 = scmp.eq.s32.totalorder %s10, 0
      %p51 = por %p49, %p50
      %p52 = scmp.ne.s32.totalorder %s41, %s44
      %p53 = scmp.eq.s32.totalorder %s15, 15
      %p54 = por %p52, %p53
      %p55 = scmp.ne.s32.totalorder %s44, %s45
      %p56 = scmp.eq.s32.totalorder %s15, 0
      %p57 = por %p55, %p56
      %p58 = scmp.ne.s32.totalorder %s44, %s45
      %p59 = scmp.eq.s32.totalorder %s16, 15
      %p60 = por %p58, %p59
      %p62 = scmp.ne.s32.totalorder %s45, %s61
      %p63 = scmp.eq.s32.totalorder %s16, 0
      %p64 = por %p62, %p63
      %s65 = ssub.s32 %s19, %s28
      %s66 = ssub.s32 %s18, %s32
      %s67 = sor.u32 %s65, %s66
      %p68 = scmp.eq.s32.totalorder %s67, 0
      %s70 = sadd.s32 %s69, 1
      %s71 = scalar_select %p68, %s69, %s70
      %p74 = pneg %p68
      %p75 = scmp.eq.s32.totalorder %s10, 15
      %p76 = por %p74, %p75
      %p77 = scmp.ne.s32.totalorder %s69, %s72
      %p78 = scmp.eq.s32.totalorder %s10, 0
      %p79 = por %p77, %p78
      %p80 = scmp.ne.s32.totalorder %s69, %s72
      %p81 = scmp.eq.s32.totalorder %s15, 15
      %p82 = por %p80, %p81
      %p83 = scmp.ne.s32.totalorder %s72, %s73
      %p84 = scmp.eq.s32.totalorder %s15, 0
      %p85 = por %p83, %p84
      %p86 = scmp.ne.s32.totalorder %s72, %s73
      %p87 = scmp.eq.s32.totalorder %s16, 15
      %p88 = por %p86, %p87
      %p90 = scmp.ne.s32.totalorder %s73, %s89
      %p91 = scmp.eq.s32.totalorder %s16, 0
      %p92 = por %p90, %p91
      %s93 = ssub.s32 %s18, %s32
      %p94 = scmp.eq.s32.totalorder %s93, 0
      %s96 = sadd.s32 %s95, 1
      %s97 = scalar_select %p94, %s95, %s96
      %p100 = pneg %p94
      %p101 = scmp.eq.s32.totalorder %s10, 15
      %p102 = por %p100, %p101
      %p103 = scmp.ne.s32.totalorder %s95, %s98
      %p104 = scmp.eq.s32.totalorder %s10, 0
      %p105 = por %p103, %p104
      %p106 = scmp.ne.s32.totalorder %s95, %s98
      %p107 = scmp.eq.s32.totalorder %s15, 15
      %p108 = por %p106, %p107
      %p109 = scmp.ne.s32.totalorder %s98, %s99
      %p110 = scmp.eq.s32.totalorder %s15, 0
      %p111 = por %p109, %p110
      %p112 = scmp.ne.s32.totalorder %s98, %s99
      %p113 = scmp.eq.s32.totalorder %s16, 15
      %p114 = por %p112, %p113
      %p116 = scmp.ne.s32.totalorder %s99, %s115
      %p117 = scmp.eq.s32.totalorder %s16, 0
      %p118 = por %p116, %p117
      %s119 = ssub.s32 %s18, %s32
      %p120 = scmp.eq.s32.totalorder %s119, 0
      %s122 = sadd.s32 %s121, 1
      %s123 = scalar_select %p120, %s121, %s122
      %p126 = pneg %p120
      %p127 = scmp.eq.s32.totalorder %s10, 15
      %p128 = por %p126, %p127
      %p129 = scmp.ne.s32.totalorder %s121, %s124
      %p130 = scmp.eq.s32.totalorder %s10, 0
      %p131 = por %p129, %p130
      %p132 = scmp.ne.s32.totalorder %s121, %s124
      %p133 = scmp.eq.s32.totalorder %s15, 15
      %p134 = por %p132, %p133
      %p135 = scmp.ne.s32.totalorder %s124, %s125
      %p136 = scmp.eq.s32.totalorder %s15, 0
      %p137 = por %p135, %p136
      %p138 = scmp.ne.s32.totalorder %s124, %s125
      %p139 = scmp.eq.s32.totalorder %s16, 15
      %p140 = por %p138, %p139
      %p142 = scmp.ne.s32.totalorder %s125, %s141
      %p143 = scmp.eq.s32.totalorder %s16, 0
      %p144 = por %p142, %p143
      %s145 = ssub.s32 %s17, %s36
      %s146 = ssub.s32 %s18, %s32
      %s147 = sor.u32 %s145, %s146
      %p148 = scmp.eq.s32.totalorder %s147, 0
      %s150 = sadd.s32 %s149, 1
      %s151 = scalar_select %p148, %s149, %s150
      %p154 = pneg %p148
      %p155 = scmp.eq.s32.totalorder %s10, 15
      %p156 = por %p154, %p155
      %p157 = scmp.ne.s32.totalorder %s149, %s152
      %p158 = scmp.eq.s32.totalorder %s10, 0
      %p159 = por %p157, %p158
      %p160 = scmp.ne.s32.totalorder %s149, %s152
      %p161 = scmp.eq.s32.totalorder %s15, 15
      %p162 = por %p160, %p161
      %p163 = scmp.ne.s32.totalorder %s152, %s153
      %p164 = scmp.eq.s32.totalorder %s15, 0
      %p165 = por %p163, %p164
      %p166 = scmp.ne.s32.totalorder %s152, %s153
      %p167 = scmp.eq.s32.totalorder %s16, 15
      %p168 = por %p166, %p167
      %p170 = scmp.ne.s32.totalorder %s153, %s169
      %p171 = scmp.eq.s32.totalorder %s16, 0
      %p172 = por %p170, %p171
      %p173 = scmp.le.s32.totalorder 1, %s10
      %p174 = scmp.lt.s32.totalorder %s10, 17
      %p175 = pnand %p173, %p174
      %p176 = pneg %p175
      // Predicated region
      $region9: #{_lambda_.5} parent=5 // pred_check
        _
      $region10: #{_lambda_.5} parent=5 // pred_check_branch
        %178 = sbr.rel (%p175) target = $region12
      $region11: #{_lambda_.5} parent=5 // pred_region
        %s179 = ssub.s32 %s10, 1
        // Predicated region
        $region13: #{_lambda_.5} parent=11 // pred_check
          %p180 = pneg %p111
        $region14: #{_lambda_.5} parent=11 // pred_check_branch
          %182 = sbr.rel (%p180) target = $region16
        $region15: #{_lambda_.5} parent=11 // pred_region
          %p183 = scmp.lt.s32.totalorder %s21, 0
          %s184 = scalar_select %p183, %s21, 0
          %s185 = scalar_lea.vmem %s2, %s184
        $region16: #{_lambda_.5} parent=11 // pred_fallthru
          _
        // Predicated region
        $region17: #{_lambda_.5} parent=11 // pred_check
          %p186 = pneg %p137
        $region18: #{_lambda_.5} parent=11 // pred_check_branch
          %188 = sbr.rel (%p186) target = $region20
        $region19: #{_lambda_.5} parent=11 // pred_region
          %p189 = scmp.lt.s32.totalorder %s21, 0
          %s190 = scalar_select %p189, %s21, 0
          %s191 = scalar_lea.vmem %s3, %s190
        $region20: #{_lambda_.5} parent=11 // pred_fallthru
          _
      $region12: #{_lambda_.5} parent=5 // pred_fallthru
        _
      %p192 = scmp.lt.s32.totalorder %s10, 16
      // Predicated region
      $region21: #{_lambda_.5} parent=5 // pred_check
        %p193 = pneg %p192
      $region22: #{_lambda_.5} parent=5 // pred_check_branch
        %195 = sbr.rel (%p193) target = $region24
      $region23: #{_lambda_.5} parent=5 // pred_region
        // Predicated region
        $region25: #{_lambda_.5} parent=23 // pred_check
          %p196 = pneg %p51
        $region26: #{_lambda_.5} parent=23 // pred_check_branch
          %198 = sbr.rel (%p196) target = $region28
        $region27: #{_lambda_.5} parent=23 // pred_region
          %s199 = sand.u32 %s41, 1
          %s200 = sand.u32 %s41, 1
          %s201 = smul.addr %s200, 256
          %s202 = scalar_lea.vmem [#allocation3], %s201
          %s203 = smul.u32 16, %s17
          %s204 = smul.u32 4, %s19
          %s205 = smul.addr %s203, 64
          %s206 = sadd.s32 %s204, %s205
          %s207 = smul.addr %s206, 4
          %s208 = scalar_lea.vmem %s0, %s207
          // Predicated region
          $region29: #{_lambda_.5} parent=27 // pred_check
            _
          $region30: #{_lambda_.5} parent=27 // pred_check_branch
            %210 = sbr.rel (0) target = $region32
          $region31: #{_lambda_.5} parent=27 // pred_region
            // Predicated region
            $region33: #{_lambda_.5} parent=31 // pred_check
              _
            $region34: #{_lambda_.5} parent=31 // pred_check_branch
              %212 = sbr.rel (0) target = $region36
            $region35: #{_lambda_.5} parent=31 // pred_region
              loop: start=0, step=1, limit=1
              $region37: #{_lambda_.5} parent=35 // loop_pre_header
                _
              $region38: #{_lambda_.5} parent=35 // loop_header
                %s214 = sphi 0, %s218
                %p215 = scmp.ge.s32.totalorder %s214, 1
                %s219 = sphi %s208, %s208
                %s220 = sphi %s202, %s202
              $region39: #{_lambda_.5} parent=35 // loop_header_branch
                %217 = sbr.rel (%p215) target = $region43
              $region40: #{_lambda_.5} parent=35 // loop_body
                %v221 = vld [vmem:[%s219] sm:$0xff]
                %222 = vst [vmem:[%s220] sm:$0xff] %v221
                %v223 = vld [vmem:[%s219 + $0x8] sm:$0xff]
                %224 = vst [vmem:[%s220 + $0x8] sm:$0xff] %v223
                %v225 = vld [vmem:[%s219 + $0x100] sm:$0xff]
                %226 = vst [vmem:[%s220 + $0x10] sm:$0xff] %v225
                %v227 = vld [vmem:[%s219 + $0x108] sm:$0xff]
                %228 = vst [vmem:[%s220 + $0x18] sm:$0xff] %v227
                %v229 = vld [vmem:[%s219 + $0x200] sm:$0xff]
                %230 = vst [vmem:[%s220 + $0x20] sm:$0xff] %v229
                %v231 = vld [vmem:[%s219 + $0x208] sm:$0xff]
                %232 = vst [vmem:[%s220 + $0x28] sm:$0xff] %v231
                %v233 = vld [vmem:[%s219 + $0x300] sm:$0xff]
                %234 = vst [vmem:[%s220 + $0x30] sm:$0xff] %v233
                %v235 = vld [vmem:[%s219 + $0x308] sm:$0xff]
                %236 = vst [vmem:[%s220 + $0x38] sm:$0xff] %v235
                %v237 = vld [vmem:[%s219 + $0x400] sm:$0xff]
                %238 = vst [vmem:[%s220 + $0x40] sm:$0xff] %v237
                %v239 = vld [vmem:[%s219 + $0x408] sm:$0xff]
                %240 = vst [vmem:[%s220 + $0x48] sm:$0xff] %v239
                %v241 = vld [vmem:[%s219 + $0x500] sm:$0xff]
                %242 = vst [vmem:[%s220 + $0x50] sm:$0xff] %v241
                %v243 = vld [vmem:[%s219 + $0x508] sm:$0xff]
                %244 = vst [vmem:[%s220 + $0x58] sm:$0xff] %v243
                %v245 = vld [vmem:[%s219 + $0x600] sm:$0xff]
                %246 = vst [vmem:[%s220 + $0x60] sm:$0xff] %v245
                %v247 = vld [vmem:[%s219 + $0x608] sm:$0xff]
                %248 = vst [vmem:[%s220 + $0x68] sm:$0xff] %v247
                %v249 = vld [vmem:[%s219 + $0x700] sm:$0xff]
                %250 = vst [vmem:[%s220 + $0x70] sm:$0xff] %v249
                %v251 = vld [vmem:[%s219 + $0x708] sm:$0xff]
                %252 = vst [vmem:[%s220 + $0x78] sm:$0xff] %v251
                %v253 = vld [vmem:[%s219 + $0x800] sm:$0xff]
                %254 = vst [vmem:[%s220 + $0x80] sm:$0xff] %v253
                %v255 = vld [vmem:[%s219 + $0x808] sm:$0xff]
                %256 = vst [vmem:[%s220 + $0x88] sm:$0xff] %v255
                %v257 = vld [vmem:[%s219 + $0x900] sm:$0xff]
                %258 = vst [vmem:[%s220 + $0x90] sm:$0xff] %v257
                %v259 = vld [vmem:[%s219 + $0x908] sm:$0xff]
                %260 = vst [vmem:[%s220 + $0x98] sm:$0xff] %v259
                %v261 = vld [vmem:[%s219 + $0xa00] sm:$0xff]
                %262 = vst [vmem:[%s220 + $0xa0] sm:$0xff] %v261
                %v263 = vld [vmem:[%s219 + $0xa08] sm:$0xff]
                %264 = vst [vmem:[%s220 + $0xa8] sm:$0xff] %v263
                %v265 = vld [vmem:[%s219 + $0xb00] sm:$0xff]
                %266 = vst [vmem:[%s220 + $0xb0] sm:$0xff] %v265
                %v267 = vld [vmem:[%s219 + $0xb08] sm:$0xff]
                %268 = vst [vmem:[%s220 + $0xb8] sm:$0xff] %v267
                %v269 = vld [vmem:[%s219 + $0xc00] sm:$0xff]
                %270 = vst [vmem:[%s220 + $0xc0] sm:$0xff] %v269
                %v271 = vld [vmem:[%s219 + $0xc08] sm:$0xff]
                %272 = vst [vmem:[%s220 + $0xc8] sm:$0xff] %v271
                %v273 = vld [vmem:[%s219 + $0xd00] sm:$0xff]
                %274 = vst [vmem:[%s220 + $0xd0] sm:$0xff] %v273
                %v275 = vld [vmem:[%s219 + $0xd08] sm:$0xff]
                %276 = vst [vmem:[%s220 + $0xd8] sm:$0xff] %v275
                %v277 = vld [vmem:[%s219 + $0xe00] sm:$0xff]
                %278 = vst [vmem:[%s220 + $0xe0] sm:$0xff] %v277
                %v279 = vld [vmem:[%s219 + $0xe08] sm:$0xff]
                %280 = vst [vmem:[%s220 + $0xe8] sm:$0xff] %v279
                %v281 = vld [vmem:[%s219 + $0xf00] sm:$0xff]
                %282 = vst [vmem:[%s220 + $0xf0] sm:$0xff] %v281
                %v283 = vld [vmem:[%s219 + $0xf08] sm:$0xff]
                %284 = vst [vmem:[%s220 + $0xf8] sm:$0xff] %v283
              $region41: #{_lambda_.5} parent=35 // loop_footer
                %s218 = sadd.s32 1, %s214
              $region42: #{_lambda_.5} parent=35 // loop_footer_branch
                %213 = sbr.rel target = $region38
              $region43: #{_lambda_.5} parent=35 // loop_exit
                _
            $region36: #{_lambda_.5} parent=31 // pred_fallthru
              _
            // Predicated region
            $region44: #{_lambda_.5} parent=31 // pred_check
              _
            $region45: #{_lambda_.5} parent=31 // pred_check_branch
              %286 = sbr.rel target = $region47
            $region46: #{_lambda_.5} parent=31 // pred_region
              _
            $region47: #{_lambda_.5} parent=31 // pred_fallthru
              _
          $region32: #{_lambda_.5} parent=27 // pred_fallthru
            _
          %287 = vnop
        $region28: #{_lambda_.5} parent=23 // pred_fallthru
          _
        // Predicated region
        $region48: #{_lambda_.5} parent=23 // pred_check
          %p288 = pneg %p79
        $region49: #{_lambda_.5} parent=23 // pred_check_branch
          %290 = sbr.rel (%p288) target = $region51
        $region50: #{_lambda_.5} parent=23 // pred_region
          %s291 = smul.u32 64, %s19
          %p292 = scmp.lt.s32.totalorder %s291, 1023
          %s293 = scalar_select %p292, %s291, 1023
          %p294 = scmp.lt.s32.totalorder %s18, 0
          %s295 = scalar_select %p294, %s18, 0
          %s296 = sadd.s32 %s295, %s293
          %s297 = smul.addr %s296, 4
          %s298 = scalar_lea.vmem %s1, %s297
          %s299 = smul.u32 64, %s19
        $region51: #{_lambda_.5} parent=23 // pred_fallthru
          _
      $region24: #{_lambda_.5} parent=5 // pred_fallthru
        _
      %p300 = scmp.le.s32.totalorder 1, %s10
      %p301 = scmp.lt.s32.totalorder %s10, 17
      %p302 = pnand %p300, %p301
      %p303 = pneg %p302
      // Predicated region
      $region52: #{_lambda_.5} parent=5 // pred_check
        _
      $region53: #{_lambda_.5} parent=5 // pred_check_branch
        %305 = sbr.rel (%p302) target = $region55
      $region54: #{_lambda_.5} parent=5 // pred_region
        %s306 = ssub.s32 %s10, 1
        %s307 = sand.u32 %s44, 1
        %s308 = sand.u32 %s44, 1
        %s309 = smul.addr %s308, 256
        %s310 = scalar_lea.vmem [#allocation3], %s309
        // Predicated region
        $region56: #{_lambda_.5} parent=54 // pred_check
          %p311 = pneg %p57
        $region57: #{_lambda_.5} parent=54 // pred_check_branch
          %313 = sbr.rel (%p311) target = $region59
        $region58: #{_lambda_.5} parent=54 // pred_region
          _
        $region59: #{_lambda_.5} parent=54 // pred_fallthru
          _
        %s314 = sand.u32 %s44, 1
        %s315 = sand.u32 %s44, 1
        %s316 = smul.addr %s315, 256
        %s317 = scalar_lea.vmem [#allocation3], %s316
        %p318 = pneg %p57
        %p319 = pneg %p54
        %s320 = smul.u32 64, %s22
        %p321 = scmp.lt.s32.totalorder %s320, 1023
        %s322 = scalar_select %p321, %s320, 1023
        %p323 = scmp.lt.s32.totalorder %s21, 0
        %s324 = scalar_select %p323, %s21, 0
        %s325 = sadd.s32 %s324, %s322
        %s326 = smul.addr %s325, 4
        %s327 = scalar_lea.vmem %s1, %s326
        %p328 = pneg %p85
        %p329 = pneg %p82
        %p330 = scmp.lt.s32.totalorder %s21, 0
        %s331 = scalar_select %p330, %s21, 0
        %s332 = scalar_lea.vmem %s2, %s331
        %p333 = pneg %p111
        %p334 = pneg %p108
        %p335 = scmp.lt.s32.totalorder %s21, 0
        %s336 = scalar_select %p335, %s21, 0
        %s337 = scalar_lea.vmem %s3, %s336
        %p338 = pneg %p137
        %p339 = pneg %p134
        %p340 = pneg %p165
        %p341 = pneg %p162
        %s342 = smul.u32 16, %s20
        %p343 = scmp.lt.s32.totalorder %s342, 15
        %s344 = scalar_select %p343, %s342, 15
        %p345 = scmp.lt.s32.totalorder %s21, 0
        %s346 = scalar_select %p345, %s21, 0
        %s347 = sadd.s32 %s346, %s344
        %s348 = smul.addr %s347, 4
        %s349 = scalar_lea.vmem %s4, %s348
        %s350 = smul.u32 16, %s20
        %s351 = smul.u32 4, %s22
        %s352 = smul.u32 64, %s22
        %p353 = scmp.lt.s32.totalorder %s352, 1023
        %s354 = scalar_select %p353, %s352, 1023
        %p355 = scmp.lt.s32.totalorder %s21, 0
        %s356 = scalar_select %p355, %s21, 0
        %s357 = sadd.s32 %s356, %s354
        %s358 = smul.addr %s357, 4
        %s359 = scalar_lea.vmem %s1, %s358
        %s360 = smul.u32 64, %s22
        %p361 = scmp.lt.s32.totalorder %s21, 0
        %s362 = scalar_select %p361, %s21, 0
        %s363 = scalar_lea.vmem %s2, %s362
        %p364 = scmp.lt.s32.totalorder %s21, 0
        %s365 = scalar_select %p364, %s21, 0
        %s366 = scalar_lea.vmem %s3, %s365
        %s367 = smul.u32 16, %s20
        %p368 = scmp.lt.s32.totalorder %s367, 15
        %s369 = scalar_select %p368, %s367, 15
        %p370 = scmp.lt.s32.totalorder %s21, 0
        %s371 = scalar_select %p370, %s21, 0
        %s372 = sadd.s32 %s371, %s369
        %s373 = smul.addr %s372, 4
        %s374 = scalar_lea.vmem %s4, %s373
        %s375 = smul.u32 16, %s20
        %p377 = scmp.eq.s32.totalorder %s22, 0
        // Predicated region
        $region60: #{_lambda_.5} parent=54 // pred_check
          %p378 = pneg %p377
        $region61: #{_lambda_.5} parent=54 // pred_check_branch
          %380 = sbr.rel (%p378) target = $region63
        $region62: #{_lambda_.5} parent=54 // pred_region
          %381 = vst [vmem:[#allocation2] sm:$0xff] 0.0
          %382 = vst [vmem:[#allocation2 + $0x8] sm:$0xff] 0.0
          %383 = vst [vmem:[#allocation2 + $0x10] sm:$0xff] 0.0
          %384 = vst [vmem:[#allocation2 + $0x18] sm:$0xff] 0.0
          %385 = vst [vmem:[#allocation2 + $0x20] sm:$0xff] 0.0
          %386 = vst [vmem:[#allocation2 + $0x28] sm:$0xff] 0.0
          %387 = vst [vmem:[#allocation2 + $0x30] sm:$0xff] 0.0
          %388 = vst [vmem:[#allocation2 + $0x38] sm:$0xff] 0.0
          %389 = vst [vmem:[#allocation2 + $0x40] sm:$0xff] 0.0
          %390 = vst [vmem:[#allocation2 + $0x48] sm:$0xff] 0.0
          %391 = vst [vmem:[#allocation2 + $0x50] sm:$0xff] 0.0
          %392 = vst [vmem:[#allocation2 + $0x58] sm:$0xff] 0.0
          %393 = vst [vmem:[#allocation2 + $0x60] sm:$0xff] 0.0
          %394 = vst [vmem:[#allocation2 + $0x68] sm:$0xff] 0.0
          %395 = vst [vmem:[#allocation2 + $0x70] sm:$0xff] 0.0
          %396 = vst [vmem:[#allocation2 + $0x78] sm:$0xff] 0.0
        $region63: #{_lambda_.5} parent=54 // pred_fallthru
          _
        %v397 = vld [vmem:[#allocation2] sm:$0xff]
        %v398 = vld [vmem:[#allocation2 + $0x8] sm:$0xff]
        %v399 = vld [vmem:[#allocation2 + $0x10] sm:$0xff]
        %v400 = vld [vmem:[#allocation2 + $0x18] sm:$0xff]
        %v401 = vld [vmem:[#allocation2 + $0x20] sm:$0xff]
        %v402 = vld [vmem:[#allocation2 + $0x28] sm:$0xff]
        %v403 = vld [vmem:[#allocation2 + $0x30] sm:$0xff]
        %v404 = vld [vmem:[#allocation2 + $0x38] sm:$0xff]
        %v405 = vld [vmem:[#allocation2 + $0x40] sm:$0xff]
        %v406 = vld [vmem:[#allocation2 + $0x48] sm:$0xff]
        %v407 = vld [vmem:[#allocation2 + $0x50] sm:$0xff]
        %v408 = vld [vmem:[#allocation2 + $0x58] sm:$0xff]
        %v409 = vld [vmem:[#allocation2 + $0x60] sm:$0xff]
        %v410 = vld [vmem:[#allocation2 + $0x68] sm:$0xff]
        %v411 = vld [vmem:[#allocation2 + $0x70] sm:$0xff]
        %v412 = vld [vmem:[#allocation2 + $0x78] sm:$0xff]
        %v413 = vld [vmem:[%s310] sm:$0xff]
        %v414 = vld [vmem:[%s310 + $0x8] sm:$0xff]
        %v415 = vld [vmem:[%s310 + $0x10] sm:$0xff]
        %v416 = vld [vmem:[%s310 + $0x18] sm:$0xff]
        %v417 = vld [vmem:[%s310 + $0x20] sm:$0xff]
        %v418 = vld [vmem:[%s310 + $0x28] sm:$0xff]
        %v419 = vld [vmem:[%s310 + $0x30] sm:$0xff]
        %v420 = vld [vmem:[%s310 + $0x38] sm:$0xff]
        %v421 = vld [vmem:[%s310 + $0x40] sm:$0xff]
        %v422 = vld [vmem:[%s310 + $0x48] sm:$0xff]
        %v423 = vld [vmem:[%s310 + $0x50] sm:$0xff]
        %v424 = vld [vmem:[%s310 + $0x58] sm:$0xff]
        %v425 = vld [vmem:[%s310 + $0x60] sm:$0xff]
        %v426 = vld [vmem:[%s310 + $0x68] sm:$0xff]
        %v427 = vld [vmem:[%s310 + $0x70] sm:$0xff]
        %v428 = vld [vmem:[%s310 + $0x78] sm:$0xff]
        %v429 = vld [vmem:[%s310 + $0x80] sm:$0xff]
        %v430 = vld [vmem:[%s310 + $0x88] sm:$0xff]
        %v431 = vld [vmem:[%s310 + $0x90] sm:$0xff]
        %v432 = vld [vmem:[%s310 + $0x98] sm:$0xff]
        %v433 = vld [vmem:[%s310 + $0xa0] sm:$0xff]
        %v434 = vld [vmem:[%s310 + $0xa8] sm:$0xff]
        %v435 = vld [vmem:[%s310 + $0xb0] sm:$0xff]
        %v436 = vld [vmem:[%s310 + $0xb8] sm:$0xff]
        %v437 = vld [vmem:[%s310 + $0xc0] sm:$0xff]
        %v438 = vld [vmem:[%s310 + $0xc8] sm:$0xff]
        %v439 = vld [vmem:[%s310 + $0xd0] sm:$0xff]
        %v440 = vld [vmem:[%s310 + $0xd8] sm:$0xff]
        %v441 = vld [vmem:[%s310 + $0xe0] sm:$0xff]
        %v442 = vld [vmem:[%s310 + $0xe8] sm:$0xff]
        %v443 = vld [vmem:[%s310 + $0xf0] sm:$0xff]
        %v444 = vld [vmem:[%s310 + $0xf8] sm:$0xff]
        %v445 = vld [vmem:[%s359] sm:$0xf]
        %v446 = vld [vmem:[%s359 + $0x4] sm:$0xf]
        %v447 = vld [vmem:[%s359 + $0x8] sm:$0xf]
        %v448 = vld [vmem:[%s359 + $0xc] sm:$0xf]
        %v449 = vld [vmem:[%s359 + $0x10] sm:$0xf]
        %v450 = vld [vmem:[%s359 + $0x14] sm:$0xf]
        %v451 = vld [vmem:[%s359 + $0x18] sm:$0xf]
        %v452 = vld [vmem:[%s359 + $0x1c] sm:$0xf]
        %v453 = vld [vmem:[%s359 + $0x20] sm:$0xf]
        %v454 = vld [vmem:[%s359 + $0x24] sm:$0xf]
        %v455 = vld [vmem:[%s359 + $0x28] sm:$0xf]
        %v456 = vld [vmem:[%s359 + $0x2c] sm:$0xf]
        %v457 = vld [vmem:[%s359 + $0x30] sm:$0xf]
        %v458 = vld [vmem:[%s359 + $0x34] sm:$0xf]
        %v459 = vld [vmem:[%s359 + $0x38] sm:$0xf]
        %v460 = vld [vmem:[%s359 + $0x3c] sm:$0xf]
        %v461 = vld [vmem:[%s359 + $0x40] sm:$0xf]
        %v462 = vld [vmem:[%s359 + $0x44] sm:$0xf]
        %v463 = vld [vmem:[%s359 + $0x48] sm:$0xf]
        %v464 = vld [vmem:[%s359 + $0x4c] sm:$0xf]
        %v465 = vld [vmem:[%s359 + $0x50] sm:$0xf]
        %v466 = vld [vmem:[%s359 + $0x54] sm:$0xf]
        %v467 = vld [vmem:[%s359 + $0x58] sm:$0xf]
        %v468 = vld [vmem:[%s359 + $0x5c] sm:$0xf]
        %v469 = vld [vmem:[%s359 + $0x60] sm:$0xf]
        %v470 = vld [vmem:[%s359 + $0x64] sm:$0xf]
        %v471 = vld [vmem:[%s359 + $0x68] sm:$0xf]
        %v472 = vld [vmem:[%s359 + $0x6c] sm:$0xf]
        %v473 = vld [vmem:[%s359 + $0x70] sm:$0xf]
        %v474 = vld [vmem:[%s359 + $0x74] sm:$0xf]
        %v475 = vld [vmem:[%s359 + $0x78] sm:$0xf]
        %v476 = vld [vmem:[%s359 + $0x7c] sm:$0xf]
        %v477 = vld [vmem:[%s359 + $0x80] sm:$0xf]
        %v478 = vld [vmem:[%s359 + $0x84] sm:$0xf]
        %v479 = vld [vmem:[%s359 + $0x88] sm:$0xf]
        %v480 = vld [vmem:[%s359 + $0x8c] sm:$0xf]
        %v481 = vld [vmem:[%s359 + $0x90] sm:$0xf]
        %v482 = vld [vmem:[%s359 + $0x94] sm:$0xf]
        %v483 = vld [vmem:[%s359 + $0x98] sm:$0xf]
        %v484 = vld [vmem:[%s359 + $0x9c] sm:$0xf]
        %v485 = vld [vmem:[%s359 + $0xa0] sm:$0xf]
        %v486 = vld [vmem:[%s359 + $0xa4] sm:$0xf]
        %v487 = vld [vmem:[%s359 + $0xa8] sm:$0xf]
        %v488 = vld [vmem:[%s359 + $0xac] sm:$0xf]
        %v489 = vld [vmem:[%s359 + $0xb0] sm:$0xf]
        %v490 = vld [vmem:[%s359 + $0xb4] sm:$0xf]
        %v491 = vld [vmem:[%s359 + $0xb8] sm:$0xf]
        %v492 = vld [vmem:[%s359 + $0xbc] sm:$0xf]
        %v493 = vld [vmem:[%s359 + $0xc0] sm:$0xf]
        %v494 = vld [vmem:[%s359 + $0xc4] sm:$0xf]
        %v495 = vld [vmem:[%s359 + $0xc8] sm:$0xf]
        %v496 = vld [vmem:[%s359 + $0xcc] sm:$0xf]
        %v497 = vld [vmem:[%s359 + $0xd0] sm:$0xf]
        %v498 = vld [vmem:[%s359 + $0xd4] sm:$0xf]
        %v499 = vld [vmem:[%s359 + $0xd8] sm:$0xf]
        %v500 = vld [vmem:[%s359 + $0xdc] sm:$0xf]
        %v501 = vld [vmem:[%s359 + $0xe0] sm:$0xf]
        %v502 = vld [vmem:[%s359 + $0xe4] sm:$0xf]
        %v503 = vld [vmem:[%s359 + $0xe8] sm:$0xf]
        %v504 = vld [vmem:[%s359 + $0xec] sm:$0xf]
        %v505 = vld [vmem:[%s359 + $0xf0] sm:$0xf]
        %v506 = vld [vmem:[%s359 + $0xf4] sm:$0xf]
        %v507 = vld [vmem:[%s359 + $0xf8] sm:$0xf]
        %v508 = vld [vmem:[%s359 + $0xfc] sm:$0xf]
        %v541 = vunpack.c.l.b16 %v413
        %v542 = vunpack.c.h.b16 %v413
        %v543 = vunpack.c.l.b16 %v414
        %v544 = vunpack.c.h.b16 %v414
        %v545 = vunpack.c.l.b16 %v415
        %v546 = vunpack.c.h.b16 %v415
        %v547 = vunpack.c.l.b16 %v416
        %v548 = vunpack.c.h.b16 %v416
        %v549 = vunpack.c.l.b16 %v417
        %v550 = vunpack.c.h.b16 %v417
        %v551 = vunpack.c.l.b16 %v418
        %v552 = vunpack.c.h.b16 %v418
        %v553 = vunpack.c.l.b16 %v419
        %v554 = vunpack.c.h.b16 %v419
        %v555 = vunpack.c.l.b16 %v420
        %v556 = vunpack.c.h.b16 %v420
        %v557 = vunpack.c.l.b16 %v421
        %v558 = vunpack.c.h.b16 %v421
        %v559 = vunpack.c.l.b16 %v422
        %v560 = vunpack.c.h.b16 %v422
        %v561 = vunpack.c.l.b16 %v423
        %v562 = vunpack.c.h.b16 %v423
        %v563 = vunpack.c.l.b16 %v424
        %v564 = vunpack.c.h.b16 %v424
        %v565 = vunpack.c.l.b16 %v425
        %v566 = vunpack.c.h.b16 %v425
        %v567 = vunpack.c.l.b16 %v426
        %v568 = vunpack.c.h.b16 %v426
        %v569 = vunpack.c.l.b16 %v427
        %v570 = vunpack.c.h.b16 %v427
        %v571 = vunpack.c.l.b16 %v428
        %v572 = vunpack.c.h.b16 %v428
        %v573 = vunpack.c.l.b16 %v429
        %v574 = vunpack.c.h.b16 %v429
        %v575 = vunpack.c.l.b16 %v430
        %v576 = vunpack.c.h.b16 %v430
        %v577 = vunpack.c.l.b16 %v431
        %v578 = vunpack.c.h.b16 %v431
        %v579 = vunpack.c.l.b16 %v432
        %v580 = vunpack.c.h.b16 %v432
        %v581 = vunpack.c.l.b16 %v433
        %v582 = vunpack.c.h.b16 %v433
        %v583 = vunpack.c.l.b16 %v434
        %v584 = vunpack.c.h.b16 %v434
        %v585 = vunpack.c.l.b16 %v435
        %v586 = vunpack.c.h.b16 %v435
        %v587 = vunpack.c.l.b16 %v436
        %v588 = vunpack.c.h.b16 %v436
        %v589 = vunpack.c.l.b16 %v437
        %v590 = vunpack.c.h.b16 %v437
        %v591 = vunpack.c.l.b16 %v438
        %v592 = vunpack.c.h.b16 %v438
        %v593 = vunpack.c.l.b16 %v439
        %v594 = vunpack.c.h.b16 %v439
        %v595 = vunpack.c.l.b16 %v440
        %v596 = vunpack.c.h.b16 %v440
        %v597 = vunpack.c.l.b16 %v441
        %v598 = vunpack.c.h.b16 %v441
        %v599 = vunpack.c.l.b16 %v442
        %v600 = vunpack.c.h.b16 %v442
        %v601 = vunpack.c.l.b16 %v443
        %v602 = vunpack.c.h.b16 %v443
        %v603 = vunpack.c.l.b16 %v444
        %v604 = vunpack.c.h.b16 %v444
        %v605 = vpack.c.b16 %v545, %v541
        %v606 = vpack.c.b16 %v546, %v542
        %v607 = vpack.c.b16 %v547, %v543
        %v608 = vpack.c.b16 %v548, %v544
        %v609 = vpack.c.b16 %v553, %v549
        %v610 = vpack.c.b16 %v554, %v550
        %v611 = vpack.c.b16 %v555, %v551
        %v612 = vpack.c.b16 %v556, %v552
        %v613 = vpack.c.b16 %v561, %v557
        %v614 = vpack.c.b16 %v562, %v558
        %v615 = vpack.c.b16 %v563, %v559
        %v616 = vpack.c.b16 %v564, %v560
        %v617 = vpack.c.b16 %v569, %v565
        %v618 = vpack.c.b16 %v570, %v566
        %v619 = vpack.c.b16 %v571, %v567
        %v620 = vpack.c.b16 %v572, %v568
        %v621 = vpack.c.b16 %v577, %v573
        %v622 = vpack.c.b16 %v578, %v574
        %v623 = vpack.c.b16 %v579, %v575
        %v624 = vpack.c.b16 %v580, %v576
        %v625 = vpack.c.b16 %v585, %v581
        %v626 = vpack.c.b16 %v586, %v582
        %v627 = vpack.c.b16 %v587, %v583
        %v628 = vpack.c.b16 %v588, %v584
        %v629 = vpack.c.b16 %v593, %v589
        %v630 = vpack.c.b16 %v594, %v590
        %v631 = vpack.c.b16 %v595, %v591
        %v632 = vpack.c.b16 %v596, %v592
        %v633 = vpack.c.b16 %v601, %v597
        %v634 = vpack.c.b16 %v602, %v598
        %v635 = vpack.c.b16 %v603, %v599
        %v636 = vpack.c.b16 %v604, %v600
        %v733 = vunpack.c.l.b16 %v445
        %v734 = vunpack.c.l.b16 %v446
        %v735 = vunpack.c.l.b16 %v447
        %v736 = vunpack.c.l.b16 %v448
        %v737 = vunpack.c.l.b16 %v449
        %v738 = vunpack.c.l.b16 %v450
        %v739 = vunpack.c.l.b16 %v451
        %v740 = vunpack.c.l.b16 %v452
        %v741 = vunpack.c.l.b16 %v453
        %v742 = vunpack.c.l.b16 %v454
        %v743 = vunpack.c.l.b16 %v455
        %v744 = vunpack.c.l.b16 %v456
        %v745 = vunpack.c.l.b16 %v457
        %v746 = vunpack.c.l.b16 %v458
        %v747 = vunpack.c.l.b16 %v459
        %v748 = vunpack.c.l.b16 %v460
        %v749 = vunpack.c.l.b16 %v461
        %v750 = vunpack.c.l.b16 %v462
        %v751 = vunpack.c.l.b16 %v463
        %v752 = vunpack.c.l.b16 %v464
        %v753 = vunpack.c.l.b16 %v465
        %v754 = vunpack.c.l.b16 %v466
        %v755 = vunpack.c.l.b16 %v467
        %v756 = vunpack.c.l.b16 %v468
        %v757 = vunpack.c.l.b16 %v469
        %v758 = vunpack.c.l.b16 %v470
        %v759 = vunpack.c.l.b16 %v471
        %v760 = vunpack.c.l.b16 %v472
        %v761 = vunpack.c.l.b16 %v473
        %v762 = vunpack.c.l.b16 %v474
        %v763 = vunpack.c.l.b16 %v475
        %v764 = vunpack.c.l.b16 %v476
        %v765 = vunpack.c.l.b16 %v477
        %v766 = vunpack.c.l.b16 %v478
        %v767 = vunpack.c.l.b16 %v479
        %v768 = vunpack.c.l.b16 %v480
        %v769 = vunpack.c.l.b16 %v481
        %v770 = vunpack.c.l.b16 %v482
        %v771 = vunpack.c.l.b16 %v483
        %v772 = vunpack.c.l.b16 %v484
        %v773 = vunpack.c.l.b16 %v485
        %v774 = vunpack.c.l.b16 %v486
        %v775 = vunpack.c.l.b16 %v487
        %v776 = vunpack.c.l.b16 %v488
        %v777 = vunpack.c.l.b16 %v489
        %v778 = vunpack.c.l.b16 %v490
        %v779 = vunpack.c.l.b16 %v491
        %v780 = vunpack.c.l.b16 %v492
        %v781 = vunpack.c.l.b16 %v493
        %v782 = vunpack.c.l.b16 %v494
        %v783 = vunpack.c.l.b16 %v495
        %v784 = vunpack.c.l.b16 %v496
        %v785 = vunpack.c.l.b16 %v497
        %v786 = vunpack.c.l.b16 %v498
        %v787 = vunpack.c.l.b16 %v499
        %v788 = vunpack.c.l.b16 %v500
        %v789 = vunpack.c.l.b16 %v501
        %v790 = vunpack.c.l.b16 %v502
        %v791 = vunpack.c.l.b16 %v503
        %v792 = vunpack.c.l.b16 %v504
        %v793 = vunpack.c.l.b16 %v505
        %v794 = vunpack.c.l.b16 %v506
        %v795 = vunpack.c.l.b16 %v507
        %v796 = vunpack.c.l.b16 %v508
        %v797 = vpack.c.b16 %v734, %v733
        %v798 = vpack.c.b16 %v736, %v735
        %v799 = vpack.c.b16 %v738, %v737
        %v800 = vpack.c.b16 %v740, %v739
        %v801 = vpack.c.b16 %v742, %v741
        %v802 = vpack.c.b16 %v744, %v743
        %v803 = vpack.c.b16 %v746, %v745
        %v804 = vpack.c.b16 %v748, %v747
        %v805 = vpack.c.b16 %v750, %v749
        %v806 = vpack.c.b16 %v752, %v751
        %v807 = vpack.c.b16 %v754, %v753
        %v808 = vpack.c.b16 %v756, %v755
        %v809 = vpack.c.b16 %v758, %v757
        %v810 = vpack.c.b16 %v760, %v759
        %v811 = vpack.c.b16 %v762, %v761
        %v812 = vpack.c.b16 %v764, %v763
        %v813 = vpack.c.b16 %v766, %v765
        %v814 = vpack.c.b16 %v768, %v767
        %v815 = vpack.c.b16 %v770, %v769
        %v816 = vpack.c.b16 %v772, %v771
        %v817 = vpack.c.b16 %v774, %v773
        %v818 = vpack.c.b16 %v776, %v775
        %v819 = vpack.c.b16 %v778, %v777
        %v820 = vpack.c.b16 %v780, %v779
        %v821 = vpack.c.b16 %v782, %v781
        %v822 = vpack.c.b16 %v784, %v783
        %v823 = vpack.c.b16 %v786, %v785
        %v824 = vpack.c.b16 %v788, %v787
        %v825 = vpack.c.b16 %v790, %v789
        %v826 = vpack.c.b16 %v792, %v791
        %v827 = vpack.c.b16 %v794, %v793
        %v828 = vpack.c.b16 %v796, %v795
        %861 = vmatprep.subr.bf16.mxu0 0
        %862 = vmatpush1.bf16.msra.mxu0 %v797
        %863 = vmatprep.subr.bf16.mxu0 0
        %864 = vmatpush1.bf16.msra.mxu0 %v798
        %865 = vmatprep.subr.bf16.mxu0 0
        %866 = vmatpush1.bf16.msra.mxu0 %v799
        %867 = vmatprep.subr.bf16.mxu0 0
        %868 = vmatpush1.bf16.msra.mxu0 %v800
        %869 = vmatprep.subr.bf16.mxu0 0
        %870 = vmatpush1.bf16.msra.mxu0 %v801
        %871 = vmatprep.subr.bf16.mxu0 0
        %872 = vmatpush1.bf16.msra.mxu0 %v802
        %873 = vmatprep.subr.bf16.mxu0 0
        %874 = vmatpush1.bf16.msra.mxu0 %v803
        %875 = vmatprep.subr.bf16.mxu0 0
        %876 = vmatpush1.bf16.msra.mxu0 %v804
        %877 = vmatprep.subr.bf16.mxu0 0
        %878 = vmatpush1.bf16.msra.mxu0 %v805
        %879 = vmatprep.subr.bf16.mxu0 0
        %880 = vmatpush1.bf16.msra.mxu0 %v806
        %881 = vmatprep.subr.bf16.mxu0 0
        %882 = vmatpush1.bf16.msra.mxu0 %v807
        %883 = vmatprep.subr.bf16.mxu0 0
        %884 = vmatpush1.bf16.msra.mxu0 %v808
        %885 = vmatprep.subr.bf16.mxu0 0
        %886 = vmatpush1.bf16.msra.mxu0 %v809
        %887 = vmatprep.subr.bf16.mxu0 0
        %888 = vmatpush1.bf16.msra.mxu0 %v810
        %889 = vmatprep.subr.bf16.mxu0 0
        %890 = vmatpush1.bf16.msra.mxu0 %v811
        %891 = vmatprep.subr.bf16.mxu0 0
        %892 = vmatpush1.bf16.msra.mxu0 %v812
        %893 = vmatprep.mubr.bf16.mxu0 %v606
        %894 = vmatmul.mubr.bf16.gmra.mrb[0].mxu0 %v605
        %v895 = vpop.f32.mrb[0].mxu0
        %v896 = vadd.f32 0.0, %v895
        %v897 = vpop.f32.mrb[0].mxu0
        %v898 = vpop.f32.mrb[0].mxu0
        %v899 = vadd.f32 0.0, %v898
        %v900 = vpop.f32.mrb[0].mxu0
        %901 = vmatprep.mubr.bf16.mxu0 %v610
        %902 = vmatmul.mubr.bf16.gmra.mrb[0].mxu0 %v609
        %v903 = vpop.f32.mrb[0].mxu0
        %v904 = vadd.f32 0.0, %v903
        %v905 = vpop.f32.mrb[0].mxu0
        %v906 = vpop.f32.mrb[0].mxu0
        %v907 = vadd.f32 0.0, %v906
        %v908 = vpop.f32.mrb[0].mxu0
        %909 = vmatprep.mubr.bf16.mxu0 %v614
        %910 = vmatmul.mubr.bf16.gmra.mrb[0].mxu0 %v613
        %v911 = vpop.f32.mrb[0].mxu0
        %v912 = vadd.f32 0.0, %v911
        %v913 = vpop.f32.mrb[0].mxu0
        %v914 = vpop.f32.mrb[0].mxu0
        %v915 = vadd.f32 0.0, %v914
        %v916 = vpop.f32.mrb[0].mxu0
        %917 = vmatprep.mubr.bf16.mxu0 %v618
        %918 = vmatmul.mubr.bf16.gmra.mrb[0].mxu0 %v617
        %v919 = vpop.f32.mrb[0].mxu0
        %v920 = vadd.f32 0.0, %v919
        %v921 = vpop.f32.mrb[0].mxu0
        %v922 = vpop.f32.mrb[0].mxu0
        %v923 = vadd.f32 0.0, %v922
        %v924 = vpop.f32.mrb[0].mxu0
        %925 = vmatprep.mubr.bf16.mxu0 %v622
        %926 = vmatmul.mubr.bf16.gmra.mrb[0].mxu0 %v621
        %v927 = vpop.f32.mrb[0].mxu0
        %v928 = vadd.f32 0.0, %v927
        %v929 = vpop.f32.mrb[0].mxu0
        %v930 = vpop.f32.mrb[0].mxu0
        %v931 = vadd.f32 0.0, %v930
        %v932 = vpop.f32.mrb[0].mxu0
        %933 = vmatprep.mubr.bf16.mxu0 %v626
        %934 = vmatmul.mubr.bf16.gmra.mrb[0].mxu0 %v625
        %v935 = vpop.f32.mrb[0].mxu0
        %v936 = vadd.f32 0.0, %v935
        %v937 = vpop.f32.mrb[0].mxu0
        %v938 = vpop.f32.mrb[0].mxu0
        %v939 = vadd.f32 0.0, %v938
        %v940 = vpop.f32.mrb[0].mxu0
        %941 = vmatprep.mubr.bf16.mxu0 %v630
        %942 = vmatmul.mubr.bf16.gmra.mrb[0].mxu0 %v629
        %v943 = vpop.f32.mrb[0].mxu0
        %v944 = vadd.f32 0.0, %v943
        %v945 = vpop.f32.mrb[0].mxu0
        %v946 = vpop.f32.mrb[0].mxu0
        %v947 = vadd.f32 0.0, %v946
        %v948 = vpop.f32.mrb[0].mxu0
        %949 = vmatprep.mubr.bf16.mxu0 %v634
        %950 = vmatmul.mubr.bf16.gmra.mrb[0].mxu0 %v633
        %v951 = vpop.f32.mrb[0].mxu0
        %v952 = vadd.f32 0.0, %v951
        %v953 = vpop.f32.mrb[0].mxu0
        %v954 = vpop.f32.mrb[0].mxu0
        %v955 = vadd.f32 0.0, %v954
        %v956 = vpop.f32.mrb[0].mxu0
        %957 = vdwg.mxu0
        %958 = vmatprep.subr.bf16.mxu0 0
        %959 = vmatpush1.bf16.msra.mxu0 %v813
        %960 = vmatprep.subr.bf16.mxu0 0
        %961 = vmatpush1.bf16.msra.mxu0 %v814
        %962 = vmatprep.subr.bf16.mxu0 0
        %963 = vmatpush1.bf16.msra.mxu0 %v815
        %964 = vmatprep.subr.bf16.mxu0 0
        %965 = vmatpush1.bf16.msra.mxu0 %v816
        %966 = vmatprep.subr.bf16.mxu0 0
        %967 = vmatpush1.bf16.msra.mxu0 %v817
        %968 = vmatprep.subr.bf16.mxu0 0
        %969 = vmatpush1.bf16.msra.mxu0 %v818
        %970 = vmatprep.subr.bf16.mxu0 0
        %971 = vmatpush1.bf16.msra.mxu0 %v819
        %972 = vmatprep.subr.bf16.mxu0 0
        %973 = vmatpush1.bf16.msra.mxu0 %v820
        %974 = vmatprep.subr.bf16.mxu0 0
        %975 = vmatpush1.bf16.msra.mxu0 %v821
        %976 = vmatprep.subr.bf16.mxu0 0
        %977 = vmatpush1.bf16.msra.mxu0 %v822
        %978 = vmatprep.subr.bf16.mxu0 0
        %979 = vmatpush1.bf16.msra.mxu0 %v823
        %980 = vmatprep.subr.bf16.mxu0 0
        %981 = vmatpush1.bf16.msra.mxu0 %v824
        %982 = vmatprep.subr.bf16.mxu0 0
        %983 = vmatpush1.bf16.msra.mxu0 %v825
        %984 = vmatprep.subr.bf16.mxu0 0
        %985 = vmatpush1.bf16.msra.mxu0 %v826
        %986 = vmatprep.subr.bf16.mxu0 0
        %987 = vmatpush1.bf16.msra.mxu0 %v827
        %988 = vmatprep.subr.bf16.mxu0 0
        %989 = vmatpush1.bf16.msra.mxu0 %v828
        %990 = vmatprep.mubr.bf16.mxu0 %v608
        %991 = vmatmul.mubr.bf16.gmra.mrb[0].mxu0 %v607
        %v992 = vpop.f32.mrb[0].mxu0
        %v993 = vadd.f32 %v896, %v992
        %v994 = vpop.f32.mrb[0].mxu0
        %v995 = vpop.f32.mrb[0].mxu0
        %v996 = vadd.f32 %v899, %v995
        %v997 = vpop.f32.mrb[0].mxu0
        %998 = vmatprep.mubr.bf16.mxu0 %v612
        %999 = vmatmul.mubr.bf16.gmra.mrb[0].mxu0 %v611
        %v1000 = vpop.f32.mrb[0].mxu0
        %v1001 = vadd.f32 %v904, %v1000
        %v1002 = vpop.f32.mrb[0].mxu0
        %v1003 = vpop.f32.mrb[0].mxu0
        %v1004 = vadd.f32 %v907, %v1003
        %v1005 = vpop.f32.mrb[0].mxu0
        %1006 = vmatprep.mubr.bf16.mxu0 %v616
        %1007 = vmatmul.mubr.bf16.gmra.mrb[0].mxu0 %v615
        %v1008 = vpop.f32.mrb[0].mxu0
        %v1009 = vadd.f32 %v912, %v1008
        %v1010 = vpop.f32.mrb[0].mxu0
        %v1011 = vpop.f32.mrb[0].mxu0
        %v1012 = vadd.f32 %v915, %v1011
        %v1013 = vpop.f32.mrb[0].mxu0
        %1014 = vmatprep.mubr.bf16.mxu0 %v620
        %1015 = vmatmul.mubr.bf16.gmra.mrb[0].mxu0 %v619
        %v1016 = vpop.f32.mrb[0].mxu0
        %v1017 = vadd.f32 %v920, %v1016
        %v1018 = vpop.f32.mrb[0].mxu0
        %v1019 = vpop.f32.mrb[0].mxu0
        %v1020 = vadd.f32 %v923, %v1019
        %v1021 = vpop.f32.mrb[0].mxu0
        %1022 = vmatprep.mubr.bf16.mxu0 %v624
        %1023 = vmatmul.mubr.bf16.gmra.mrb[0].mxu0 %v623
        %v1024 = vpop.f32.mrb[0].mxu0
        %v1025 = vadd.f32 %v928, %v1024
        %v1026 = vpop.f32.mrb[0].mxu0
        %v1027 = vpop.f32.mrb[0].mxu0
        %v1028 = vadd.f32 %v931, %v1027
        %v1029 = vpop.f32.mrb[0].mxu0
        %1030 = vmatprep.mubr.bf16.mxu0 %v628
        %1031 = vmatmul.mubr.bf16.gmra.mrb[0].mxu0 %v627
        %v1032 = vpop.f32.mrb[0].mxu0
        %v1033 = vadd.f32 %v936, %v1032
        %v1034 = vpop.f32.mrb[0].mxu0
        %v1035 = vpop.f32.mrb[0].mxu0
        %v1036 = vadd.f32 %v939, %v1035
        %v1037 = vpop.f32.mrb[0].mxu0
        %1038 = vmatprep.mubr.bf16.mxu0 %v632
        %1039 = vmatmul.mubr.bf16.gmra.mrb[0].mxu0 %v631
        %v1040 = vpop.f32.mrb[0].mxu0
        %v1041 = vadd.f32 %v944, %v1040
        %v1042 = vpop.f32.mrb[0].mxu0
        %v1043 = vpop.f32.mrb[0].mxu0
        %v1044 = vadd.f32 %v947, %v1043
        %v1045 = vpop.f32.mrb[0].mxu0
        %1046 = vmatprep.mubr.bf16.mxu0 %v636
        %1047 = vmatmul.mubr.bf16.gmra.mrb[0].mxu0 %v635
        %v1048 = vpop.f32.mrb[0].mxu0
        %v1049 = vadd.f32 %v952, %v1048
        %v1050 = vpop.f32.mrb[0].mxu0
        %v1051 = vpop.f32.mrb[0].mxu0
        %v1052 = vadd.f32 %v955, %v1051
        %v1053 = vpop.f32.mrb[0].mxu0
        %1054 = vdwg.mxu0
        %v1055 = vadd.f32 %v397, %v993
        %v1056 = vadd.f32 %v398, %v996
        %v1057 = vadd.f32 %v399, %v1001
        %v1058 = vadd.f32 %v400, %v1004
        %v1059 = vadd.f32 %v401, %v1009
        %v1060 = vadd.f32 %v402, %v1012
        %v1061 = vadd.f32 %v403, %v1017
        %v1062 = vadd.f32 %v404, %v1020
        %v1063 = vadd.f32 %v405, %v1025
        %v1064 = vadd.f32 %v406, %v1028
        %v1065 = vadd.f32 %v407, %v1033
        %v1066 = vadd.f32 %v408, %v1036
        %v1067 = vadd.f32 %v409, %v1041
        %v1068 = vadd.f32 %v410, %v1044
        %v1069 = vadd.f32 %v411, %v1049
        %v1070 = vadd.f32 %v412, %v1052
        %1071 = vst [vmem:[#allocation2] sm:$0xff] %v1055
        %1072 = vst [vmem:[#allocation2 + $0x8] sm:$0xff] %v1056
        %1073 = vst [vmem:[#allocation2 + $0x10] sm:$0xff] %v1057
        %1074 = vst [vmem:[#allocation2 + $0x18] sm:$0xff] %v1058
        %1075 = vst [vmem:[#allocation2 + $0x20] sm:$0xff] %v1059
        %1076 = vst [vmem:[#allocation2 + $0x28] sm:$0xff] %v1060
        %1077 = vst [vmem:[#allocation2 + $0x30] sm:$0xff] %v1061
        %1078 = vst [vmem:[#allocation2 + $0x38] sm:$0xff] %v1062
        %1079 = vst [vmem:[#allocation2 + $0x40] sm:$0xff] %v1063
        %1080 = vst [vmem:[#allocation2 + $0x48] sm:$0xff] %v1064
        %1081 = vst [vmem:[#allocation2 + $0x50] sm:$0xff] %v1065
        %1082 = vst [vmem:[#allocation2 + $0x58] sm:$0xff] %v1066
        %1083 = vst [vmem:[#allocation2 + $0x60] sm:$0xff] %v1067
        %1084 = vst [vmem:[#allocation2 + $0x68] sm:$0xff] %v1068
        %1085 = vst [vmem:[#allocation2 + $0x70] sm:$0xff] %v1069
        %1086 = vst [vmem:[#allocation2 + $0x78] sm:$0xff] %v1070
        %p1087 = scmp.eq.s32.totalorder %s22, 15
        // Predicated region
        $region64: #{_lambda_.5} parent=54 // pred_check
          %p1088 = pneg %p1087
        $region65: #{_lambda_.5} parent=54 // pred_check_branch
          %1090 = sbr.rel (%p1088) target = $region67
        $region66: #{_lambda_.5} parent=54 // pred_region
          %v1091 = vld [vmem:[#allocation2] sm:$0xff]
          %v1092 = vld [vmem:[#allocation2 + $0x8] sm:$0xff]
          %v1093 = vld [vmem:[#allocation2 + $0x10] sm:$0xff]
          %v1094 = vld [vmem:[#allocation2 + $0x18] sm:$0xff]
          %v1095 = vld [vmem:[#allocation2 + $0x20] sm:$0xff]
          %v1096 = vld [vmem:[#allocation2 + $0x28] sm:$0xff]
          %v1097 = vld [vmem:[#allocation2 + $0x30] sm:$0xff]
          %v1098 = vld [vmem:[#allocation2 + $0x38] sm:$0xff]
          %v1099 = vld [vmem:[#allocation2 + $0x40] sm:$0xff]
          %v1100 = vld [vmem:[#allocation2 + $0x48] sm:$0xff]
          %v1101 = vld [vmem:[#allocation2 + $0x50] sm:$0xff]
          %v1102 = vld [vmem:[#allocation2 + $0x58] sm:$0xff]
          %v1103 = vld [vmem:[#allocation2 + $0x60] sm:$0xff]
          %v1104 = vld [vmem:[#allocation2 + $0x68] sm:$0xff]
          %v1105 = vld [vmem:[#allocation2 + $0x70] sm:$0xff]
          %v1106 = vld [vmem:[#allocation2 + $0x78] sm:$0xff]
          %v1107 = vld [vmem:[%s363] sm:$0x1]
          %v1109 = vlaneseq
          %v1110 = vshrl.u32 %v1109, 7
          %v1111 = vsub.s32 0, %v1110
          %v1112 = vrot.slane %v1107, %v1111
          %v1114 = vmul.f32 %v1091, %v1112
          %v1115 = vmul.f32 %v1092, %v1112
          %v1116 = vmul.f32 %v1093, %v1112
          %v1117 = vmul.f32 %v1094, %v1112
          %v1118 = vmul.f32 %v1095, %v1112
          %v1119 = vmul.f32 %v1096, %v1112
          %v1120 = vmul.f32 %v1097, %v1112
          %v1121 = vmul.f32 %v1098, %v1112
          %v1122 = vmul.f32 %v1099, %v1112
          %v1123 = vmul.f32 %v1100, %v1112
          %v1124 = vmul.f32 %v1101, %v1112
          %v1125 = vmul.f32 %v1102, %v1112
          %v1126 = vmul.f32 %v1103, %v1112
          %v1127 = vmul.f32 %v1104, %v1112
          %v1128 = vmul.f32 %v1105, %v1112
          %v1129 = vmul.f32 %v1106, %v1112
          %v1130 = vld [vmem:[%s366] sm:$0x1]
          %v1132 = vlaneseq
          %v1133 = vshrl.u32 %v1132, 7
          %v1134 = vsub.s32 0, %v1133
          %v1135 = vrot.slane %v1130, %v1134
          %v1137 = vadd.f32 %v1114, %v1135
          %v1138 = vadd.f32 %v1115, %v1135
          %v1139 = vadd.f32 %v1116, %v1135
          %v1140 = vadd.f32 %v1117, %v1135
          %v1141 = vadd.f32 %v1118, %v1135
          %v1142 = vadd.f32 %v1119, %v1135
          %v1143 = vadd.f32 %v1120, %v1135
          %v1144 = vadd.f32 %v1121, %v1135
          %v1145 = vadd.f32 %v1122, %v1135
          %v1146 = vadd.f32 %v1123, %v1135
          %v1147 = vadd.f32 %v1124, %v1135
          %v1148 = vadd.f32 %v1125, %v1135
          %v1149 = vadd.f32 %v1126, %v1135
          %v1150 = vadd.f32 %v1127, %v1135
          %v1151 = vadd.f32 %v1128, %v1135
          %v1152 = vadd.f32 %v1129, %v1135
          %vm1153 = vcmp.gt.f32.partialorder %v1137, 0.0
          %vm1154 = vcmp.gt.f32.partialorder %v1138, 0.0
          %vm1155 = vcmp.gt.f32.partialorder %v1139, 0.0
          %vm1156 = vcmp.gt.f32.partialorder %v1140, 0.0
          %vm1157 = vcmp.gt.f32.partialorder %v1141, 0.0
          %vm1158 = vcmp.gt.f32.partialorder %v1142, 0.0
          %vm1159 = vcmp.gt.f32.partialorder %v1143, 0.0
          %vm1160 = vcmp.gt.f32.partialorder %v1144, 0.0
          %vm1161 = vcmp.gt.f32.partialorder %v1145, 0.0
          %vm1162 = vcmp.gt.f32.partialorder %v1146, 0.0
          %vm1163 = vcmp.gt.f32.partialorder %v1147, 0.0
          %vm1164 = vcmp.gt.f32.partialorder %v1148, 0.0
          %vm1165 = vcmp.gt.f32.partialorder %v1149, 0.0
          %vm1166 = vcmp.gt.f32.partialorder %v1150, 0.0
          %vm1167 = vcmp.gt.f32.partialorder %v1151, 0.0
          %vm1168 = vcmp.gt.f32.partialorder %v1152, 0.0
          %v1169 = vmul.f32 %v1137, 0.2
          %v1170 = vmul.f32 %v1138, 0.2
          %v1171 = vmul.f32 %v1139, 0.2
          %v1172 = vmul.f32 %v1140, 0.2
          %v1173 = vmul.f32 %v1141, 0.2
          %v1174 = vmul.f32 %v1142, 0.2
          %v1175 = vmul.f32 %v1143, 0.2
          %v1176 = vmul.f32 %v1144, 0.2
          %v1177 = vmul.f32 %v1145, 0.2
          %v1178 = vmul.f32 %v1146, 0.2
          %v1179 = vmul.f32 %v1147, 0.2
          %v1180 = vmul.f32 %v1148, 0.2
          %v1181 = vmul.f32 %v1149, 0.2
          %v1182 = vmul.f32 %v1150, 0.2
          %v1183 = vmul.f32 %v1151, 0.2
          %v1184 = vmul.f32 %v1152, 0.2
          %v1185 = vsel %vm1153, %v1137, %v1169
          %v1186 = vsel %vm1154, %v1138, %v1170
          %v1187 = vsel %vm1155, %v1139, %v1171
          %v1188 = vsel %vm1156, %v1140, %v1172
          %v1189 = vsel %vm1157, %v1141, %v1173
          %v1190 = vsel %vm1158, %v1142, %v1174
          %v1191 = vsel %vm1159, %v1143, %v1175
          %v1192 = vsel %vm1160, %v1144, %v1176
          %v1193 = vsel %vm1161, %v1145, %v1177
          %v1194 = vsel %vm1162, %v1146, %v1178
          %v1195 = vsel %vm1163, %v1147, %v1179
          %v1196 = vsel %vm1164, %v1148, %v1180
          %v1197 = vsel %vm1165, %v1149, %v1181
          %v1198 = vsel %vm1166, %v1150, %v1182
          %v1199 = vsel %vm1167, %v1151, %v1183
          %v1200 = vsel %vm1168, %v1152, %v1184
          %v1201 = vpack.c.bf16 %v1186, %v1185
          %v1202 = vpack.c.bf16 %v1188, %v1187
          %v1203 = vpack.c.bf16 %v1190, %v1189
          %v1204 = vpack.c.bf16 %v1192, %v1191
          %v1205 = vpack.c.bf16 %v1194, %v1193
          %v1206 = vpack.c.bf16 %v1196, %v1195
          %v1207 = vpack.c.bf16 %v1198, %v1197
          %v1208 = vpack.c.bf16 %v1200, %v1199
          %v1217 = vunpack.c.l.b16 %v1201
          %v1218 = vunpack.c.h.b16 %v1201
          %v1219 = vunpack.c.l.b16 %v1202
          %v1220 = vunpack.c.h.b16 %v1202
          %v1221 = vunpack.c.l.b16 %v1203
          %v1222 = vunpack.c.h.b16 %v1203
          %v1223 = vunpack.c.l.b16 %v1204
          %v1224 = vunpack.c.h.b16 %v1204
          %v1225 = vunpack.c.l.b16 %v1205
          %v1226 = vunpack.c.h.b16 %v1205
          %v1227 = vunpack.c.l.b16 %v1206
          %v1228 = vunpack.c.h.b16 %v1206
          %v1229 = vunpack.c.l.b16 %v1207
          %v1230 = vunpack.c.h.b16 %v1207
          %v1231 = vunpack.c.l.b16 %v1208
          %v1232 = vunpack.c.h.b16 %v1208
          %v1233 = vpack.c.b16 %v1217, %v1217
          %v1234 = vpack.c.b16 %v1218, %v1218
          %v1235 = vpack.c.b16 %v1219, %v1219
          %v1236 = vpack.c.b16 %v1220, %v1220
          %v1237 = vpack.c.b16 %v1221, %v1221
          %v1238 = vpack.c.b16 %v1222, %v1222
          %v1239 = vpack.c.b16 %v1223, %v1223
          %v1240 = vpack.c.b16 %v1224, %v1224
          %v1241 = vpack.c.b16 %v1225, %v1225
          %v1242 = vpack.c.b16 %v1226, %v1226
          %v1243 = vpack.c.b16 %v1227, %v1227
          %v1244 = vpack.c.b16 %v1228, %v1228
          %v1245 = vpack.c.b16 %v1229, %v1229
          %v1246 = vpack.c.b16 %v1230, %v1230
          %v1247 = vpack.c.b16 %v1231, %v1231
          %v1248 = vpack.c.b16 %v1232, %v1232
          %1265 = vst [vmem:[%s374] sm:$0xf] %v1233
          %1266 = vst [vmem:[%s374 + $0x4] sm:$0xf] %v1234
          %1267 = vst [vmem:[%s374 + $0x8] sm:$0xf] %v1235
          %1268 = vst [vmem:[%s374 + $0xc] sm:$0xf] %v1236
          %1269 = vst [vmem:[%s374 + $0x10] sm:$0xf] %v1237
          %1270 = vst [vmem:[%s374 + $0x14] sm:$0xf] %v1238
          %1271 = vst [vmem:[%s374 + $0x18] sm:$0xf] %v1239
          %1272 = vst [vmem:[%s374 + $0x1c] sm:$0xf] %v1240
          %1273 = vst [vmem:[%s374 + $0x20] sm:$0xf] %v1241
          %1274 = vst [vmem:[%s374 + $0x24] sm:$0xf] %v1242
          %1275 = vst [vmem:[%s374 + $0x28] sm:$0xf] %v1243
          %1276 = vst [vmem:[%s374 + $0x2c] sm:$0xf] %v1244
          %1277 = vst [vmem:[%s374 + $0x30] sm:$0xf] %v1245
          %1278 = vst [vmem:[%s374 + $0x34] sm:$0xf] %v1246
          %1279 = vst [vmem:[%s374 + $0x38] sm:$0xf] %v1247
          %1280 = vst [vmem:[%s374 + $0x3c] sm:$0xf] %v1248
        $region67: #{_lambda_.5} parent=54 // pred_fallthru
          _
        %s1281 = smul.u32 16, %s20
        %p1282 = scmp.lt.s32.totalorder %s1281, 15
        %s1283 = scalar_select %p1282, %s1281, 15
        %p1284 = scmp.lt.s32.totalorder %s21, 0
        %s1285 = scalar_select %p1284, %s21, 0
        %s1286 = sadd.s32 %s1285, %s1283
        %s1287 = smul.addr %s1286, 4
        %s1288 = scalar_lea.vmem %s4, %s1287
        // Predicated region
        $region68: #{_lambda_.5} parent=54 // pred_check
          %p1289 = pneg %p162
        $region69: #{_lambda_.5} parent=54 // pred_check_branch
          %1291 = sbr.rel (%p1289) target = $region71
        $region70: #{_lambda_.5} parent=54 // pred_region
          %s1292 = smul.u32 16, %s20
        $region71: #{_lambda_.5} parent=54 // pred_fallthru
          _
        // Predicated region
        $region72: #{_lambda_.5} parent=54 // pred_check
          %p1293 = pneg %p162
        $region73: #{_lambda_.5} parent=54 // pred_check_branch
          %1295 = sbr.rel (%p1293) target = $region75
        $region74: #{_lambda_.5} parent=54 // pred_region
          %s1296 = smul.u32 16, %s20
          %p1297 = scmp.lt.s32.totalorder %s1296, 15
          %s1298 = scalar_select %p1297, %s1296, 15
          %p1299 = scmp.lt.s32.totalorder %s21, 0
          %s1300 = scalar_select %p1299, %s21, 0
          %s1301 = sadd.s32 %s1300, %s1298
          %s1302 = smul.addr %s1301, 4
          %s1303 = scalar_lea.vmem %s4, %s1302
        $region75: #{_lambda_.5} parent=54 // pred_fallthru
          _
      $region55: #{_lambda_.5} parent=5 // pred_fallthru
        _
      %p1304 = scmp.le.s32.totalorder 2, %s10
      // Predicated region
      $region76: #{_lambda_.5} parent=5 // pred_check
        %p1305 = pneg %p1304
      $region77: #{_lambda_.5} parent=5 // pred_check_branch
        %1307 = sbr.rel (%p1305) target = $region79
      $region78: #{_lambda_.5} parent=5 // pred_region
        %s1308 = ssub.s32 %s10, 2
      $region79: #{_lambda_.5} parent=5 // pred_fallthru
        _
    $region6: #{_lambda_.5} parent=1 // loop_footer
      %s14 = sadd.s32 1, %s10
    $region7: #{_lambda_.5} parent=1 // loop_footer_branch
      %9 = sbr.rel target = $region3
    $region8: #{_lambda_.5} parent=1 // loop_exit
      _

</llo_original>
